<compile_context>
chip_gen: v6e
topology: v6e:2x2x1
jax: 0.10.0
libtpu: 0.0.40
codegen_flags: <defaults>
</compile_context>

<pallas_src>
import functools

import jax
import jax.numpy as jnp
from jax.experimental import pallas as pl
from jax.experimental.pallas import tpu as pltpu

MHU = 1.5  # self.mhu in the PyTorch module


def _lstm_chunk_kernel(x_ref, h0_ref, c0_ref, wx_ref, wht_ref, d_ref, b_ref,
                       y_ref, hf_ref, cf_ref, *, hidden_size, state_dim, chunk):
    """One grid step == `chunk` timesteps of one batch block.

    hf_ref / cf_ref are the (Bb, H) hidden/cell carries, VMEM-resident across
    the inner ("arbitrary") time-chunk grid axis.
    """
    H = hidden_size
    K = chunk
    tb = pl.program_id(1)                      # time-chunk index (recurrence)

    @pl.when(tb == 0)
    def _init():
        hf_ref[...] = h0_ref[...]
        cf_ref[...] = c0_ref[...]

    Bb = x_ref.shape[0]
    I = x_ref.shape[2]

    # ---- hoisted non-recurrent input path: one big matmul + bias per chunk ---
    # (Bb*K, I) @ (I, 4H) + b; replaces K tiny per-step MXU pushes and the
    # per-step bias broadcast.  K % 8 == 0 (or K == T) keeps the reshapes
    # layout-trivial.  For very large H*K the compiler spills zx to VMEM, which
    # is the intended residency anyway.
    xb = x_ref[...].reshape(Bb * K, I)
    zx = jnp.dot(xb, wx_ref[...], preferred_element_type=jnp.float32) + b_ref[...]
    zx = zx.reshape(Bb, K, 4 * H)              # (Bb, K, 4H) chunk pre-activations

    h = hf_ref[...]                            # (Bb, H) carry h_{t-1}
    c = cf_ref[...]                            # (Bb, H) carry c_{t-1}

    # Global timestep 0 lives in chunk 0 only; gate for the tau-fold correction.
    t0 = (tb == 0).astype(jnp.float32)

    for s in range(K):                         # unrolled: static indices, LLO-visible
        # Recurrent path: weight fed straight from the ref to the dot so Mosaic
        # can bound its live range (no value hoisted across the unrolled body).
        z = zx[:, s, :] + jnp.dot(h, wht_ref[...],
                                  preferred_element_type=jnp.float32)  # (Bb, 4H)

        if s == 0:
            # Global t == 0 skips the physics update: undo the tau fold with a
            # rank-`state_dim` correction (pure VPU, once per chunk, zero when
            # tau is None or tb > 0).
            corr = h[:, 0:1] * d_ref[0:1, :]
            for r in range(1, state_dim):
                corr = corr + h[:, r:r + 1] * d_ref[r:r + 1, :]
            z = z - t0 * corr

        # sigmoid(x) = 0.5*tanh(x/2) + 0.5; the 0.5 pre-scale of the i/f/o
        # columns is folded into the weights, so one tanh covers all 4 gates.
        t_act = jnp.tanh(z)
        i_g = 0.5 * t_act[:, 0 * H:1 * H] + 0.5
        f_g = 0.5 * t_act[:, 1 * H:2 * H] + 0.5
        g_g = t_act[:, 2 * H:3 * H]
        o_g = 0.5 * t_act[:, 3 * H:4 * H] + 0.5

        c = f_g * c + i_g * g_g
        h = o_g * jnp.tanh(c)

        # Store timestep s into the lane-dense (Bb, K*H) output block (VMEM);
        # the HBM writeback is one K*H-lane DMA per chunk.
        y_ref[:, s * H:(s + 1) * H] = h.astype(y_ref.dtype)

    hf_ref[...] = h.astype(hf_ref.dtype)
    cf_ref[...] = c.astype(cf_ref.dtype)


def _num_tensorcores():
    """2 on dual-TensorCore chips (v7x), 1 otherwise; safe fallback is 1."""
    try:
        kind = jax.devices()[0].device_kind.lower()
    except Exception:
        return 1
    if "v7" in kind or "tpu7" in kind:
        return 2
    return 1


def _pick_batch_block(B, num_cores):
    """v5e/v6e (single TC): never split the batch -- splitting only serializes
    more grid steps with smaller matmul M.  v7x: exactly one block per TC."""
    if num_cores >= 2 and B % 2 == 0 and (B // 2) % 8 == 0:
        return B // 2
    return B


def _pick_time_chunk(T, H, target=32):
    """Largest K <= target with T % K == 0, K % 8 == 0 and (K*H) % 128 == 0."""
    if T <= target:
        return T
    k = (min(target, T) // 8) * 8
    while k >= 8:
        if T % k == 0 and (k * H) % 128 == 0:
            return k
        k -= 8
    return T  # whole sequence in one block (block dims == full dims: always legal)


def _vmem_limit_bytes(Bb, K, I, H, state_dim):
    """Size the VMEM limit from actual buffers, clamped to 75% of capacity."""
    f32 = 4
    dbuf = 2                                          # BlockSpec double-buffering
    x_bytes = Bb * K * I * f32 * dbuf
    y_bytes = Bb * K * H * f32 * dbuf
    w_bytes = (I + H + state_dim + 1) * 4 * H * f32 * dbuf
    carry_bytes = 4 * Bb * H * f32 * dbuf             # h0, c0, h_f, c_f blocks
    zx_bytes = Bb * K * 4 * H * f32                   # chunk pre-activations / spill
    need = x_bytes + y_bytes + w_bytes + carry_bytes + zx_bytes
    try:
        cap = int(pltpu.get_tpu_info().vmem_capacity_bytes)
    except Exception:
        cap = 64 * 1024 * 1024                        # v7x-safe fallback
    limit = max(int(need * 1.5) + (4 << 20), 32 << 20)
    return int(min(limit, cap * 3 // 4))


def lstm_pallas(x_btI, h0, c0, wx, wh, b, *, tau, state_dim, time_chunk=32):
    """Forward LSTM with the tau 'physics' state update.

    x_btI: (B, T, I) batch_first.  h0/c0: (1, B, H).
    wx: (I, 4H), wh: (H, 4H), b: (1, 4H) -- fused gates in order i, f, g, o
    (the module's Linear biases and the extra zero-init b_* fold into b exactly).
    Returns (outputs (B, T, H) f32, (h_final (1,B,H), c_final (1,B,H))).
    """
    B, T, I = x_btI.shape
    H = h0.shape[-1]
    f32 = jnp.float32

    wx = wx.astype(f32)
    wh = wh.astype(f32)
    b = b.astype(f32).reshape(1, 4 * H)

    # --- fold the tau physics update into the recurrent weights ---------------
    # h_mod = h @ M with M = I_H + tau*A_pad (A in the top-left state_dim block),
    # so h_mod @ Wh == h @ (M @ Wh): only the first `state_dim` rows change.
    # D = tau*(A @ Wh[:sd]) is the rank-sd delta removed again at global t == 0.
    if tau is not None:
        assert state_dim == 2, "physics matrix A is hard-coded 2x2 in the module"
        A = jnp.array([[MHU, -MHU], [1.0 / MHU, 0.0]], dtype=f32)
        delta = tau * (A @ wh[:state_dim, :])          # (state_dim, 4H)
        wh_tau = wh.at[:state_dim, :].add(delta)
    else:
        state_dim = 2 if state_dim is None else state_dim
        delta = jnp.zeros((state_dim, 4 * H), dtype=f32)
        wh_tau = wh

    # --- fold the sigmoid-via-tanh 0.5 pre-scale into the i/f/o columns -------
    col_scale = jnp.concatenate([
        jnp.full((2 * H,), 0.5, f32),   # i, f (sigmoid)
        jnp.ones((H,), f32),            # g (tanh, unscaled)
        jnp.full((H,), 0.5, f32),       # o (sigmoid)
    ])[None, :]
    wx_s = wx * col_scale
    wht_s = wh_tau * col_scale
    d_s = delta * col_scale
    b_s = b * col_scale

    h0_2d = h0[0].astype(f32)
    c0_2d = c0[0].astype(f32)

    K = _pick_time_chunk(T, H, time_chunk)
    Bb = _pick_batch_block(B, _num_tensorcores())
    NB, NT = B // Bb, T // K
    assert NB * Bb == B and NT * K == T

    kernel = functools.partial(_lstm_chunk_kernel, hidden_size=H,
                               state_dim=state_dim, chunk=K)

    y_flat, h_f, c_f = pl.pallas_call(
        kernel,
        out_shape=(jax.ShapeDtypeStruct((B, T * H), f32),   # lane-dense output
                   jax.ShapeDtypeStruct((B, H), f32),
                   jax.ShapeDtypeStruct((B, H), f32)),
        grid_spec=pltpu.PrefetchScalarGridSpec(
            num_scalar_prefetch=0,
            grid=(NB, NT),
            in_specs=[
                pl.BlockSpec((Bb, K, I), lambda bb, tb: (bb, tb, 0)),       # x chunk
                pl.BlockSpec((Bb, H), lambda bb, tb: (bb, 0)),              # h0
                pl.BlockSpec((Bb, H), lambda bb, tb: (bb, 0)),              # c0
                pl.BlockSpec((I, 4 * H), lambda bb, tb: (0, 0)),            # Wx (scaled)
                pl.BlockSpec((H, 4 * H), lambda bb, tb: (0, 0)),            # Wh_tau (scaled)
                pl.BlockSpec((state_dim, 4 * H), lambda bb, tb: (0, 0)),    # t==0 correction
                pl.BlockSpec((1, 4 * H), lambda bb, tb: (0, 0)),            # bias (scaled)
            ],
            out_specs=(
                pl.BlockSpec((Bb, K * H), lambda bb, tb: (bb, tb)),         # outputs chunk
                pl.BlockSpec((Bb, H), lambda bb, tb: (bb, 0)),              # final h carry
                pl.BlockSpec((Bb, H), lambda bb, tb: (bb, 0)),              # final c carry
            ),
        ),
        compiler_params=pltpu.CompilerParams(
            # batch blocks are independent (2 TCs on v7x); time is a recurrence
            dimension_semantics=("parallel", "arbitrary"),
            vmem_limit_bytes=_vmem_limit_bytes(Bb, K, I, H, state_dim),
        ),
    )(x_btI.astype(f32), h0_2d, c0_2d, wx_s, wht_s, d_s, b_s)

    outputs = y_flat.reshape(B, T, H)           # row-major reshape: no data movement
    return outputs, (h_f[None].astype(h0.dtype), c_f[None].astype(c0.dtype))


def lstm_reference(x_btI, h0, c0, wx, wh, b, *, tau, state_dim):
    """Pure-JAX reference mirroring the PyTorch forward."""
    B, T, _ = x_btI.shape
    H = h0.shape[-1]
    A = jnp.array([[MHU, -MHU], [1.0 / MHU, 0.0]], dtype=jnp.float32)
    h = h0[0]
    c = c0[0]
    ys = []
    for t in range(T):
        if tau is not None and t != 0:
            xs = h[:, :state_dim]
            xs = xs + tau * xs @ A
            h = jnp.concatenate([xs, h[:, state_dim:]], axis=-1)
        u = x_btI[:, t, :]
        z = u @ wx + h @ wh + b
        i = jax.nn.sigmoid(z[:, :H])
        f = jax.nn.sigmoid(z[:, H:2 * H])
        g = jnp.tanh(z[:, 2 * H:3 * H])
        o = jax.nn.sigmoid(z[:, 3 * H:])
        c = f * c + i * g
        h = o * jnp.tanh(c)
        ys.append(h)
    return jnp.stack(ys, axis=1), (h[None], c[None])


if __name__ == "__main__":
    # Small shapes: batch=16, seq=16, input_size=8, hidden_size=32, state_dim=2.
    B, T, I, H = 16, 16, 8, 32
    state_dim = 2
    tau = 0.1

    key = jax.random.PRNGKey(0)
    kx, kh, kc, kwx, kwh, kb = jax.random.split(key, 6)

    x = jax.random.normal(kx, (B, T, I), dtype=jnp.float32)
    h0 = jax.random.normal(kh, (1, B, H), dtype=jnp.float32) * 0.1
    c0 = jax.random.normal(kc, (1, B, H), dtype=jnp.float32) * 0.1

    # Fused gate weights (gate order i, f, g, o). The module's extra b_* params
    # are zero-initialized, so folding them into the Linear biases is exact.
    wx = jax.random.normal(kwx, (I, 4 * H), dtype=jnp.float32) * 0.2
    wh = jax.random.normal(kwh, (H, 4 * H), dtype=jnp.float32) * 0.2
    b = jax.random.normal(kb, (1, 4 * H), dtype=jnp.float32) * 0.1

    configs = [
        dict(tau=tau, time_chunk=32),   # whole sequence in one chunk (default path)
        dict(tau=tau, time_chunk=8),    # 2 time chunks: exercises carry + t==0 gate
        dict(tau=None, time_chunk=8),   # no physics update path
    ]
    for cfg in configs:
        out, (hf, cf) = lstm_pallas(x, h0, c0, wx, wh, b,
                                    tau=cfg["tau"], state_dim=state_dim,
                                    time_chunk=cfg["time_chunk"])
        out = jax.block_until_ready(out)
        hf = jax.block_until_ready(hf)
        cf = jax.block_until_ready(cf)

        ref_out, (ref_hf, ref_cf) = lstm_reference(
            x, h0, c0, wx, wh, b, tau=cfg["tau"], state_dim=state_dim)

        assert out.shape == (B, T, H) and hf.shape == (1, B, H) and cf.shape == (1, B, H)
        # Weight folding (tau into Wh) and the tanh-based sigmoid change the fp
        # association slightly vs. the reference -> slightly loosened tolerance.
        assert jnp.allclose(out, ref_out, atol=1e-4, rtol=1e-4), \
            float(jnp.max(jnp.abs(out - ref_out)))
        assert jnp.allclose(hf, ref_hf, atol=1e-4, rtol=1e-4)
        assert jnp.allclose(cf, ref_cf, atol=1e-4, rtol=1e-4)

    print("KERNEL_OK")
</pallas_src>

<mosaic_0001>
module attributes {stable_mosaic.version = 11 : i64} {
  func.func @_lstm_chunk_kernel(%arg0: i32, %arg1: i32, %arg2: memref<16x16x8xf32, #tpu.memory_space<vmem>>, %arg3: memref<16x32xf32, #tpu.memory_space<vmem>>, %arg4: memref<16x32xf32, #tpu.memory_space<vmem>>, %arg5: memref<8x128xf32, #tpu.memory_space<vmem>>, %arg6: memref<32x128xf32, #tpu.memory_space<vmem>>, %arg7: memref<2x128xf32, #tpu.memory_space<vmem>>, %arg8: memref<1x128xf32, #tpu.memory_space<vmem>>, %arg9: memref<16x512xf32, #tpu.memory_space<vmem>>, %arg10: memref<16x32xf32, #tpu.memory_space<vmem>>, %arg11: memref<16x32xf32, #tpu.memory_space<vmem>>) attributes {dimension_semantics = [#tpu.dimension_semantics<parallel>, #tpu.dimension_semantics<arbitrary>], iteration_bounds = array<i64: 1, 1>, scalar_prefetch = 0 : i64, scratch_operands = 0 : i64, tpu.core_type = #tpu.core_type<tc>, window_params = [{transform_indices = @transform_0, window_bounds = array<i64: 16, 16, 8>}, {transform_indices = @transform_1, window_bounds = array<i64: 16, 32>}, {transform_indices = @transform_2, window_bounds = array<i64: 16, 32>}, {pipeline_mode = #tpu.pipeline_mode<synchronous>, transform_indices = @transform_3, window_bounds = array<i64: 8, 128>}, {pipeline_mode = #tpu.pipeline_mode<synchronous>, transform_indices = @transform_4, window_bounds = array<i64: 32, 128>}, {pipeline_mode = #tpu.pipeline_mode<synchronous>, transform_indices = @transform_5, window_bounds = array<i64: 2, 128>}, {pipeline_mode = #tpu.pipeline_mode<synchronous>, transform_indices = @transform_6, window_bounds = array<i64: 1, 128>}, {transform_indices = @transform_7, window_bounds = array<i64: 16, 512>}, {transform_indices = @transform_8, window_bounds = array<i64: 16, 32>}, {transform_indices = @transform_9, window_bounds = array<i64: 16, 32>}]} {
    %c0_i32 = arith.constant 0 : i32
    %0 = arith.cmpi eq, %arg1, %c0_i32 : i32
    %1 = arith.extui %0 : i1 to i32
    %c0_i32_0 = arith.constant 0 : i32
    %2 = arith.cmpi ne, %1, %c0_i32_0 : i32
    scf.if %2 {
      %c0_180 = arith.constant 0 : index
      %c0_181 = arith.constant 0 : index
      %480 = vector.load %arg3[%c0_180, %c0_181] : memref<16x32xf32, #tpu.memory_space<vmem>>, vector<16x32xf32>
      %c0_182 = arith.constant 0 : index
      %c0_183 = arith.constant 0 : index
      %481 = vector.load %arg10[%c0_182, %c0_183] : memref<16x32xf32, #tpu.memory_space<vmem>>, vector<16x32xf32>
      tpu.vector_store %arg10[%c0_182, %c0_183], %480 {strides = array<i32>} : memref<16x32xf32, #tpu.memory_space<vmem>>, vector<16x32xf32>,
      %c0_184 = arith.constant 0 : index
      %c0_185 = arith.constant 0 : index
      %482 = vector.load %arg4[%c0_184, %c0_185] : memref<16x32xf32, #tpu.memory_space<vmem>>, vector<16x32xf32>
      %c0_186 = arith.constant 0 : index
      %c0_187 = arith.constant 0 : index
      %483 = vector.load %arg11[%c0_186, %c0_187] : memref<16x32xf32, #tpu.memory_space<vmem>>, vector<16x32xf32>
      tpu.vector_store %arg11[%c0_186, %c0_187], %482 {strides = array<i32>} : memref<16x32xf32, #tpu.memory_space<vmem>>, vector<16x32xf32>,
    } else {
    }
    %c0 = arith.constant 0 : index
    %c0_1 = arith.constant 0 : index
    %c0_2 = arith.constant 0 : index
    %3 = vector.load %arg2[%c0, %c0_1, %c0_2] : memref<16x16x8xf32, #tpu.memory_space<vmem>>, vector<16x16x8xf32>
    %4 = vector.shape_cast %3 : vector<16x16x8xf32> to vector<256x8xf32>
    %c0_3 = arith.constant 0 : index
    %c0_4 = arith.constant 0 : index
    %5 = vector.load %arg5[%c0_3, %c0_4] : memref<8x128xf32, #tpu.memory_space<vmem>>, vector<8x128xf32>
    %cst = arith.constant dense<0.000000e+00> : vector<256x128xf32>
    %6 = tpu.matmul %4, %5, %cst {dimension_numbers = #tpu.dot_dimension_numbers<[1], [0], [0], [1], [0, 0, 1, 1], [], []>} : vector<256x8xf32>, vector<8x128xf32>, vector<256x128xf32> -> vector<256x128xf32>
    %c0_5 = arith.constant 0 : index
    %c0_6 = arith.constant 0 : index
    %7 = vector.load %arg8[%c0_5, %c0_6] : memref<1x128xf32, #tpu.memory_space<vmem>>, vector<1x128xf32>
    %8 = vector.broadcast %7 : vector<1x128xf32> to vector<256x128xf32>
    %9 = arith.addf %6, %8 : vector<256x128xf32>
    %10 = vector.shape_cast %9 : vector<256x128xf32> to vector<16x16x128xf32>
    %c0_7 = arith.constant 0 : index
    %c0_8 = arith.constant 0 : index
    %11 = vector.load %arg10[%c0_7, %c0_8] : memref<16x32xf32, #tpu.memory_space<vmem>>, vector<16x32xf32>
    %c0_9 = arith.constant 0 : index
    %c0_10 = arith.constant 0 : index
    %12 = vector.load %arg11[%c0_9, %c0_10] : memref<16x32xf32, #tpu.memory_space<vmem>>, vector<16x32xf32>
    %c0_i32_11 = arith.constant 0 : i32
    %13 = arith.cmpi eq, %arg1, %c0_i32_11 : i32
    %14 = arith.extui %13 : i1 to i32
    %15 = arith.sitofp %14 : i32 to f32
    %16 = vector.extract_strided_slice %10 {offsets = [0, 0, 0], sizes = [16, 1, 128], strides = [1, 1, 1]} : vector<16x16x128xf32> to vector<16x1x128xf32>
    %17 = vector.shape_cast %16 : vector<16x1x128xf32> to vector<16x128xf32>
    %c0_12 = arith.constant 0 : index
    %c0_13 = arith.constant 0 : index
    %18 = vector.load %arg6[%c0_12, %c0_13] : memref<32x128xf32, #tpu.memory_space<vmem>>, vector<32x128xf32>
    %cst_14 = arith.constant dense<0.000000e+00> : vector<16x128xf32>
    %19 = tpu.matmul %11, %18, %cst_14 {dimension_numbers = #tpu.dot_dimension_numbers<[1], [0], [0], [1], [0, 0, 1, 1], [], []>} : vector<16x32xf32>, vector<32x128xf32>, vector<16x128xf32> -> vector<16x128xf32>
    %20 = arith.addf %17, %19 : vector<16x128xf32>
    %21 = vector.extract_strided_slice %11 {offsets = [0, 0], sizes = [16, 1], strides = [1, 1]} : vector<16x32xf32> to vector<16x1xf32>
    %c0_15 = arith.constant 0 : index
    %c0_16 = arith.constant 0 : index
    %22 = vector.load %arg7[%c0_15, %c0_16] : memref<2x128xf32, #tpu.memory_space<vmem>>, vector<1x128xf32>
    %23 = vector.broadcast %21 : vector<16x1xf32> to vector<16x128xf32>
    %24 = vector.broadcast %22 : vector<1x128xf32> to vector<16x128xf32>
    %25 = arith.mulf %23, %24 : vector<16x128xf32>
    %26 = vector.extract_strided_slice %11 {offsets = [0, 1], sizes = [16, 1], strides = [1, 1]} : vector<16x32xf32> to vector<16x1xf32>
    %c1 = arith.constant 1 : index
    %c0_17 = arith.constant 0 : index
    %27 = vector.load %arg7[%c1, %c0_17] : memref<2x128xf32, #tpu.memory_space<vmem>>, vector<1x128xf32>
    %28 = vector.broadcast %26 : vector<16x1xf32> to vector<16x128xf32>
    %29 = vector.broadcast %27 : vector<1x128xf32> to vector<16x128xf32>
    %30 = arith.mulf %28, %29 : vector<16x128xf32>
    %31 = arith.addf %25, %30 : vector<16x128xf32>
    %32 = vector.broadcast %15 : f32 to vector<16x128xf32>
    %33 = arith.mulf %32, %31 : vector<16x128xf32>
    %34 = arith.subf %20, %33 : vector<16x128xf32>
    %35 = math.tanh %34 : vector<16x128xf32>
    %36 = vector.extract_strided_slice %35 {offsets = [0, 0], sizes = [16, 32], strides = [1, 1]} : vector<16x128xf32> to vector<16x32xf32>
    %cst_18 = arith.constant 5.000000e-01 : f32
    %37 = vector.broadcast %cst_18 : f32 to vector<16x32xf32>
    %38 = arith.mulf %37, %36 : vector<16x32xf32>
    %cst_19 = arith.constant 5.000000e-01 : f32
    %39 = vector.broadcast %cst_19 : f32 to vector<16x32xf32>
    %40 = arith.addf %38, %39 : vector<16x32xf32>
    %41 = vector.extract_strided_slice %35 {offsets = [0, 32], sizes = [16, 32], strides = [1, 1]} : vector<16x128xf32> to vector<16x32xf32>
    %cst_20 = arith.constant 5.000000e-01 : f32
    %42 = vector.broadcast %cst_20 : f32 to vector<16x32xf32>
    %43 = arith.mulf %42, %41 : vector<16x32xf32>
    %cst_21 = arith.constant 5.000000e-01 : f32
    %44 = vector.broadcast %cst_21 : f32 to vector<16x32xf32>
    %45 = arith.addf %43, %44 : vector<16x32xf32>
    %46 = vector.extract_strided_slice %35 {offsets = [0, 64], sizes = [16, 32], strides = [1, 1]} : vector<16x128xf32> to vector<16x32xf32>
    %47 = vector.extract_strided_slice %35 {offsets = [0, 96], sizes = [16, 32], strides = [1, 1]} : vector<16x128xf32> to vector<16x32xf32>
    %cst_22 = arith.constant 5.000000e-01 : f32
    %48 = vector.broadcast %cst_22 : f32 to vector<16x32xf32>
    %49 = arith.mulf %48, %47 : vector<16x32xf32>
    %cst_23 = arith.constant 5.000000e-01 : f32
    %50 = vector.broadcast %cst_23 : f32 to vector<16x32xf32>
    %51 = arith.addf %49, %50 : vector<16x32xf32>
    %52 = arith.mulf %45, %12 : vector<16x32xf32>
    %53 = arith.mulf %40, %46 : vector<16x32xf32>
    %54 = arith.addf %52, %53 : vector<16x32xf32>
    %55 = math.tanh %54 : vector<16x32xf32>
    %56 = arith.mulf %51, %55 : vector<16x32xf32>
    %c0_24 = arith.constant 0 : index
    %c0_25 = arith.constant 0 : index
    %57 = vector.load %arg9[%c0_24, %c0_25] : memref<16x512xf32, #tpu.memory_space<vmem>>, vector<16x32xf32>
    tpu.vector_store %arg9[%c0_24, %c0_25], %56 {strides = array<i32>} : memref<16x512xf32, #tpu.memory_space<vmem>>, vector<16x32xf32>,
    %58 = vector.extract_strided_slice %10 {offsets = [0, 1, 0], sizes = [16, 1, 128], strides = [1, 1, 1]} : vector<16x16x128xf32> to vector<16x1x128xf32>
    %59 = vector.shape_cast %58 : vector<16x1x128xf32> to vector<16x128xf32>
    %c0_26 = arith.constant 0 : index
    %c0_27 = arith.constant 0 : index
    %60 = vector.load %arg6[%c0_26, %c0_27] : memref<32x128xf32, #tpu.memory_space<vmem>>, vector<32x128xf32>
    %cst_28 = arith.constant dense<0.000000e+00> : vector<16x128xf32>
    %61 = tpu.matmul %56, %60, %cst_28 {dimension_numbers = #tpu.dot_dimension_numbers<[1], [0], [0], [1], [0, 0, 1, 1], [], []>} : vector<16x32xf32>, vector<32x128xf32>, vector<16x128xf32> -> vector<16x128xf32>
    %62 = arith.addf %59, %61 : vector<16x128xf32>
    %63 = math.tanh %62 : vector<16x128xf32>
    %64 = vector.extract_strided_slice %63 {offsets = [0, 0], sizes = [16, 32], strides = [1, 1]} : vector<16x128xf32> to vector<16x32xf32>
    %cst_29 = arith.constant 5.000000e-01 : f32
    %65 = vector.broadcast %cst_29 : f32 to vector<16x32xf32>
    %66 = arith.mulf %65, %64 : vector<16x32xf32>
    %cst_30 = arith.constant 5.000000e-01 : f32
    %67 = vector.broadcast %cst_30 : f32 to vector<16x32xf32>
    %68 = arith.addf %66, %67 : vector<16x32xf32>
    %69 = vector.extract_strided_slice %63 {offsets = [0, 32], sizes = [16, 32], strides = [1, 1]} : vector<16x128xf32> to vector<16x32xf32>
    %cst_31 = arith.constant 5.000000e-01 : f32
    %70 = vector.broadcast %cst_31 : f32 to vector<16x32xf32>
    %71 = arith.mulf %70, %69 : vector<16x32xf32>
    %cst_32 = arith.constant 5.000000e-01 : f32
    %72 = vector.broadcast %cst_32 : f32 to vector<16x32xf32>
    %73 = arith.addf %71, %72 : vector<16x32xf32>
    %74 = vector.extract_strided_slice %63 {offsets = [0, 64], sizes = [16, 32], strides = [1, 1]} : vector<16x128xf32> to vector<16x32xf32>
    %75 = vector.extract_strided_slice %63 {offsets = [0, 96], sizes = [16, 32], strides = [1, 1]} : vector<16x128xf32> to vector<16x32xf32>
    %cst_33 = arith.constant 5.000000e-01 : f32
    %76 = vector.broadcast %cst_33 : f32 to vector<16x32xf32>
    %77 = arith.mulf %76, %75 : vector<16x32xf32>
    %cst_34 = arith.constant 5.000000e-01 : f32
    %78 = vector.broadcast %cst_34 : f32 to vector<16x32xf32>
    %79 = arith.addf %77, %78 : vector<16x32xf32>
    %80 = arith.mulf %73, %54 : vector<16x32xf32>
    %81 = arith.mulf %68, %74 : vector<16x32xf32>
    %82 = arith.addf %80, %81 : vector<16x32xf32>
    %83 = math.tanh %82 : vector<16x32xf32>
    %84 = arith.mulf %79, %83 : vector<16x32xf32>
    %c0_35 = arith.constant 0 : index
    %c32 = arith.constant 32 : index
    %85 = vector.load %arg9[%c0_35, %c32] : memref<16x512xf32, #tpu.memory_space<vmem>>, vector<16x32xf32>
    tpu.vector_store %arg9[%c0_35, %c32], %84 {strides = array<i32>} : memref<16x512xf32, #tpu.memory_space<vmem>>, vector<16x32xf32>,
    %86 = vector.extract_strided_slice %10 {offsets = [0, 2, 0], sizes = [16, 1, 128], strides = [1, 1, 1]} : vector<16x16x128xf32> to vector<16x1x128xf32>
    %87 = vector.shape_cast %86 : vector<16x1x128xf32> to vector<16x128xf32>
    %c0_36 = arith.constant 0 : index
    %c0_37 = arith.constant 0 : index
    %88 = vector.load %arg6[%c0_36, %c0_37] : memref<32x128xf32, #tpu.memory_space<vmem>>, vector<32x128xf32>
    %cst_38 = arith.constant dense<0.000000e+00> : vector<16x128xf32>
    %89 = tpu.matmul %84, %88, %cst_38 {dimension_numbers = #tpu.dot_dimension_numbers<[1], [0], [0], [1], [0, 0, 1, 1], [], []>} : vector<16x32xf32>, vector<32x128xf32>, vector<16x128xf32> -> vector<16x128xf32>
    %90 = arith.addf %87, %89 : vector<16x128xf32>
    %91 = math.tanh %90 : vector<16x128xf32>
    %92 = vector.extract_strided_slice %91 {offsets = [0, 0], sizes = [16, 32], strides = [1, 1]} : vector<16x128xf32> to vector<16x32xf32>
    %cst_39 = arith.constant 5.000000e-01 : f32
    %93 = vector.broadcast %cst_39 : f32 to vector<16x32xf32>
    %94 = arith.mulf %93, %92 : vector<16x32xf32>
    %cst_40 = arith.constant 5.000000e-01 : f32
    %95 = vector.broadcast %cst_40 : f32 to vector<16x32xf32>
    %96 = arith.addf %94, %95 : vector<16x32xf32>
    %97 = vector.extract_strided_slice %91 {offsets = [0, 32], sizes = [16, 32], strides = [1, 1]} : vector<16x128xf32> to vector<16x32xf32>
    %cst_41 = arith.constant 5.000000e-01 : f32
    %98 = vector.broadcast %cst_41 : f32 to vector<16x32xf32>
    %99 = arith.mulf %98, %97 : vector<16x32xf32>
    %cst_42 = arith.constant 5.000000e-01 : f32
    %100 = vector.broadcast %cst_42 : f32 to vector<16x32xf32>
    %101 = arith.addf %99, %100 : vector<16x32xf32>
    %102 = vector.extract_strided_slice %91 {offsets = [0, 64], sizes = [16, 32], strides = [1, 1]} : vector<16x128xf32> to vector<16x32xf32>
    %103 = vector.extract_strided_slice %91 {offsets = [0, 96], sizes = [16, 32], strides = [1, 1]} : vector<16x128xf32> to vector<16x32xf32>
    %cst_43 = arith.constant 5.000000e-01 : f32
    %104 = vector.broadcast %cst_43 : f32 to vector<16x32xf32>
    %105 = arith.mulf %104, %103 : vector<16x32xf32>
    %cst_44 = arith.constant 5.000000e-01 : f32
    %106 = vector.broadcast %cst_44 : f32 to vector<16x32xf32>
    %107 = arith.addf %105, %106 : vector<16x32xf32>
    %108 = arith.mulf %101, %82 : vector<16x32xf32>
    %109 = arith.mulf %96, %102 : vector<16x32xf32>
    %110 = arith.addf %108, %109 : vector<16x32xf32>
    %111 = math.tanh %110 : vector<16x32xf32>
    %112 = arith.mulf %107, %111 : vector<16x32xf32>
    %c0_45 = arith.constant 0 : index
    %c64 = arith.constant 64 : index
    %113 = vector.load %arg9[%c0_45, %c64] : memref<16x512xf32, #tpu.memory_space<vmem>>, vector<16x32xf32>
    tpu.vector_store %arg9[%c0_45, %c64], %112 {strides = array<i32>} : memref<16x512xf32, #tpu.memory_space<vmem>>, vector<16x32xf32>,
    %114 = vector.extract_strided_slice %10 {offsets = [0, 3, 0], sizes = [16, 1, 128], strides = [1, 1, 1]} : vector<16x16x128xf32> to vector<16x1x128xf32>
    %115 = vector.shape_cast %114 : vector<16x1x128xf32> to vector<16x128xf32>
    %c0_46 = arith.constant 0 : index
    %c0_47 = arith.constant 0 : index
    %116 = vector.load %arg6[%c0_46, %c0_47] : memref<32x128xf32, #tpu.memory_space<vmem>>, vector<32x128xf32>
    %cst_48 = arith.constant dense<0.000000e+00> : vector<16x128xf32>
    %117 = tpu.matmul %112, %116, %cst_48 {dimension_numbers = #tpu.dot_dimension_numbers<[1], [0], [0], [1], [0, 0, 1, 1], [], []>} : vector<16x32xf32>, vector<32x128xf32>, vector<16x128xf32> -> vector<16x128xf32>
    %118 = arith.addf %115, %117 : vector<16x128xf32>
    %119 = math.tanh %118 : vector<16x128xf32>
    %120 = vector.extract_strided_slice %119 {offsets = [0, 0], sizes = [16, 32], strides = [1, 1]} : vector<16x128xf32> to vector<16x32xf32>
    %cst_49 = arith.constant 5.000000e-01 : f32
    %121 = vector.broadcast %cst_49 : f32 to vector<16x32xf32>
    %122 = arith.mulf %121, %120 : vector<16x32xf32>
    %cst_50 = arith.constant 5.000000e-01 : f32
    %123 = vector.broadcast %cst_50 : f32 to vector<16x32xf32>
    %124 = arith.addf %122, %123 : vector<16x32xf32>
    %125 = vector.extract_strided_slice %119 {offsets = [0, 32], sizes = [16, 32], strides = [1, 1]} : vector<16x128xf32> to vector<16x32xf32>
    %cst_51 = arith.constant 5.000000e-01 : f32
    %126 = vector.broadcast %cst_51 : f32 to vector<16x32xf32>
    %127 = arith.mulf %126, %125 : vector<16x32xf32>
    %cst_52 = arith.constant 5.000000e-01 : f32
    %128 = vector.broadcast %cst_52 : f32 to vector<16x32xf32>
    %129 = arith.addf %127, %128 : vector<16x32xf32>
    %130 = vector.extract_strided_slice %119 {offsets = [0, 64], sizes = [16, 32], strides = [1, 1]} : vector<16x128xf32> to vector<16x32xf32>
    %131 = vector.extract_strided_slice %119 {offsets = [0, 96], sizes = [16, 32], strides = [1, 1]} : vector<16x128xf32> to vector<16x32xf32>
    %cst_53 = arith.constant 5.000000e-01 : f32
    %132 = vector.broadcast %cst_53 : f32 to vector<16x32xf32>
    %133 = arith.mulf %132, %131 : vector<16x32xf32>
    %cst_54 = arith.constant 5.000000e-01 : f32
    %134 = vector.broadcast %cst_54 : f32 to vector<16x32xf32>
    %135 = arith.addf %133, %134 : vector<16x32xf32>
    %136 = arith.mulf %129, %110 : vector<16x32xf32>
    %137 = arith.mulf %124, %130 : vector<16x32xf32>
    %138 = arith.addf %136, %137 : vector<16x32xf32>
    %139 = math.tanh %138 : vector<16x32xf32>
    %140 = arith.mulf %135, %139 : vector<16x32xf32>
    %c0_55 = arith.constant 0 : index
    %c96 = arith.constant 96 : index
    %141 = vector.load %arg9[%c0_55, %c96] : memref<16x512xf32, #tpu.memory_space<vmem>>, vector<16x32xf32>
    tpu.vector_store %arg9[%c0_55, %c96], %140 {strides = array<i32>} : memref<16x512xf32, #tpu.memory_space<vmem>>, vector<16x32xf32>,
    %142 = vector.extract_strided_slice %10 {offsets = [0, 4, 0], sizes = [16, 1, 128], strides = [1, 1, 1]} : vector<16x16x128xf32> to vector<16x1x128xf32>
    %143 = vector.shape_cast %142 : vector<16x1x128xf32> to vector<16x128xf32>
    %c0_56 = arith.constant 0 : index
    %c0_57 = arith.constant 0 : index
    %144 = vector.load %arg6[%c0_56, %c0_57] : memref<32x128xf32, #tpu.memory_space<vmem>>, vector<32x128xf32>
    %cst_58 = arith.constant dense<0.000000e+00> : vector<16x128xf32>
    %145 = tpu.matmul %140, %144, %cst_58 {dimension_numbers = #tpu.dot_dimension_numbers<[1], [0], [0], [1], [0, 0, 1, 1], [], []>} : vector<16x32xf32>, vector<32x128xf32>, vector<16x128xf32> -> vector<16x128xf32>
    %146 = arith.addf %143, %145 : vector<16x128xf32>
    %147 = math.tanh %146 : vector<16x128xf32>
    %148 = vector.extract_strided_slice %147 {offsets = [0, 0], sizes = [16, 32], strides = [1, 1]} : vector<16x128xf32> to vector<16x32xf32>
    %cst_59 = arith.constant 5.000000e-01 : f32
    %149 = vector.broadcast %cst_59 : f32 to vector<16x32xf32>
    %150 = arith.mulf %149, %148 : vector<16x32xf32>
    %cst_60 = arith.constant 5.000000e-01 : f32
    %151 = vector.broadcast %cst_60 : f32 to vector<16x32xf32>
    %152 = arith.addf %150, %151 : vector<16x32xf32>
    %153 = vector.extract_strided_slice %147 {offsets = [0, 32], sizes = [16, 32], strides = [1, 1]} : vector<16x128xf32> to vector<16x32xf32>
    %cst_61 = arith.constant 5.000000e-01 : f32
    %154 = vector.broadcast %cst_61 : f32 to vector<16x32xf32>
    %155 = arith.mulf %154, %153 : vector<16x32xf32>
    %cst_62 = arith.constant 5.000000e-01 : f32
    %156 = vector.broadcast %cst_62 : f32 to vector<16x32xf32>
    %157 = arith.addf %155, %156 : vector<16x32xf32>
    %158 = vector.extract_strided_slice %147 {offsets = [0, 64], sizes = [16, 32], strides = [1, 1]} : vector<16x128xf32> to vector<16x32xf32>
    %159 = vector.extract_strided_slice %147 {offsets = [0, 96], sizes = [16, 32], strides = [1, 1]} : vector<16x128xf32> to vector<16x32xf32>
    %cst_63 = arith.constant 5.000000e-01 : f32
    %160 = vector.broadcast %cst_63 : f32 to vector<16x32xf32>
    %161 = arith.mulf %160, %159 : vector<16x32xf32>
    %cst_64 = arith.constant 5.000000e-01 : f32
    %162 = vector.broadcast %cst_64 : f32 to vector<16x32xf32>
    %163 = arith.addf %161, %162 : vector<16x32xf32>
    %164 = arith.mulf %157, %138 : vector<16x32xf32>
    %165 = arith.mulf %152, %158 : vector<16x32xf32>
    %166 = arith.addf %164, %165 : vector<16x32xf32>
    %167 = math.tanh %166 : vector<16x32xf32>
    %168 = arith.mulf %163, %167 : vector<16x32xf32>
    %c0_65 = arith.constant 0 : index
    %c128 = arith.constant 128 : index
    %169 = vector.load %arg9[%c0_65, %c128] : memref<16x512xf32, #tpu.memory_space<vmem>>, vector<16x32xf32>
    tpu.vector_store %arg9[%c0_65, %c128], %168 {strides = array<i32>} : memref<16x512xf32, #tpu.memory_space<vmem>>, vector<16x32xf32>,
    %170 = vector.extract_strided_slice %10 {offsets = [0, 5, 0], sizes = [16, 1, 128], strides = [1, 1, 1]} : vector<16x16x128xf32> to vector<16x1x128xf32>
    %171 = vector.shape_cast %170 : vector<16x1x128xf32> to vector<16x128xf32>
    %c0_66 = arith.constant 0 : index
    %c0_67 = arith.constant 0 : index
    %172 = vector.load %arg6[%c0_66, %c0_67] : memref<32x128xf32, #tpu.memory_space<vmem>>, vector<32x128xf32>
    %cst_68 = arith.constant dense<0.000000e+00> : vector<16x128xf32>
    %173 = tpu.matmul %168, %172, %cst_68 {dimension_numbers = #tpu.dot_dimension_numbers<[1], [0], [0], [1], [0, 0, 1, 1], [], []>} : vector<16x32xf32>, vector<32x128xf32>, vector<16x128xf32> -> vector<16x128xf32>
    %174 = arith.addf %171, %173 : vector<16x128xf32>
    %175 = math.tanh %174 : vector<16x128xf32>
    %176 = vector.extract_strided_slice %175 {offsets = [0, 0], sizes = [16, 32], strides = [1, 1]} : vector<16x128xf32> to vector<16x32xf32>
    %cst_69 = arith.constant 5.000000e-01 : f32
    %177 = vector.broadcast %cst_69 : f32 to vector<16x32xf32>
    %178 = arith.mulf %177, %176 : vector<16x32xf32>
    %cst_70 = arith.constant 5.000000e-01 : f32
    %179 = vector.broadcast %cst_70 : f32 to vector<16x32xf32>
    %180 = arith.addf %178, %179 : vector<16x32xf32>
    %181 = vector.extract_strided_slice %175 {offsets = [0, 32], sizes = [16, 32], strides = [1, 1]} : vector<16x128xf32> to vector<16x32xf32>
    %cst_71 = arith.constant 5.000000e-01 : f32
    %182 = vector.broadcast %cst_71 : f32 to vector<16x32xf32>
    %183 = arith.mulf %182, %181 : vector<16x32xf32>
    %cst_72 = arith.constant 5.000000e-01 : f32
    %184 = vector.broadcast %cst_72 : f32 to vector<16x32xf32>
    %185 = arith.addf %183, %184 : vector<16x32xf32>
    %186 = vector.extract_strided_slice %175 {offsets = [0, 64], sizes = [16, 32], strides = [1, 1]} : vector<16x128xf32> to vector<16x32xf32>
    %187 = vector.extract_strided_slice %175 {offsets = [0, 96], sizes = [16, 32], strides = [1, 1]} : vector<16x128xf32> to vector<16x32xf32>
    %cst_73 = arith.constant 5.000000e-01 : f32
    %188 = vector.broadcast %cst_73 : f32 to vector<16x32xf32>
    %189 = arith.mulf %188, %187 : vector<16x32xf32>
    %cst_74 = arith.constant 5.000000e-01 : f32
    %190 = vector.broadcast %cst_74 : f32 to vector<16x32xf32>
    %191 = arith.addf %189, %190 : vector<16x32xf32>
    %192 = arith.mulf %185, %166 : vector<16x32xf32>
    %193 = arith.mulf %180, %186 : vector<16x32xf32>
    %194 = arith.addf %192, %193 : vector<16x32xf32>
    %195 = math.tanh %194 : vector<16x32xf32>
    %196 = arith.mulf %191, %195 : vector<16x32xf32>
    %c0_75 = arith.constant 0 : index
    %c160 = arith.constant 160 : index
    %197 = vector.load %arg9[%c0_75, %c160] : memref<16x512xf32, #tpu.memory_space<vmem>>, vector<16x32xf32>
    tpu.vector_store %arg9[%c0_75, %c160], %196 {strides = array<i32>} : memref<16x512xf32, #tpu.memory_space<vmem>>, vector<16x32xf32>,
    %198 = vector.extract_strided_slice %10 {offsets = [0, 6, 0], sizes = [16, 1, 128], strides = [1, 1, 1]} : vector<16x16x128xf32> to vector<16x1x128xf32>
    %199 = vector.shape_cast %198 : vector<16x1x128xf32> to vector<16x128xf32>
    %c0_76 = arith.constant 0 : index
    %c0_77 = arith.constant 0 : index
    %200 = vector.load %arg6[%c0_76, %c0_77] : memref<32x128xf32, #tpu.memory_space<vmem>>, vector<32x128xf32>
    %cst_78 = arith.constant dense<0.000000e+00> : vector<16x128xf32>
    %201 = tpu.matmul %196, %200, %cst_78 {dimension_numbers = #tpu.dot_dimension_numbers<[1], [0], [0], [1], [0, 0, 1, 1], [], []>} : vector<16x32xf32>, vector<32x128xf32>, vector<16x128xf32> -> vector<16x128xf32>
    %202 = arith.addf %199, %201 : vector<16x128xf32>
    %203 = math.tanh %202 : vector<16x128xf32>
    %204 = vector.extract_strided_slice %203 {offsets = [0, 0], sizes = [16, 32], strides = [1, 1]} : vector<16x128xf32> to vector<16x32xf32>
    %cst_79 = arith.constant 5.000000e-01 : f32
    %205 = vector.broadcast %cst_79 : f32 to vector<16x32xf32>
    %206 = arith.mulf %205, %204 : vector<16x32xf32>
    %cst_80 = arith.constant 5.000000e-01 : f32
    %207 = vector.broadcast %cst_80 : f32 to vector<16x32xf32>
    %208 = arith.addf %206, %207 : vector<16x32xf32>
    %209 = vector.extract_strided_slice %203 {offsets = [0, 32], sizes = [16, 32], strides = [1, 1]} : vector<16x128xf32> to vector<16x32xf32>
    %cst_81 = arith.constant 5.000000e-01 : f32
    %210 = vector.broadcast %cst_81 : f32 to vector<16x32xf32>
    %211 = arith.mulf %210, %209 : vector<16x32xf32>
    %cst_82 = arith.constant 5.000000e-01 : f32
    %212 = vector.broadcast %cst_82 : f32 to vector<16x32xf32>
    %213 = arith.addf %211, %212 : vector<16x32xf32>
    %214 = vector.extract_strided_slice %203 {offsets = [0, 64], sizes = [16, 32], strides = [1, 1]} : vector<16x128xf32> to vector<16x32xf32>
    %215 = vector.extract_strided_slice %203 {offsets = [0, 96], sizes = [16, 32], strides = [1, 1]} : vector<16x128xf32> to vector<16x32xf32>
    %cst_83 = arith.constant 5.000000e-01 : f32
    %216 = vector.broadcast %cst_83 : f32 to vector<16x32xf32>
    %217 = arith.mulf %216, %215 : vector<16x32xf32>
    %cst_84 = arith.constant 5.000000e-01 : f32
    %218 = vector.broadcast %cst_84 : f32 to vector<16x32xf32>
    %219 = arith.addf %217, %218 : vector<16x32xf32>
    %220 = arith.mulf %213, %194 : vector<16x32xf32>
    %221 = arith.mulf %208, %214 : vector<16x32xf32>
    %222 = arith.addf %220, %221 : vector<16x32xf32>
    %223 = math.tanh %222 : vector<16x32xf32>
    %224 = arith.mulf %219, %223 : vector<16x32xf32>
    %c0_85 = arith.constant 0 : index
    %c192 = arith.constant 192 : index
    %225 = vector.load %arg9[%c0_85, %c192] : memref<16x512xf32, #tpu.memory_space<vmem>>, vector<16x32xf32>
    tpu.vector_store %arg9[%c0_85, %c192], %224 {strides = array<i32>} : memref<16x512xf32, #tpu.memory_space<vmem>>, vector<16x32xf32>,
    %226 = vector.extract_strided_slice %10 {offsets = [0, 7, 0], sizes = [16, 1, 128], strides = [1, 1, 1]} : vector<16x16x128xf32> to vector<16x1x128xf32>
    %227 = vector.shape_cast %226 : vector<16x1x128xf32> to vector<16x128xf32>
    %c0_86 = arith.constant 0 : index
    %c0_87 = arith.constant 0 : index
    %228 = vector.load %arg6[%c0_86, %c0_87] : memref<32x128xf32, #tpu.memory_space<vmem>>, vector<32x128xf32>
    %cst_88 = arith.constant dense<0.000000e+00> : vector<16x128xf32>
    %229 = tpu.matmul %224, %228, %cst_88 {dimension_numbers = #tpu.dot_dimension_numbers<[1], [0], [0], [1], [0, 0, 1, 1], [], []>} : vector<16x32xf32>, vector<32x128xf32>, vector<16x128xf32> -> vector<16x128xf32>
    %230 = arith.addf %227, %229 : vector<16x128xf32>
    %231 = math.tanh %230 : vector<16x128xf32>
    %232 = vector.extract_strided_slice %231 {offsets = [0, 0], sizes = [16, 32], strides = [1, 1]} : vector<16x128xf32> to vector<16x32xf32>
    %cst_89 = arith.constant 5.000000e-01 : f32
    %233 = vector.broadcast %cst_89 : f32 to vector<16x32xf32>
    %234 = arith.mulf %233, %232 : vector<16x32xf32>
    %cst_90 = arith.constant 5.000000e-01 : f32
    %235 = vector.broadcast %cst_90 : f32 to vector<16x32xf32>
    %236 = arith.addf %234, %235 : vector<16x32xf32>
    %237 = vector.extract_strided_slice %231 {offsets = [0, 32], sizes = [16, 32], strides = [1, 1]} : vector<16x128xf32> to vector<16x32xf32>
    %cst_91 = arith.constant 5.000000e-01 : f32
    %238 = vector.broadcast %cst_91 : f32 to vector<16x32xf32>
    %239 = arith.mulf %238, %237 : vector<16x32xf32>
    %cst_92 = arith.constant 5.000000e-01 : f32
    %240 = vector.broadcast %cst_92 : f32 to vector<16x32xf32>
    %241 = arith.addf %239, %240 : vector<16x32xf32>
    %242 = vector.extract_strided_slice %231 {offsets = [0, 64], sizes = [16, 32], strides = [1, 1]} : vector<16x128xf32> to vector<16x32xf32>
    %243 = vector.extract_strided_slice %231 {offsets = [0, 96], sizes = [16, 32], strides = [1, 1]} : vector<16x128xf32> to vector<16x32xf32>
    %cst_93 = arith.constant 5.000000e-01 : f32
    %244 = vector.broadcast %cst_93 : f32 to vector<16x32xf32>
    %245 = arith.mulf %244, %243 : vector<16x32xf32>
    %cst_94 = arith.constant 5.000000e-01 : f32
    %246 = vector.broadcast %cst_94 : f32 to vector<16x32xf32>
    %247 = arith.addf %245, %246 : vector<16x32xf32>
    %248 = arith.mulf %241, %222 : vector<16x32xf32>
    %249 = arith.mulf %236, %242 : vector<16x32xf32>
    %250 = arith.addf %248, %249 : vector<16x32xf32>
    %251 = math.tanh %250 : vector<16x32xf32>
    %252 = arith.mulf %247, %251 : vector<16x32xf32>
    %c0_95 = arith.constant 0 : index
    %c224 = arith.constant 224 : index
    %253 = vector.load %arg9[%c0_95, %c224] : memref<16x512xf32, #tpu.memory_space<vmem>>, vector<16x32xf32>
    tpu.vector_store %arg9[%c0_95, %c224], %252 {strides = array<i32>} : memref<16x512xf32, #tpu.memory_space<vmem>>, vector<16x32xf32>,
    %254 = vector.extract_strided_slice %10 {offsets = [0, 8, 0], sizes = [16, 1, 128], strides = [1, 1, 1]} : vector<16x16x128xf32> to vector<16x1x128xf32>
    %255 = vector.shape_cast %254 : vector<16x1x128xf32> to vector<16x128xf32>
    %c0_96 = arith.constant 0 : index
    %c0_97 = arith.constant 0 : index
    %256 = vector.load %arg6[%c0_96, %c0_97] : memref<32x128xf32, #tpu.memory_space<vmem>>, vector<32x128xf32>
    %cst_98 = arith.constant dense<0.000000e+00> : vector<16x128xf32>
    %257 = tpu.matmul %252, %256, %cst_98 {dimension_numbers = #tpu.dot_dimension_numbers<[1], [0], [0], [1], [0, 0, 1, 1], [], []>} : vector<16x32xf32>, vector<32x128xf32>, vector<16x128xf32> -> vector<16x128xf32>
    %258 = arith.addf %255, %257 : vector<16x128xf32>
    %259 = math.tanh %258 : vector<16x128xf32>
    %260 = vector.extract_strided_slice %259 {offsets = [0, 0], sizes = [16, 32], strides = [1, 1]} : vector<16x128xf32> to vector<16x32xf32>
    %cst_99 = arith.constant 5.000000e-01 : f32
    %261 = vector.broadcast %cst_99 : f32 to vector<16x32xf32>
    %262 = arith.mulf %261, %260 : vector<16x32xf32>
    %cst_100 = arith.constant 5.000000e-01 : f32
    %263 = vector.broadcast %cst_100 : f32 to vector<16x32xf32>
    %264 = arith.addf %262, %263 : vector<16x32xf32>
    %265 = vector.extract_strided_slice %259 {offsets = [0, 32], sizes = [16, 32], strides = [1, 1]} : vector<16x128xf32> to vector<16x32xf32>
    %cst_101 = arith.constant 5.000000e-01 : f32
    %266 = vector.broadcast %cst_101 : f32 to vector<16x32xf32>
    %267 = arith.mulf %266, %265 : vector<16x32xf32>
    %cst_102 = arith.constant 5.000000e-01 : f32
    %268 = vector.broadcast %cst_102 : f32 to vector<16x32xf32>
    %269 = arith.addf %267, %268 : vector<16x32xf32>
    %270 = vector.extract_strided_slice %259 {offsets = [0, 64], sizes = [16, 32], strides = [1, 1]} : vector<16x128xf32> to vector<16x32xf32>
    %271 = vector.extract_strided_slice %259 {offsets = [0, 96], sizes = [16, 32], strides = [1, 1]} : vector<16x128xf32> to vector<16x32xf32>
    %cst_103 = arith.constant 5.000000e-01 : f32
    %272 = vector.broadcast %cst_103 : f32 to vector<16x32xf32>
    %273 = arith.mulf %272, %271 : vector<16x32xf32>
    %cst_104 = arith.constant 5.000000e-01 : f32
    %274 = vector.broadcast %cst_104 : f32 to vector<16x32xf32>
    %275 = arith.addf %273, %274 : vector<16x32xf32>
    %276 = arith.mulf %269, %250 : vector<16x32xf32>
    %277 = arith.mulf %264, %270 : vector<16x32xf32>
    %278 = arith.addf %276, %277 : vector<16x32xf32>
    %279 = math.tanh %278 : vector<16x32xf32>
    %280 = arith.mulf %275, %279 : vector<16x32xf32>
    %c0_105 = arith.constant 0 : index
    %c256 = arith.constant 256 : index
    %281 = vector.load %arg9[%c0_105, %c256] : memref<16x512xf32, #tpu.memory_space<vmem>>, vector<16x32xf32>
    tpu.vector_store %arg9[%c0_105, %c256], %280 {strides = array<i32>} : memref<16x512xf32, #tpu.memory_space<vmem>>, vector<16x32xf32>,
    %282 = vector.extract_strided_slice %10 {offsets = [0, 9, 0], sizes = [16, 1, 128], strides = [1, 1, 1]} : vector<16x16x128xf32> to vector<16x1x128xf32>
    %283 = vector.shape_cast %282 : vector<16x1x128xf32> to vector<16x128xf32>
    %c0_106 = arith.constant 0 : index
    %c0_107 = arith.constant 0 : index
    %284 = vector.load %arg6[%c0_106, %c0_107] : memref<32x128xf32, #tpu.memory_space<vmem>>, vector<32x128xf32>
    %cst_108 = arith.constant dense<0.000000e+00> : vector<16x128xf32>
    %285 = tpu.matmul %280, %284, %cst_108 {dimension_numbers = #tpu.dot_dimension_numbers<[1], [0], [0], [1], [0, 0, 1, 1], [], []>} : vector<16x32xf32>, vector<32x128xf32>, vector<16x128xf32> -> vector<16x128xf32>
    %286 = arith.addf %283, %285 : vector<16x128xf32>
    %287 = math.tanh %286 : vector<16x128xf32>
    %288 = vector.extract_strided_slice %287 {offsets = [0, 0], sizes = [16, 32], strides = [1, 1]} : vector<16x128xf32> to vector<16x32xf32>
    %cst_109 = arith.constant 5.000000e-01 : f32
    %289 = vector.broadcast %cst_109 : f32 to vector<16x32xf32>
    %290 = arith.mulf %289, %288 : vector<16x32xf32>
    %cst_110 = arith.constant 5.000000e-01 : f32
    %291 = vector.broadcast %cst_110 : f32 to vector<16x32xf32>
    %292 = arith.addf %290, %291 : vector<16x32xf32>
    %293 = vector.extract_strided_slice %287 {offsets = [0, 32], sizes = [16, 32], strides = [1, 1]} : vector<16x128xf32> to vector<16x32xf32>
    %cst_111 = arith.constant 5.000000e-01 : f32
    %294 = vector.broadcast %cst_111 : f32 to vector<16x32xf32>
    %295 = arith.mulf %294, %293 : vector<16x32xf32>
    %cst_112 = arith.constant 5.000000e-01 : f32
    %296 = vector.broadcast %cst_112 : f32 to vector<16x32xf32>
    %297 = arith.addf %295, %296 : vector<16x32xf32>
    %298 = vector.extract_strided_slice %287 {offsets = [0, 64], sizes = [16, 32], strides = [1, 1]} : vector<16x128xf32> to vector<16x32xf32>
    %299 = vector.extract_strided_slice %287 {offsets = [0, 96], sizes = [16, 32], strides = [1, 1]} : vector<16x128xf32> to vector<16x32xf32>
    %cst_113 = arith.constant 5.000000e-01 : f32
    %300 = vector.broadcast %cst_113 : f32 to vector<16x32xf32>
    %301 = arith.mulf %300, %299 : vector<16x32xf32>
    %cst_114 = arith.constant 5.000000e-01 : f32
    %302 = vector.broadcast %cst_114 : f32 to vector<16x32xf32>
    %303 = arith.addf %301, %302 : vector<16x32xf32>
    %304 = arith.mulf %297, %278 : vector<16x32xf32>
    %305 = arith.mulf %292, %298 : vector<16x32xf32>
    %306 = arith.addf %304, %305 : vector<16x32xf32>
    %307 = math.tanh %306 : vector<16x32xf32>
    %308 = arith.mulf %303, %307 : vector<16x32xf32>
    %c0_115 = arith.constant 0 : index
    %c288 = arith.constant 288 : index
    %309 = vector.load %arg9[%c0_115, %c288] : memref<16x512xf32, #tpu.memory_space<vmem>>, vector<16x32xf32>
    tpu.vector_store %arg9[%c0_115, %c288], %308 {strides = array<i32>} : memref<16x512xf32, #tpu.memory_space<vmem>>, vector<16x32xf32>,
    %310 = vector.extract_strided_slice %10 {offsets = [0, 10, 0], sizes = [16, 1, 128], strides = [1, 1, 1]} : vector<16x16x128xf32> to vector<16x1x128xf32>
    %311 = vector.shape_cast %310 : vector<16x1x128xf32> to vector<16x128xf32>
    %c0_116 = arith.constant 0 : index
    %c0_117 = arith.constant 0 : index
    %312 = vector.load %arg6[%c0_116, %c0_117] : memref<32x128xf32, #tpu.memory_space<vmem>>, vector<32x128xf32>
    %cst_118 = arith.constant dense<0.000000e+00> : vector<16x128xf32>
    %313 = tpu.matmul %308, %312, %cst_118 {dimension_numbers = #tpu.dot_dimension_numbers<[1], [0], [0], [1], [0, 0, 1, 1], [], []>} : vector<16x32xf32>, vector<32x128xf32>, vector<16x128xf32> -> vector<16x128xf32>
    %314 = arith.addf %311, %313 : vector<16x128xf32>
    %315 = math.tanh %314 : vector<16x128xf32>
    %316 = vector.extract_strided_slice %315 {offsets = [0, 0], sizes = [16, 32], strides = [1, 1]} : vector<16x128xf32> to vector<16x32xf32>
    %cst_119 = arith.constant 5.000000e-01 : f32
    %317 = vector.broadcast %cst_119 : f32 to vector<16x32xf32>
    %318 = arith.mulf %317, %316 : vector<16x32xf32>
    %cst_120 = arith.constant 5.000000e-01 : f32
    %319 = vector.broadcast %cst_120 : f32 to vector<16x32xf32>
    %320 = arith.addf %318, %319 : vector<16x32xf32>
    %321 = vector.extract_strided_slice %315 {offsets = [0, 32], sizes = [16, 32], strides = [1, 1]} : vector<16x128xf32> to vector<16x32xf32>
    %cst_121 = arith.constant 5.000000e-01 : f32
    %322 = vector.broadcast %cst_121 : f32 to vector<16x32xf32>
    %323 = arith.mulf %322, %321 : vector<16x32xf32>
    %cst_122 = arith.constant 5.000000e-01 : f32
    %324 = vector.broadcast %cst_122 : f32 to vector<16x32xf32>
    %325 = arith.addf %323, %324 : vector<16x32xf32>
    %326 = vector.extract_strided_slice %315 {offsets = [0, 64], sizes = [16, 32], strides = [1, 1]} : vector<16x128xf32> to vector<16x32xf32>
    %327 = vector.extract_strided_slice %315 {offsets = [0, 96], sizes = [16, 32], strides = [1, 1]} : vector<16x128xf32> to vector<16x32xf32>
    %cst_123 = arith.constant 5.000000e-01 : f32
    %328 = vector.broadcast %cst_123 : f32 to vector<16x32xf32>
    %329 = arith.mulf %328, %327 : vector<16x32xf32>
    %cst_124 = arith.constant 5.000000e-01 : f32
    %330 = vector.broadcast %cst_124 : f32 to vector<16x32xf32>
    %331 = arith.addf %329, %330 : vector<16x32xf32>
    %332 = arith.mulf %325, %306 : vector<16x32xf32>
    %333 = arith.mulf %320, %326 : vector<16x32xf32>
    %334 = arith.addf %332, %333 : vector<16x32xf32>
    %335 = math.tanh %334 : vector<16x32xf32>
    %336 = arith.mulf %331, %335 : vector<16x32xf32>
    %c0_125 = arith.constant 0 : index
    %c320 = arith.constant 320 : index
    %337 = vector.load %arg9[%c0_125, %c320] : memref<16x512xf32, #tpu.memory_space<vmem>>, vector<16x32xf32>
    tpu.vector_store %arg9[%c0_125, %c320], %336 {strides = array<i32>} : memref<16x512xf32, #tpu.memory_space<vmem>>, vector<16x32xf32>,
    %338 = vector.extract_strided_slice %10 {offsets = [0, 11, 0], sizes = [16, 1, 128], strides = [1, 1, 1]} : vector<16x16x128xf32> to vector<16x1x128xf32>
    %339 = vector.shape_cast %338 : vector<16x1x128xf32> to vector<16x128xf32>
    %c0_126 = arith.constant 0 : index
    %c0_127 = arith.constant 0 : index
    %340 = vector.load %arg6[%c0_126, %c0_127] : memref<32x128xf32, #tpu.memory_space<vmem>>, vector<32x128xf32>
    %cst_128 = arith.constant dense<0.000000e+00> : vector<16x128xf32>
    %341 = tpu.matmul %336, %340, %cst_128 {dimension_numbers = #tpu.dot_dimension_numbers<[1], [0], [0], [1], [0, 0, 1, 1], [], []>} : vector<16x32xf32>, vector<32x128xf32>, vector<16x128xf32> -> vector<16x128xf32>
    %342 = arith.addf %339, %341 : vector<16x128xf32>
    %343 = math.tanh %342 : vector<16x128xf32>
    %344 = vector.extract_strided_slice %343 {offsets = [0, 0], sizes = [16, 32], strides = [1, 1]} : vector<16x128xf32> to vector<16x32xf32>
    %cst_129 = arith.constant 5.000000e-01 : f32
    %345 = vector.broadcast %cst_129 : f32 to vector<16x32xf32>
    %346 = arith.mulf %345, %344 : vector<16x32xf32>
    %cst_130 = arith.constant 5.000000e-01 : f32
    %347 = vector.broadcast %cst_130 : f32 to vector<16x32xf32>
    %348 = arith.addf %346, %347 : vector<16x32xf32>
    %349 = vector.extract_strided_slice %343 {offsets = [0, 32], sizes = [16, 32], strides = [1, 1]} : vector<16x128xf32> to vector<16x32xf32>
    %cst_131 = arith.constant 5.000000e-01 : f32
    %350 = vector.broadcast %cst_131 : f32 to vector<16x32xf32>
    %351 = arith.mulf %350, %349 : vector<16x32xf32>
    %cst_132 = arith.constant 5.000000e-01 : f32
    %352 = vector.broadcast %cst_132 : f32 to vector<16x32xf32>
    %353 = arith.addf %351, %352 : vector<16x32xf32>
    %354 = vector.extract_strided_slice %343 {offsets = [0, 64], sizes = [16, 32], strides = [1, 1]} : vector<16x128xf32> to vector<16x32xf32>
    %355 = vector.extract_strided_slice %343 {offsets = [0, 96], sizes = [16, 32], strides = [1, 1]} : vector<16x128xf32> to vector<16x32xf32>
    %cst_133 = arith.constant 5.000000e-01 : f32
    %356 = vector.broadcast %cst_133 : f32 to vector<16x32xf32>
    %357 = arith.mulf %356, %355 : vector<16x32xf32>
    %cst_134 = arith.constant 5.000000e-01 : f32
    %358 = vector.broadcast %cst_134 : f32 to vector<16x32xf32>
    %359 = arith.addf %357, %358 : vector<16x32xf32>
    %360 = arith.mulf %353, %334 : vector<16x32xf32>
    %361 = arith.mulf %348, %354 : vector<16x32xf32>
    %362 = arith.addf %360, %361 : vector<16x32xf32>
    %363 = math.tanh %362 : vector<16x32xf32>
    %364 = arith.mulf %359, %363 : vector<16x32xf32>
    %c0_135 = arith.constant 0 : index
    %c352 = arith.constant 352 : index
    %365 = vector.load %arg9[%c0_135, %c352] : memref<16x512xf32, #tpu.memory_space<vmem>>, vector<16x32xf32>
    tpu.vector_store %arg9[%c0_135, %c352], %364 {strides = array<i32>} : memref<16x512xf32, #tpu.memory_space<vmem>>, vector<16x32xf32>,
    %366 = vector.extract_strided_slice %10 {offsets = [0, 12, 0], sizes = [16, 1, 128], strides = [1, 1, 1]} : vector<16x16x128xf32> to vector<16x1x128xf32>
    %367 = vector.shape_cast %366 : vector<16x1x128xf32> to vector<16x128xf32>
    %c0_136 = arith.constant 0 : index
    %c0_137 = arith.constant 0 : index
    %368 = vector.load %arg6[%c0_136, %c0_137] : memref<32x128xf32, #tpu.memory_space<vmem>>, vector<32x128xf32>
    %cst_138 = arith.constant dense<0.000000e+00> : vector<16x128xf32>
    %369 = tpu.matmul %364, %368, %cst_138 {dimension_numbers = #tpu.dot_dimension_numbers<[1], [0], [0], [1], [0, 0, 1, 1], [], []>} : vector<16x32xf32>, vector<32x128xf32>, vector<16x128xf32> -> vector<16x128xf32>
    %370 = arith.addf %367, %369 : vector<16x128xf32>
    %371 = math.tanh %370 : vector<16x128xf32>
    %372 = vector.extract_strided_slice %371 {offsets = [0, 0], sizes = [16, 32], strides = [1, 1]} : vector<16x128xf32> to vector<16x32xf32>
    %cst_139 = arith.constant 5.000000e-01 : f32
    %373 = vector.broadcast %cst_139 : f32 to vector<16x32xf32>
    %374 = arith.mulf %373, %372 : vector<16x32xf32>
    %cst_140 = arith.constant 5.000000e-01 : f32
    %375 = vector.broadcast %cst_140 : f32 to vector<16x32xf32>
    %376 = arith.addf %374, %375 : vector<16x32xf32>
    %377 = vector.extract_strided_slice %371 {offsets = [0, 32], sizes = [16, 32], strides = [1, 1]} : vector<16x128xf32> to vector<16x32xf32>
    %cst_141 = arith.constant 5.000000e-01 : f32
    %378 = vector.broadcast %cst_141 : f32 to vector<16x32xf32>
    %379 = arith.mulf %378, %377 : vector<16x32xf32>
    %cst_142 = arith.constant 5.000000e-01 : f32
    %380 = vector.broadcast %cst_142 : f32 to vector<16x32xf32>
    %381 = arith.addf %379, %380 : vector<16x32xf32>
    %382 = vector.extract_strided_slice %371 {offsets = [0, 64], sizes = [16, 32], strides = [1, 1]} : vector<16x128xf32> to vector<16x32xf32>
    %383 = vector.extract_strided_slice %371 {offsets = [0, 96], sizes = [16, 32], strides = [1, 1]} : vector<16x128xf32> to vector<16x32xf32>
    %cst_143 = arith.constant 5.000000e-01 : f32
    %384 = vector.broadcast %cst_143 : f32 to vector<16x32xf32>
    %385 = arith.mulf %384, %383 : vector<16x32xf32>
    %cst_144 = arith.constant 5.000000e-01 : f32
    %386 = vector.broadcast %cst_144 : f32 to vector<16x32xf32>
    %387 = arith.addf %385, %386 : vector<16x32xf32>
    %388 = arith.mulf %381, %362 : vector<16x32xf32>
    %389 = arith.mulf %376, %382 : vector<16x32xf32>
    %390 = arith.addf %388, %389 : vector<16x32xf32>
    %391 = math.tanh %390 : vector<16x32xf32>
    %392 = arith.mulf %387, %391 : vector<16x32xf32>
    %c0_145 = arith.constant 0 : index
    %c384 = arith.constant 384 : index
    %393 = vector.load %arg9[%c0_145, %c384] : memref<16x512xf32, #tpu.memory_space<vmem>>, vector<16x32xf32>
    tpu.vector_store %arg9[%c0_145, %c384], %392 {strides = array<i32>} : memref<16x512xf32, #tpu.memory_space<vmem>>, vector<16x32xf32>,
    %394 = vector.extract_strided_slice %10 {offsets = [0, 13, 0], sizes = [16, 1, 128], strides = [1, 1, 1]} : vector<16x16x128xf32> to vector<16x1x128xf32>
    %395 = vector.shape_cast %394 : vector<16x1x128xf32> to vector<16x128xf32>
    %c0_146 = arith.constant 0 : index
    %c0_147 = arith.constant 0 : index
    %396 = vector.load %arg6[%c0_146, %c0_147] : memref<32x128xf32, #tpu.memory_space<vmem>>, vector<32x128xf32>
    %cst_148 = arith.constant dense<0.000000e+00> : vector<16x128xf32>
    %397 = tpu.matmul %392, %396, %cst_148 {dimension_numbers = #tpu.dot_dimension_numbers<[1], [0], [0], [1], [0, 0, 1, 1], [], []>} : vector<16x32xf32>, vector<32x128xf32>, vector<16x128xf32> -> vector<16x128xf32>
    %398 = arith.addf %395, %397 : vector<16x128xf32>
    %399 = math.tanh %398 : vector<16x128xf32>
    %400 = vector.extract_strided_slice %399 {offsets = [0, 0], sizes = [16, 32], strides = [1, 1]} : vector<16x128xf32> to vector<16x32xf32>
    %cst_149 = arith.constant 5.000000e-01 : f32
    %401 = vector.broadcast %cst_149 : f32 to vector<16x32xf32>
    %402 = arith.mulf %401, %400 : vector<16x32xf32>
    %cst_150 = arith.constant 5.000000e-01 : f32
    %403 = vector.broadcast %cst_150 : f32 to vector<16x32xf32>
    %404 = arith.addf %402, %403 : vector<16x32xf32>
    %405 = vector.extract_strided_slice %399 {offsets = [0, 32], sizes = [16, 32], strides = [1, 1]} : vector<16x128xf32> to vector<16x32xf32>
    %cst_151 = arith.constant 5.000000e-01 : f32
    %406 = vector.broadcast %cst_151 : f32 to vector<16x32xf32>
    %407 = arith.mulf %406, %405 : vector<16x32xf32>
    %cst_152 = arith.constant 5.000000e-01 : f32
    %408 = vector.broadcast %cst_152 : f32 to vector<16x32xf32>
    %409 = arith.addf %407, %408 : vector<16x32xf32>
    %410 = vector.extract_strided_slice %399 {offsets = [0, 64], sizes = [16, 32], strides = [1, 1]} : vector<16x128xf32> to vector<16x32xf32>
    %411 = vector.extract_strided_slice %399 {offsets = [0, 96], sizes = [16, 32], strides = [1, 1]} : vector<16x128xf32> to vector<16x32xf32>
    %cst_153 = arith.constant 5.000000e-01 : f32
    %412 = vector.broadcast %cst_153 : f32 to vector<16x32xf32>
    %413 = arith.mulf %412, %411 : vector<16x32xf32>
    %cst_154 = arith.constant 5.000000e-01 : f32
    %414 = vector.broadcast %cst_154 : f32 to vector<16x32xf32>
    %415 = arith.addf %413, %414 : vector<16x32xf32>
    %416 = arith.mulf %409, %390 : vector<16x32xf32>
    %417 = arith.mulf %404, %410 : vector<16x32xf32>
    %418 = arith.addf %416, %417 : vector<16x32xf32>
    %419 = math.tanh %418 : vector<16x32xf32>
    %420 = arith.mulf %415, %419 : vector<16x32xf32>
    %c0_155 = arith.constant 0 : index
    %c416 = arith.constant 416 : index
    %421 = vector.load %arg9[%c0_155, %c416] : memref<16x512xf32, #tpu.memory_space<vmem>>, vector<16x32xf32>
    tpu.vector_store %arg9[%c0_155, %c416], %420 {strides = array<i32>} : memref<16x512xf32, #tpu.memory_space<vmem>>, vector<16x32xf32>,
    %422 = vector.extract_strided_slice %10 {offsets = [0, 14, 0], sizes = [16, 1, 128], strides = [1, 1, 1]} : vector<16x16x128xf32> to vector<16x1x128xf32>
    %423 = vector.shape_cast %422 : vector<16x1x128xf32> to vector<16x128xf32>
    %c0_156 = arith.constant 0 : index
    %c0_157 = arith.constant 0 : index
    %424 = vector.load %arg6[%c0_156, %c0_157] : memref<32x128xf32, #tpu.memory_space<vmem>>, vector<32x128xf32>
    %cst_158 = arith.constant dense<0.000000e+00> : vector<16x128xf32>
    %425 = tpu.matmul %420, %424, %cst_158 {dimension_numbers = #tpu.dot_dimension_numbers<[1], [0], [0], [1], [0, 0, 1, 1], [], []>} : vector<16x32xf32>, vector<32x128xf32>, vector<16x128xf32> -> vector<16x128xf32>
    %426 = arith.addf %423, %425 : vector<16x128xf32>
    %427 = math.tanh %426 : vector<16x128xf32>
    %428 = vector.extract_strided_slice %427 {offsets = [0, 0], sizes = [16, 32], strides = [1, 1]} : vector<16x128xf32> to vector<16x32xf32>
    %cst_159 = arith.constant 5.000000e-01 : f32
    %429 = vector.broadcast %cst_159 : f32 to vector<16x32xf32>
    %430 = arith.mulf %429, %428 : vector<16x32xf32>
    %cst_160 = arith.constant 5.000000e-01 : f32
    %431 = vector.broadcast %cst_160 : f32 to vector<16x32xf32>
    %432 = arith.addf %430, %431 : vector<16x32xf32>
    %433 = vector.extract_strided_slice %427 {offsets = [0, 32], sizes = [16, 32], strides = [1, 1]} : vector<16x128xf32> to vector<16x32xf32>
    %cst_161 = arith.constant 5.000000e-01 : f32
    %434 = vector.broadcast %cst_161 : f32 to vector<16x32xf32>
    %435 = arith.mulf %434, %433 : vector<16x32xf32>
    %cst_162 = arith.constant 5.000000e-01 : f32
    %436 = vector.broadcast %cst_162 : f32 to vector<16x32xf32>
    %437 = arith.addf %435, %436 : vector<16x32xf32>
    %438 = vector.extract_strided_slice %427 {offsets = [0, 64], sizes = [16, 32], strides = [1, 1]} : vector<16x128xf32> to vector<16x32xf32>
    %439 = vector.extract_strided_slice %427 {offsets = [0, 96], sizes = [16, 32], strides = [1, 1]} : vector<16x128xf32> to vector<16x32xf32>
    %cst_163 = arith.constant 5.000000e-01 : f32
    %440 = vector.broadcast %cst_163 : f32 to vector<16x32xf32>
    %441 = arith.mulf %440, %439 : vector<16x32xf32>
    %cst_164 = arith.constant 5.000000e-01 : f32
    %442 = vector.broadcast %cst_164 : f32 to vector<16x32xf32>
    %443 = arith.addf %441, %442 : vector<16x32xf32>
    %444 = arith.mulf %437, %418 : vector<16x32xf32>
    %445 = arith.mulf %432, %438 : vector<16x32xf32>
    %446 = arith.addf %444, %445 : vector<16x32xf32>
    %447 = math.tanh %446 : vector<16x32xf32>
    %448 = arith.mulf %443, %447 : vector<16x32xf32>
    %c0_165 = arith.constant 0 : index
    %c448 = arith.constant 448 : index
    %449 = vector.load %arg9[%c0_165, %c448] : memref<16x512xf32, #tpu.memory_space<vmem>>, vector<16x32xf32>
    tpu.vector_store %arg9[%c0_165, %c448], %448 {strides = array<i32>} : memref<16x512xf32, #tpu.memory_space<vmem>>, vector<16x32xf32>,
    %450 = vector.extract_strided_slice %10 {offsets = [0, 15, 0], sizes = [16, 1, 128], strides = [1, 1, 1]} : vector<16x16x128xf32> to vector<16x1x128xf32>
    %451 = vector.shape_cast %450 : vector<16x1x128xf32> to vector<16x128xf32>
    %c0_166 = arith.constant 0 : index
    %c0_167 = arith.constant 0 : index
    %452 = vector.load %arg6[%c0_166, %c0_167] : memref<32x128xf32, #tpu.memory_space<vmem>>, vector<32x128xf32>
    %cst_168 = arith.constant dense<0.000000e+00> : vector<16x128xf32>
    %453 = tpu.matmul %448, %452, %cst_168 {dimension_numbers = #tpu.dot_dimension_numbers<[1], [0], [0], [1], [0, 0, 1, 1], [], []>} : vector<16x32xf32>, vector<32x128xf32>, vector<16x128xf32> -> vector<16x128xf32>
    %454 = arith.addf %451, %453 : vector<16x128xf32>
    %455 = math.tanh %454 : vector<16x128xf32>
    %456 = vector.extract_strided_slice %455 {offsets = [0, 0], sizes = [16, 32], strides = [1, 1]} : vector<16x128xf32> to vector<16x32xf32>
    %cst_169 = arith.constant 5.000000e-01 : f32
    %457 = vector.broadcast %cst_169 : f32 to vector<16x32xf32>
    %458 = arith.mulf %457, %456 : vector<16x32xf32>
    %cst_170 = arith.constant 5.000000e-01 : f32
    %459 = vector.broadcast %cst_170 : f32 to vector<16x32xf32>
    %460 = arith.addf %458, %459 : vector<16x32xf32>
    %461 = vector.extract_strided_slice %455 {offsets = [0, 32], sizes = [16, 32], strides = [1, 1]} : vector<16x128xf32> to vector<16x32xf32>
    %cst_171 = arith.constant 5.000000e-01 : f32
    %462 = vector.broadcast %cst_171 : f32 to vector<16x32xf32>
    %463 = arith.mulf %462, %461 : vector<16x32xf32>
    %cst_172 = arith.constant 5.000000e-01 : f32
    %464 = vector.broadcast %cst_172 : f32 to vector<16x32xf32>
    %465 = arith.addf %463, %464 : vector<16x32xf32>
    %466 = vector.extract_strided_slice %455 {offsets = [0, 64], sizes = [16, 32], strides = [1, 1]} : vector<16x128xf32> to vector<16x32xf32>
    %467 = vector.extract_strided_slice %455 {offsets = [0, 96], sizes = [16, 32], strides = [1, 1]} : vector<16x128xf32> to vector<16x32xf32>
    %cst_173 = arith.constant 5.000000e-01 : f32
    %468 = vector.broadcast %cst_173 : f32 to vector<16x32xf32>
    %469 = arith.mulf %468, %467 : vector<16x32xf32>
    %cst_174 = arith.constant 5.000000e-01 : f32
    %470 = vector.broadcast %cst_174 : f32 to vector<16x32xf32>
    %471 = arith.addf %469, %470 : vector<16x32xf32>
    %472 = arith.mulf %465, %446 : vector<16x32xf32>
    %473 = arith.mulf %460, %466 : vector<16x32xf32>
    %474 = arith.addf %472, %473 : vector<16x32xf32>
    %475 = math.tanh %474 : vector<16x32xf32>
    %476 = arith.mulf %471, %475 : vector<16x32xf32>
    %c0_175 = arith.constant 0 : index
    %c480 = arith.constant 480 : index
    %477 = vector.load %arg9[%c0_175, %c480] : memref<16x512xf32, #tpu.memory_space<vmem>>, vector<16x32xf32>
    tpu.vector_store %arg9[%c0_175, %c480], %476 {strides = array<i32>} : memref<16x512xf32, #tpu.memory_space<vmem>>, vector<16x32xf32>,
    %c0_176 = arith.constant 0 : index
    %c0_177 = arith.constant 0 : index
    %478 = vector.load %arg10[%c0_176, %c0_177] : memref<16x32xf32, #tpu.memory_space<vmem>>, vector<16x32xf32>
    tpu.vector_store %arg10[%c0_176, %c0_177], %476 {strides = array<i32>} : memref<16x32xf32, #tpu.memory_space<vmem>>, vector<16x32xf32>,
    %c0_178 = arith.constant 0 : index
    %c0_179 = arith.constant 0 : index
    %479 = vector.load %arg11[%c0_178, %c0_179] : memref<16x32xf32, #tpu.memory_space<vmem>>, vector<16x32xf32>
    tpu.vector_store %arg11[%c0_178, %c0_179], %474 {strides = array<i32>} : memref<16x32xf32, #tpu.memory_space<vmem>>, vector<16x32xf32>,
    return
  }
  func.func @transform_0(%arg0: i32, %arg1: i32) -> (i32, i32, i32) {
    %c0_i32 = arith.constant 0 : i32
    %c0_i32_0 = arith.constant 0 : i32
    return %arg0, %arg1, %c0_i32 : i32, i32, i32
  }
  func.func @transform_1(%arg0: i32, %arg1: i32) -> (i32, i32) {
    %c0_i32 = arith.constant 0 : i32
    %c0_i32_0 = arith.constant 0 : i32
    return %arg0, %c0_i32 : i32, i32
  }
  func.func @transform_2(%arg0: i32, %arg1: i32) -> (i32, i32) {
    %c0_i32 = arith.constant 0 : i32
    %c0_i32_0 = arith.constant 0 : i32
    return %arg0, %c0_i32 : i32, i32
  }
  func.func @transform_3(%arg0: i32, %arg1: i32) -> (i32, i32) {
    %c0_i32 = arith.constant 0 : i32
    %c0_i32_0 = arith.constant 0 : i32
    %c0_i32_1 = arith.constant 0 : i32
    return %c0_i32, %c0_i32_0 : i32, i32
  }
  func.func @transform_4(%arg0: i32, %arg1: i32) -> (i32, i32) {
    %c0_i32 = arith.constant 0 : i32
    %c0_i32_0 = arith.constant 0 : i32
    %c0_i32_1 = arith.constant 0 : i32
    return %c0_i32, %c0_i32_0 : i32, i32
  }
  func.func @transform_5(%arg0: i32, %arg1: i32) -> (i32, i32) {
    %c0_i32 = arith.constant 0 : i32
    %c0_i32_0 = arith.constant 0 : i32
    %c0_i32_1 = arith.constant 0 : i32
    return %c0_i32, %c0_i32_0 : i32, i32
  }
  func.func @transform_6(%arg0: i32, %arg1: i32) -> (i32, i32) {
    %c0_i32 = arith.constant 0 : i32
    %c0_i32_0 = arith.constant 0 : i32
    %c0_i32_1 = arith.constant 0 : i32
    return %c0_i32, %c0_i32_0 : i32, i32
  }
  func.func @transform_7(%arg0: i32, %arg1: i32) -> (i32, i32) {
    %c0_i32 = arith.constant 0 : i32
    return %arg0, %arg1 : i32, i32
  }
  func.func @transform_8(%arg0: i32, %arg1: i32) -> (i32, i32) {
    %c0_i32 = arith.constant 0 : i32
    %c0_i32_0 = arith.constant 0 : i32
    return %arg0, %c0_i32 : i32, i32
  }
  func.func @transform_9(%arg0: i32, %arg1: i32) -> (i32, i32) {
    %c0_i32 = arith.constant 0 : i32
    %c0_i32_0 = arith.constant 0 : i32
    return %arg0, %c0_i32 : i32, i32
  }
}

</mosaic_0001>

<llo_original>
// kernel: tpu_custom_call.1
$region0: #{tpu_custom_call.1}
  #allocation0 [shape = 'u32[]', space=smem, size = 0x4, offset = 0x4, fixed_abs, tag = 'smem constant byte address 0x4 - core index']
  #allocation1 [shape = 'u32[144,128]{1,0:T(1,128)}', space=vmem, size = 0x12000, scoped, tag = 'internal scratch']
  %s0 = inlined_call_operand.vmem [shape: f32[16,16,8], index: 0, kind: input, shape index: {}]
  %s1 = inlined_call_operand.vmem [shape: f32[16,32], index: 1, kind: input, shape index: {}]
  %s2 = inlined_call_operand.vmem [shape: f32[16,32], index: 2, kind: input, shape index: {}]
  %s3 = inlined_call_operand.vmem [shape: f32[8,128], index: 3, kind: input, shape index: {}]
  %s4 = inlined_call_operand.vmem [shape: f32[32,128], index: 4, kind: input, shape index: {}]
  %s5 = inlined_call_operand.vmem [shape: f32[2,128], index: 5, kind: input, shape index: {}]
  %s6 = inlined_call_operand.vmem [shape: f32[1,128], index: 6, kind: input, shape index: {}]
  %s7 = inlined_call_operand.hbm [shape: f32[16,512], index: 7, kind: output, shape index: {0}]
  %s8 = inlined_call_operand.hbm [shape: f32[16,32], index: 8, kind: output, shape index: {1}]
  %s9 = inlined_call_operand.hbm [shape: f32[16,32], index: 9, kind: output, shape index: {2}]
  %10 = xla_tuple %s7, %s8, %s9
  %s11 = sld [smem:[#allocation0]]
  $region58: #{tpu_custom_call.1} parent=0
    _
  %s13 = ssub.s32 1, %s11
  %s14 = scalar_select 0, %s13, %s11
  $region1: #{tpu_custom_call.1} parent=0
    #allocation2 [shape = 'u8[32768]{0}', space=vmem, size = 0x8000, scoped, tag = 'output window, operand 0, single buffered']
    #allocation3 [shape = 's32[1]{0}', space=sflag, size = 0x4, scoped, tag = 'scoped memory for tpu_custom_call.1']
    #allocation4 [shape = 'u8[8192]{0}', space=vmem, size = 0x2000, scoped, tag = 'output window, operand 1, single buffered']
    #allocation5 [shape = 's32[1]{0}', space=sflag, size = 0x4, scoped, tag = 'scoped memory for tpu_custom_call.1']
    #allocation6 [shape = 'u8[8192]{0}', space=vmem, size = 0x2000, scoped, tag = 'output window, operand 2, single buffered']
    %15 = vsyncpa [#allocation3], 0
    %16 = vsyncpa [#allocation5], 0
    // Predicated region
    $region2: #{tpu_custom_call.1} parent=1 // pred_check
      _
    $region3: #{tpu_custom_call.1} parent=1 // pred_check_branch
      %18 = sbr.rel (0) target = $region5
    $region4: #{tpu_custom_call.1} parent=1 // pred_region
      _
    $region5: #{tpu_custom_call.1} parent=1 // pred_fallthru
      _
    // Predicated region
    $region6: #{tpu_custom_call.1} parent=1 // pred_check
      _
    $region7: #{tpu_custom_call.1} parent=1 // pred_check_branch
      %20 = sbr.rel (0) target = $region9
    $region8: #{tpu_custom_call.1} parent=1 // pred_region
      _
    $region9: #{tpu_custom_call.1} parent=1 // pred_fallthru
      _
    // Predicated region
    $region10: #{tpu_custom_call.1} parent=1 // pred_check
      _
    $region11: #{tpu_custom_call.1} parent=1 // pred_check_branch
      %22 = sbr.rel (0) target = $region13
    $region12: #{tpu_custom_call.1} parent=1 // pred_region
      _
    $region13: #{tpu_custom_call.1} parent=1 // pred_fallthru
      _
    // Predicated region
    $region14: #{tpu_custom_call.1} parent=1 // pred_check
      _
    $region15: #{tpu_custom_call.1} parent=1 // pred_check_branch
      %24 = sbr.rel (0) target = $region17
    $region16: #{tpu_custom_call.1} parent=1 // pred_region
      _
    $region17: #{tpu_custom_call.1} parent=1 // pred_fallthru
      _
    // Predicated region
    $region18: #{tpu_custom_call.1} parent=1 // pred_check
      _
    $region19: #{tpu_custom_call.1} parent=1 // pred_check_branch
      %26 = sbr.rel (0) target = $region21
    $region20: #{tpu_custom_call.1} parent=1 // pred_region
      _
    $region21: #{tpu_custom_call.1} parent=1 // pred_fallthru
      _
    // Predicated region
    $region22: #{tpu_custom_call.1} parent=1 // pred_check
      _
    $region23: #{tpu_custom_call.1} parent=1 // pred_check_branch
      %28 = sbr.rel (0) target = $region25
    $region24: #{tpu_custom_call.1} parent=1 // pred_region
      _
    $region25: #{tpu_custom_call.1} parent=1 // pred_fallthru
      _
    // Predicated region
    $region26: #{tpu_custom_call.1} parent=1 // pred_check
      _
    $region27: #{tpu_custom_call.1} parent=1 // pred_check_branch
      %30 = sbr.rel (0) target = $region29
    $region28: #{tpu_custom_call.1} parent=1 // pred_region
      _
    $region29: #{tpu_custom_call.1} parent=1 // pred_fallthru
      _
    %p31 = scmp.eq.s32.totalorder 0, 0
    // Predicated region
    $region30: #{tpu_custom_call.1} parent=1 // pred_check
      %p32 = pneg %p31
    $region31: #{tpu_custom_call.1} parent=1 // pred_check_branch
      %34 = sbr.rel (%p32) target = $region33
    $region32: #{tpu_custom_call.1} parent=1 // pred_region
      %v35 = vld [vmem:[%s1] sm:$0xff]
      %v36 = vld [vmem:[%s1 + $0x8] sm:$0xff]
      %vm37 = vcmask 261120
      %38 = vst.msk [vmem:[#allocation4] sm:$0xff] %vm37, %v35
      %39 = vst.msk [vmem:[#allocation4 + $0x8] sm:$0xff] %vm37, %v36
      %v40 = vld [vmem:[%s2] sm:$0xff]
      %v41 = vld [vmem:[%s2 + $0x8] sm:$0xff]
      %42 = vst.msk [vmem:[#allocation6] sm:$0xff] %vm37, %v40
      %43 = vst.msk [vmem:[#allocation6 + $0x8] sm:$0xff] %vm37, %v41
    $region33: #{tpu_custom_call.1} parent=1 // pred_fallthru
      _
    %v44 = vld [vmem:[%s0] sm:$0xff]
    %v45 = vld [vmem:[%s0 + $0x8] sm:$0xff]
    %v46 = vld [vmem:[%s0 + $0x10] sm:$0xff]
    %v47 = vld [vmem:[%s0 + $0x18] sm:$0xff]
    %v48 = vld [vmem:[%s0 + $0x20] sm:$0xff]
    %v49 = vld [vmem:[%s0 + $0x28] sm:$0xff]
    %v50 = vld [vmem:[%s0 + $0x30] sm:$0xff]
    %v51 = vld [vmem:[%s0 + $0x38] sm:$0xff]
    %v52 = vld [vmem:[%s0 + $0x40] sm:$0xff]
    %v53 = vld [vmem:[%s0 + $0x48] sm:$0xff]
    %v54 = vld [vmem:[%s0 + $0x50] sm:$0xff]
    %v55 = vld [vmem:[%s0 + $0x58] sm:$0xff]
    %v56 = vld [vmem:[%s0 + $0x60] sm:$0xff]
    %v57 = vld [vmem:[%s0 + $0x68] sm:$0xff]
    %v58 = vld [vmem:[%s0 + $0x70] sm:$0xff]
    %v59 = vld [vmem:[%s0 + $0x78] sm:$0xff]
    %v60 = vld [vmem:[%s0 + $0x80] sm:$0xff]
    %v61 = vld [vmem:[%s0 + $0x88] sm:$0xff]
    %v62 = vld [vmem:[%s0 + $0x90] sm:$0xff]
    %v63 = vld [vmem:[%s0 + $0x98] sm:$0xff]
    %v64 = vld [vmem:[%s0 + $0xa0] sm:$0xff]
    %v65 = vld [vmem:[%s0 + $0xa8] sm:$0xff]
    %v66 = vld [vmem:[%s0 + $0xb0] sm:$0xff]
    %v67 = vld [vmem:[%s0 + $0xb8] sm:$0xff]
    %v68 = vld [vmem:[%s0 + $0xc0] sm:$0xff]
    %v69 = vld [vmem:[%s0 + $0xc8] sm:$0xff]
    %v70 = vld [vmem:[%s0 + $0xd0] sm:$0xff]
    %v71 = vld [vmem:[%s0 + $0xd8] sm:$0xff]
    %v72 = vld [vmem:[%s0 + $0xe0] sm:$0xff]
    %v73 = vld [vmem:[%s0 + $0xe8] sm:$0xff]
    %v74 = vld [vmem:[%s0 + $0xf0] sm:$0xff]
    %v75 = vld [vmem:[%s0 + $0xf8] sm:$0xff]
    %v76 = vld [vmem:[%s3] sm:$0xff]
    %v77 = vld [vmem:[%s6] sm:$0x1]
    %v79 = vlaneseq
    %v80 = vshrl.u32 %v79, 7
    %v81 = vsub.s32 0, %v80
    %v82 = vrot.slane %v77, %v81
    %vm84 = vcmask 64512
    %v86 = vsel %vm84, %v44, 0
    %v89 = vsel %vm84, %v45, 0
    %v92 = vsel %vm84, %v46, 0
    %v95 = vsel %vm84, %v47, 0
    %v98 = vsel %vm84, %v48, 0
    %v101 = vsel %vm84, %v49, 0
    %v104 = vsel %vm84, %v50, 0
    %v107 = vsel %vm84, %v51, 0
    %v110 = vsel %vm84, %v52, 0
    %v113 = vsel %vm84, %v53, 0
    %v116 = vsel %vm84, %v54, 0
    %v119 = vsel %vm84, %v55, 0
    %v122 = vsel %vm84, %v56, 0
    %v125 = vsel %vm84, %v57, 0
    %v128 = vsel %vm84, %v58, 0
    %v131 = vsel %vm84, %v59, 0
    %v134 = vsel %vm84, %v60, 0
    %v137 = vsel %vm84, %v61, 0
    %v140 = vsel %vm84, %v62, 0
    %v143 = vsel %vm84, %v63, 0
    %v146 = vsel %vm84, %v64, 0
    %v149 = vsel %vm84, %v65, 0
    %v152 = vsel %vm84, %v66, 0
    %v155 = vsel %vm84, %v67, 0
    %v158 = vsel %vm84, %v68, 0
    %v161 = vsel %vm84, %v69, 0
    %v164 = vsel %vm84, %v70, 0
    %v167 = vsel %vm84, %v71, 0
    %v170 = vsel %vm84, %v72, 0
    %v173 = vsel %vm84, %v73, 0
    %v176 = vsel %vm84, %v74, 0
    %v179 = vsel %vm84, %v75, 0
    %181 = vmatprep.subr.mxu0 0.0
    %182 = vmatpush1.msra.mxu0 0.0
    %183 = vmatprep.subr.mxu0 0.0
    %184 = vmatpush1.msra.mxu0 0.0
    %185 = vmatprep.subr.mxu0 0.0
    %186 = vmatpush1.msra.mxu0 0.0
    %187 = vmatprep.subr.mxu0 0.0
    %188 = vmatpush1.msra.mxu0 0.0
    %189 = vmatprep.subr.mxu0 0.0
    %190 = vmatpush1.msra.mxu0 0.0
    %191 = vmatprep.subr.mxu0 0.0
    %192 = vmatpush1.msra.mxu0 0.0
    %193 = vmatprep.subr.mxu0 0.0
    %194 = vmatpush1.msra.mxu0 0.0
    %195 = vmatprep.subr.mxu0 0.0
    %196 = vmatpush1.msra.mxu0 0.0
    %197 = vmatprep.subr.mxu0 0.0
    %198 = vmatpush1.msra.mxu0 0.0
    %199 = vmatprep.subr.mxu0 0.0
    %200 = vmatpush1.msra.mxu0 0.0
    %201 = vmatprep.subr.mxu0 0.0
    %202 = vmatpush1.msra.mxu0 0.0
    %203 = vmatprep.subr.mxu0 0.0
    %204 = vmatpush1.msra.mxu0 0.0
    %205 = vmatprep.subr.mxu0 0.0
    %206 = vmatpush1.msra.mxu0 0.0
    %207 = vmatprep.subr.mxu0 0.0
    %208 = vmatpush1.msra.mxu0 0.0
    %209 = vmatprep.subr.mxu0 0.0
    %210 = vmatpush1.msra.mxu0 0.0
    %211 = vmatprep.subr.mxu0 0.0
    %212 = vmatpush1.msra.mxu0 %v76
    %213 = vmatprep.subr.mxu0 0.0
    %214 = vmatpush2.msra.mxu0 0.0
    %215 = vmatprep.subr.mxu0 0.0
    %216 = vmatpush2.msra.mxu0 0.0
    %217 = vmatprep.subr.mxu0 0.0
    %218 = vmatpush2.msra.mxu0 0.0
    %219 = vmatprep.subr.mxu0 0.0
    %220 = vmatpush2.msra.mxu0 0.0
    %221 = vmatprep.subr.mxu0 0.0
    %222 = vmatpush2.msra.mxu0 0.0
    %223 = vmatprep.subr.mxu0 0.0
    %224 = vmatpush2.msra.mxu0 0.0
    %225 = vmatprep.subr.mxu0 0.0
    %226 = vmatpush2.msra.mxu0 0.0
    %227 = vmatprep.subr.mxu0 0.0
    %228 = vmatpush2.msra.mxu0 0.0
    %229 = vmatprep.subr.mxu0 0.0
    %230 = vmatpush2.msra.mxu0 0.0
    %231 = vmatprep.subr.mxu0 0.0
    %232 = vmatpush2.msra.mxu0 0.0
    %233 = vmatprep.subr.mxu0 0.0
    %234 = vmatpush2.msra.mxu0 0.0
    %235 = vmatprep.subr.mxu0 0.0
    %236 = vmatpush2.msra.mxu0 0.0
    %237 = vmatprep.subr.mxu0 0.0
    %238 = vmatpush2.msra.mxu0 0.0
    %239 = vmatprep.subr.mxu0 0.0
    %240 = vmatpush2.msra.mxu0 0.0
    %241 = vmatprep.subr.mxu0 0.0
    %242 = vmatpush2.msra.mxu0 0.0
    %243 = vmatprep.subr.mxu0 0.0
    %244 = vmatpush2.msra.mxu0 0.0
    %245 = vmatprep.mubr.f32.mxu0 0.0
    %246 = vmatmul.mubr.f32.gmra.mxu0 %v86
    %v247 = vpop.f32.mrf.mxu0
    %v248 = vadd.f32 %v82, %v247
    %v249 = vpop.f32.mrf.mxu0
    %250 = vmatprep.mubr.f32.mxu0 0.0
    %251 = vmatmul.mubr.f32.gmra.mxu0 %v89
    %v252 = vpop.f32.mrf.mxu0
    %v253 = vadd.f32 %v82, %v252
    %v254 = vpop.f32.mrf.mxu0
    %255 = vmatprep.mubr.f32.mxu0 0.0
    %256 = vmatmul.mubr.f32.gmra.mxu0 %v92
    %v257 = vpop.f32.mrf.mxu0
    %v258 = vadd.f32 %v82, %v257
    %v259 = vpop.f32.mrf.mxu0
    %260 = vmatprep.mubr.f32.mxu0 0.0
    %261 = vmatmul.mubr.f32.gmra.mxu0 %v95
    %v262 = vpop.f32.mrf.mxu0
    %v263 = vadd.f32 %v82, %v262
    %v264 = vpop.f32.mrf.mxu0
    %265 = vmatprep.mubr.f32.mxu0 0.0
    %266 = vmatmul.mubr.f32.gmra.mxu0 %v98
    %v267 = vpop.f32.mrf.mxu0
    %v268 = vadd.f32 %v82, %v267
    %v269 = vpop.f32.mrf.mxu0
    %270 = vmatprep.mubr.f32.mxu0 0.0
    %271 = vmatmul.mubr.f32.gmra.mxu0 %v101
    %v272 = vpop.f32.mrf.mxu0
    %v273 = vadd.f32 %v82, %v272
    %v274 = vpop.f32.mrf.mxu0
    %275 = vmatprep.mubr.f32.mxu0 0.0
    %276 = vmatmul.mubr.f32.gmra.mxu0 %v104
    %v277 = vpop.f32.mrf.mxu0
    %v278 = vadd.f32 %v82, %v277
    %v279 = vpop.f32.mrf.mxu0
    %280 = vmatprep.mubr.f32.mxu0 0.0
    %281 = vmatmul.mubr.f32.gmra.mxu0 %v107
    %v282 = vpop.f32.mrf.mxu0
    %v283 = vadd.f32 %v82, %v282
    %v284 = vpop.f32.mrf.mxu0
    %285 = vmatprep.mubr.f32.mxu0 0.0
    %286 = vmatmul.mubr.f32.gmra.mxu0 %v110
    %v287 = vpop.f32.mrf.mxu0
    %v288 = vadd.f32 %v82, %v287
    %v289 = vpop.f32.mrf.mxu0
    %290 = vmatprep.mubr.f32.mxu0 0.0
    %291 = vmatmul.mubr.f32.gmra.mxu0 %v113
    %v292 = vpop.f32.mrf.mxu0
    %v293 = vadd.f32 %v82, %v292
    %v294 = vpop.f32.mrf.mxu0
    %295 = vmatprep.mubr.f32.mxu0 0.0
    %296 = vmatmul.mubr.f32.gmra.mxu0 %v116
    %v297 = vpop.f32.mrf.mxu0
    %v298 = vadd.f32 %v82, %v297
    %v299 = vpop.f32.mrf.mxu0
    %300 = vmatprep.mubr.f32.mxu0 0.0
    %301 = vmatmul.mubr.f32.gmra.mxu0 %v119
    %v302 = vpop.f32.mrf.mxu0
    %v303 = vadd.f32 %v82, %v302
    %v304 = vpop.f32.mrf.mxu0
    %305 = vmatprep.mubr.f32.mxu0 0.0
    %306 = vmatmul.mubr.f32.gmra.mxu0 %v122
    %v307 = vpop.f32.mrf.mxu0
    %v308 = vadd.f32 %v82, %v307
    %v309 = vpop.f32.mrf.mxu0
    %310 = vmatprep.mubr.f32.mxu0 0.0
    %311 = vmatmul.mubr.f32.gmra.mxu0 %v125
    %v312 = vpop.f32.mrf.mxu0
    %v313 = vadd.f32 %v82, %v312
    %v314 = vpop.f32.mrf.mxu0
    %315 = vmatprep.mubr.f32.mxu0 0.0
    %316 = vmatmul.mubr.f32.gmra.mxu0 %v128
    %v317 = vpop.f32.mrf.mxu0
    %v318 = vadd.f32 %v82, %v317
    %v319 = vpop.f32.mrf.mxu0
    %320 = vmatprep.mubr.f32.mxu0 0.0
    %321 = vmatmul.mubr.f32.gmra.mxu0 %v131
    %v322 = vpop.f32.mrf.mxu0
    %v323 = vadd.f32 %v82, %v322
    %v324 = vpop.f32.mrf.mxu0
    %325 = vmatprep.mubr.f32.mxu0 0.0
    %326 = vmatmul.mubr.f32.gmra.mxu0 %v134
    %v327 = vpop.f32.mrf.mxu0
    %v328 = vadd.f32 %v82, %v327
    %v329 = vpop.f32.mrf.mxu0
    %330 = vmatprep.mubr.f32.mxu0 0.0
    %331 = vmatmul.mubr.f32.gmra.mxu0 %v137
    %v332 = vpop.f32.mrf.mxu0
    %v333 = vadd.f32 %v82, %v332
    %v334 = vpop.f32.mrf.mxu0
    %335 = vmatprep.mubr.f32.mxu0 0.0
    %336 = vmatmul.mubr.f32.gmra.mxu0 %v140
    %v337 = vpop.f32.mrf.mxu0
    %v338 = vadd.f32 %v82, %v337
    %v339 = vpop.f32.mrf.mxu0
    %340 = vmatprep.mubr.f32.mxu0 0.0
    %341 = vmatmul.mubr.f32.gmra.mxu0 %v143
    %v342 = vpop.f32.mrf.mxu0
    %v343 = vadd.f32 %v82, %v342
    %v344 = vpop.f32.mrf.mxu0
    %345 = vmatprep.mubr.f32.mxu0 0.0
    %346 = vmatmul.mubr.f32.gmra.mxu0 %v146
    %v347 = vpop.f32.mrf.mxu0
    %v348 = vadd.f32 %v82, %v347
    %v349 = vpop.f32.mrf.mxu0
    %350 = vmatprep.mubr.f32.mxu0 0.0
    %351 = vmatmul.mubr.f32.gmra.mxu0 %v149
    %v352 = vpop.f32.mrf.mxu0
    %v353 = vadd.f32 %v82, %v352
    %v354 = vpop.f32.mrf.mxu0
    %355 = vmatprep.mubr.f32.mxu0 0.0
    %356 = vmatmul.mubr.f32.gmra.mxu0 %v152
    %v357 = vpop.f32.mrf.mxu0
    %v358 = vadd.f32 %v82, %v357
    %v359 = vpop.f32.mrf.mxu0
    %360 = vmatprep.mubr.f32.mxu0 0.0
    %361 = vmatmul.mubr.f32.gmra.mxu0 %v155
    %v362 = vpop.f32.mrf.mxu0
    %v363 = vadd.f32 %v82, %v362
    %v364 = vpop.f32.mrf.mxu0
    %365 = vmatprep.mubr.f32.mxu0 0.0
    %366 = vmatmul.mubr.f32.gmra.mxu0 %v158
    %v367 = vpop.f32.mrf.mxu0
    %v368 = vadd.f32 %v82, %v367
    %v369 = vpop.f32.mrf.mxu0
    %370 = vmatprep.mubr.f32.mxu0 0.0
    %371 = vmatmul.mubr.f32.gmra.mxu0 %v161
    %v372 = vpop.f32.mrf.mxu0
    %v373 = vadd.f32 %v82, %v372
    %v374 = vpop.f32.mrf.mxu0
    %375 = vmatprep.mubr.f32.mxu0 0.0
    %376 = vmatmul.mubr.f32.gmra.mxu0 %v164
    %v377 = vpop.f32.mrf.mxu0
    %v378 = vadd.f32 %v82, %v377
    %v379 = vpop.f32.mrf.mxu0
    %380 = vmatprep.mubr.f32.mxu0 0.0
    %381 = vmatmul.mubr.f32.gmra.mxu0 %v167
    %v382 = vpop.f32.mrf.mxu0
    %v383 = vadd.f32 %v82, %v382
    %v384 = vpop.f32.mrf.mxu0
    %385 = vmatprep.mubr.f32.mxu0 0.0
    %386 = vmatmul.mubr.f32.gmra.mxu0 %v170
    %v387 = vpop.f32.mrf.mxu0
    %v388 = vadd.f32 %v82, %v387
    %v389 = vpop.f32.mrf.mxu0
    %390 = vmatprep.mubr.f32.mxu0 0.0
    %391 = vmatmul.mubr.f32.gmra.mxu0 %v173
    %v392 = vpop.f32.mrf.mxu0
    %v393 = vadd.f32 %v82, %v392
    %v394 = vpop.f32.mrf.mxu0
    %395 = vmatprep.mubr.f32.mxu0 0.0
    %396 = vmatmul.mubr.f32.gmra.mxu0 %v176
    %v397 = vpop.f32.mrf.mxu0
    %v398 = vadd.f32 %v82, %v397
    %v399 = vpop.f32.mrf.mxu0
    %400 = vmatprep.mubr.f32.mxu0 0.0
    %401 = vmatmul.mubr.f32.gmra.mxu0 %v179
    %v402 = vpop.f32.mrf.mxu0
    %v403 = vadd.f32 %v82, %v402
    %v404 = vpop.f32.mrf.mxu0
    %405 = vdwg.mxu0
    %v406 = vld [vmem:[#allocation4] sm:$0xff]
    %v407 = vld [vmem:[#allocation4 + $0x8] sm:$0xff]
    %v408 = vld [vmem:[#allocation6] sm:$0xff]
    %v409 = vld [vmem:[#allocation6 + $0x8] sm:$0xff]
    %s410 = scalar_select %p31, 1, 0
    %s411 = scvt.s32.f32 %s410
    %v412 = vld [vmem:[%s4] sm:$0xff]
    %v413 = vld [vmem:[%s4 + $0x8] sm:$0xff]
    %v414 = vld [vmem:[%s4 + $0x10] sm:$0xff]
    %v415 = vld [vmem:[%s4 + $0x18] sm:$0xff]
    %vm416 = vcmask 261120
    %v418 = vsel %vm416, %v406, 0
    %v421 = vsel %vm416, %v407, 0
    %423 = vmatprep.subr.mxu0 0.0
    %424 = vmatpush1.msra.mxu0 0.0
    %425 = vmatprep.subr.mxu0 0.0
    %426 = vmatpush1.msra.mxu0 0.0
    %427 = vmatprep.subr.mxu0 0.0
    %428 = vmatpush1.msra.mxu0 0.0
    %429 = vmatprep.subr.mxu0 0.0
    %430 = vmatpush1.msra.mxu0 0.0
    %431 = vmatprep.subr.mxu0 0.0
    %432 = vmatpush1.msra.mxu0 0.0
    %433 = vmatprep.subr.mxu0 0.0
    %434 = vmatpush1.msra.mxu0 0.0
    %435 = vmatprep.subr.mxu0 0.0
    %436 = vmatpush1.msra.mxu0 0.0
    %437 = vmatprep.subr.mxu0 0.0
    %438 = vmatpush1.msra.mxu0 0.0
    %439 = vmatprep.subr.mxu0 0.0
    %440 = vmatpush1.msra.mxu0 0.0
    %441 = vmatprep.subr.mxu0 0.0
    %442 = vmatpush1.msra.mxu0 0.0
    %443 = vmatprep.subr.mxu0 0.0
    %444 = vmatpush1.msra.mxu0 0.0
    %445 = vmatprep.subr.mxu0 0.0
    %446 = vmatpush1.msra.mxu0 0.0
    %447 = vmatprep.subr.mxu0 0.0
    %448 = vmatpush1.msra.mxu0 %v415
    %449 = vmatprep.subr.mxu0 0.0
    %450 = vmatpush1.msra.mxu0 %v414
    %451 = vmatprep.subr.mxu0 0.0
    %452 = vmatpush1.msra.mxu0 %v413
    %453 = vmatprep.subr.mxu0 0.0
    %454 = vmatpush1.msra.mxu0 %v412
    %455 = vmatprep.subr.mxu0 0.0
    %456 = vmatpush2.msra.mxu0 0.0
    %457 = vmatprep.subr.mxu0 0.0
    %458 = vmatpush2.msra.mxu0 0.0
    %459 = vmatprep.subr.mxu0 0.0
    %460 = vmatpush2.msra.mxu0 0.0
    %461 = vmatprep.subr.mxu0 0.0
    %462 = vmatpush2.msra.mxu0 0.0
    %463 = vmatprep.subr.mxu0 0.0
    %464 = vmatpush2.msra.mxu0 0.0
    %465 = vmatprep.subr.mxu0 0.0
    %466 = vmatpush2.msra.mxu0 0.0
    %467 = vmatprep.subr.mxu0 0.0
    %468 = vmatpush2.msra.mxu0 0.0
    %469 = vmatprep.subr.mxu0 0.0
    %470 = vmatpush2.msra.mxu0 0.0
    %471 = vmatprep.subr.mxu0 0.0
    %472 = vmatpush2.msra.mxu0 0.0
    %473 = vmatprep.subr.mxu0 0.0
    %474 = vmatpush2.msra.mxu0 0.0
    %475 = vmatprep.subr.mxu0 0.0
    %476 = vmatpush2.msra.mxu0 0.0
    %477 = vmatprep.subr.mxu0 0.0
    %478 = vmatpush2.msra.mxu0 0.0
    %479 = vmatprep.subr.mxu0 0.0
    %480 = vmatpush2.msra.mxu0 0.0
    %481 = vmatprep.subr.mxu0 0.0
    %482 = vmatpush2.msra.mxu0 0.0
    %483 = vmatprep.subr.mxu0 0.0
    %484 = vmatpush2.msra.mxu0 0.0
    %485 = vmatprep.subr.mxu0 0.0
    %486 = vmatpush2.msra.mxu0 0.0
    %487 = vmatprep.mubr.f32.mxu0 0.0
    %488 = vmatmul.mubr.f32.gmra.mxu0 %v418
    %v489 = vpop.f32.mrf.mxu0
    %v490 = vadd.f32 0.0, %v489
    %v491 = vpop.f32.mrf.mxu0
    %492 = vmatprep.mubr.f32.mxu0 0.0
    %493 = vmatmul.mubr.f32.gmra.mxu0 %v421
    %v494 = vpop.f32.mrf.mxu0
    %v495 = vadd.f32 0.0, %v494
    %v496 = vpop.f32.mrf.mxu0
    %497 = vdwg.mxu0
    %v500 = vrot.slane %v490, 1
    %v501 = vrot.slane %v490, 2
    %v502 = vrot.slane %v490, 3
    %v503 = vrot.slane %v490, 4
    %v504 = vrot.slane %v490, 5
    %v505 = vrot.slane %v490, 6
    %v506 = vrot.slane %v490, 7
    %v507 = vrot.slane %v495, 1
    %v508 = vrot.slane %v495, 2
    %v509 = vrot.slane %v495, 3
    %v510 = vrot.slane %v495, 4
    %v511 = vrot.slane %v495, 5
    %v512 = vrot.slane %v495, 6
    %v513 = vrot.slane %v495, 7
    %v530 = vadd.f32 %v248, %v490
    %v531 = vadd.f32 %v258, %v500
    %v532 = vadd.f32 %v268, %v501
    %v533 = vadd.f32 %v278, %v502
    %v534 = vadd.f32 %v288, %v503
    %v535 = vadd.f32 %v298, %v504
    %v536 = vadd.f32 %v308, %v505
    %v537 = vadd.f32 %v318, %v506
    %v538 = vadd.f32 %v328, %v495
    %v539 = vadd.f32 %v338, %v507
    %v540 = vadd.f32 %v348, %v508
    %v541 = vadd.f32 %v358, %v509
    %v542 = vadd.f32 %v368, %v510
    %v543 = vadd.f32 %v378, %v511
    %v544 = vadd.f32 %v388, %v512
    %v545 = vadd.f32 %v398, %v513
    %v546 = vld [vmem:[%s5] sm:$0x1]
    %547 = vset.pattern.permute.xlu0 0
    %548 = vperm.xlu0 %547, %v406
    %v549 = vpop.permute.xlu0 %548
    %551 = vset.pattern.permute.xlu0 0
    %552 = vperm.xlu0 %551, %v407
    %v553 = vpop.permute.xlu0 %552
    %v555 = vlaneseq
    %v556 = vshrl.u32 %v555, 7
    %v557 = vsub.s32 0, %v556
    %v558 = vrot.slane %v546, %v557
    %v559 = vmul.f32 %v549, %v558
    %v560 = vmul.f32 %v553, %v558
    %v561 = vld [vmem:[%s5 + $0x1] sm:$0x1]
    %562 = vset.pattern.permute.xlu0 1
    %563 = vperm.xlu0 %562, %v406
    %v564 = vpop.permute.xlu0 %563
    %566 = vset.pattern.permute.xlu0 1
    %567 = vperm.xlu0 %566, %v407
    %v568 = vpop.permute.xlu0 %567
    %v570 = vlaneseq
    %v571 = vshrl.u32 %v570, 7
    %v572 = vsub.s32 0, %v571
    %v573 = vrot.slane %v561, %v572
    %v574 = vmul.f32 %v564, %v573
    %v575 = vmul.f32 %v568, %v573
    %v576 = vadd.f32 %v559, %v574
    %v577 = vadd.f32 %v560, %v575
    %v578 = vstv %s411
    %v579 = vmul.f32 %v578, %v576
    %v580 = vmul.f32 %v578, %v577
    %v583 = vrot.slane %v579, 1
    %v584 = vrot.slane %v579, 2
    %v585 = vrot.slane %v579, 3
    %v586 = vrot.slane %v579, 4
    %v587 = vrot.slane %v579, 5
    %v588 = vrot.slane %v579, 6
    %v589 = vrot.slane %v579, 7
    %v590 = vrot.slane %v580, 1
    %v591 = vrot.slane %v580, 2
    %v592 = vrot.slane %v580, 3
    %v593 = vrot.slane %v580, 4
    %v594 = vrot.slane %v580, 5
    %v595 = vrot.slane %v580, 6
    %v596 = vrot.slane %v580, 7
    %v613 = vsub.f32 %v530, %v579
    %v614 = vsub.f32 %v531, %v583
    %v615 = vsub.f32 %v532, %v584
    %v616 = vsub.f32 %v533, %v585
    %v617 = vsub.f32 %v534, %v586
    %v618 = vsub.f32 %v535, %v587
    %v619 = vsub.f32 %v536, %v588
    %v620 = vsub.f32 %v537, %v589
    %v621 = vsub.f32 %v538, %v580
    %v622 = vsub.f32 %v539, %v590
    %v623 = vsub.f32 %v540, %v591
    %v624 = vsub.f32 %v541, %v592
    %v625 = vsub.f32 %v542, %v593
    %v626 = vsub.f32 %v543, %v594
    %v627 = vsub.f32 %v544, %v595
    %v628 = vsub.f32 %v545, %v596
    %v629 = vtanh.pop %v613
    %v630 = vtanh.pop %v614
    %v631 = vtanh.pop %v615
    %v632 = vtanh.pop %v616
    %v633 = vtanh.pop %v617
    %v634 = vtanh.pop %v618
    %v635 = vtanh.pop %v619
    %v636 = vtanh.pop %v620
    %v637 = vtanh.pop %v621
    %v638 = vtanh.pop %v622
    %v639 = vtanh.pop %v623
    %v640 = vtanh.pop %v624
    %v641 = vtanh.pop %v625
    %v642 = vtanh.pop %v626
    %v643 = vtanh.pop %v627
    %v644 = vtanh.pop %v628
    %v645 = vmul.f32 %v629, 0.5
    %v646 = vmul.f32 %v630, 0.5
    %v647 = vmul.f32 %v631, 0.5
    %v648 = vmul.f32 %v632, 0.5
    %v649 = vmul.f32 %v633, 0.5
    %v650 = vmul.f32 %v634, 0.5
    %v651 = vmul.f32 %v635, 0.5
    %v652 = vmul.f32 %v636, 0.5
    %v653 = vmul.f32 %v637, 0.5
    %v654 = vmul.f32 %v638, 0.5
    %v655 = vmul.f32 %v639, 0.5
    %v656 = vmul.f32 %v640, 0.5
    %v657 = vmul.f32 %v641, 0.5
    %v658 = vmul.f32 %v642, 0.5
    %v659 = vmul.f32 %v643, 0.5
    %v660 = vmul.f32 %v644, 0.5
    %v661 = vadd.f32 %v645, 0.5
    %v662 = vadd.f32 %v646, 0.5
    %v663 = vadd.f32 %v647, 0.5
    %v664 = vadd.f32 %v648, 0.5
    %v665 = vadd.f32 %v649, 0.5
    %v666 = vadd.f32 %v650, 0.5
    %v667 = vadd.f32 %v651, 0.5
    %v668 = vadd.f32 %v652, 0.5
    %v669 = vadd.f32 %v653, 0.5
    %v670 = vadd.f32 %v654, 0.5
    %v671 = vadd.f32 %v655, 0.5
    %v672 = vadd.f32 %v656, 0.5
    %v673 = vadd.f32 %v657, 0.5
    %v674 = vadd.f32 %v658, 0.5
    %v675 = vadd.f32 %v659, 0.5
    %v676 = vadd.f32 %v660, 0.5
    %v679 = vrot.slane %v408, 1
    %v680 = vrot.slane %v408, 2
    %v681 = vrot.slane %v408, 3
    %v682 = vrot.slane %v408, 4
    %v683 = vrot.slane %v408, 5
    %v684 = vrot.slane %v408, 6
    %v685 = vrot.slane %v408, 7
    %v686 = vrot.slane %v409, 1
    %v687 = vrot.slane %v409, 2
    %v688 = vrot.slane %v409, 3
    %v689 = vrot.slane %v409, 4
    %v690 = vrot.slane %v409, 5
    %v691 = vrot.slane %v409, 6
    %v692 = vrot.slane %v409, 7
    %693 = vrot.lane.b32.xlu0 %v408, 32
    %v694 = vpop.permute.xlu0 %693
    %695 = vrot.lane.b32.xlu0 %v679, 32
    %v696 = vpop.permute.xlu0 %695
    %697 = vrot.lane.b32.xlu0 %v680, 32
    %v698 = vpop.permute.xlu0 %697
    %699 = vrot.lane.b32.xlu0 %v681, 32
    %v700 = vpop.permute.xlu0 %699
    %701 = vrot.lane.b32.xlu0 %v682, 32
    %v702 = vpop.permute.xlu0 %701
    %703 = vrot.lane.b32.xlu0 %v683, 32
    %v704 = vpop.permute.xlu0 %703
    %705 = vrot.lane.b32.xlu0 %v684, 32
    %v706 = vpop.permute.xlu0 %705
    %707 = vrot.lane.b32.xlu0 %v685, 32
    %v708 = vpop.permute.xlu0 %707
    %709 = vrot.lane.b32.xlu0 %v409, 32
    %v710 = vpop.permute.xlu0 %709
    %711 = vrot.lane.b32.xlu0 %v686, 32
    %v712 = vpop.permute.xlu0 %711
    %713 = vrot.lane.b32.xlu0 %v687, 32
    %v714 = vpop.permute.xlu0 %713
    %715 = vrot.lane.b32.xlu0 %v688, 32
    %v716 = vpop.permute.xlu0 %715
    %717 = vrot.lane.b32.xlu0 %v689, 32
    %v718 = vpop.permute.xlu0 %717
    %719 = vrot.lane.b32.xlu0 %v690, 32
    %v720 = vpop.permute.xlu0 %719
    %721 = vrot.lane.b32.xlu0 %v691, 32
    %v722 = vpop.permute.xlu0 %721
    %723 = vrot.lane.b32.xlu0 %v692, 32
    %v724 = vpop.permute.xlu0 %723
    %v741 = vmul.f32 %v661, %v694
    %v742 = vmul.f32 %v662, %v696
    %v743 = vmul.f32 %v663, %v698
    %v744 = vmul.f32 %v664, %v700
    %v745 = vmul.f32 %v665, %v702
    %v746 = vmul.f32 %v666, %v704
    %v747 = vmul.f32 %v667, %v706
    %v748 = vmul.f32 %v668, %v708
    %v749 = vmul.f32 %v669, %v710
    %v750 = vmul.f32 %v670, %v712
    %v751 = vmul.f32 %v671, %v714
    %v752 = vmul.f32 %v672, %v716
    %v753 = vmul.f32 %v673, %v718
    %v754 = vmul.f32 %v674, %v720
    %v755 = vmul.f32 %v675, %v722
    %v756 = vmul.f32 %v676, %v724
    %773 = vrot.lane.b32.xlu0 %v629, 64
    %v774 = vpop.permute.xlu0 %773
    %775 = vrot.lane.b32.xlu0 %v630, 64
    %v776 = vpop.permute.xlu0 %775
    %777 = vrot.lane.b32.xlu0 %v631, 64
    %v778 = vpop.permute.xlu0 %777
    %779 = vrot.lane.b32.xlu0 %v632, 64
    %v780 = vpop.permute.xlu0 %779
    %781 = vrot.lane.b32.xlu0 %v633, 64
    %v782 = vpop.permute.xlu0 %781
    %783 = vrot.lane.b32.xlu0 %v634, 64
    %v784 = vpop.permute.xlu0 %783
    %785 = vrot.lane.b32.xlu0 %v635, 64
    %v786 = vpop.permute.xlu0 %785
    %787 = vrot.lane.b32.xlu0 %v636, 64
    %v788 = vpop.permute.xlu0 %787
    %789 = vrot.lane.b32.xlu0 %v637, 64
    %v790 = vpop.permute.xlu0 %789
    %791 = vrot.lane.b32.xlu0 %v638, 64
    %v792 = vpop.permute.xlu0 %791
    %793 = vrot.lane.b32.xlu0 %v639, 64
    %v794 = vpop.permute.xlu0 %793
    %795 = vrot.lane.b32.xlu0 %v640, 64
    %v796 = vpop.permute.xlu0 %795
    %797 = vrot.lane.b32.xlu0 %v641, 64
    %v798 = vpop.permute.xlu0 %797
    %799 = vrot.lane.b32.xlu0 %v642, 64
    %v800 = vpop.permute.xlu0 %799
    %801 = vrot.lane.b32.xlu0 %v643, 64
    %v802 = vpop.permute.xlu0 %801
    %803 = vrot.lane.b32.xlu0 %v644, 64
    %v804 = vpop.permute.xlu0 %803
    %v821 = vmul.f32 %v661, %v774
    %v822 = vmul.f32 %v662, %v776
    %v823 = vmul.f32 %v663, %v778
    %v824 = vmul.f32 %v664, %v780
    %v825 = vmul.f32 %v665, %v782
    %v826 = vmul.f32 %v666, %v784
    %v827 = vmul.f32 %v667, %v786
    %v828 = vmul.f32 %v668, %v788
    %v829 = vmul.f32 %v669, %v790
    %v830 = vmul.f32 %v670, %v792
    %v831 = vmul.f32 %v671, %v794
    %v832 = vmul.f32 %v672, %v796
    %v833 = vmul.f32 %v673, %v798
    %v834 = vmul.f32 %v674, %v800
    %v835 = vmul.f32 %v675, %v802
    %v836 = vmul.f32 %v676, %v804
    %853 = vrot.lane.b32.xlu0 %v821, 32
    %v854 = vpop.permute.xlu0 %853
    %855 = vrot.lane.b32.xlu0 %v822, 32
    %v856 = vpop.permute.xlu0 %855
    %857 = vrot.lane.b32.xlu0 %v823, 32
    %v858 = vpop.permute.xlu0 %857
    %859 = vrot.lane.b32.xlu0 %v824, 32
    %v860 = vpop.permute.xlu0 %859
    %861 = vrot.lane.b32.xlu0 %v825, 32
    %v862 = vpop.permute.xlu0 %861
    %863 = vrot.lane.b32.xlu0 %v826, 32
    %v864 = vpop.permute.xlu0 %863
    %865 = vrot.lane.b32.xlu0 %v827, 32
    %v866 = vpop.permute.xlu0 %865
    %867 = vrot.lane.b32.xlu0 %v828, 32
    %v868 = vpop.permute.xlu0 %867
    %869 = vrot.lane.b32.xlu0 %v829, 32
    %v870 = vpop.permute.xlu0 %869
    %871 = vrot.lane.b32.xlu0 %v830, 32
    %v872 = vpop.permute.xlu0 %871
    %873 = vrot.lane.b32.xlu0 %v831, 32
    %v874 = vpop.permute.xlu0 %873
    %875 = vrot.lane.b32.xlu0 %v832, 32
    %v876 = vpop.permute.xlu0 %875
    %877 = vrot.lane.b32.xlu0 %v833, 32
    %v878 = vpop.permute.xlu0 %877
    %879 = vrot.lane.b32.xlu0 %v834, 32
    %v880 = vpop.permute.xlu0 %879
    %881 = vrot.lane.b32.xlu0 %v835, 32
    %v882 = vpop.permute.xlu0 %881
    %883 = vrot.lane.b32.xlu0 %v836, 32
    %v884 = vpop.permute.xlu0 %883
    %v901 = vadd.f32 %v741, %v854
    %v902 = vadd.f32 %v742, %v856
    %v903 = vadd.f32 %v743, %v858
    %v904 = vadd.f32 %v744, %v860
    %v905 = vadd.f32 %v745, %v862
    %v906 = vadd.f32 %v746, %v864
    %v907 = vadd.f32 %v747, %v866
    %v908 = vadd.f32 %v748, %v868
    %v909 = vadd.f32 %v749, %v870
    %v910 = vadd.f32 %v750, %v872
    %v911 = vadd.f32 %v751, %v874
    %v912 = vadd.f32 %v752, %v876
    %v913 = vadd.f32 %v753, %v878
    %v914 = vadd.f32 %v754, %v880
    %v915 = vadd.f32 %v755, %v882
    %v916 = vadd.f32 %v756, %v884
    %v917 = vtanh.pop %v901
    %v918 = vtanh.pop %v902
    %v919 = vtanh.pop %v903
    %v920 = vtanh.pop %v904
    %v921 = vtanh.pop %v905
    %v922 = vtanh.pop %v906
    %v923 = vtanh.pop %v907
    %v924 = vtanh.pop %v908
    %v925 = vtanh.pop %v909
    %v926 = vtanh.pop %v910
    %v927 = vtanh.pop %v911
    %v928 = vtanh.pop %v912
    %v929 = vtanh.pop %v913
    %v930 = vtanh.pop %v914
    %v931 = vtanh.pop %v915
    %v932 = vtanh.pop %v916
    %949 = vrot.lane.b32.xlu0 %v917, 64
    %v950 = vpop.permute.xlu0 %949
    %951 = vrot.lane.b32.xlu0 %v918, 64
    %v952 = vpop.permute.xlu0 %951
    %953 = vrot.lane.b32.xlu0 %v919, 64
    %v954 = vpop.permute.xlu0 %953
    %955 = vrot.lane.b32.xlu0 %v920, 64
    %v956 = vpop.permute.xlu0 %955
    %957 = vrot.lane.b32.xlu0 %v921, 64
    %v958 = vpop.permute.xlu0 %957
    %959 = vrot.lane.b32.xlu0 %v922, 64
    %v960 = vpop.permute.xlu0 %959
    %961 = vrot.lane.b32.xlu0 %v923, 64
    %v962 = vpop.permute.xlu0 %961
    %963 = vrot.lane.b32.xlu0 %v924, 64
    %v964 = vpop.permute.xlu0 %963
    %965 = vrot.lane.b32.xlu0 %v925, 64
    %v966 = vpop.permute.xlu0 %965
    %967 = vrot.lane.b32.xlu0 %v926, 64
    %v968 = vpop.permute.xlu0 %967
    %969 = vrot.lane.b32.xlu0 %v927, 64
    %v970 = vpop.permute.xlu0 %969
    %971 = vrot.lane.b32.xlu0 %v928, 64
    %v972 = vpop.permute.xlu0 %971
    %973 = vrot.lane.b32.xlu0 %v929, 64
    %v974 = vpop.permute.xlu0 %973
    %975 = vrot.lane.b32.xlu0 %v930, 64
    %v976 = vpop.permute.xlu0 %975
    %977 = vrot.lane.b32.xlu0 %v931, 64
    %v978 = vpop.permute.xlu0 %977
    %979 = vrot.lane.b32.xlu0 %v932, 64
    %v980 = vpop.permute.xlu0 %979
    %v997 = vmul.f32 %v661, %v950
    %v998 = vmul.f32 %v662, %v952
    %v999 = vmul.f32 %v663, %v954
    %v1000 = vmul.f32 %v664, %v956
    %v1001 = vmul.f32 %v665, %v958
    %v1002 = vmul.f32 %v666, %v960
    %v1003 = vmul.f32 %v667, %v962
    %v1004 = vmul.f32 %v668, %v964
    %v1005 = vmul.f32 %v669, %v966
    %v1006 = vmul.f32 %v670, %v968
    %v1007 = vmul.f32 %v671, %v970
    %v1008 = vmul.f32 %v672, %v972
    %v1009 = vmul.f32 %v673, %v974
    %v1010 = vmul.f32 %v674, %v976
    %v1011 = vmul.f32 %v675, %v978
    %v1012 = vmul.f32 %v676, %v980
    %v1029 = vrot.slane %v998, 7
    %vm1030 = vcmask 1041409
    %v1031 = vsel %vm1030, %v1029, %v997
    %v1032 = vrot.slane %v999, 6
    %vm1033 = vcmask 1042434
    %v1034 = vsel %vm1033, %v1032, %v1031
    %v1035 = vrot.slane %v1000, 5
    %vm1036 = vcmask 1043459
    %v1037 = vsel %vm1036, %v1035, %v1034
    %v1038 = vrot.slane %v1001, 4
    %vm1039 = vcmask 1044484
    %v1040 = vsel %vm1039, %v1038, %v1037
    %v1041 = vrot.slane %v1002, 3
    %vm1042 = vcmask 1045509
    %v1043 = vsel %vm1042, %v1041, %v1040
    %v1044 = vrot.slane %v1003, 2
    %vm1045 = vcmask 1046534
    %v1046 = vsel %vm1045, %v1044, %v1043
    %v1047 = vrot.slane %v1004, 1
    %vm1048 = vcmask 1047559
    %v1049 = vsel %vm1048, %v1047, %v1046
    %v1050 = vrot.slane %v1006, 7
    %v1051 = vsel %vm1030, %v1050, %v1005
    %v1052 = vrot.slane %v1007, 6
    %v1053 = vsel %vm1033, %v1052, %v1051
    %v1054 = vrot.slane %v1008, 5
    %v1055 = vsel %vm1036, %v1054, %v1053
    %v1056 = vrot.slane %v1009, 4
    %v1057 = vsel %vm1039, %v1056, %v1055
    %v1058 = vrot.slane %v1010, 3
    %v1059 = vsel %vm1042, %v1058, %v1057
    %v1060 = vrot.slane %v1011, 2
    %v1061 = vsel %vm1045, %v1060, %v1059
    %v1062 = vrot.slane %v1012, 1
    %v1063 = vsel %vm1048, %v1062, %v1061
    %1064 = vrot.lane.b32.xlu0 %v1049, 32
    %v1065 = vpop.permute.xlu0 %1064
    %1066 = vrot.lane.b32.xlu0 %v1063, 32
    %v1067 = vpop.permute.xlu0 %1066
    %1070 = vst.msk [vmem:[#allocation2] sm:$0xff] %vm416, %v1065
    %1071 = vst.msk [vmem:[#allocation2 + $0x20] sm:$0xff] %vm416, %v1067
    %v1072 = vld [vmem:[%s4] sm:$0xff]
    %v1073 = vld [vmem:[%s4 + $0x8] sm:$0xff]
    %v1074 = vld [vmem:[%s4 + $0x10] sm:$0xff]
    %v1075 = vld [vmem:[%s4 + $0x18] sm:$0xff]
    %v1076 = vsel %vm416, %v1065, 0
    %v1078 = vsel %vm416, %v1067, 0
    %1080 = vmatprep.subr.mxu0 0.0
    %1081 = vmatpush1.msra.mxu0 0.0
    %1082 = vmatprep.subr.mxu0 0.0
    %1083 = vmatpush1.msra.mxu0 0.0
    %1084 = vmatprep.subr.mxu0 0.0
    %1085 = vmatpush1.msra.mxu0 0.0
    %1086 = vmatprep.subr.mxu0 0.0
    %1087 = vmatpush1.msra.mxu0 0.0
    %1088 = vmatprep.subr.mxu0 0.0
    %1089 = vmatpush1.msra.mxu0 0.0
    %1090 = vmatprep.subr.mxu0 0.0
    %1091 = vmatpush1.msra.mxu0 0.0
    %1092 = vmatprep.subr.mxu0 0.0
    %1093 = vmatpush1.msra.mxu0 0.0
    %1094 = vmatprep.subr.mxu0 0.0
    %1095 = vmatpush1.msra.mxu0 0.0
    %1096 = vmatprep.subr.mxu0 0.0
    %1097 = vmatpush1.msra.mxu0 0.0
    %1098 = vmatprep.subr.mxu0 0.0
    %1099 = vmatpush1.msra.mxu0 0.0
    %1100 = vmatprep.subr.mxu0 0.0
    %1101 = vmatpush1.msra.mxu0 0.0
    %1102 = vmatprep.subr.mxu0 0.0
    %1103 = vmatpush1.msra.mxu0 0.0
    %1104 = vmatprep.subr.mxu0 0.0
    %1105 = vmatpush1.msra.mxu0 %v1075
    %1106 = vmatprep.subr.mxu0 0.0
    %1107 = vmatpush1.msra.mxu0 %v1074
    %1108 = vmatprep.subr.mxu0 0.0
    %1109 = vmatpush1.msra.mxu0 %v1073
    %1110 = vmatprep.subr.mxu0 0.0
    %1111 = vmatpush1.msra.mxu0 %v1072
    %1112 = vmatprep.subr.mxu0 0.0
    %1113 = vmatpush2.msra.mxu0 0.0
    %1114 = vmatprep.subr.mxu0 0.0
    %1115 = vmatpush2.msra.mxu0 0.0
    %1116 = vmatprep.subr.mxu0 0.0
    %1117 = vmatpush2.msra.mxu0 0.0
    %1118 = vmatprep.subr.mxu0 0.0
    %1119 = vmatpush2.msra.mxu0 0.0
    %1120 = vmatprep.subr.mxu0 0.0
    %1121 = vmatpush2.msra.mxu0 0.0
    %1122 = vmatprep.subr.mxu0 0.0
    %1123 = vmatpush2.msra.mxu0 0.0
    %1124 = vmatprep.subr.mxu0 0.0
    %1125 = vmatpush2.msra.mxu0 0.0
    %1126 = vmatprep.subr.mxu0 0.0
    %1127 = vmatpush2.msra.mxu0 0.0
    %1128 = vmatprep.subr.mxu0 0.0
    %1129 = vmatpush2.msra.mxu0 0.0
    %1130 = vmatprep.subr.mxu0 0.0
    %1131 = vmatpush2.msra.mxu0 0.0
    %1132 = vmatprep.subr.mxu0 0.0
    %1133 = vmatpush2.msra.mxu0 0.0
    %1134 = vmatprep.subr.mxu0 0.0
    %1135 = vmatpush2.msra.mxu0 0.0
    %1136 = vmatprep.subr.mxu0 0.0
    %1137 = vmatpush2.msra.mxu0 0.0
    %1138 = vmatprep.subr.mxu0 0.0
    %1139 = vmatpush2.msra.mxu0 0.0
    %1140 = vmatprep.subr.mxu0 0.0
    %1141 = vmatpush2.msra.mxu0 0.0
    %1142 = vmatprep.subr.mxu0 0.0
    %1143 = vmatpush2.msra.mxu0 0.0
    %1144 = vmatprep.mubr.f32.mxu0 0.0
    %1145 = vmatmul.mubr.f32.gmra.mxu0 %v1076
    %v1146 = vpop.f32.mrf.mxu0
    %v1147 = vadd.f32 0.0, %v1146
    %v1148 = vpop.f32.mrf.mxu0
    %1149 = vmatprep.mubr.f32.mxu0 0.0
    %1150 = vmatmul.mubr.f32.gmra.mxu0 %v1078
    %v1151 = vpop.f32.mrf.mxu0
    %v1152 = vadd.f32 0.0, %v1151
    %v1153 = vpop.f32.mrf.mxu0
    %1154 = vdwg.mxu0
    %v1157 = vrot.slane %v1147, 7
    %v1158 = vrot.slane %v1147, 1
    %v1159 = vrot.slane %v1147, 2
    %v1160 = vrot.slane %v1147, 3
    %v1161 = vrot.slane %v1147, 4
    %v1162 = vrot.slane %v1147, 5
    %v1163 = vrot.slane %v1147, 6
    %v1164 = vrot.slane %v1152, 7
    %v1165 = vrot.slane %v1152, 1
    %v1166 = vrot.slane %v1152, 2
    %v1167 = vrot.slane %v1152, 3
    %v1168 = vrot.slane %v1152, 4
    %v1169 = vrot.slane %v1152, 5
    %v1170 = vrot.slane %v1152, 6
    %v1187 = vadd.f32 %v248, %v1157
    %v1188 = vadd.f32 %v258, %v1147
    %v1189 = vadd.f32 %v268, %v1158
    %v1190 = vadd.f32 %v278, %v1159
    %v1191 = vadd.f32 %v288, %v1160
    %v1192 = vadd.f32 %v298, %v1161
    %v1193 = vadd.f32 %v308, %v1162
    %v1194 = vadd.f32 %v318, %v1163
    %v1195 = vadd.f32 %v328, %v1164
    %v1196 = vadd.f32 %v338, %v1152
    %v1197 = vadd.f32 %v348, %v1165
    %v1198 = vadd.f32 %v358, %v1166
    %v1199 = vadd.f32 %v368, %v1167
    %v1200 = vadd.f32 %v378, %v1168
    %v1201 = vadd.f32 %v388, %v1169
    %v1202 = vadd.f32 %v398, %v1170
    %v1203 = vtanh.pop %v1187
    %v1204 = vtanh.pop %v1188
    %v1205 = vtanh.pop %v1189
    %v1206 = vtanh.pop %v1190
    %v1207 = vtanh.pop %v1191
    %v1208 = vtanh.pop %v1192
    %v1209 = vtanh.pop %v1193
    %v1210 = vtanh.pop %v1194
    %v1211 = vtanh.pop %v1195
    %v1212 = vtanh.pop %v1196
    %v1213 = vtanh.pop %v1197
    %v1214 = vtanh.pop %v1198
    %v1215 = vtanh.pop %v1199
    %v1216 = vtanh.pop %v1200
    %v1217 = vtanh.pop %v1201
    %v1218 = vtanh.pop %v1202
    %v1219 = vmul.f32 %v1203, 0.5
    %v1220 = vmul.f32 %v1204, 0.5
    %v1221 = vmul.f32 %v1205, 0.5
    %v1222 = vmul.f32 %v1206, 0.5
    %v1223 = vmul.f32 %v1207, 0.5
    %v1224 = vmul.f32 %v1208, 0.5
    %v1225 = vmul.f32 %v1209, 0.5
    %v1226 = vmul.f32 %v1210, 0.5
    %v1227 = vmul.f32 %v1211, 0.5
    %v1228 = vmul.f32 %v1212, 0.5
    %v1229 = vmul.f32 %v1213, 0.5
    %v1230 = vmul.f32 %v1214, 0.5
    %v1231 = vmul.f32 %v1215, 0.5
    %v1232 = vmul.f32 %v1216, 0.5
    %v1233 = vmul.f32 %v1217, 0.5
    %v1234 = vmul.f32 %v1218, 0.5
    %v1235 = vadd.f32 %v1219, 0.5
    %v1236 = vadd.f32 %v1220, 0.5
    %v1237 = vadd.f32 %v1221, 0.5
    %v1238 = vadd.f32 %v1222, 0.5
    %v1239 = vadd.f32 %v1223, 0.5
    %v1240 = vadd.f32 %v1224, 0.5
    %v1241 = vadd.f32 %v1225, 0.5
    %v1242 = vadd.f32 %v1226, 0.5
    %v1243 = vadd.f32 %v1227, 0.5
    %v1244 = vadd.f32 %v1228, 0.5
    %v1245 = vadd.f32 %v1229, 0.5
    %v1246 = vadd.f32 %v1230, 0.5
    %v1247 = vadd.f32 %v1231, 0.5
    %v1248 = vadd.f32 %v1232, 0.5
    %v1249 = vadd.f32 %v1233, 0.5
    %v1250 = vadd.f32 %v1234, 0.5
    %v1267 = vrot.slane %v901, 7
    %v1268 = vrot.slane %v902, 7
    %v1269 = vrot.slane %v903, 7
    %v1270 = vrot.slane %v904, 7
    %v1271 = vrot.slane %v905, 7
    %v1272 = vrot.slane %v906, 7
    %v1273 = vrot.slane %v907, 7
    %v1274 = vrot.slane %v908, 7
    %v1275 = vrot.slane %v909, 7
    %v1276 = vrot.slane %v910, 7
    %v1277 = vrot.slane %v911, 7
    %v1278 = vrot.slane %v912, 7
    %v1279 = vrot.slane %v913, 7
    %v1280 = vrot.slane %v914, 7
    %v1281 = vrot.slane %v915, 7
    %v1282 = vrot.slane %v916, 7
    %v1299 = vmul.f32 %v1235, %v1267
    %v1300 = vmul.f32 %v1236, %v1268
    %v1301 = vmul.f32 %v1237, %v1269
    %v1302 = vmul.f32 %v1238, %v1270
    %v1303 = vmul.f32 %v1239, %v1271
    %v1304 = vmul.f32 %v1240, %v1272
    %v1305 = vmul.f32 %v1241, %v1273
    %v1306 = vmul.f32 %v1242, %v1274
    %v1307 = vmul.f32 %v1243, %v1275
    %v1308 = vmul.f32 %v1244, %v1276
    %v1309 = vmul.f32 %v1245, %v1277
    %v1310 = vmul.f32 %v1246, %v1278
    %v1311 = vmul.f32 %v1247, %v1279
    %v1312 = vmul.f32 %v1248, %v1280
    %v1313 = vmul.f32 %v1249, %v1281
    %v1314 = vmul.f32 %v1250, %v1282
    %1331 = vrot.lane.b32.xlu0 %v1203, 64
    %v1332 = vpop.permute.xlu0 %1331
    %1333 = vrot.lane.b32.xlu0 %v1204, 64
    %v1334 = vpop.permute.xlu0 %1333
    %1335 = vrot.lane.b32.xlu0 %v1205, 64
    %v1336 = vpop.permute.xlu0 %1335
    %1337 = vrot.lane.b32.xlu0 %v1206, 64
    %v1338 = vpop.permute.xlu0 %1337
    %1339 = vrot.lane.b32.xlu0 %v1207, 64
    %v1340 = vpop.permute.xlu0 %1339
    %1341 = vrot.lane.b32.xlu0 %v1208, 64
    %v1342 = vpop.permute.xlu0 %1341
    %1343 = vrot.lane.b32.xlu0 %v1209, 64
    %v1344 = vpop.permute.xlu0 %1343
    %1345 = vrot.lane.b32.xlu0 %v1210, 64
    %v1346 = vpop.permute.xlu0 %1345
    %1347 = vrot.lane.b32.xlu0 %v1211, 64
    %v1348 = vpop.permute.xlu0 %1347
    %1349 = vrot.lane.b32.xlu0 %v1212, 64
    %v1350 = vpop.permute.xlu0 %1349
    %1351 = vrot.lane.b32.xlu0 %v1213, 64
    %v1352 = vpop.permute.xlu0 %1351
    %1353 = vrot.lane.b32.xlu0 %v1214, 64
    %v1354 = vpop.permute.xlu0 %1353
    %1355 = vrot.lane.b32.xlu0 %v1215, 64
    %v1356 = vpop.permute.xlu0 %1355
    %1357 = vrot.lane.b32.xlu0 %v1216, 64
    %v1358 = vpop.permute.xlu0 %1357
    %1359 = vrot.lane.b32.xlu0 %v1217, 64
    %v1360 = vpop.permute.xlu0 %1359
    %1361 = vrot.lane.b32.xlu0 %v1218, 64
    %v1362 = vpop.permute.xlu0 %1361
    %v1379 = vmul.f32 %v1235, %v1332
    %v1380 = vmul.f32 %v1236, %v1334
    %v1381 = vmul.f32 %v1237, %v1336
    %v1382 = vmul.f32 %v1238, %v1338
    %v1383 = vmul.f32 %v1239, %v1340
    %v1384 = vmul.f32 %v1240, %v1342
    %v1385 = vmul.f32 %v1241, %v1344
    %v1386 = vmul.f32 %v1242, %v1346
    %v1387 = vmul.f32 %v1243, %v1348
    %v1388 = vmul.f32 %v1244, %v1350
    %v1389 = vmul.f32 %v1245, %v1352
    %v1390 = vmul.f32 %v1246, %v1354
    %v1391 = vmul.f32 %v1247, %v1356
    %v1392 = vmul.f32 %v1248, %v1358
    %v1393 = vmul.f32 %v1249, %v1360
    %v1394 = vmul.f32 %v1250, %v1362
    %1411 = vrot.lane.b32.xlu0 %v1379, 32
    %v1412 = vpop.permute.xlu0 %1411
    %1413 = vrot.lane.b32.xlu0 %v1380, 32
    %v1414 = vpop.permute.xlu0 %1413
    %1415 = vrot.lane.b32.xlu0 %v1381, 32
    %v1416 = vpop.permute.xlu0 %1415
    %1417 = vrot.lane.b32.xlu0 %v1382, 32
    %v1418 = vpop.permute.xlu0 %1417
    %1419 = vrot.lane.b32.xlu0 %v1383, 32
    %v1420 = vpop.permute.xlu0 %1419
    %1421 = vrot.lane.b32.xlu0 %v1384, 32
    %v1422 = vpop.permute.xlu0 %1421
    %1423 = vrot.lane.b32.xlu0 %v1385, 32
    %v1424 = vpop.permute.xlu0 %1423
    %1425 = vrot.lane.b32.xlu0 %v1386, 32
    %v1426 = vpop.permute.xlu0 %1425
    %1427 = vrot.lane.b32.xlu0 %v1387, 32
    %v1428 = vpop.permute.xlu0 %1427
    %1429 = vrot.lane.b32.xlu0 %v1388, 32
    %v1430 = vpop.permute.xlu0 %1429
    %1431 = vrot.lane.b32.xlu0 %v1389, 32
    %v1432 = vpop.permute.xlu0 %1431
    %1433 = vrot.lane.b32.xlu0 %v1390, 32
    %v1434 = vpop.permute.xlu0 %1433
    %1435 = vrot.lane.b32.xlu0 %v1391, 32
    %v1436 = vpop.permute.xlu0 %1435
    %1437 = vrot.lane.b32.xlu0 %v1392, 32
    %v1438 = vpop.permute.xlu0 %1437
    %1439 = vrot.lane.b32.xlu0 %v1393, 32
    %v1440 = vpop.permute.xlu0 %1439
    %1441 = vrot.lane.b32.xlu0 %v1394, 32
    %v1442 = vpop.permute.xlu0 %1441
    %v1459 = vadd.f32 %v1299, %v1412
    %v1460 = vadd.f32 %v1300, %v1414
    %v1461 = vadd.f32 %v1301, %v1416
    %v1462 = vadd.f32 %v1302, %v1418
    %v1463 = vadd.f32 %v1303, %v1420
    %v1464 = vadd.f32 %v1304, %v1422
    %v1465 = vadd.f32 %v1305, %v1424
    %v1466 = vadd.f32 %v1306, %v1426
    %v1467 = vadd.f32 %v1307, %v1428
    %v1468 = vadd.f32 %v1308, %v1430
    %v1469 = vadd.f32 %v1309, %v1432
    %v1470 = vadd.f32 %v1310, %v1434
    %v1471 = vadd.f32 %v1311, %v1436
    %v1472 = vadd.f32 %v1312, %v1438
    %v1473 = vadd.f32 %v1313, %v1440
    %v1474 = vadd.f32 %v1314, %v1442
    %v1475 = vtanh.pop %v1459
    %v1476 = vtanh.pop %v1460
    %v1477 = vtanh.pop %v1461
    %v1478 = vtanh.pop %v1462
    %v1479 = vtanh.pop %v1463
    %v1480 = vtanh.pop %v1464
    %v1481 = vtanh.pop %v1465
    %v1482 = vtanh.pop %v1466
    %v1483 = vtanh.pop %v1467
    %v1484 = vtanh.pop %v1468
    %v1485 = vtanh.pop %v1469
    %v1486 = vtanh.pop %v1470
    %v1487 = vtanh.pop %v1471
    %v1488 = vtanh.pop %v1472
    %v1489 = vtanh.pop %v1473
    %v1490 = vtanh.pop %v1474
    %1507 = vrot.lane.b32.xlu0 %v1475, 64
    %v1508 = vpop.permute.xlu0 %1507
    %1509 = vrot.lane.b32.xlu0 %v1476, 64
    %v1510 = vpop.permute.xlu0 %1509
    %1511 = vrot.lane.b32.xlu0 %v1477, 64
    %v1512 = vpop.permute.xlu0 %1511
    %1513 = vrot.lane.b32.xlu0 %v1478, 64
    %v1514 = vpop.permute.xlu0 %1513
    %1515 = vrot.lane.b32.xlu0 %v1479, 64
    %v1516 = vpop.permute.xlu0 %1515
    %1517 = vrot.lane.b32.xlu0 %v1480, 64
    %v1518 = vpop.permute.xlu0 %1517
    %1519 = vrot.lane.b32.xlu0 %v1481, 64
    %v1520 = vpop.permute.xlu0 %1519
    %1521 = vrot.lane.b32.xlu0 %v1482, 64
    %v1522 = vpop.permute.xlu0 %1521
    %1523 = vrot.lane.b32.xlu0 %v1483, 64
    %v1524 = vpop.permute.xlu0 %1523
    %1525 = vrot.lane.b32.xlu0 %v1484, 64
    %v1526 = vpop.permute.xlu0 %1525
    %1527 = vrot.lane.b32.xlu0 %v1485, 64
    %v1528 = vpop.permute.xlu0 %1527
    %1529 = vrot.lane.b32.xlu0 %v1486, 64
    %v1530 = vpop.permute.xlu0 %1529
    %1531 = vrot.lane.b32.xlu0 %v1487, 64
    %v1532 = vpop.permute.xlu0 %1531
    %1533 = vrot.lane.b32.xlu0 %v1488, 64
    %v1534 = vpop.permute.xlu0 %1533
    %1535 = vrot.lane.b32.xlu0 %v1489, 64
    %v1536 = vpop.permute.xlu0 %1535
    %1537 = vrot.lane.b32.xlu0 %v1490, 64
    %v1538 = vpop.permute.xlu0 %1537
    %v1555 = vmul.f32 %v1235, %v1508
    %v1556 = vmul.f32 %v1236, %v1510
    %v1557 = vmul.f32 %v1237, %v1512
    %v1558 = vmul.f32 %v1238, %v1514
    %v1559 = vmul.f32 %v1239, %v1516
    %v1560 = vmul.f32 %v1240, %v1518
    %v1561 = vmul.f32 %v1241, %v1520
    %v1562 = vmul.f32 %v1242, %v1522
    %v1563 = vmul.f32 %v1243, %v1524
    %v1564 = vmul.f32 %v1244, %v1526
    %v1565 = vmul.f32 %v1245, %v1528
    %v1566 = vmul.f32 %v1246, %v1530
    %v1567 = vmul.f32 %v1247, %v1532
    %v1568 = vmul.f32 %v1248, %v1534
    %v1569 = vmul.f32 %v1249, %v1536
    %v1570 = vmul.f32 %v1250, %v1538
    %v1587 = vrot.slane %v1555, 1
    %v1588 = vsel %vm1030, %v1556, %v1587
    %v1589 = vrot.slane %v1557, 7
    %v1590 = vsel %vm1033, %v1589, %v1588
    %v1591 = vrot.slane %v1558, 6
    %v1592 = vsel %vm1036, %v1591, %v1590
    %v1593 = vrot.slane %v1559, 5
    %v1594 = vsel %vm1039, %v1593, %v1592
    %v1595 = vrot.slane %v1560, 4
    %v1596 = vsel %vm1042, %v1595, %v1594
    %v1597 = vrot.slane %v1561, 3
    %v1598 = vsel %vm1045, %v1597, %v1596
    %v1599 = vrot.slane %v1562, 2
    %v1600 = vsel %vm1048, %v1599, %v1598
    %v1601 = vrot.slane %v1563, 1
    %v1602 = vsel %vm1030, %v1564, %v1601
    %v1603 = vrot.slane %v1565, 7
    %v1604 = vsel %vm1033, %v1603, %v1602
    %v1605 = vrot.slane %v1566, 6
    %v1606 = vsel %vm1036, %v1605, %v1604
    %v1607 = vrot.slane %v1567, 5
    %v1608 = vsel %vm1039, %v1607, %v1606
    %v1609 = vrot.slane %v1568, 4
    %v1610 = vsel %vm1042, %v1609, %v1608
    %v1611 = vrot.slane %v1569, 3
    %v1612 = vsel %vm1045, %v1611, %v1610
    %v1613 = vrot.slane %v1570, 2
    %v1614 = vsel %vm1048, %v1613, %v1612
    %1615 = vrot.lane.b32.xlu0 %v1600, 64
    %v1616 = vpop.permute.xlu0 %1615
    %1617 = vrot.lane.b32.xlu0 %v1614, 64
    %v1618 = vpop.permute.xlu0 %1617
    %vm1621 = vcmask 523520
    %1622 = vst.msk [vmem:[#allocation2] sm:$0xff] %vm1621, %v1616
    %1623 = vst.msk [vmem:[#allocation2 + $0x20] sm:$0xff] %vm1621, %v1618
    %v1624 = vld [vmem:[%s4] sm:$0xff]
    %v1625 = vld [vmem:[%s4 + $0x8] sm:$0xff]
    %v1626 = vld [vmem:[%s4 + $0x10] sm:$0xff]
    %v1627 = vld [vmem:[%s4 + $0x18] sm:$0xff]
    %1628 = vrot.lane.b32.xlu0 %v1600, 32
    %v1629 = vpop.permute.xlu0 %1628
    %1630 = vrot.lane.b32.xlu0 %v1614, 32
    %v1631 = vpop.permute.xlu0 %1630
    %v1632 = vsel %vm416, %v1629, 0
    %v1634 = vsel %vm416, %v1631, 0
    %1636 = vmatprep.subr.mxu0 0.0
    %1637 = vmatpush1.msra.mxu0 0.0
    %1638 = vmatprep.subr.mxu0 0.0
    %1639 = vmatpush1.msra.mxu0 0.0
    %1640 = vmatprep.subr.mxu0 0.0
    %1641 = vmatpush1.msra.mxu0 0.0
    %1642 = vmatprep.subr.mxu0 0.0
    %1643 = vmatpush1.msra.mxu0 0.0
    %1644 = vmatprep.subr.mxu0 0.0
    %1645 = vmatpush1.msra.mxu0 0.0
    %1646 = vmatprep.subr.mxu0 0.0
    %1647 = vmatpush1.msra.mxu0 0.0
    %1648 = vmatprep.subr.mxu0 0.0
    %1649 = vmatpush1.msra.mxu0 0.0
    %1650 = vmatprep.subr.mxu0 0.0
    %1651 = vmatpush1.msra.mxu0 0.0
    %1652 = vmatprep.subr.mxu0 0.0
    %1653 = vmatpush1.msra.mxu0 0.0
    %1654 = vmatprep.subr.mxu0 0.0
    %1655 = vmatpush1.msra.mxu0 0.0
    %1656 = vmatprep.subr.mxu0 0.0
    %1657 = vmatpush1.msra.mxu0 0.0
    %1658 = vmatprep.subr.mxu0 0.0
    %1659 = vmatpush1.msra.mxu0 0.0
    %1660 = vmatprep.subr.mxu0 0.0
    %1661 = vmatpush1.msra.mxu0 %v1627
    %1662 = vmatprep.subr.mxu0 0.0
    %1663 = vmatpush1.msra.mxu0 %v1626
    %1664 = vmatprep.subr.mxu0 0.0
    %1665 = vmatpush1.msra.mxu0 %v1625
    %1666 = vmatprep.subr.mxu0 0.0
    %1667 = vmatpush1.msra.mxu0 %v1624
    %1668 = vmatprep.subr.mxu0 0.0
    %1669 = vmatpush2.msra.mxu0 0.0
    %1670 = vmatprep.subr.mxu0 0.0
    %1671 = vmatpush2.msra.mxu0 0.0
    %1672 = vmatprep.subr.mxu0 0.0
    %1673 = vmatpush2.msra.mxu0 0.0
    %1674 = vmatprep.subr.mxu0 0.0
    %1675 = vmatpush2.msra.mxu0 0.0
    %1676 = vmatprep.subr.mxu0 0.0
    %1677 = vmatpush2.msra.mxu0 0.0
    %1678 = vmatprep.subr.mxu0 0.0
    %1679 = vmatpush2.msra.mxu0 0.0
    %1680 = vmatprep.subr.mxu0 0.0
    %1681 = vmatpush2.msra.mxu0 0.0
    %1682 = vmatprep.subr.mxu0 0.0
    %1683 = vmatpush2.msra.mxu0 0.0
    %1684 = vmatprep.subr.mxu0 0.0
    %1685 = vmatpush2.msra.mxu0 0.0
    %1686 = vmatprep.subr.mxu0 0.0
    %1687 = vmatpush2.msra.mxu0 0.0
    %1688 = vmatprep.subr.mxu0 0.0
    %1689 = vmatpush2.msra.mxu0 0.0
    %1690 = vmatprep.subr.mxu0 0.0
    %1691 = vmatpush2.msra.mxu0 0.0
    %1692 = vmatprep.subr.mxu0 0.0
    %1693 = vmatpush2.msra.mxu0 0.0
    %1694 = vmatprep.subr.mxu0 0.0
    %1695 = vmatpush2.msra.mxu0 0.0
    %1696 = vmatprep.subr.mxu0 0.0
    %1697 = vmatpush2.msra.mxu0 0.0
    %1698 = vmatprep.subr.mxu0 0.0
    %1699 = vmatpush2.msra.mxu0 0.0
    %1700 = vmatprep.mubr.f32.mxu0 0.0
    %1701 = vmatmul.mubr.f32.gmra.mxu0 %v1632
    %v1702 = vpop.f32.mrf.mxu0
    %v1703 = vadd.f32 0.0, %v1702
    %v1704 = vpop.f32.mrf.mxu0
    %1705 = vmatprep.mubr.f32.mxu0 0.0
    %1706 = vmatmul.mubr.f32.gmra.mxu0 %v1634
    %v1707 = vpop.f32.mrf.mxu0
    %v1708 = vadd.f32 0.0, %v1707
    %v1709 = vpop.f32.mrf.mxu0
    %1710 = vdwg.mxu0
    %v1713 = vrot.slane %v1703, 6
    %v1714 = vrot.slane %v1703, 7
    %v1715 = vrot.slane %v1703, 1
    %v1716 = vrot.slane %v1703, 2
    %v1717 = vrot.slane %v1703, 3
    %v1718 = vrot.slane %v1703, 4
    %v1719 = vrot.slane %v1703, 5
    %v1720 = vrot.slane %v1708, 6
    %v1721 = vrot.slane %v1708, 7
    %v1722 = vrot.slane %v1708, 1
    %v1723 = vrot.slane %v1708, 2
    %v1724 = vrot.slane %v1708, 3
    %v1725 = vrot.slane %v1708, 4
    %v1726 = vrot.slane %v1708, 5
    %v1743 = vadd.f32 %v248, %v1713
    %v1744 = vadd.f32 %v258, %v1714
    %v1745 = vadd.f32 %v268, %v1703
    %v1746 = vadd.f32 %v278, %v1715
    %v1747 = vadd.f32 %v288, %v1716
    %v1748 = vadd.f32 %v298, %v1717
    %v1749 = vadd.f32 %v308, %v1718
    %v1750 = vadd.f32 %v318, %v1719
    %v1751 = vadd.f32 %v328, %v1720
    %v1752 = vadd.f32 %v338, %v1721
    %v1753 = vadd.f32 %v348, %v1708
    %v1754 = vadd.f32 %v358, %v1722
    %v1755 = vadd.f32 %v368, %v1723
    %v1756 = vadd.f32 %v378, %v1724
    %v1757 = vadd.f32 %v388, %v1725
    %v1758 = vadd.f32 %v398, %v1726
    %v1759 = vtanh.pop %v1743
    %v1760 = vtanh.pop %v1744
    %v1761 = vtanh.pop %v1745
    %v1762 = vtanh.pop %v1746
    %v1763 = vtanh.pop %v1747
    %v1764 = vtanh.pop %v1748
    %v1765 = vtanh.pop %v1749
    %v1766 = vtanh.pop %v1750
    %v1767 = vtanh.pop %v1751
    %v1768 = vtanh.pop %v1752
    %v1769 = vtanh.pop %v1753
    %v1770 = vtanh.pop %v1754
    %v1771 = vtanh.pop %v1755
    %v1772 = vtanh.pop %v1756
    %v1773 = vtanh.pop %v1757
    %v1774 = vtanh.pop %v1758
    %v1775 = vmul.f32 %v1759, 0.5
    %v1776 = vmul.f32 %v1760, 0.5
    %v1777 = vmul.f32 %v1761, 0.5
    %v1778 = vmul.f32 %v1762, 0.5
    %v1779 = vmul.f32 %v1763, 0.5
    %v1780 = vmul.f32 %v1764, 0.5
    %v1781 = vmul.f32 %v1765, 0.5
    %v1782 = vmul.f32 %v1766, 0.5
    %v1783 = vmul.f32 %v1767, 0.5
    %v1784 = vmul.f32 %v1768, 0.5
    %v1785 = vmul.f32 %v1769, 0.5
    %v1786 = vmul.f32 %v1770, 0.5
    %v1787 = vmul.f32 %v1771, 0.5
    %v1788 = vmul.f32 %v1772, 0.5
    %v1789 = vmul.f32 %v1773, 0.5
    %v1790 = vmul.f32 %v1774, 0.5
    %v1791 = vadd.f32 %v1775, 0.5
    %v1792 = vadd.f32 %v1776, 0.5
    %v1793 = vadd.f32 %v1777, 0.5
    %v1794 = vadd.f32 %v1778, 0.5
    %v1795 = vadd.f32 %v1779, 0.5
    %v1796 = vadd.f32 %v1780, 0.5
    %v1797 = vadd.f32 %v1781, 0.5
    %v1798 = vadd.f32 %v1782, 0.5
    %v1799 = vadd.f32 %v1783, 0.5
    %v1800 = vadd.f32 %v1784, 0.5
    %v1801 = vadd.f32 %v1785, 0.5
    %v1802 = vadd.f32 %v1786, 0.5
    %v1803 = vadd.f32 %v1787, 0.5
    %v1804 = vadd.f32 %v1788, 0.5
    %v1805 = vadd.f32 %v1789, 0.5
    %v1806 = vadd.f32 %v1790, 0.5
    %v1823 = vrot.slane %v1459, 7
    %v1824 = vrot.slane %v1460, 7
    %v1825 = vrot.slane %v1461, 7
    %v1826 = vrot.slane %v1462, 7
    %v1827 = vrot.slane %v1463, 7
    %v1828 = vrot.slane %v1464, 7
    %v1829 = vrot.slane %v1465, 7
    %v1830 = vrot.slane %v1466, 7
    %v1831 = vrot.slane %v1467, 7
    %v1832 = vrot.slane %v1468, 7
    %v1833 = vrot.slane %v1469, 7
    %v1834 = vrot.slane %v1470, 7
    %v1835 = vrot.slane %v1471, 7
    %v1836 = vrot.slane %v1472, 7
    %v1837 = vrot.slane %v1473, 7
    %v1838 = vrot.slane %v1474, 7
    %v1855 = vmul.f32 %v1791, %v1823
    %v1856 = vmul.f32 %v1792, %v1824
    %v1857 = vmul.f32 %v1793, %v1825
    %v1858 = vmul.f32 %v1794, %v1826
    %v1859 = vmul.f32 %v1795, %v1827
    %v1860 = vmul.f32 %v1796, %v1828
    %v1861 = vmul.f32 %v1797, %v1829
    %v1862 = vmul.f32 %v1798, %v1830
    %v1863 = vmul.f32 %v1799, %v1831
    %v1864 = vmul.f32 %v1800, %v1832
    %v1865 = vmul.f32 %v1801, %v1833
    %v1866 = vmul.f32 %v1802, %v1834
    %v1867 = vmul.f32 %v1803, %v1835
    %v1868 = vmul.f32 %v1804, %v1836
    %v1869 = vmul.f32 %v1805, %v1837
    %v1870 = vmul.f32 %v1806, %v1838
    %1887 = vrot.lane.b32.xlu0 %v1759, 64
    %v1888 = vpop.permute.xlu0 %1887
    %1889 = vrot.lane.b32.xlu0 %v1760, 64
    %v1890 = vpop.permute.xlu0 %1889
    %1891 = vrot.lane.b32.xlu0 %v1761, 64
    %v1892 = vpop.permute.xlu0 %1891
    %1893 = vrot.lane.b32.xlu0 %v1762, 64
    %v1894 = vpop.permute.xlu0 %1893
    %1895 = vrot.lane.b32.xlu0 %v1763, 64
    %v1896 = vpop.permute.xlu0 %1895
    %1897 = vrot.lane.b32.xlu0 %v1764, 64
    %v1898 = vpop.permute.xlu0 %1897
    %1899 = vrot.lane.b32.xlu0 %v1765, 64
    %v1900 = vpop.permute.xlu0 %1899
    %1901 = vrot.lane.b32.xlu0 %v1766, 64
    %v1902 = vpop.permute.xlu0 %1901
    %1903 = vrot.lane.b32.xlu0 %v1767, 64
    %v1904 = vpop.permute.xlu0 %1903
    %1905 = vrot.lane.b32.xlu0 %v1768, 64
    %v1906 = vpop.permute.xlu0 %1905
    %1907 = vrot.lane.b32.xlu0 %v1769, 64
    %v1908 = vpop.permute.xlu0 %1907
    %1909 = vrot.lane.b32.xlu0 %v1770, 64
    %v1910 = vpop.permute.xlu0 %1909
    %1911 = vrot.lane.b32.xlu0 %v1771, 64
    %v1912 = vpop.permute.xlu0 %1911
    %1913 = vrot.lane.b32.xlu0 %v1772, 64
    %v1914 = vpop.permute.xlu0 %1913
    %1915 = vrot.lane.b32.xlu0 %v1773, 64
    %v1916 = vpop.permute.xlu0 %1915
    %1917 = vrot.lane.b32.xlu0 %v1774, 64
    %v1918 = vpop.permute.xlu0 %1917
    %v1935 = vmul.f32 %v1791, %v1888
    %v1936 = vmul.f32 %v1792, %v1890
    %v1937 = vmul.f32 %v1793, %v1892
    %v1938 = vmul.f32 %v1794, %v1894
    %v1939 = vmul.f32 %v1795, %v1896
    %v1940 = vmul.f32 %v1796, %v1898
    %v1941 = vmul.f32 %v1797, %v1900
    %v1942 = vmul.f32 %v1798, %v1902
    %v1943 = vmul.f32 %v1799, %v1904
    %v1944 = vmul.f32 %v1800, %v1906
    %v1945 = vmul.f32 %v1801, %v1908
    %v1946 = vmul.f32 %v1802, %v1910
    %v1947 = vmul.f32 %v1803, %v1912
    %v1948 = vmul.f32 %v1804, %v1914
    %v1949 = vmul.f32 %v1805, %v1916
    %v1950 = vmul.f32 %v1806, %v1918
    %1967 = vrot.lane.b32.xlu0 %v1935, 32
    %v1968 = vpop.permute.xlu0 %1967
    %1969 = vrot.lane.b32.xlu0 %v1936, 32
    %v1970 = vpop.permute.xlu0 %1969
    %1971 = vrot.lane.b32.xlu0 %v1937, 32
    %v1972 = vpop.permute.xlu0 %1971
    %1973 = vrot.lane.b32.xlu0 %v1938, 32
    %v1974 = vpop.permute.xlu0 %1973
    %1975 = vrot.lane.b32.xlu0 %v1939, 32
    %v1976 = vpop.permute.xlu0 %1975
    %1977 = vrot.lane.b32.xlu0 %v1940, 32
    %v1978 = vpop.permute.xlu0 %1977
    %1979 = vrot.lane.b32.xlu0 %v1941, 32
    %v1980 = vpop.permute.xlu0 %1979
    %1981 = vrot.lane.b32.xlu0 %v1942, 32
    %v1982 = vpop.permute.xlu0 %1981
    %1983 = vrot.lane.b32.xlu0 %v1943, 32
    %v1984 = vpop.permute.xlu0 %1983
    %1985 = vrot.lane.b32.xlu0 %v1944, 32
    %v1986 = vpop.permute.xlu0 %1985
    %1987 = vrot.lane.b32.xlu0 %v1945, 32
    %v1988 = vpop.permute.xlu0 %1987
    %1989 = vrot.lane.b32.xlu0 %v1946, 32
    %v1990 = vpop.permute.xlu0 %1989
    %1991 = vrot.lane.b32.xlu0 %v1947, 32
    %v1992 = vpop.permute.xlu0 %1991
    %1993 = vrot.lane.b32.xlu0 %v1948, 32
    %v1994 = vpop.permute.xlu0 %1993
    %1995 = vrot.lane.b32.xlu0 %v1949, 32
    %v1996 = vpop.permute.xlu0 %1995
    %1997 = vrot.lane.b32.xlu0 %v1950, 32
    %v1998 = vpop.permute.xlu0 %1997
    %v2015 = vadd.f32 %v1855, %v1968
    %v2016 = vadd.f32 %v1856, %v1970
    %v2017 = vadd.f32 %v1857, %v1972
    %v2018 = vadd.f32 %v1858, %v1974
    %v2019 = vadd.f32 %v1859, %v1976
    %v2020 = vadd.f32 %v1860, %v1978
    %v2021 = vadd.f32 %v1861, %v1980
    %v2022 = vadd.f32 %v1862, %v1982
    %v2023 = vadd.f32 %v1863, %v1984
    %v2024 = vadd.f32 %v1864, %v1986
    %v2025 = vadd.f32 %v1865, %v1988
    %v2026 = vadd.f32 %v1866, %v1990
    %v2027 = vadd.f32 %v1867, %v1992
    %v2028 = vadd.f32 %v1868, %v1994
    %v2029 = vadd.f32 %v1869, %v1996
    %v2030 = vadd.f32 %v1870, %v1998
    %v2031 = vtanh.pop %v2015
    %v2032 = vtanh.pop %v2016
    %v2033 = vtanh.pop %v2017
    %v2034 = vtanh.pop %v2018
    %v2035 = vtanh.pop %v2019
    %v2036 = vtanh.pop %v2020
    %v2037 = vtanh.pop %v2021
    %v2038 = vtanh.pop %v2022
    %v2039 = vtanh.pop %v2023
    %v2040 = vtanh.pop %v2024
    %v2041 = vtanh.pop %v2025
    %v2042 = vtanh.pop %v2026
    %v2043 = vtanh.pop %v2027
    %v2044 = vtanh.pop %v2028
    %v2045 = vtanh.pop %v2029
    %v2046 = vtanh.pop %v2030
    %2063 = vrot.lane.b32.xlu0 %v2031, 64
    %v2064 = vpop.permute.xlu0 %2063
    %2065 = vrot.lane.b32.xlu0 %v2032, 64
    %v2066 = vpop.permute.xlu0 %2065
    %2067 = vrot.lane.b32.xlu0 %v2033, 64
    %v2068 = vpop.permute.xlu0 %2067
    %2069 = vrot.lane.b32.xlu0 %v2034, 64
    %v2070 = vpop.permute.xlu0 %2069
    %2071 = vrot.lane.b32.xlu0 %v2035, 64
    %v2072 = vpop.permute.xlu0 %2071
    %2073 = vrot.lane.b32.xlu0 %v2036, 64
    %v2074 = vpop.permute.xlu0 %2073
    %2075 = vrot.lane.b32.xlu0 %v2037, 64
    %v2076 = vpop.permute.xlu0 %2075
    %2077 = vrot.lane.b32.xlu0 %v2038, 64
    %v2078 = vpop.permute.xlu0 %2077
    %2079 = vrot.lane.b32.xlu0 %v2039, 64
    %v2080 = vpop.permute.xlu0 %2079
    %2081 = vrot.lane.b32.xlu0 %v2040, 64
    %v2082 = vpop.permute.xlu0 %2081
    %2083 = vrot.lane.b32.xlu0 %v2041, 64
    %v2084 = vpop.permute.xlu0 %2083
    %2085 = vrot.lane.b32.xlu0 %v2042, 64
    %v2086 = vpop.permute.xlu0 %2085
    %2087 = vrot.lane.b32.xlu0 %v2043, 64
    %v2088 = vpop.permute.xlu0 %2087
    %2089 = vrot.lane.b32.xlu0 %v2044, 64
    %v2090 = vpop.permute.xlu0 %2089
    %2091 = vrot.lane.b32.xlu0 %v2045, 64
    %v2092 = vpop.permute.xlu0 %2091
    %2093 = vrot.lane.b32.xlu0 %v2046, 64
    %v2094 = vpop.permute.xlu0 %2093
    %v2111 = vmul.f32 %v1791, %v2064
    %v2112 = vmul.f32 %v1792, %v2066
    %v2113 = vmul.f32 %v1793, %v2068
    %v2114 = vmul.f32 %v1794, %v2070
    %v2115 = vmul.f32 %v1795, %v2072
    %v2116 = vmul.f32 %v1796, %v2074
    %v2117 = vmul.f32 %v1797, %v2076
    %v2118 = vmul.f32 %v1798, %v2078
    %v2119 = vmul.f32 %v1799, %v2080
    %v2120 = vmul.f32 %v1800, %v2082
    %v2121 = vmul.f32 %v1801, %v2084
    %v2122 = vmul.f32 %v1802, %v2086
    %v2123 = vmul.f32 %v1803, %v2088
    %v2124 = vmul.f32 %v1804, %v2090
    %v2125 = vmul.f32 %v1805, %v2092
    %v2126 = vmul.f32 %v1806, %v2094
    %v2143 = vrot.slane %v2111, 2
    %v2144 = vrot.slane %v2112, 1
    %v2145 = vsel %vm1030, %v2144, %v2143
    %v2146 = vsel %vm1033, %v2113, %v2145
    %v2147 = vrot.slane %v2114, 7
    %v2148 = vsel %vm1036, %v2147, %v2146
    %v2149 = vrot.slane %v2115, 6
    %v2150 = vsel %vm1039, %v2149, %v2148
    %v2151 = vrot.slane %v2116, 5
    %v2152 = vsel %vm1042, %v2151, %v2150
    %v2153 = vrot.slane %v2117, 4
    %v2154 = vsel %vm1045, %v2153, %v2152
    %v2155 = vrot.slane %v2118, 3
    %v2156 = vsel %vm1048, %v2155, %v2154
    %v2157 = vrot.slane %v2119, 2
    %v2158 = vrot.slane %v2120, 1
    %v2159 = vsel %vm1030, %v2158, %v2157
    %v2160 = vsel %vm1033, %v2121, %v2159
    %v2161 = vrot.slane %v2122, 7
    %v2162 = vsel %vm1036, %v2161, %v2160
    %v2163 = vrot.slane %v2123, 6
    %v2164 = vsel %vm1039, %v2163, %v2162
    %v2165 = vrot.slane %v2124, 5
    %v2166 = vsel %vm1042, %v2165, %v2164
    %v2167 = vrot.slane %v2125, 4
    %v2168 = vsel %vm1045, %v2167, %v2166
    %v2169 = vrot.slane %v2126, 3
    %v2170 = vsel %vm1048, %v2169, %v2168
    %2171 = vrot.lane.b32.xlu0 %v2156, 96
    %v2172 = vpop.permute.xlu0 %2171
    %2173 = vrot.lane.b32.xlu0 %v2170, 96
    %v2174 = vpop.permute.xlu0 %2173
    %vm2177 = vcmask 785920
    %2178 = vst.msk [vmem:[#allocation2] sm:$0xff] %vm2177, %v2172
    %2179 = vst.msk [vmem:[#allocation2 + $0x20] sm:$0xff] %vm2177, %v2174
    %v2180 = vld [vmem:[%s4] sm:$0xff]
    %v2181 = vld [vmem:[%s4 + $0x8] sm:$0xff]
    %v2182 = vld [vmem:[%s4 + $0x10] sm:$0xff]
    %v2183 = vld [vmem:[%s4 + $0x18] sm:$0xff]
    %2184 = vrot.lane.b32.xlu0 %v2156, 32
    %v2185 = vpop.permute.xlu0 %2184
    %2186 = vrot.lane.b32.xlu0 %v2170, 32
    %v2187 = vpop.permute.xlu0 %2186
    %v2188 = vsel %vm416, %v2185, 0
    %v2190 = vsel %vm416, %v2187, 0
    %2192 = vmatprep.subr.mxu0 0.0
    %2193 = vmatpush1.msra.mxu0 0.0
    %2194 = vmatprep.subr.mxu0 0.0
    %2195 = vmatpush1.msra.mxu0 0.0
    %2196 = vmatprep.subr.mxu0 0.0
    %2197 = vmatpush1.msra.mxu0 0.0
    %2198 = vmatprep.subr.mxu0 0.0
    %2199 = vmatpush1.msra.mxu0 0.0
    %2200 = vmatprep.subr.mxu0 0.0
    %2201 = vmatpush1.msra.mxu0 0.0
    %2202 = vmatprep.subr.mxu0 0.0
    %2203 = vmatpush1.msra.mxu0 0.0
    %2204 = vmatprep.subr.mxu0 0.0
    %2205 = vmatpush1.msra.mxu0 0.0
    %2206 = vmatprep.subr.mxu0 0.0
    %2207 = vmatpush1.msra.mxu0 0.0
    %2208 = vmatprep.subr.mxu0 0.0
    %2209 = vmatpush1.msra.mxu0 0.0
    %2210 = vmatprep.subr.mxu0 0.0
    %2211 = vmatpush1.msra.mxu0 0.0
    %2212 = vmatprep.subr.mxu0 0.0
    %2213 = vmatpush1.msra.mxu0 0.0
    %2214 = vmatprep.subr.mxu0 0.0
    %2215 = vmatpush1.msra.mxu0 0.0
    %2216 = vmatprep.subr.mxu0 0.0
    %2217 = vmatpush1.msra.mxu0 %v2183
    %2218 = vmatprep.subr.mxu0 0.0
    %2219 = vmatpush1.msra.mxu0 %v2182
    %2220 = vmatprep.subr.mxu0 0.0
    %2221 = vmatpush1.msra.mxu0 %v2181
    %2222 = vmatprep.subr.mxu0 0.0
    %2223 = vmatpush1.msra.mxu0 %v2180
    %2224 = vmatprep.subr.mxu0 0.0
    %2225 = vmatpush2.msra.mxu0 0.0
    %2226 = vmatprep.subr.mxu0 0.0
    %2227 = vmatpush2.msra.mxu0 0.0
    %2228 = vmatprep.subr.mxu0 0.0
    %2229 = vmatpush2.msra.mxu0 0.0
    %2230 = vmatprep.subr.mxu0 0.0
    %2231 = vmatpush2.msra.mxu0 0.0
    %2232 = vmatprep.subr.mxu0 0.0
    %2233 = vmatpush2.msra.mxu0 0.0
    %2234 = vmatprep.subr.mxu0 0.0
    %2235 = vmatpush2.msra.mxu0 0.0
    %2236 = vmatprep.subr.mxu0 0.0
    %2237 = vmatpush2.msra.mxu0 0.0
    %2238 = vmatprep.subr.mxu0 0.0
    %2239 = vmatpush2.msra.mxu0 0.0
    %2240 = vmatprep.subr.mxu0 0.0
    %2241 = vmatpush2.msra.mxu0 0.0
    %2242 = vmatprep.subr.mxu0 0.0
    %2243 = vmatpush2.msra.mxu0 0.0
    %2244 = vmatprep.subr.mxu0 0.0
    %2245 = vmatpush2.msra.mxu0 0.0
    %2246 = vmatprep.subr.mxu0 0.0
    %2247 = vmatpush2.msra.mxu0 0.0
    %2248 = vmatprep.subr.mxu0 0.0
    %2249 = vmatpush2.msra.mxu0 0.0
    %2250 = vmatprep.subr.mxu0 0.0
    %2251 = vmatpush2.msra.mxu0 0.0
    %2252 = vmatprep.subr.mxu0 0.0
    %2253 = vmatpush2.msra.mxu0 0.0
    %2254 = vmatprep.subr.mxu0 0.0
    %2255 = vmatpush2.msra.mxu0 0.0
    %2256 = vmatprep.mubr.f32.mxu0 0.0
    %2257 = vmatmul.mubr.f32.gmra.mxu0 %v2188
    %v2258 = vpop.f32.mrf.mxu0
    %v2259 = vadd.f32 0.0, %v2258
    %v2260 = vpop.f32.mrf.mxu0
    %2261 = vmatprep.mubr.f32.mxu0 0.0
    %2262 = vmatmul.mubr.f32.gmra.mxu0 %v2190
    %v2263 = vpop.f32.mrf.mxu0
    %v2264 = vadd.f32 0.0, %v2263
    %v2265 = vpop.f32.mrf.mxu0
    %2266 = vdwg.mxu0
    %v2269 = vrot.slane %v2259, 5
    %v2270 = vrot.slane %v2259, 6
    %v2271 = vrot.slane %v2259, 7
    %v2272 = vrot.slane %v2259, 1
    %v2273 = vrot.slane %v2259, 2
    %v2274 = vrot.slane %v2259, 3
    %v2275 = vrot.slane %v2259, 4
    %v2276 = vrot.slane %v2264, 5
    %v2277 = vrot.slane %v2264, 6
    %v2278 = vrot.slane %v2264, 7
    %v2279 = vrot.slane %v2264, 1
    %v2280 = vrot.slane %v2264, 2
    %v2281 = vrot.slane %v2264, 3
    %v2282 = vrot.slane %v2264, 4
    %v2299 = vadd.f32 %v248, %v2269
    %v2300 = vadd.f32 %v258, %v2270
    %v2301 = vadd.f32 %v268, %v2271
    %v2302 = vadd.f32 %v278, %v2259
    %v2303 = vadd.f32 %v288, %v2272
    %v2304 = vadd.f32 %v298, %v2273
    %v2305 = vadd.f32 %v308, %v2274
    %v2306 = vadd.f32 %v318, %v2275
    %v2307 = vadd.f32 %v328, %v2276
    %v2308 = vadd.f32 %v338, %v2277
    %v2309 = vadd.f32 %v348, %v2278
    %v2310 = vadd.f32 %v358, %v2264
    %v2311 = vadd.f32 %v368, %v2279
    %v2312 = vadd.f32 %v378, %v2280
    %v2313 = vadd.f32 %v388, %v2281
    %v2314 = vadd.f32 %v398, %v2282
    %v2315 = vtanh.pop %v2299
    %v2316 = vtanh.pop %v2300
    %v2317 = vtanh.pop %v2301
    %v2318 = vtanh.pop %v2302
    %v2319 = vtanh.pop %v2303
    %v2320 = vtanh.pop %v2304
    %v2321 = vtanh.pop %v2305
    %v2322 = vtanh.pop %v2306
    %v2323 = vtanh.pop %v2307
    %v2324 = vtanh.pop %v2308
    %v2325 = vtanh.pop %v2309
    %v2326 = vtanh.pop %v2310
    %v2327 = vtanh.pop %v2311
    %v2328 = vtanh.pop %v2312
    %v2329 = vtanh.pop %v2313
    %v2330 = vtanh.pop %v2314
    %v2331 = vmul.f32 %v2315, 0.5
    %v2332 = vmul.f32 %v2316, 0.5
    %v2333 = vmul.f32 %v2317, 0.5
    %v2334 = vmul.f32 %v2318, 0.5
    %v2335 = vmul.f32 %v2319, 0.5
    %v2336 = vmul.f32 %v2320, 0.5
    %v2337 = vmul.f32 %v2321, 0.5
    %v2338 = vmul.f32 %v2322, 0.5
    %v2339 = vmul.f32 %v2323, 0.5
    %v2340 = vmul.f32 %v2324, 0.5
    %v2341 = vmul.f32 %v2325, 0.5
    %v2342 = vmul.f32 %v2326, 0.5
    %v2343 = vmul.f32 %v2327, 0.5
    %v2344 = vmul.f32 %v2328, 0.5
    %v2345 = vmul.f32 %v2329, 0.5
    %v2346 = vmul.f32 %v2330, 0.5
    %v2347 = vadd.f32 %v2331, 0.5
    %v2348 = vadd.f32 %v2332, 0.5
    %v2349 = vadd.f32 %v2333, 0.5
    %v2350 = vadd.f32 %v2334, 0.5
    %v2351 = vadd.f32 %v2335, 0.5
    %v2352 = vadd.f32 %v2336, 0.5
    %v2353 = vadd.f32 %v2337, 0.5
    %v2354 = vadd.f32 %v2338, 0.5
    %v2355 = vadd.f32 %v2339, 0.5
    %v2356 = vadd.f32 %v2340, 0.5
    %v2357 = vadd.f32 %v2341, 0.5
    %v2358 = vadd.f32 %v2342, 0.5
    %v2359 = vadd.f32 %v2343, 0.5
    %v2360 = vadd.f32 %v2344, 0.5
    %v2361 = vadd.f32 %v2345, 0.5
    %v2362 = vadd.f32 %v2346, 0.5
    %v2379 = vrot.slane %v2015, 7
    %v2380 = vrot.slane %v2016, 7
    %v2381 = vrot.slane %v2017, 7
    %v2382 = vrot.slane %v2018, 7
    %v2383 = vrot.slane %v2019, 7
    %v2384 = vrot.slane %v2020, 7
    %v2385 = vrot.slane %v2021, 7
    %v2386 = vrot.slane %v2022, 7
    %v2387 = vrot.slane %v2023, 7
    %v2388 = vrot.slane %v2024, 7
    %v2389 = vrot.slane %v2025, 7
    %v2390 = vrot.slane %v2026, 7
    %v2391 = vrot.slane %v2027, 7
    %v2392 = vrot.slane %v2028, 7
    %v2393 = vrot.slane %v2029, 7
    %v2394 = vrot.slane %v2030, 7
    %v2411 = vmul.f32 %v2347, %v2379
    %v2412 = vmul.f32 %v2348, %v2380
    %v2413 = vmul.f32 %v2349, %v2381
    %v2414 = vmul.f32 %v2350, %v2382
    %v2415 = vmul.f32 %v2351, %v2383
    %v2416 = vmul.f32 %v2352, %v2384
    %v2417 = vmul.f32 %v2353, %v2385
    %v2418 = vmul.f32 %v2354, %v2386
    %v2419 = vmul.f32 %v2355, %v2387
    %v2420 = vmul.f32 %v2356, %v2388
    %v2421 = vmul.f32 %v2357, %v2389
    %v2422 = vmul.f32 %v2358, %v2390
    %v2423 = vmul.f32 %v2359, %v2391
    %v2424 = vmul.f32 %v2360, %v2392
    %v2425 = vmul.f32 %v2361, %v2393
    %v2426 = vmul.f32 %v2362, %v2394
    %2443 = vrot.lane.b32.xlu0 %v2315, 64
    %v2444 = vpop.permute.xlu0 %2443
    %2445 = vrot.lane.b32.xlu0 %v2316, 64
    %v2446 = vpop.permute.xlu0 %2445
    %2447 = vrot.lane.b32.xlu0 %v2317, 64
    %v2448 = vpop.permute.xlu0 %2447
    %2449 = vrot.lane.b32.xlu0 %v2318, 64
    %v2450 = vpop.permute.xlu0 %2449
    %2451 = vrot.lane.b32.xlu0 %v2319, 64
    %v2452 = vpop.permute.xlu0 %2451
    %2453 = vrot.lane.b32.xlu0 %v2320, 64
    %v2454 = vpop.permute.xlu0 %2453
    %2455 = vrot.lane.b32.xlu0 %v2321, 64
    %v2456 = vpop.permute.xlu0 %2455
    %2457 = vrot.lane.b32.xlu0 %v2322, 64
    %v2458 = vpop.permute.xlu0 %2457
    %2459 = vrot.lane.b32.xlu0 %v2323, 64
    %v2460 = vpop.permute.xlu0 %2459
    %2461 = vrot.lane.b32.xlu0 %v2324, 64
    %v2462 = vpop.permute.xlu0 %2461
    %2463 = vrot.lane.b32.xlu0 %v2325, 64
    %v2464 = vpop.permute.xlu0 %2463
    %2465 = vrot.lane.b32.xlu0 %v2326, 64
    %v2466 = vpop.permute.xlu0 %2465
    %2467 = vrot.lane.b32.xlu0 %v2327, 64
    %v2468 = vpop.permute.xlu0 %2467
    %2469 = vrot.lane.b32.xlu0 %v2328, 64
    %v2470 = vpop.permute.xlu0 %2469
    %2471 = vrot.lane.b32.xlu0 %v2329, 64
    %v2472 = vpop.permute.xlu0 %2471
    %2473 = vrot.lane.b32.xlu0 %v2330, 64
    %v2474 = vpop.permute.xlu0 %2473
    %v2491 = vmul.f32 %v2347, %v2444
    %v2492 = vmul.f32 %v2348, %v2446
    %v2493 = vmul.f32 %v2349, %v2448
    %v2494 = vmul.f32 %v2350, %v2450
    %v2495 = vmul.f32 %v2351, %v2452
    %v2496 = vmul.f32 %v2352, %v2454
    %v2497 = vmul.f32 %v2353, %v2456
    %v2498 = vmul.f32 %v2354, %v2458
    %v2499 = vmul.f32 %v2355, %v2460
    %v2500 = vmul.f32 %v2356, %v2462
    %v2501 = vmul.f32 %v2357, %v2464
    %v2502 = vmul.f32 %v2358, %v2466
    %v2503 = vmul.f32 %v2359, %v2468
    %v2504 = vmul.f32 %v2360, %v2470
    %v2505 = vmul.f32 %v2361, %v2472
    %v2506 = vmul.f32 %v2362, %v2474
    %2523 = vrot.lane.b32.xlu0 %v2491, 32
    %v2524 = vpop.permute.xlu0 %2523
    %2525 = vrot.lane.b32.xlu0 %v2492, 32
    %v2526 = vpop.permute.xlu0 %2525
    %2527 = vrot.lane.b32.xlu0 %v2493, 32
    %v2528 = vpop.permute.xlu0 %2527
    %2529 = vrot.lane.b32.xlu0 %v2494, 32
    %v2530 = vpop.permute.xlu0 %2529
    %2531 = vrot.lane.b32.xlu0 %v2495, 32
    %v2532 = vpop.permute.xlu0 %2531
    %2533 = vrot.lane.b32.xlu0 %v2496, 32
    %v2534 = vpop.permute.xlu0 %2533
    %2535 = vrot.lane.b32.xlu0 %v2497, 32
    %v2536 = vpop.permute.xlu0 %2535
    %2537 = vrot.lane.b32.xlu0 %v2498, 32
    %v2538 = vpop.permute.xlu0 %2537
    %2539 = vrot.lane.b32.xlu0 %v2499, 32
    %v2540 = vpop.permute.xlu0 %2539
    %2541 = vrot.lane.b32.xlu0 %v2500, 32
    %v2542 = vpop.permute.xlu0 %2541
    %2543 = vrot.lane.b32.xlu0 %v2501, 32
    %v2544 = vpop.permute.xlu0 %2543
    %2545 = vrot.lane.b32.xlu0 %v2502, 32
    %v2546 = vpop.permute.xlu0 %2545
    %2547 = vrot.lane.b32.xlu0 %v2503, 32
    %v2548 = vpop.permute.xlu0 %2547
    %2549 = vrot.lane.b32.xlu0 %v2504, 32
    %v2550 = vpop.permute.xlu0 %2549
    %2551 = vrot.lane.b32.xlu0 %v2505, 32
    %v2552 = vpop.permute.xlu0 %2551
    %2553 = vrot.lane.b32.xlu0 %v2506, 32
    %v2554 = vpop.permute.xlu0 %2553
    %v2571 = vadd.f32 %v2411, %v2524
    %v2572 = vadd.f32 %v2412, %v2526
    %v2573 = vadd.f32 %v2413, %v2528
    %v2574 = vadd.f32 %v2414, %v2530
    %v2575 = vadd.f32 %v2415, %v2532
    %v2576 = vadd.f32 %v2416, %v2534
    %v2577 = vadd.f32 %v2417, %v2536
    %v2578 = vadd.f32 %v2418, %v2538
    %v2579 = vadd.f32 %v2419, %v2540
    %v2580 = vadd.f32 %v2420, %v2542
    %v2581 = vadd.f32 %v2421, %v2544
    %v2582 = vadd.f32 %v2422, %v2546
    %v2583 = vadd.f32 %v2423, %v2548
    %v2584 = vadd.f32 %v2424, %v2550
    %v2585 = vadd.f32 %v2425, %v2552
    %v2586 = vadd.f32 %v2426, %v2554
    %v2587 = vtanh.pop %v2571
    %v2588 = vtanh.pop %v2572
    %v2589 = vtanh.pop %v2573
    %v2590 = vtanh.pop %v2574
    %v2591 = vtanh.pop %v2575
    %v2592 = vtanh.pop %v2576
    %v2593 = vtanh.pop %v2577
    %v2594 = vtanh.pop %v2578
    %v2595 = vtanh.pop %v2579
    %v2596 = vtanh.pop %v2580
    %v2597 = vtanh.pop %v2581
    %v2598 = vtanh.pop %v2582
    %v2599 = vtanh.pop %v2583
    %v2600 = vtanh.pop %v2584
    %v2601 = vtanh.pop %v2585
    %v2602 = vtanh.pop %v2586
    %2619 = vrot.lane.b32.xlu0 %v2587, 64
    %v2620 = vpop.permute.xlu0 %2619
    %2621 = vrot.lane.b32.xlu0 %v2588, 64
    %v2622 = vpop.permute.xlu0 %2621
    %2623 = vrot.lane.b32.xlu0 %v2589, 64
    %v2624 = vpop.permute.xlu0 %2623
    %2625 = vrot.lane.b32.xlu0 %v2590, 64
    %v2626 = vpop.permute.xlu0 %2625
    %2627 = vrot.lane.b32.xlu0 %v2591, 64
    %v2628 = vpop.permute.xlu0 %2627
    %2629 = vrot.lane.b32.xlu0 %v2592, 64
    %v2630 = vpop.permute.xlu0 %2629
    %2631 = vrot.lane.b32.xlu0 %v2593, 64
    %v2632 = vpop.permute.xlu0 %2631
    %2633 = vrot.lane.b32.xlu0 %v2594, 64
    %v2634 = vpop.permute.xlu0 %2633
    %2635 = vrot.lane.b32.xlu0 %v2595, 64
    %v2636 = vpop.permute.xlu0 %2635
    %2637 = vrot.lane.b32.xlu0 %v2596, 64
    %v2638 = vpop.permute.xlu0 %2637
    %2639 = vrot.lane.b32.xlu0 %v2597, 64
    %v2640 = vpop.permute.xlu0 %2639
    %2641 = vrot.lane.b32.xlu0 %v2598, 64
    %v2642 = vpop.permute.xlu0 %2641
    %2643 = vrot.lane.b32.xlu0 %v2599, 64
    %v2644 = vpop.permute.xlu0 %2643
    %2645 = vrot.lane.b32.xlu0 %v2600, 64
    %v2646 = vpop.permute.xlu0 %2645
    %2647 = vrot.lane.b32.xlu0 %v2601, 64
    %v2648 = vpop.permute.xlu0 %2647
    %2649 = vrot.lane.b32.xlu0 %v2602, 64
    %v2650 = vpop.permute.xlu0 %2649
    %v2667 = vmul.f32 %v2347, %v2620
    %v2668 = vmul.f32 %v2348, %v2622
    %v2669 = vmul.f32 %v2349, %v2624
    %v2670 = vmul.f32 %v2350, %v2626
    %v2671 = vmul.f32 %v2351, %v2628
    %v2672 = vmul.f32 %v2352, %v2630
    %v2673 = vmul.f32 %v2353, %v2632
    %v2674 = vmul.f32 %v2354, %v2634
    %v2675 = vmul.f32 %v2355, %v2636
    %v2676 = vmul.f32 %v2356, %v2638
    %v2677 = vmul.f32 %v2357, %v2640
    %v2678 = vmul.f32 %v2358, %v2642
    %v2679 = vmul.f32 %v2359, %v2644
    %v2680 = vmul.f32 %v2360, %v2646
    %v2681 = vmul.f32 %v2361, %v2648
    %v2682 = vmul.f32 %v2362, %v2650
    %v2699 = vrot.slane %v2667, 3
    %v2700 = vrot.slane %v2668, 2
    %v2701 = vsel %vm1030, %v2700, %v2699
    %v2702 = vrot.slane %v2669, 1
    %v2703 = vsel %vm1033, %v2702, %v2701
    %v2704 = vsel %vm1036, %v2670, %v2703
    %v2705 = vrot.slane %v2671, 7
    %v2706 = vsel %vm1039, %v2705, %v2704
    %v2707 = vrot.slane %v2672, 6
    %v2708 = vsel %vm1042, %v2707, %v2706
    %v2709 = vrot.slane %v2673, 5
    %v2710 = vsel %vm1045, %v2709, %v2708
    %v2711 = vrot.slane %v2674, 4
    %v2712 = vsel %vm1048, %v2711, %v2710
    %v2713 = vrot.slane %v2675, 3
    %v2714 = vrot.slane %v2676, 2
    %v2715 = vsel %vm1030, %v2714, %v2713
    %v2716 = vrot.slane %v2677, 1
    %v2717 = vsel %vm1033, %v2716, %v2715
    %v2718 = vsel %vm1036, %v2678, %v2717
    %v2719 = vrot.slane %v2679, 7
    %v2720 = vsel %vm1039, %v2719, %v2718
    %v2721 = vrot.slane %v2680, 6
    %v2722 = vsel %vm1042, %v2721, %v2720
    %v2723 = vrot.slane %v2681, 5
    %v2724 = vsel %vm1045, %v2723, %v2722
    %v2725 = vrot.slane %v2682, 4
    %v2726 = vsel %vm1048, %v2725, %v2724
    %vm2729 = vcmask 1048320
    %2730 = vst.msk [vmem:[#allocation2] sm:$0xff] %vm2729, %v2712
    %2731 = vst.msk [vmem:[#allocation2 + $0x20] sm:$0xff] %vm2729, %v2726
    %v2732 = vld [vmem:[%s4] sm:$0xff]
    %v2733 = vld [vmem:[%s4 + $0x8] sm:$0xff]
    %v2734 = vld [vmem:[%s4 + $0x10] sm:$0xff]
    %v2735 = vld [vmem:[%s4 + $0x18] sm:$0xff]
    %2736 = vrot.lane.b32.xlu0 %v2712, 32
    %v2737 = vpop.permute.xlu0 %2736
    %2738 = vrot.lane.b32.xlu0 %v2726, 32
    %v2739 = vpop.permute.xlu0 %2738
    %v2740 = vsel %vm416, %v2737, 0
    %v2742 = vsel %vm416, %v2739, 0
    %2744 = vmatprep.subr.mxu0 0.0
    %2745 = vmatpush1.msra.mxu0 0.0
    %2746 = vmatprep.subr.mxu0 0.0
    %2747 = vmatpush1.msra.mxu0 0.0
    %2748 = vmatprep.subr.mxu0 0.0
    %2749 = vmatpush1.msra.mxu0 0.0
    %2750 = vmatprep.subr.mxu0 0.0
    %2751 = vmatpush1.msra.mxu0 0.0
    %2752 = vmatprep.subr.mxu0 0.0
    %2753 = vmatpush1.msra.mxu0 0.0
    %2754 = vmatprep.subr.mxu0 0.0
    %2755 = vmatpush1.msra.mxu0 0.0
    %2756 = vmatprep.subr.mxu0 0.0
    %2757 = vmatpush1.msra.mxu0 0.0
    %2758 = vmatprep.subr.mxu0 0.0
    %2759 = vmatpush1.msra.mxu0 0.0
    %2760 = vmatprep.subr.mxu0 0.0
    %2761 = vmatpush1.msra.mxu0 0.0
    %2762 = vmatprep.subr.mxu0 0.0
    %2763 = vmatpush1.msra.mxu0 0.0
    %2764 = vmatprep.subr.mxu0 0.0
    %2765 = vmatpush1.msra.mxu0 0.0
    %2766 = vmatprep.subr.mxu0 0.0
    %2767 = vmatpush1.msra.mxu0 0.0
    %2768 = vmatprep.subr.mxu0 0.0
    %2769 = vmatpush1.msra.mxu0 %v2735
    %2770 = vmatprep.subr.mxu0 0.0
    %2771 = vmatpush1.msra.mxu0 %v2734
    %2772 = vmatprep.subr.mxu0 0.0
    %2773 = vmatpush1.msra.mxu0 %v2733
    %2774 = vmatprep.subr.mxu0 0.0
    %2775 = vmatpush1.msra.mxu0 %v2732
    %2776 = vmatprep.subr.mxu0 0.0
    %2777 = vmatpush2.msra.mxu0 0.0
    %2778 = vmatprep.subr.mxu0 0.0
    %2779 = vmatpush2.msra.mxu0 0.0
    %2780 = vmatprep.subr.mxu0 0.0
    %2781 = vmatpush2.msra.mxu0 0.0
    %2782 = vmatprep.subr.mxu0 0.0
    %2783 = vmatpush2.msra.mxu0 0.0
    %2784 = vmatprep.subr.mxu0 0.0
    %2785 = vmatpush2.msra.mxu0 0.0
    %2786 = vmatprep.subr.mxu0 0.0
    %2787 = vmatpush2.msra.mxu0 0.0
    %2788 = vmatprep.subr.mxu0 0.0
    %2789 = vmatpush2.msra.mxu0 0.0
    %2790 = vmatprep.subr.mxu0 0.0
    %2791 = vmatpush2.msra.mxu0 0.0
    %2792 = vmatprep.subr.mxu0 0.0
    %2793 = vmatpush2.msra.mxu0 0.0
    %2794 = vmatprep.subr.mxu0 0.0
    %2795 = vmatpush2.msra.mxu0 0.0
    %2796 = vmatprep.subr.mxu0 0.0
    %2797 = vmatpush2.msra.mxu0 0.0
    %2798 = vmatprep.subr.mxu0 0.0
    %2799 = vmatpush2.msra.mxu0 0.0
    %2800 = vmatprep.subr.mxu0 0.0
    %2801 = vmatpush2.msra.mxu0 0.0
    %2802 = vmatprep.subr.mxu0 0.0
    %2803 = vmatpush2.msra.mxu0 0.0
    %2804 = vmatprep.subr.mxu0 0.0
    %2805 = vmatpush2.msra.mxu0 0.0
    %2806 = vmatprep.subr.mxu0 0.0
    %2807 = vmatpush2.msra.mxu0 0.0
    %2808 = vmatprep.mubr.f32.mxu0 0.0
    %2809 = vmatmul.mubr.f32.gmra.mxu0 %v2740
    %v2810 = vpop.f32.mrf.mxu0
    %v2811 = vadd.f32 0.0, %v2810
    %v2812 = vpop.f32.mrf.mxu0
    %2813 = vmatprep.mubr.f32.mxu0 0.0
    %2814 = vmatmul.mubr.f32.gmra.mxu0 %v2742
    %v2815 = vpop.f32.mrf.mxu0
    %v2816 = vadd.f32 0.0, %v2815
    %v2817 = vpop.f32.mrf.mxu0
    %2818 = vdwg.mxu0
    %v2821 = vrot.slane %v2811, 4
    %v2822 = vrot.slane %v2811, 5
    %v2823 = vrot.slane %v2811, 6
    %v2824 = vrot.slane %v2811, 7
    %v2825 = vrot.slane %v2811, 1
    %v2826 = vrot.slane %v2811, 2
    %v2827 = vrot.slane %v2811, 3
    %v2828 = vrot.slane %v2816, 4
    %v2829 = vrot.slane %v2816, 5
    %v2830 = vrot.slane %v2816, 6
    %v2831 = vrot.slane %v2816, 7
    %v2832 = vrot.slane %v2816, 1
    %v2833 = vrot.slane %v2816, 2
    %v2834 = vrot.slane %v2816, 3
    %v2851 = vadd.f32 %v248, %v2821
    %v2852 = vadd.f32 %v258, %v2822
    %v2853 = vadd.f32 %v268, %v2823
    %v2854 = vadd.f32 %v278, %v2824
    %v2855 = vadd.f32 %v288, %v2811
    %v2856 = vadd.f32 %v298, %v2825
    %v2857 = vadd.f32 %v308, %v2826
    %v2858 = vadd.f32 %v318, %v2827
    %v2859 = vadd.f32 %v328, %v2828
    %v2860 = vadd.f32 %v338, %v2829
    %v2861 = vadd.f32 %v348, %v2830
    %v2862 = vadd.f32 %v358, %v2831
    %v2863 = vadd.f32 %v368, %v2816
    %v2864 = vadd.f32 %v378, %v2832
    %v2865 = vadd.f32 %v388, %v2833
    %v2866 = vadd.f32 %v398, %v2834
    %v2867 = vtanh.pop %v2851
    %v2868 = vtanh.pop %v2852
    %v2869 = vtanh.pop %v2853
    %v2870 = vtanh.pop %v2854
    %v2871 = vtanh.pop %v2855
    %v2872 = vtanh.pop %v2856
    %v2873 = vtanh.pop %v2857
    %v2874 = vtanh.pop %v2858
    %v2875 = vtanh.pop %v2859
    %v2876 = vtanh.pop %v2860
    %v2877 = vtanh.pop %v2861
    %v2878 = vtanh.pop %v2862
    %v2879 = vtanh.pop %v2863
    %v2880 = vtanh.pop %v2864
    %v2881 = vtanh.pop %v2865
    %v2882 = vtanh.pop %v2866
    %v2883 = vmul.f32 %v2867, 0.5
    %v2884 = vmul.f32 %v2868, 0.5
    %v2885 = vmul.f32 %v2869, 0.5
    %v2886 = vmul.f32 %v2870, 0.5
    %v2887 = vmul.f32 %v2871, 0.5
    %v2888 = vmul.f32 %v2872, 0.5
    %v2889 = vmul.f32 %v2873, 0.5
    %v2890 = vmul.f32 %v2874, 0.5
    %v2891 = vmul.f32 %v2875, 0.5
    %v2892 = vmul.f32 %v2876, 0.5
    %v2893 = vmul.f32 %v2877, 0.5
    %v2894 = vmul.f32 %v2878, 0.5
    %v2895 = vmul.f32 %v2879, 0.5
    %v2896 = vmul.f32 %v2880, 0.5
    %v2897 = vmul.f32 %v2881, 0.5
    %v2898 = vmul.f32 %v2882, 0.5
    %v2899 = vadd.f32 %v2883, 0.5
    %v2900 = vadd.f32 %v2884, 0.5
    %v2901 = vadd.f32 %v2885, 0.5
    %v2902 = vadd.f32 %v2886, 0.5
    %v2903 = vadd.f32 %v2887, 0.5
    %v2904 = vadd.f32 %v2888, 0.5
    %v2905 = vadd.f32 %v2889, 0.5
    %v2906 = vadd.f32 %v2890, 0.5
    %v2907 = vadd.f32 %v2891, 0.5
    %v2908 = vadd.f32 %v2892, 0.5
    %v2909 = vadd.f32 %v2893, 0.5
    %v2910 = vadd.f32 %v2894, 0.5
    %v2911 = vadd.f32 %v2895, 0.5
    %v2912 = vadd.f32 %v2896, 0.5
    %v2913 = vadd.f32 %v2897, 0.5
    %v2914 = vadd.f32 %v2898, 0.5
    %v2931 = vrot.slane %v2571, 7
    %v2932 = vrot.slane %v2572, 7
    %v2933 = vrot.slane %v2573, 7
    %v2934 = vrot.slane %v2574, 7
    %v2935 = vrot.slane %v2575, 7
    %v2936 = vrot.slane %v2576, 7
    %v2937 = vrot.slane %v2577, 7
    %v2938 = vrot.slane %v2578, 7
    %v2939 = vrot.slane %v2579, 7
    %v2940 = vrot.slane %v2580, 7
    %v2941 = vrot.slane %v2581, 7
    %v2942 = vrot.slane %v2582, 7
    %v2943 = vrot.slane %v2583, 7
    %v2944 = vrot.slane %v2584, 7
    %v2945 = vrot.slane %v2585, 7
    %v2946 = vrot.slane %v2586, 7
    %v2963 = vmul.f32 %v2899, %v2931
    %v2964 = vmul.f32 %v2900, %v2932
    %v2965 = vmul.f32 %v2901, %v2933
    %v2966 = vmul.f32 %v2902, %v2934
    %v2967 = vmul.f32 %v2903, %v2935
    %v2968 = vmul.f32 %v2904, %v2936
    %v2969 = vmul.f32 %v2905, %v2937
    %v2970 = vmul.f32 %v2906, %v2938
    %v2971 = vmul.f32 %v2907, %v2939
    %v2972 = vmul.f32 %v2908, %v2940
    %v2973 = vmul.f32 %v2909, %v2941
    %v2974 = vmul.f32 %v2910, %v2942
    %v2975 = vmul.f32 %v2911, %v2943
    %v2976 = vmul.f32 %v2912, %v2944
    %v2977 = vmul.f32 %v2913, %v2945
    %v2978 = vmul.f32 %v2914, %v2946
    %2995 = vrot.lane.b32.xlu0 %v2867, 64
    %v2996 = vpop.permute.xlu0 %2995
    %2997 = vrot.lane.b32.xlu0 %v2868, 64
    %v2998 = vpop.permute.xlu0 %2997
    %2999 = vrot.lane.b32.xlu0 %v2869, 64
    %v3000 = vpop.permute.xlu0 %2999
    %3001 = vrot.lane.b32.xlu0 %v2870, 64
    %v3002 = vpop.permute.xlu0 %3001
    %3003 = vrot.lane.b32.xlu0 %v2871, 64
    %v3004 = vpop.permute.xlu0 %3003
    %3005 = vrot.lane.b32.xlu0 %v2872, 64
    %v3006 = vpop.permute.xlu0 %3005
    %3007 = vrot.lane.b32.xlu0 %v2873, 64
    %v3008 = vpop.permute.xlu0 %3007
    %3009 = vrot.lane.b32.xlu0 %v2874, 64
    %v3010 = vpop.permute.xlu0 %3009
    %3011 = vrot.lane.b32.xlu0 %v2875, 64
    %v3012 = vpop.permute.xlu0 %3011
    %3013 = vrot.lane.b32.xlu0 %v2876, 64
    %v3014 = vpop.permute.xlu0 %3013
    %3015 = vrot.lane.b32.xlu0 %v2877, 64
    %v3016 = vpop.permute.xlu0 %3015
    %3017 = vrot.lane.b32.xlu0 %v2878, 64
    %v3018 = vpop.permute.xlu0 %3017
    %3019 = vrot.lane.b32.xlu0 %v2879, 64
    %v3020 = vpop.permute.xlu0 %3019
    %3021 = vrot.lane.b32.xlu0 %v2880, 64
    %v3022 = vpop.permute.xlu0 %3021
    %3023 = vrot.lane.b32.xlu0 %v2881, 64
    %v3024 = vpop.permute.xlu0 %3023
    %3025 = vrot.lane.b32.xlu0 %v2882, 64
    %v3026 = vpop.permute.xlu0 %3025
    %v3043 = vmul.f32 %v2899, %v2996
    %v3044 = vmul.f32 %v2900, %v2998
    %v3045 = vmul.f32 %v2901, %v3000
    %v3046 = vmul.f32 %v2902, %v3002
    %v3047 = vmul.f32 %v2903, %v3004
    %v3048 = vmul.f32 %v2904, %v3006
    %v3049 = vmul.f32 %v2905, %v3008
    %v3050 = vmul.f32 %v2906, %v3010
    %v3051 = vmul.f32 %v2907, %v3012
    %v3052 = vmul.f32 %v2908, %v3014
    %v3053 = vmul.f32 %v2909, %v3016
    %v3054 = vmul.f32 %v2910, %v3018
    %v3055 = vmul.f32 %v2911, %v3020
    %v3056 = vmul.f32 %v2912, %v3022
    %v3057 = vmul.f32 %v2913, %v3024
    %v3058 = vmul.f32 %v2914, %v3026
    %3075 = vrot.lane.b32.xlu0 %v3043, 32
    %v3076 = vpop.permute.xlu0 %3075
    %3077 = vrot.lane.b32.xlu0 %v3044, 32
    %v3078 = vpop.permute.xlu0 %3077
    %3079 = vrot.lane.b32.xlu0 %v3045, 32
    %v3080 = vpop.permute.xlu0 %3079
    %3081 = vrot.lane.b32.xlu0 %v3046, 32
    %v3082 = vpop.permute.xlu0 %3081
    %3083 = vrot.lane.b32.xlu0 %v3047, 32
    %v3084 = vpop.permute.xlu0 %3083
    %3085 = vrot.lane.b32.xlu0 %v3048, 32
    %v3086 = vpop.permute.xlu0 %3085
    %3087 = vrot.lane.b32.xlu0 %v3049, 32
    %v3088 = vpop.permute.xlu0 %3087
    %3089 = vrot.lane.b32.xlu0 %v3050, 32
    %v3090 = vpop.permute.xlu0 %3089
    %3091 = vrot.lane.b32.xlu0 %v3051, 32
    %v3092 = vpop.permute.xlu0 %3091
    %3093 = vrot.lane.b32.xlu0 %v3052, 32
    %v3094 = vpop.permute.xlu0 %3093
    %3095 = vrot.lane.b32.xlu0 %v3053, 32
    %v3096 = vpop.permute.xlu0 %3095
    %3097 = vrot.lane.b32.xlu0 %v3054, 32
    %v3098 = vpop.permute.xlu0 %3097
    %3099 = vrot.lane.b32.xlu0 %v3055, 32
    %v3100 = vpop.permute.xlu0 %3099
    %3101 = vrot.lane.b32.xlu0 %v3056, 32
    %v3102 = vpop.permute.xlu0 %3101
    %3103 = vrot.lane.b32.xlu0 %v3057, 32
    %v3104 = vpop.permute.xlu0 %3103
    %3105 = vrot.lane.b32.xlu0 %v3058, 32
    %v3106 = vpop.permute.xlu0 %3105
    %v3123 = vadd.f32 %v2963, %v3076
    %v3124 = vadd.f32 %v2964, %v3078
    %v3125 = vadd.f32 %v2965, %v3080
    %v3126 = vadd.f32 %v2966, %v3082
    %v3127 = vadd.f32 %v2967, %v3084
    %v3128 = vadd.f32 %v2968, %v3086
    %v3129 = vadd.f32 %v2969, %v3088
    %v3130 = vadd.f32 %v2970, %v3090
    %v3131 = vadd.f32 %v2971, %v3092
    %v3132 = vadd.f32 %v2972, %v3094
    %v3133 = vadd.f32 %v2973, %v3096
    %v3134 = vadd.f32 %v2974, %v3098
    %v3135 = vadd.f32 %v2975, %v3100
    %v3136 = vadd.f32 %v2976, %v3102
    %v3137 = vadd.f32 %v2977, %v3104
    %v3138 = vadd.f32 %v2978, %v3106
    %v3139 = vtanh.pop %v3123
    %v3140 = vtanh.pop %v3124
    %v3141 = vtanh.pop %v3125
    %v3142 = vtanh.pop %v3126
    %v3143 = vtanh.pop %v3127
    %v3144 = vtanh.pop %v3128
    %v3145 = vtanh.pop %v3129
    %v3146 = vtanh.pop %v3130
    %v3147 = vtanh.pop %v3131
    %v3148 = vtanh.pop %v3132
    %v3149 = vtanh.pop %v3133
    %v3150 = vtanh.pop %v3134
    %v3151 = vtanh.pop %v3135
    %v3152 = vtanh.pop %v3136
    %v3153 = vtanh.pop %v3137
    %v3154 = vtanh.pop %v3138
    %3171 = vrot.lane.b32.xlu0 %v3139, 64
    %v3172 = vpop.permute.xlu0 %3171
    %3173 = vrot.lane.b32.xlu0 %v3140, 64
    %v3174 = vpop.permute.xlu0 %3173
    %3175 = vrot.lane.b32.xlu0 %v3141, 64
    %v3176 = vpop.permute.xlu0 %3175
    %3177 = vrot.lane.b32.xlu0 %v3142, 64
    %v3178 = vpop.permute.xlu0 %3177
    %3179 = vrot.lane.b32.xlu0 %v3143, 64
    %v3180 = vpop.permute.xlu0 %3179
    %3181 = vrot.lane.b32.xlu0 %v3144, 64
    %v3182 = vpop.permute.xlu0 %3181
    %3183 = vrot.lane.b32.xlu0 %v3145, 64
    %v3184 = vpop.permute.xlu0 %3183
    %3185 = vrot.lane.b32.xlu0 %v3146, 64
    %v3186 = vpop.permute.xlu0 %3185
    %3187 = vrot.lane.b32.xlu0 %v3147, 64
    %v3188 = vpop.permute.xlu0 %3187
    %3189 = vrot.lane.b32.xlu0 %v3148, 64
    %v3190 = vpop.permute.xlu0 %3189
    %3191 = vrot.lane.b32.xlu0 %v3149, 64
    %v3192 = vpop.permute.xlu0 %3191
    %3193 = vrot.lane.b32.xlu0 %v3150, 64
    %v3194 = vpop.permute.xlu0 %3193
    %3195 = vrot.lane.b32.xlu0 %v3151, 64
    %v3196 = vpop.permute.xlu0 %3195
    %3197 = vrot.lane.b32.xlu0 %v3152, 64
    %v3198 = vpop.permute.xlu0 %3197
    %3199 = vrot.lane.b32.xlu0 %v3153, 64
    %v3200 = vpop.permute.xlu0 %3199
    %3201 = vrot.lane.b32.xlu0 %v3154, 64
    %v3202 = vpop.permute.xlu0 %3201
    %v3219 = vmul.f32 %v2899, %v3172
    %v3220 = vmul.f32 %v2900, %v3174
    %v3221 = vmul.f32 %v2901, %v3176
    %v3222 = vmul.f32 %v2902, %v3178
    %v3223 = vmul.f32 %v2903, %v3180
    %v3224 = vmul.f32 %v2904, %v3182
    %v3225 = vmul.f32 %v2905, %v3184
    %v3226 = vmul.f32 %v2906, %v3186
    %v3227 = vmul.f32 %v2907, %v3188
    %v3228 = vmul.f32 %v2908, %v3190
    %v3229 = vmul.f32 %v2909, %v3192
    %v3230 = vmul.f32 %v2910, %v3194
    %v3231 = vmul.f32 %v2911, %v3196
    %v3232 = vmul.f32 %v2912, %v3198
    %v3233 = vmul.f32 %v2913, %v3200
    %v3234 = vmul.f32 %v2914, %v3202
    %v3251 = vrot.slane %v3219, 4
    %v3252 = vrot.slane %v3220, 3
    %v3253 = vsel %vm1030, %v3252, %v3251
    %v3254 = vrot.slane %v3221, 2
    %v3255 = vsel %vm1033, %v3254, %v3253
    %v3256 = vrot.slane %v3222, 1
    %v3257 = vsel %vm1036, %v3256, %v3255
    %v3258 = vsel %vm1039, %v3223, %v3257
    %v3259 = vrot.slane %v3224, 7
    %v3260 = vsel %vm1042, %v3259, %v3258
    %v3261 = vrot.slane %v3225, 6
    %v3262 = vsel %vm1045, %v3261, %v3260
    %v3263 = vrot.slane %v3226, 5
    %v3264 = vsel %vm1048, %v3263, %v3262
    %v3265 = vrot.slane %v3227, 4
    %v3266 = vrot.slane %v3228, 3
    %v3267 = vsel %vm1030, %v3266, %v3265
    %v3268 = vrot.slane %v3229, 2
    %v3269 = vsel %vm1033, %v3268, %v3267
    %v3270 = vrot.slane %v3230, 1
    %v3271 = vsel %vm1036, %v3270, %v3269
    %v3272 = vsel %vm1039, %v3231, %v3271
    %v3273 = vrot.slane %v3232, 7
    %v3274 = vsel %vm1042, %v3273, %v3272
    %v3275 = vrot.slane %v3233, 6
    %v3276 = vsel %vm1045, %v3275, %v3274
    %v3277 = vrot.slane %v3234, 5
    %v3278 = vsel %vm1048, %v3277, %v3276
    %3279 = vrot.lane.b32.xlu0 %v3264, 32
    %v3280 = vpop.permute.xlu0 %3279
    %3281 = vrot.lane.b32.xlu0 %v3278, 32
    %v3282 = vpop.permute.xlu0 %3281
    %3285 = vst.msk [vmem:[#allocation2 + $0x8] sm:$0xff] %vm416, %v3280
    %3286 = vst.msk [vmem:[#allocation2 + $0x28] sm:$0xff] %vm416, %v3282
    %v3287 = vld [vmem:[%s4] sm:$0xff]
    %v3288 = vld [vmem:[%s4 + $0x8] sm:$0xff]
    %v3289 = vld [vmem:[%s4 + $0x10] sm:$0xff]
    %v3290 = vld [vmem:[%s4 + $0x18] sm:$0xff]
    %v3291 = vsel %vm416, %v3280, 0
    %v3293 = vsel %vm416, %v3282, 0
    %3295 = vmatprep.subr.mxu0 0.0
    %3296 = vmatpush1.msra.mxu0 0.0
    %3297 = vmatprep.subr.mxu0 0.0
    %3298 = vmatpush1.msra.mxu0 0.0
    %3299 = vmatprep.subr.mxu0 0.0
    %3300 = vmatpush1.msra.mxu0 0.0
    %3301 = vmatprep.subr.mxu0 0.0
    %3302 = vmatpush1.msra.mxu0 0.0
    %3303 = vmatprep.subr.mxu0 0.0
    %3304 = vmatpush1.msra.mxu0 0.0
    %3305 = vmatprep.subr.mxu0 0.0
    %3306 = vmatpush1.msra.mxu0 0.0
    %3307 = vmatprep.subr.mxu0 0.0
    %3308 = vmatpush1.msra.mxu0 0.0
    %3309 = vmatprep.subr.mxu0 0.0
    %3310 = vmatpush1.msra.mxu0 0.0
    %3311 = vmatprep.subr.mxu0 0.0
    %3312 = vmatpush1.msra.mxu0 0.0
    %3313 = vmatprep.subr.mxu0 0.0
    %3314 = vmatpush1.msra.mxu0 0.0
    %3315 = vmatprep.subr.mxu0 0.0
    %3316 = vmatpush1.msra.mxu0 0.0
    %3317 = vmatprep.subr.mxu0 0.0
    %3318 = vmatpush1.msra.mxu0 0.0
    %3319 = vmatprep.subr.mxu0 0.0
    %3320 = vmatpush1.msra.mxu0 %v3290
    %3321 = vmatprep.subr.mxu0 0.0
    %3322 = vmatpush1.msra.mxu0 %v3289
    %3323 = vmatprep.subr.mxu0 0.0
    %3324 = vmatpush1.msra.mxu0 %v3288
    %3325 = vmatprep.subr.mxu0 0.0
    %3326 = vmatpush1.msra.mxu0 %v3287
    %3327 = vmatprep.subr.mxu0 0.0
    %3328 = vmatpush2.msra.mxu0 0.0
    %3329 = vmatprep.subr.mxu0 0.0
    %3330 = vmatpush2.msra.mxu0 0.0
    %3331 = vmatprep.subr.mxu0 0.0
    %3332 = vmatpush2.msra.mxu0 0.0
    %3333 = vmatprep.subr.mxu0 0.0
    %3334 = vmatpush2.msra.mxu0 0.0
    %3335 = vmatprep.subr.mxu0 0.0
    %3336 = vmatpush2.msra.mxu0 0.0
    %3337 = vmatprep.subr.mxu0 0.0
    %3338 = vmatpush2.msra.mxu0 0.0
    %3339 = vmatprep.subr.mxu0 0.0
    %3340 = vmatpush2.msra.mxu0 0.0
    %3341 = vmatprep.subr.mxu0 0.0
    %3342 = vmatpush2.msra.mxu0 0.0
    %3343 = vmatprep.subr.mxu0 0.0
    %3344 = vmatpush2.msra.mxu0 0.0
    %3345 = vmatprep.subr.mxu0 0.0
    %3346 = vmatpush2.msra.mxu0 0.0
    %3347 = vmatprep.subr.mxu0 0.0
    %3348 = vmatpush2.msra.mxu0 0.0
    %3349 = vmatprep.subr.mxu0 0.0
    %3350 = vmatpush2.msra.mxu0 0.0
    %3351 = vmatprep.subr.mxu0 0.0
    %3352 = vmatpush2.msra.mxu0 0.0
    %3353 = vmatprep.subr.mxu0 0.0
    %3354 = vmatpush2.msra.mxu0 0.0
    %3355 = vmatprep.subr.mxu0 0.0
    %3356 = vmatpush2.msra.mxu0 0.0
    %3357 = vmatprep.subr.mxu0 0.0
    %3358 = vmatpush2.msra.mxu0 0.0
    %3359 = vmatprep.mubr.f32.mxu0 0.0
    %3360 = vmatmul.mubr.f32.gmra.mxu0 %v3291
    %v3361 = vpop.f32.mrf.mxu0
    %v3362 = vadd.f32 0.0, %v3361
    %v3363 = vpop.f32.mrf.mxu0
    %3364 = vmatprep.mubr.f32.mxu0 0.0
    %3365 = vmatmul.mubr.f32.gmra.mxu0 %v3293
    %v3366 = vpop.f32.mrf.mxu0
    %v3367 = vadd.f32 0.0, %v3366
    %v3368 = vpop.f32.mrf.mxu0
    %3369 = vdwg.mxu0
    %v3372 = vrot.slane %v3362, 3
    %v3373 = vrot.slane %v3362, 4
    %v3374 = vrot.slane %v3362, 5
    %v3375 = vrot.slane %v3362, 6
    %v3376 = vrot.slane %v3362, 7
    %v3377 = vrot.slane %v3362, 1
    %v3378 = vrot.slane %v3362, 2
    %v3379 = vrot.slane %v3367, 3
    %v3380 = vrot.slane %v3367, 4
    %v3381 = vrot.slane %v3367, 5
    %v3382 = vrot.slane %v3367, 6
    %v3383 = vrot.slane %v3367, 7
    %v3384 = vrot.slane %v3367, 1
    %v3385 = vrot.slane %v3367, 2
    %v3402 = vadd.f32 %v248, %v3372
    %v3403 = vadd.f32 %v258, %v3373
    %v3404 = vadd.f32 %v268, %v3374
    %v3405 = vadd.f32 %v278, %v3375
    %v3406 = vadd.f32 %v288, %v3376
    %v3407 = vadd.f32 %v298, %v3362
    %v3408 = vadd.f32 %v308, %v3377
    %v3409 = vadd.f32 %v318, %v3378
    %v3410 = vadd.f32 %v328, %v3379
    %v3411 = vadd.f32 %v338, %v3380
    %v3412 = vadd.f32 %v348, %v3381
    %v3413 = vadd.f32 %v358, %v3382
    %v3414 = vadd.f32 %v368, %v3383
    %v3415 = vadd.f32 %v378, %v3367
    %v3416 = vadd.f32 %v388, %v3384
    %v3417 = vadd.f32 %v398, %v3385
    %v3418 = vtanh.pop %v3402
    %v3419 = vtanh.pop %v3403
    %v3420 = vtanh.pop %v3404
    %v3421 = vtanh.pop %v3405
    %v3422 = vtanh.pop %v3406
    %v3423 = vtanh.pop %v3407
    %v3424 = vtanh.pop %v3408
    %v3425 = vtanh.pop %v3409
    %v3426 = vtanh.pop %v3410
    %v3427 = vtanh.pop %v3411
    %v3428 = vtanh.pop %v3412
    %v3429 = vtanh.pop %v3413
    %v3430 = vtanh.pop %v3414
    %v3431 = vtanh.pop %v3415
    %v3432 = vtanh.pop %v3416
    %v3433 = vtanh.pop %v3417
    %v3434 = vmul.f32 %v3418, 0.5
    %v3435 = vmul.f32 %v3419, 0.5
    %v3436 = vmul.f32 %v3420, 0.5
    %v3437 = vmul.f32 %v3421, 0.5
    %v3438 = vmul.f32 %v3422, 0.5
    %v3439 = vmul.f32 %v3423, 0.5
    %v3440 = vmul.f32 %v3424, 0.5
    %v3441 = vmul.f32 %v3425, 0.5
    %v3442 = vmul.f32 %v3426, 0.5
    %v3443 = vmul.f32 %v3427, 0.5
    %v3444 = vmul.f32 %v3428, 0.5
    %v3445 = vmul.f32 %v3429, 0.5
    %v3446 = vmul.f32 %v3430, 0.5
    %v3447 = vmul.f32 %v3431, 0.5
    %v3448 = vmul.f32 %v3432, 0.5
    %v3449 = vmul.f32 %v3433, 0.5
    %v3450 = vadd.f32 %v3434, 0.5
    %v3451 = vadd.f32 %v3435, 0.5
    %v3452 = vadd.f32 %v3436, 0.5
    %v3453 = vadd.f32 %v3437, 0.5
    %v3454 = vadd.f32 %v3438, 0.5
    %v3455 = vadd.f32 %v3439, 0.5
    %v3456 = vadd.f32 %v3440, 0.5
    %v3457 = vadd.f32 %v3441, 0.5
    %v3458 = vadd.f32 %v3442, 0.5
    %v3459 = vadd.f32 %v3443, 0.5
    %v3460 = vadd.f32 %v3444, 0.5
    %v3461 = vadd.f32 %v3445, 0.5
    %v3462 = vadd.f32 %v3446, 0.5
    %v3463 = vadd.f32 %v3447, 0.5
    %v3464 = vadd.f32 %v3448, 0.5
    %v3465 = vadd.f32 %v3449, 0.5
    %v3482 = vrot.slane %v3123, 7
    %v3483 = vrot.slane %v3124, 7
    %v3484 = vrot.slane %v3125, 7
    %v3485 = vrot.slane %v3126, 7
    %v3486 = vrot.slane %v3127, 7
    %v3487 = vrot.slane %v3128, 7
    %v3488 = vrot.slane %v3129, 7
    %v3489 = vrot.slane %v3130, 7
    %v3490 = vrot.slane %v3131, 7
    %v3491 = vrot.slane %v3132, 7
    %v3492 = vrot.slane %v3133, 7
    %v3493 = vrot.slane %v3134, 7
    %v3494 = vrot.slane %v3135, 7
    %v3495 = vrot.slane %v3136, 7
    %v3496 = vrot.slane %v3137, 7
    %v3497 = vrot.slane %v3138, 7
    %v3514 = vmul.f32 %v3450, %v3482
    %v3515 = vmul.f32 %v3451, %v3483
    %v3516 = vmul.f32 %v3452, %v3484
    %v3517 = vmul.f32 %v3453, %v3485
    %v3518 = vmul.f32 %v3454, %v3486
    %v3519 = vmul.f32 %v3455, %v3487
    %v3520 = vmul.f32 %v3456, %v3488
    %v3521 = vmul.f32 %v3457, %v3489
    %v3522 = vmul.f32 %v3458, %v3490
    %v3523 = vmul.f32 %v3459, %v3491
    %v3524 = vmul.f32 %v3460, %v3492
    %v3525 = vmul.f32 %v3461, %v3493
    %v3526 = vmul.f32 %v3462, %v3494
    %v3527 = vmul.f32 %v3463, %v3495
    %v3528 = vmul.f32 %v3464, %v3496
    %v3529 = vmul.f32 %v3465, %v3497
    %3546 = vrot.lane.b32.xlu0 %v3418, 64
    %v3547 = vpop.permute.xlu0 %3546
    %3548 = vrot.lane.b32.xlu0 %v3419, 64
    %v3549 = vpop.permute.xlu0 %3548
    %3550 = vrot.lane.b32.xlu0 %v3420, 64
    %v3551 = vpop.permute.xlu0 %3550
    %3552 = vrot.lane.b32.xlu0 %v3421, 64
    %v3553 = vpop.permute.xlu0 %3552
    %3554 = vrot.lane.b32.xlu0 %v3422, 64
    %v3555 = vpop.permute.xlu0 %3554
    %3556 = vrot.lane.b32.xlu0 %v3423, 64
    %v3557 = vpop.permute.xlu0 %3556
    %3558 = vrot.lane.b32.xlu0 %v3424, 64
    %v3559 = vpop.permute.xlu0 %3558
    %3560 = vrot.lane.b32.xlu0 %v3425, 64
    %v3561 = vpop.permute.xlu0 %3560
    %3562 = vrot.lane.b32.xlu0 %v3426, 64
    %v3563 = vpop.permute.xlu0 %3562
    %3564 = vrot.lane.b32.xlu0 %v3427, 64
    %v3565 = vpop.permute.xlu0 %3564
    %3566 = vrot.lane.b32.xlu0 %v3428, 64
    %v3567 = vpop.permute.xlu0 %3566
    %3568 = vrot.lane.b32.xlu0 %v3429, 64
    %v3569 = vpop.permute.xlu0 %3568
    %3570 = vrot.lane.b32.xlu0 %v3430, 64
    %v3571 = vpop.permute.xlu0 %3570
    %3572 = vrot.lane.b32.xlu0 %v3431, 64
    %v3573 = vpop.permute.xlu0 %3572
    %3574 = vrot.lane.b32.xlu0 %v3432, 64
    %v3575 = vpop.permute.xlu0 %3574
    %3576 = vrot.lane.b32.xlu0 %v3433, 64
    %v3577 = vpop.permute.xlu0 %3576
    %v3594 = vmul.f32 %v3450, %v3547
    %v3595 = vmul.f32 %v3451, %v3549
    %v3596 = vmul.f32 %v3452, %v3551
    %v3597 = vmul.f32 %v3453, %v3553
    %v3598 = vmul.f32 %v3454, %v3555
    %v3599 = vmul.f32 %v3455, %v3557
    %v3600 = vmul.f32 %v3456, %v3559
    %v3601 = vmul.f32 %v3457, %v3561
    %v3602 = vmul.f32 %v3458, %v3563
    %v3603 = vmul.f32 %v3459, %v3565
    %v3604 = vmul.f32 %v3460, %v3567
    %v3605 = vmul.f32 %v3461, %v3569
    %v3606 = vmul.f32 %v3462, %v3571
    %v3607 = vmul.f32 %v3463, %v3573
    %v3608 = vmul.f32 %v3464, %v3575
    %v3609 = vmul.f32 %v3465, %v3577
    %3626 = vrot.lane.b32.xlu0 %v3594, 32
    %v3627 = vpop.permute.xlu0 %3626
    %3628 = vrot.lane.b32.xlu0 %v3595, 32
    %v3629 = vpop.permute.xlu0 %3628
    %3630 = vrot.lane.b32.xlu0 %v3596, 32
    %v3631 = vpop.permute.xlu0 %3630
    %3632 = vrot.lane.b32.xlu0 %v3597, 32
    %v3633 = vpop.permute.xlu0 %3632
    %3634 = vrot.lane.b32.xlu0 %v3598, 32
    %v3635 = vpop.permute.xlu0 %3634
    %3636 = vrot.lane.b32.xlu0 %v3599, 32
    %v3637 = vpop.permute.xlu0 %3636
    %3638 = vrot.lane.b32.xlu0 %v3600, 32
    %v3639 = vpop.permute.xlu0 %3638
    %3640 = vrot.lane.b32.xlu0 %v3601, 32
    %v3641 = vpop.permute.xlu0 %3640
    %3642 = vrot.lane.b32.xlu0 %v3602, 32
    %v3643 = vpop.permute.xlu0 %3642
    %3644 = vrot.lane.b32.xlu0 %v3603, 32
    %v3645 = vpop.permute.xlu0 %3644
    %3646 = vrot.lane.b32.xlu0 %v3604, 32
    %v3647 = vpop.permute.xlu0 %3646
    %3648 = vrot.lane.b32.xlu0 %v3605, 32
    %v3649 = vpop.permute.xlu0 %3648
    %3650 = vrot.lane.b32.xlu0 %v3606, 32
    %v3651 = vpop.permute.xlu0 %3650
    %3652 = vrot.lane.b32.xlu0 %v3607, 32
    %v3653 = vpop.permute.xlu0 %3652
    %3654 = vrot.lane.b32.xlu0 %v3608, 32
    %v3655 = vpop.permute.xlu0 %3654
    %3656 = vrot.lane.b32.xlu0 %v3609, 32
    %v3657 = vpop.permute.xlu0 %3656
    %v3674 = vadd.f32 %v3514, %v3627
    %v3675 = vadd.f32 %v3515, %v3629
    %v3676 = vadd.f32 %v3516, %v3631
    %v3677 = vadd.f32 %v3517, %v3633
    %v3678 = vadd.f32 %v3518, %v3635
    %v3679 = vadd.f32 %v3519, %v3637
    %v3680 = vadd.f32 %v3520, %v3639
    %v3681 = vadd.f32 %v3521, %v3641
    %v3682 = vadd.f32 %v3522, %v3643
    %v3683 = vadd.f32 %v3523, %v3645
    %v3684 = vadd.f32 %v3524, %v3647
    %v3685 = vadd.f32 %v3525, %v3649
    %v3686 = vadd.f32 %v3526, %v3651
    %v3687 = vadd.f32 %v3527, %v3653
    %v3688 = vadd.f32 %v3528, %v3655
    %v3689 = vadd.f32 %v3529, %v3657
    %v3690 = vtanh.pop %v3674
    %v3691 = vtanh.pop %v3675
    %v3692 = vtanh.pop %v3676
    %v3693 = vtanh.pop %v3677
    %v3694 = vtanh.pop %v3678
    %v3695 = vtanh.pop %v3679
    %v3696 = vtanh.pop %v3680
    %v3697 = vtanh.pop %v3681
    %v3698 = vtanh.pop %v3682
    %v3699 = vtanh.pop %v3683
    %v3700 = vtanh.pop %v3684
    %v3701 = vtanh.pop %v3685
    %v3702 = vtanh.pop %v3686
    %v3703 = vtanh.pop %v3687
    %v3704 = vtanh.pop %v3688
    %v3705 = vtanh.pop %v3689
    %3722 = vrot.lane.b32.xlu0 %v3690, 64
    %v3723 = vpop.permute.xlu0 %3722
    %3724 = vrot.lane.b32.xlu0 %v3691, 64
    %v3725 = vpop.permute.xlu0 %3724
    %3726 = vrot.lane.b32.xlu0 %v3692, 64
    %v3727 = vpop.permute.xlu0 %3726
    %3728 = vrot.lane.b32.xlu0 %v3693, 64
    %v3729 = vpop.permute.xlu0 %3728
    %3730 = vrot.lane.b32.xlu0 %v3694, 64
    %v3731 = vpop.permute.xlu0 %3730
    %3732 = vrot.lane.b32.xlu0 %v3695, 64
    %v3733 = vpop.permute.xlu0 %3732
    %3734 = vrot.lane.b32.xlu0 %v3696, 64
    %v3735 = vpop.permute.xlu0 %3734
    %3736 = vrot.lane.b32.xlu0 %v3697, 64
    %v3737 = vpop.permute.xlu0 %3736
    %3738 = vrot.lane.b32.xlu0 %v3698, 64
    %v3739 = vpop.permute.xlu0 %3738
    %3740 = vrot.lane.b32.xlu0 %v3699, 64
    %v3741 = vpop.permute.xlu0 %3740
    %3742 = vrot.lane.b32.xlu0 %v3700, 64
    %v3743 = vpop.permute.xlu0 %3742
    %3744 = vrot.lane.b32.xlu0 %v3701, 64
    %v3745 = vpop.permute.xlu0 %3744
    %3746 = vrot.lane.b32.xlu0 %v3702, 64
    %v3747 = vpop.permute.xlu0 %3746
    %3748 = vrot.lane.b32.xlu0 %v3703, 64
    %v3749 = vpop.permute.xlu0 %3748
    %3750 = vrot.lane.b32.xlu0 %v3704, 64
    %v3751 = vpop.permute.xlu0 %3750
    %3752 = vrot.lane.b32.xlu0 %v3705, 64
    %v3753 = vpop.permute.xlu0 %3752
    %v3770 = vmul.f32 %v3450, %v3723
    %v3771 = vmul.f32 %v3451, %v3725
    %v3772 = vmul.f32 %v3452, %v3727
    %v3773 = vmul.f32 %v3453, %v3729
    %v3774 = vmul.f32 %v3454, %v3731
    %v3775 = vmul.f32 %v3455, %v3733
    %v3776 = vmul.f32 %v3456, %v3735
    %v3777 = vmul.f32 %v3457, %v3737
    %v3778 = vmul.f32 %v3458, %v3739
    %v3779 = vmul.f32 %v3459, %v3741
    %v3780 = vmul.f32 %v3460, %v3743
    %v3781 = vmul.f32 %v3461, %v3745
    %v3782 = vmul.f32 %v3462, %v3747
    %v3783 = vmul.f32 %v3463, %v3749
    %v3784 = vmul.f32 %v3464, %v3751
    %v3785 = vmul.f32 %v3465, %v3753
    %v3802 = vrot.slane %v3770, 5
    %v3803 = vrot.slane %v3771, 4
    %v3804 = vsel %vm1030, %v3803, %v3802
    %v3805 = vrot.slane %v3772, 3
    %v3806 = vsel %vm1033, %v3805, %v3804
    %v3807 = vrot.slane %v3773, 2
    %v3808 = vsel %vm1036, %v3807, %v3806
    %v3809 = vrot.slane %v3774, 1
    %v3810 = vsel %vm1039, %v3809, %v3808
    %v3811 = vsel %vm1042, %v3775, %v3810
    %v3812 = vrot.slane %v3776, 7
    %v3813 = vsel %vm1045, %v3812, %v3811
    %v3814 = vrot.slane %v3777, 6
    %v3815 = vsel %vm1048, %v3814, %v3813
    %v3816 = vrot.slane %v3778, 5
    %v3817 = vrot.slane %v3779, 4
    %v3818 = vsel %vm1030, %v3817, %v3816
    %v3819 = vrot.slane %v3780, 3
    %v3820 = vsel %vm1033, %v3819, %v3818
    %v3821 = vrot.slane %v3781, 2
    %v3822 = vsel %vm1036, %v3821, %v3820
    %v3823 = vrot.slane %v3782, 1
    %v3824 = vsel %vm1039, %v3823, %v3822
    %v3825 = vsel %vm1042, %v3783, %v3824
    %v3826 = vrot.slane %v3784, 7
    %v3827 = vsel %vm1045, %v3826, %v3825
    %v3828 = vrot.slane %v3785, 6
    %v3829 = vsel %vm1048, %v3828, %v3827
    %3830 = vrot.lane.b32.xlu0 %v3815, 64
    %v3831 = vpop.permute.xlu0 %3830
    %3832 = vrot.lane.b32.xlu0 %v3829, 64
    %v3833 = vpop.permute.xlu0 %3832
    %3836 = vst.msk [vmem:[#allocation2 + $0x8] sm:$0xff] %vm1621, %v3831
    %3837 = vst.msk [vmem:[#allocation2 + $0x28] sm:$0xff] %vm1621, %v3833
    %v3838 = vld [vmem:[%s4] sm:$0xff]
    %v3839 = vld [vmem:[%s4 + $0x8] sm:$0xff]
    %v3840 = vld [vmem:[%s4 + $0x10] sm:$0xff]
    %v3841 = vld [vmem:[%s4 + $0x18] sm:$0xff]
    %3842 = vrot.lane.b32.xlu0 %v3815, 32
    %v3843 = vpop.permute.xlu0 %3842
    %3844 = vrot.lane.b32.xlu0 %v3829, 32
    %v3845 = vpop.permute.xlu0 %3844
    %v3846 = vsel %vm416, %v3843, 0
    %v3848 = vsel %vm416, %v3845, 0
    %3850 = vmatprep.subr.mxu0 0.0
    %3851 = vmatpush1.msra.mxu0 0.0
    %3852 = vmatprep.subr.mxu0 0.0
    %3853 = vmatpush1.msra.mxu0 0.0
    %3854 = vmatprep.subr.mxu0 0.0
    %3855 = vmatpush1.msra.mxu0 0.0
    %3856 = vmatprep.subr.mxu0 0.0
    %3857 = vmatpush1.msra.mxu0 0.0
    %3858 = vmatprep.subr.mxu0 0.0
    %3859 = vmatpush1.msra.mxu0 0.0
    %3860 = vmatprep.subr.mxu0 0.0
    %3861 = vmatpush1.msra.mxu0 0.0
    %3862 = vmatprep.subr.mxu0 0.0
    %3863 = vmatpush1.msra.mxu0 0.0
    %3864 = vmatprep.subr.mxu0 0.0
    %3865 = vmatpush1.msra.mxu0 0.0
    %3866 = vmatprep.subr.mxu0 0.0
    %3867 = vmatpush1.msra.mxu0 0.0
    %3868 = vmatprep.subr.mxu0 0.0
    %3869 = vmatpush1.msra.mxu0 0.0
    %3870 = vmatprep.subr.mxu0 0.0
    %3871 = vmatpush1.msra.mxu0 0.0
    %3872 = vmatprep.subr.mxu0 0.0
    %3873 = vmatpush1.msra.mxu0 0.0
    %3874 = vmatprep.subr.mxu0 0.0
    %3875 = vmatpush1.msra.mxu0 %v3841
    %3876 = vmatprep.subr.mxu0 0.0
    %3877 = vmatpush1.msra.mxu0 %v3840
    %3878 = vmatprep.subr.mxu0 0.0
    %3879 = vmatpush1.msra.mxu0 %v3839
    %3880 = vmatprep.subr.mxu0 0.0
    %3881 = vmatpush1.msra.mxu0 %v3838
    %3882 = vmatprep.subr.mxu0 0.0
    %3883 = vmatpush2.msra.mxu0 0.0
    %3884 = vmatprep.subr.mxu0 0.0
    %3885 = vmatpush2.msra.mxu0 0.0
    %3886 = vmatprep.subr.mxu0 0.0
    %3887 = vmatpush2.msra.mxu0 0.0
    %3888 = vmatprep.subr.mxu0 0.0
    %3889 = vmatpush2.msra.mxu0 0.0
    %3890 = vmatprep.subr.mxu0 0.0
    %3891 = vmatpush2.msra.mxu0 0.0
    %3892 = vmatprep.subr.mxu0 0.0
    %3893 = vmatpush2.msra.mxu0 0.0
    %3894 = vmatprep.subr.mxu0 0.0
    %3895 = vmatpush2.msra.mxu0 0.0
    %3896 = vmatprep.subr.mxu0 0.0
    %3897 = vmatpush2.msra.mxu0 0.0
    %3898 = vmatprep.subr.mxu0 0.0
    %3899 = vmatpush2.msra.mxu0 0.0
    %3900 = vmatprep.subr.mxu0 0.0
    %3901 = vmatpush2.msra.mxu0 0.0
    %3902 = vmatprep.subr.mxu0 0.0
    %3903 = vmatpush2.msra.mxu0 0.0
    %3904 = vmatprep.subr.mxu0 0.0
    %3905 = vmatpush2.msra.mxu0 0.0
    %3906 = vmatprep.subr.mxu0 0.0
    %3907 = vmatpush2.msra.mxu0 0.0
    %3908 = vmatprep.subr.mxu0 0.0
    %3909 = vmatpush2.msra.mxu0 0.0
    %3910 = vmatprep.subr.mxu0 0.0
    %3911 = vmatpush2.msra.mxu0 0.0
    %3912 = vmatprep.subr.mxu0 0.0
    %3913 = vmatpush2.msra.mxu0 0.0
    %3914 = vmatprep.mubr.f32.mxu0 0.0
    %3915 = vmatmul.mubr.f32.gmra.mxu0 %v3846
    %v3916 = vpop.f32.mrf.mxu0
    %v3917 = vadd.f32 0.0, %v3916
    %v3918 = vpop.f32.mrf.mxu0
    %3919 = vmatprep.mubr.f32.mxu0 0.0
    %3920 = vmatmul.mubr.f32.gmra.mxu0 %v3848
    %v3921 = vpop.f32.mrf.mxu0
    %v3922 = vadd.f32 0.0, %v3921
    %v3923 = vpop.f32.mrf.mxu0
    %3924 = vdwg.mxu0
    %v3927 = vrot.slane %v3917, 2
    %v3928 = vrot.slane %v3917, 3
    %v3929 = vrot.slane %v3917, 4
    %v3930 = vrot.slane %v3917, 5
    %v3931 = vrot.slane %v3917, 6
    %v3932 = vrot.slane %v3917, 7
    %v3933 = vrot.slane %v3917, 1
    %v3934 = vrot.slane %v3922, 2
    %v3935 = vrot.slane %v3922, 3
    %v3936 = vrot.slane %v3922, 4
    %v3937 = vrot.slane %v3922, 5
    %v3938 = vrot.slane %v3922, 6
    %v3939 = vrot.slane %v3922, 7
    %v3940 = vrot.slane %v3922, 1
    %v3957 = vadd.f32 %v248, %v3927
    %v3958 = vadd.f32 %v258, %v3928
    %v3959 = vadd.f32 %v268, %v3929
    %v3960 = vadd.f32 %v278, %v3930
    %v3961 = vadd.f32 %v288, %v3931
    %v3962 = vadd.f32 %v298, %v3932
    %v3963 = vadd.f32 %v308, %v3917
    %v3964 = vadd.f32 %v318, %v3933
    %v3965 = vadd.f32 %v328, %v3934
    %v3966 = vadd.f32 %v338, %v3935
    %v3967 = vadd.f32 %v348, %v3936
    %v3968 = vadd.f32 %v358, %v3937
    %v3969 = vadd.f32 %v368, %v3938
    %v3970 = vadd.f32 %v378, %v3939
    %v3971 = vadd.f32 %v388, %v3922
    %v3972 = vadd.f32 %v398, %v3940
    %v3973 = vtanh.pop %v3957
    %v3974 = vtanh.pop %v3958
    %v3975 = vtanh.pop %v3959
    %v3976 = vtanh.pop %v3960
    %v3977 = vtanh.pop %v3961
    %v3978 = vtanh.pop %v3962
    %v3979 = vtanh.pop %v3963
    %v3980 = vtanh.pop %v3964
    %v3981 = vtanh.pop %v3965
    %v3982 = vtanh.pop %v3966
    %v3983 = vtanh.pop %v3967
    %v3984 = vtanh.pop %v3968
    %v3985 = vtanh.pop %v3969
    %v3986 = vtanh.pop %v3970
    %v3987 = vtanh.pop %v3971
    %v3988 = vtanh.pop %v3972
    %v3989 = vmul.f32 %v3973, 0.5
    %v3990 = vmul.f32 %v3974, 0.5
    %v3991 = vmul.f32 %v3975, 0.5
    %v3992 = vmul.f32 %v3976, 0.5
    %v3993 = vmul.f32 %v3977, 0.5
    %v3994 = vmul.f32 %v3978, 0.5
    %v3995 = vmul.f32 %v3979, 0.5
    %v3996 = vmul.f32 %v3980, 0.5
    %v3997 = vmul.f32 %v3981, 0.5
    %v3998 = vmul.f32 %v3982, 0.5
    %v3999 = vmul.f32 %v3983, 0.5
    %v4000 = vmul.f32 %v3984, 0.5
    %v4001 = vmul.f32 %v3985, 0.5
    %v4002 = vmul.f32 %v3986, 0.5
    %v4003 = vmul.f32 %v3987, 0.5
    %v4004 = vmul.f32 %v3988, 0.5
    %v4005 = vadd.f32 %v3989, 0.5
    %v4006 = vadd.f32 %v3990, 0.5
    %v4007 = vadd.f32 %v3991, 0.5
    %v4008 = vadd.f32 %v3992, 0.5
    %v4009 = vadd.f32 %v3993, 0.5
    %v4010 = vadd.f32 %v3994, 0.5
    %v4011 = vadd.f32 %v3995, 0.5
    %v4012 = vadd.f32 %v3996, 0.5
    %v4013 = vadd.f32 %v3997, 0.5
    %v4014 = vadd.f32 %v3998, 0.5
    %v4015 = vadd.f32 %v3999, 0.5
    %v4016 = vadd.f32 %v4000, 0.5
    %v4017 = vadd.f32 %v4001, 0.5
    %v4018 = vadd.f32 %v4002, 0.5
    %v4019 = vadd.f32 %v4003, 0.5
    %v4020 = vadd.f32 %v4004, 0.5
    %v4037 = vrot.slane %v3674, 7
    %v4038 = vrot.slane %v3675, 7
    %v4039 = vrot.slane %v3676, 7
    %v4040 = vrot.slane %v3677, 7
    %v4041 = vrot.slane %v3678, 7
    %v4042 = vrot.slane %v3679, 7
    %v4043 = vrot.slane %v3680, 7
    %v4044 = vrot.slane %v3681, 7
    %v4045 = vrot.slane %v3682, 7
    %v4046 = vrot.slane %v3683, 7
    %v4047 = vrot.slane %v3684, 7
    %v4048 = vrot.slane %v3685, 7
    %v4049 = vrot.slane %v3686, 7
    %v4050 = vrot.slane %v3687, 7
    %v4051 = vrot.slane %v3688, 7
    %v4052 = vrot.slane %v3689, 7
    %v4069 = vmul.f32 %v4005, %v4037
    %v4070 = vmul.f32 %v4006, %v4038
    %v4071 = vmul.f32 %v4007, %v4039
    %v4072 = vmul.f32 %v4008, %v4040
    %v4073 = vmul.f32 %v4009, %v4041
    %v4074 = vmul.f32 %v4010, %v4042
    %v4075 = vmul.f32 %v4011, %v4043
    %v4076 = vmul.f32 %v4012, %v4044
    %v4077 = vmul.f32 %v4013, %v4045
    %v4078 = vmul.f32 %v4014, %v4046
    %v4079 = vmul.f32 %v4015, %v4047
    %v4080 = vmul.f32 %v4016, %v4048
    %v4081 = vmul.f32 %v4017, %v4049
    %v4082 = vmul.f32 %v4018, %v4050
    %v4083 = vmul.f32 %v4019, %v4051
    %v4084 = vmul.f32 %v4020, %v4052
    %4101 = vrot.lane.b32.xlu0 %v3973, 64
    %v4102 = vpop.permute.xlu0 %4101
    %4103 = vrot.lane.b32.xlu0 %v3974, 64
    %v4104 = vpop.permute.xlu0 %4103
    %4105 = vrot.lane.b32.xlu0 %v3975, 64
    %v4106 = vpop.permute.xlu0 %4105
    %4107 = vrot.lane.b32.xlu0 %v3976, 64
    %v4108 = vpop.permute.xlu0 %4107
    %4109 = vrot.lane.b32.xlu0 %v3977, 64
    %v4110 = vpop.permute.xlu0 %4109
    %4111 = vrot.lane.b32.xlu0 %v3978, 64
    %v4112 = vpop.permute.xlu0 %4111
    %4113 = vrot.lane.b32.xlu0 %v3979, 64
    %v4114 = vpop.permute.xlu0 %4113
    %4115 = vrot.lane.b32.xlu0 %v3980, 64
    %v4116 = vpop.permute.xlu0 %4115
    %4117 = vrot.lane.b32.xlu0 %v3981, 64
    %v4118 = vpop.permute.xlu0 %4117
    %4119 = vrot.lane.b32.xlu0 %v3982, 64
    %v4120 = vpop.permute.xlu0 %4119
    %4121 = vrot.lane.b32.xlu0 %v3983, 64
    %v4122 = vpop.permute.xlu0 %4121
    %4123 = vrot.lane.b32.xlu0 %v3984, 64
    %v4124 = vpop.permute.xlu0 %4123
    %4125 = vrot.lane.b32.xlu0 %v3985, 64
    %v4126 = vpop.permute.xlu0 %4125
    %4127 = vrot.lane.b32.xlu0 %v3986, 64
    %v4128 = vpop.permute.xlu0 %4127
    %4129 = vrot.lane.b32.xlu0 %v3987, 64
    %v4130 = vpop.permute.xlu0 %4129
    %4131 = vrot.lane.b32.xlu0 %v3988, 64
    %v4132 = vpop.permute.xlu0 %4131
    %v4149 = vmul.f32 %v4005, %v4102
    %v4150 = vmul.f32 %v4006, %v4104
    %v4151 = vmul.f32 %v4007, %v4106
    %v4152 = vmul.f32 %v4008, %v4108
    %v4153 = vmul.f32 %v4009, %v4110
    %v4154 = vmul.f32 %v4010, %v4112
    %v4155 = vmul.f32 %v4011, %v4114
    %v4156 = vmul.f32 %v4012, %v4116
    %v4157 = vmul.f32 %v4013, %v4118
    %v4158 = vmul.f32 %v4014, %v4120
    %v4159 = vmul.f32 %v4015, %v4122
    %v4160 = vmul.f32 %v4016, %v4124
    %v4161 = vmul.f32 %v4017, %v4126
    %v4162 = vmul.f32 %v4018, %v4128
    %v4163 = vmul.f32 %v4019, %v4130
    %v4164 = vmul.f32 %v4020, %v4132
    %4181 = vrot.lane.b32.xlu0 %v4149, 32
    %v4182 = vpop.permute.xlu0 %4181
    %4183 = vrot.lane.b32.xlu0 %v4150, 32
    %v4184 = vpop.permute.xlu0 %4183
    %4185 = vrot.lane.b32.xlu0 %v4151, 32
    %v4186 = vpop.permute.xlu0 %4185
    %4187 = vrot.lane.b32.xlu0 %v4152, 32
    %v4188 = vpop.permute.xlu0 %4187
    %4189 = vrot.lane.b32.xlu0 %v4153, 32
    %v4190 = vpop.permute.xlu0 %4189
    %4191 = vrot.lane.b32.xlu0 %v4154, 32
    %v4192 = vpop.permute.xlu0 %4191
    %4193 = vrot.lane.b32.xlu0 %v4155, 32
    %v4194 = vpop.permute.xlu0 %4193
    %4195 = vrot.lane.b32.xlu0 %v4156, 32
    %v4196 = vpop.permute.xlu0 %4195
    %4197 = vrot.lane.b32.xlu0 %v4157, 32
    %v4198 = vpop.permute.xlu0 %4197
    %4199 = vrot.lane.b32.xlu0 %v4158, 32
    %v4200 = vpop.permute.xlu0 %4199
    %4201 = vrot.lane.b32.xlu0 %v4159, 32
    %v4202 = vpop.permute.xlu0 %4201
    %4203 = vrot.lane.b32.xlu0 %v4160, 32
    %v4204 = vpop.permute.xlu0 %4203
    %4205 = vrot.lane.b32.xlu0 %v4161, 32
    %v4206 = vpop.permute.xlu0 %4205
    %4207 = vrot.lane.b32.xlu0 %v4162, 32
    %v4208 = vpop.permute.xlu0 %4207
    %4209 = vrot.lane.b32.xlu0 %v4163, 32
    %v4210 = vpop.permute.xlu0 %4209
    %4211 = vrot.lane.b32.xlu0 %v4164, 32
    %v4212 = vpop.permute.xlu0 %4211
    %v4229 = vadd.f32 %v4069, %v4182
    %v4230 = vadd.f32 %v4070, %v4184
    %v4231 = vadd.f32 %v4071, %v4186
    %v4232 = vadd.f32 %v4072, %v4188
    %v4233 = vadd.f32 %v4073, %v4190
    %v4234 = vadd.f32 %v4074, %v4192
    %v4235 = vadd.f32 %v4075, %v4194
    %v4236 = vadd.f32 %v4076, %v4196
    %v4237 = vadd.f32 %v4077, %v4198
    %v4238 = vadd.f32 %v4078, %v4200
    %v4239 = vadd.f32 %v4079, %v4202
    %v4240 = vadd.f32 %v4080, %v4204
    %v4241 = vadd.f32 %v4081, %v4206
    %v4242 = vadd.f32 %v4082, %v4208
    %v4243 = vadd.f32 %v4083, %v4210
    %v4244 = vadd.f32 %v4084, %v4212
    %v4245 = vtanh.pop %v4229
    %v4246 = vtanh.pop %v4230
    %v4247 = vtanh.pop %v4231
    %v4248 = vtanh.pop %v4232
    %v4249 = vtanh.pop %v4233
    %v4250 = vtanh.pop %v4234
    %v4251 = vtanh.pop %v4235
    %v4252 = vtanh.pop %v4236
    %v4253 = vtanh.pop %v4237
    %v4254 = vtanh.pop %v4238
    %v4255 = vtanh.pop %v4239
    %v4256 = vtanh.pop %v4240
    %v4257 = vtanh.pop %v4241
    %v4258 = vtanh.pop %v4242
    %v4259 = vtanh.pop %v4243
    %v4260 = vtanh.pop %v4244
    %4277 = vrot.lane.b32.xlu0 %v4245, 64
    %v4278 = vpop.permute.xlu0 %4277
    %4279 = vrot.lane.b32.xlu0 %v4246, 64
    %v4280 = vpop.permute.xlu0 %4279
    %4281 = vrot.lane.b32.xlu0 %v4247, 64
    %v4282 = vpop.permute.xlu0 %4281
    %4283 = vrot.lane.b32.xlu0 %v4248, 64
    %v4284 = vpop.permute.xlu0 %4283
    %4285 = vrot.lane.b32.xlu0 %v4249, 64
    %v4286 = vpop.permute.xlu0 %4285
    %4287 = vrot.lane.b32.xlu0 %v4250, 64
    %v4288 = vpop.permute.xlu0 %4287
    %4289 = vrot.lane.b32.xlu0 %v4251, 64
    %v4290 = vpop.permute.xlu0 %4289
    %4291 = vrot.lane.b32.xlu0 %v4252, 64
    %v4292 = vpop.permute.xlu0 %4291
    %4293 = vrot.lane.b32.xlu0 %v4253, 64
    %v4294 = vpop.permute.xlu0 %4293
    %4295 = vrot.lane.b32.xlu0 %v4254, 64
    %v4296 = vpop.permute.xlu0 %4295
    %4297 = vrot.lane.b32.xlu0 %v4255, 64
    %v4298 = vpop.permute.xlu0 %4297
    %4299 = vrot.lane.b32.xlu0 %v4256, 64
    %v4300 = vpop.permute.xlu0 %4299
    %4301 = vrot.lane.b32.xlu0 %v4257, 64
    %v4302 = vpop.permute.xlu0 %4301
    %4303 = vrot.lane.b32.xlu0 %v4258, 64
    %v4304 = vpop.permute.xlu0 %4303
    %4305 = vrot.lane.b32.xlu0 %v4259, 64
    %v4306 = vpop.permute.xlu0 %4305
    %4307 = vrot.lane.b32.xlu0 %v4260, 64
    %v4308 = vpop.permute.xlu0 %4307
    %v4325 = vmul.f32 %v4005, %v4278
    %v4326 = vmul.f32 %v4006, %v4280
    %v4327 = vmul.f32 %v4007, %v4282
    %v4328 = vmul.f32 %v4008, %v4284
    %v4329 = vmul.f32 %v4009, %v4286
    %v4330 = vmul.f32 %v4010, %v4288
    %v4331 = vmul.f32 %v4011, %v4290
    %v4332 = vmul.f32 %v4012, %v4292
    %v4333 = vmul.f32 %v4013, %v4294
    %v4334 = vmul.f32 %v4014, %v4296
    %v4335 = vmul.f32 %v4015, %v4298
    %v4336 = vmul.f32 %v4016, %v4300
    %v4337 = vmul.f32 %v4017, %v4302
    %v4338 = vmul.f32 %v4018, %v4304
    %v4339 = vmul.f32 %v4019, %v4306
    %v4340 = vmul.f32 %v4020, %v4308
    %v4357 = vrot.slane %v4325, 6
    %v4358 = vrot.slane %v4326, 5
    %v4359 = vsel %vm1030, %v4358, %v4357
    %v4360 = vrot.slane %v4327, 4
    %v4361 = vsel %vm1033, %v4360, %v4359
    %v4362 = vrot.slane %v4328, 3
    %v4363 = vsel %vm1036, %v4362, %v4361
    %v4364 = vrot.slane %v4329, 2
    %v4365 = vsel %vm1039, %v4364, %v4363
    %v4366 = vrot.slane %v4330, 1
    %v4367 = vsel %vm1042, %v4366, %v4365
    %v4368 = vsel %vm1045, %v4331, %v4367
    %v4369 = vrot.slane %v4332, 7
    %v4370 = vsel %vm1048, %v4369, %v4368
    %v4371 = vrot.slane %v4333, 6
    %v4372 = vrot.slane %v4334, 5
    %v4373 = vsel %vm1030, %v4372, %v4371
    %v4374 = vrot.slane %v4335, 4
    %v4375 = vsel %vm1033, %v4374, %v4373
    %v4376 = vrot.slane %v4336, 3
    %v4377 = vsel %vm1036, %v4376, %v4375
    %v4378 = vrot.slane %v4337, 2
    %v4379 = vsel %vm1039, %v4378, %v4377
    %v4380 = vrot.slane %v4338, 1
    %v4381 = vsel %vm1042, %v4380, %v4379
    %v4382 = vsel %vm1045, %v4339, %v4381
    %v4383 = vrot.slane %v4340, 7
    %v4384 = vsel %vm1048, %v4383, %v4382
    %4385 = vrot.lane.b32.xlu0 %v4370, 96
    %v4386 = vpop.permute.xlu0 %4385
    %4387 = vrot.lane.b32.xlu0 %v4384, 96
    %v4388 = vpop.permute.xlu0 %4387
    %4391 = vst.msk [vmem:[#allocation2 + $0x8] sm:$0xff] %vm2177, %v4386
    %4392 = vst.msk [vmem:[#allocation2 + $0x28] sm:$0xff] %vm2177, %v4388
    %v4393 = vld [vmem:[%s4] sm:$0xff]
    %v4394 = vld [vmem:[%s4 + $0x8] sm:$0xff]
    %v4395 = vld [vmem:[%s4 + $0x10] sm:$0xff]
    %v4396 = vld [vmem:[%s4 + $0x18] sm:$0xff]
    %4397 = vrot.lane.b32.xlu0 %v4370, 32
    %v4398 = vpop.permute.xlu0 %4397
    %4399 = vrot.lane.b32.xlu0 %v4384, 32
    %v4400 = vpop.permute.xlu0 %4399
    %v4401 = vsel %vm416, %v4398, 0
    %v4403 = vsel %vm416, %v4400, 0
    %4405 = vmatprep.subr.mxu0 0.0
    %4406 = vmatpush1.msra.mxu0 0.0
    %4407 = vmatprep.subr.mxu0 0.0
    %4408 = vmatpush1.msra.mxu0 0.0
    %4409 = vmatprep.subr.mxu0 0.0
    %4410 = vmatpush1.msra.mxu0 0.0
    %4411 = vmatprep.subr.mxu0 0.0
    %4412 = vmatpush1.msra.mxu0 0.0
    %4413 = vmatprep.subr.mxu0 0.0
    %4414 = vmatpush1.msra.mxu0 0.0
    %4415 = vmatprep.subr.mxu0 0.0
    %4416 = vmatpush1.msra.mxu0 0.0
    %4417 = vmatprep.subr.mxu0 0.0
    %4418 = vmatpush1.msra.mxu0 0.0
    %4419 = vmatprep.subr.mxu0 0.0
    %4420 = vmatpush1.msra.mxu0 0.0
    %4421 = vmatprep.subr.mxu0 0.0
    %4422 = vmatpush1.msra.mxu0 0.0
    %4423 = vmatprep.subr.mxu0 0.0
    %4424 = vmatpush1.msra.mxu0 0.0
    %4425 = vmatprep.subr.mxu0 0.0
    %4426 = vmatpush1.msra.mxu0 0.0
    %4427 = vmatprep.subr.mxu0 0.0
    %4428 = vmatpush1.msra.mxu0 0.0
    %4429 = vmatprep.subr.mxu0 0.0
    %4430 = vmatpush1.msra.mxu0 %v4396
    %4431 = vmatprep.subr.mxu0 0.0
    %4432 = vmatpush1.msra.mxu0 %v4395
    %4433 = vmatprep.subr.mxu0 0.0
    %4434 = vmatpush1.msra.mxu0 %v4394
    %4435 = vmatprep.subr.mxu0 0.0
    %4436 = vmatpush1.msra.mxu0 %v4393
    %4437 = vmatprep.subr.mxu0 0.0
    %4438 = vmatpush2.msra.mxu0 0.0
    %4439 = vmatprep.subr.mxu0 0.0
    %4440 = vmatpush2.msra.mxu0 0.0
    %4441 = vmatprep.subr.mxu0 0.0
    %4442 = vmatpush2.msra.mxu0 0.0
    %4443 = vmatprep.subr.mxu0 0.0
    %4444 = vmatpush2.msra.mxu0 0.0
    %4445 = vmatprep.subr.mxu0 0.0
    %4446 = vmatpush2.msra.mxu0 0.0
    %4447 = vmatprep.subr.mxu0 0.0
    %4448 = vmatpush2.msra.mxu0 0.0
    %4449 = vmatprep.subr.mxu0 0.0
    %4450 = vmatpush2.msra.mxu0 0.0
    %4451 = vmatprep.subr.mxu0 0.0
    %4452 = vmatpush2.msra.mxu0 0.0
    %4453 = vmatprep.subr.mxu0 0.0
    %4454 = vmatpush2.msra.mxu0 0.0
    %4455 = vmatprep.subr.mxu0 0.0
    %4456 = vmatpush2.msra.mxu0 0.0
    %4457 = vmatprep.subr.mxu0 0.0
    %4458 = vmatpush2.msra.mxu0 0.0
    %4459 = vmatprep.subr.mxu0 0.0
    %4460 = vmatpush2.msra.mxu0 0.0
    %4461 = vmatprep.subr.mxu0 0.0
    %4462 = vmatpush2.msra.mxu0 0.0
    %4463 = vmatprep.subr.mxu0 0.0
    %4464 = vmatpush2.msra.mxu0 0.0
    %4465 = vmatprep.subr.mxu0 0.0
    %4466 = vmatpush2.msra.mxu0 0.0
    %4467 = vmatprep.subr.mxu0 0.0
    %4468 = vmatpush2.msra.mxu0 0.0
    %4469 = vmatprep.mubr.f32.mxu0 0.0
    %4470 = vmatmul.mubr.f32.gmra.mxu0 %v4401
    %v4471 = vpop.f32.mrf.mxu0
    %v4472 = vadd.f32 0.0, %v4471
    %v4473 = vpop.f32.mrf.mxu0
    %4474 = vmatprep.mubr.f32.mxu0 0.0
    %4475 = vmatmul.mubr.f32.gmra.mxu0 %v4403
    %v4476 = vpop.f32.mrf.mxu0
    %v4477 = vadd.f32 0.0, %v4476
    %v4478 = vpop.f32.mrf.mxu0
    %4479 = vdwg.mxu0
    %v4482 = vrot.slane %v4472, 1
    %v4483 = vrot.slane %v4472, 2
    %v4484 = vrot.slane %v4472, 3
    %v4485 = vrot.slane %v4472, 4
    %v4486 = vrot.slane %v4472, 5
    %v4487 = vrot.slane %v4472, 6
    %v4488 = vrot.slane %v4472, 7
    %v4489 = vrot.slane %v4477, 1
    %v4490 = vrot.slane %v4477, 2
    %v4491 = vrot.slane %v4477, 3
    %v4492 = vrot.slane %v4477, 4
    %v4493 = vrot.slane %v4477, 5
    %v4494 = vrot.slane %v4477, 6
    %v4495 = vrot.slane %v4477, 7
    %v4512 = vadd.f32 %v248, %v4482
    %v4513 = vadd.f32 %v258, %v4483
    %v4514 = vadd.f32 %v268, %v4484
    %v4515 = vadd.f32 %v278, %v4485
    %v4516 = vadd.f32 %v288, %v4486
    %v4517 = vadd.f32 %v298, %v4487
    %v4518 = vadd.f32 %v308, %v4488
    %v4519 = vadd.f32 %v318, %v4472
    %v4520 = vadd.f32 %v328, %v4489
    %v4521 = vadd.f32 %v338, %v4490
    %v4522 = vadd.f32 %v348, %v4491
    %v4523 = vadd.f32 %v358, %v4492
    %v4524 = vadd.f32 %v368, %v4493
    %v4525 = vadd.f32 %v378, %v4494
    %v4526 = vadd.f32 %v388, %v4495
    %v4527 = vadd.f32 %v398, %v4477
    %v4528 = vtanh.pop %v4512
    %v4529 = vtanh.pop %v4513
    %v4530 = vtanh.pop %v4514
    %v4531 = vtanh.pop %v4515
    %v4532 = vtanh.pop %v4516
    %v4533 = vtanh.pop %v4517
    %v4534 = vtanh.pop %v4518
    %v4535 = vtanh.pop %v4519
    %v4536 = vtanh.pop %v4520
    %v4537 = vtanh.pop %v4521
    %v4538 = vtanh.pop %v4522
    %v4539 = vtanh.pop %v4523
    %v4540 = vtanh.pop %v4524
    %v4541 = vtanh.pop %v4525
    %v4542 = vtanh.pop %v4526
    %v4543 = vtanh.pop %v4527
    %v4544 = vmul.f32 %v4528, 0.5
    %v4545 = vmul.f32 %v4529, 0.5
    %v4546 = vmul.f32 %v4530, 0.5
    %v4547 = vmul.f32 %v4531, 0.5
    %v4548 = vmul.f32 %v4532, 0.5
    %v4549 = vmul.f32 %v4533, 0.5
    %v4550 = vmul.f32 %v4534, 0.5
    %v4551 = vmul.f32 %v4535, 0.5
    %v4552 = vmul.f32 %v4536, 0.5
    %v4553 = vmul.f32 %v4537, 0.5
    %v4554 = vmul.f32 %v4538, 0.5
    %v4555 = vmul.f32 %v4539, 0.5
    %v4556 = vmul.f32 %v4540, 0.5
    %v4557 = vmul.f32 %v4541, 0.5
    %v4558 = vmul.f32 %v4542, 0.5
    %v4559 = vmul.f32 %v4543, 0.5
    %v4560 = vadd.f32 %v4544, 0.5
    %v4561 = vadd.f32 %v4545, 0.5
    %v4562 = vadd.f32 %v4546, 0.5
    %v4563 = vadd.f32 %v4547, 0.5
    %v4564 = vadd.f32 %v4548, 0.5
    %v4565 = vadd.f32 %v4549, 0.5
    %v4566 = vadd.f32 %v4550, 0.5
    %v4567 = vadd.f32 %v4551, 0.5
    %v4568 = vadd.f32 %v4552, 0.5
    %v4569 = vadd.f32 %v4553, 0.5
    %v4570 = vadd.f32 %v4554, 0.5
    %v4571 = vadd.f32 %v4555, 0.5
    %v4572 = vadd.f32 %v4556, 0.5
    %v4573 = vadd.f32 %v4557, 0.5
    %v4574 = vadd.f32 %v4558, 0.5
    %v4575 = vadd.f32 %v4559, 0.5
    %v4592 = vrot.slane %v4229, 7
    %v4593 = vrot.slane %v4230, 7
    %v4594 = vrot.slane %v4231, 7
    %v4595 = vrot.slane %v4232, 7
    %v4596 = vrot.slane %v4233, 7
    %v4597 = vrot.slane %v4234, 7
    %v4598 = vrot.slane %v4235, 7
    %v4599 = vrot.slane %v4236, 7
    %v4600 = vrot.slane %v4237, 7
    %v4601 = vrot.slane %v4238, 7
    %v4602 = vrot.slane %v4239, 7
    %v4603 = vrot.slane %v4240, 7
    %v4604 = vrot.slane %v4241, 7
    %v4605 = vrot.slane %v4242, 7
    %v4606 = vrot.slane %v4243, 7
    %v4607 = vrot.slane %v4244, 7
    %v4624 = vmul.f32 %v4560, %v4592
    %v4625 = vmul.f32 %v4561, %v4593
    %v4626 = vmul.f32 %v4562, %v4594
    %v4627 = vmul.f32 %v4563, %v4595
    %v4628 = vmul.f32 %v4564, %v4596
    %v4629 = vmul.f32 %v4565, %v4597
    %v4630 = vmul.f32 %v4566, %v4598
    %v4631 = vmul.f32 %v4567, %v4599
    %v4632 = vmul.f32 %v4568, %v4600
    %v4633 = vmul.f32 %v4569, %v4601
    %v4634 = vmul.f32 %v4570, %v4602
    %v4635 = vmul.f32 %v4571, %v4603
    %v4636 = vmul.f32 %v4572, %v4604
    %v4637 = vmul.f32 %v4573, %v4605
    %v4638 = vmul.f32 %v4574, %v4606
    %v4639 = vmul.f32 %v4575, %v4607
    %4656 = vrot.lane.b32.xlu0 %v4528, 64
    %v4657 = vpop.permute.xlu0 %4656
    %4658 = vrot.lane.b32.xlu0 %v4529, 64
    %v4659 = vpop.permute.xlu0 %4658
    %4660 = vrot.lane.b32.xlu0 %v4530, 64
    %v4661 = vpop.permute.xlu0 %4660
    %4662 = vrot.lane.b32.xlu0 %v4531, 64
    %v4663 = vpop.permute.xlu0 %4662
    %4664 = vrot.lane.b32.xlu0 %v4532, 64
    %v4665 = vpop.permute.xlu0 %4664
    %4666 = vrot.lane.b32.xlu0 %v4533, 64
    %v4667 = vpop.permute.xlu0 %4666
    %4668 = vrot.lane.b32.xlu0 %v4534, 64
    %v4669 = vpop.permute.xlu0 %4668
    %4670 = vrot.lane.b32.xlu0 %v4535, 64
    %v4671 = vpop.permute.xlu0 %4670
    %4672 = vrot.lane.b32.xlu0 %v4536, 64
    %v4673 = vpop.permute.xlu0 %4672
    %4674 = vrot.lane.b32.xlu0 %v4537, 64
    %v4675 = vpop.permute.xlu0 %4674
    %4676 = vrot.lane.b32.xlu0 %v4538, 64
    %v4677 = vpop.permute.xlu0 %4676
    %4678 = vrot.lane.b32.xlu0 %v4539, 64
    %v4679 = vpop.permute.xlu0 %4678
    %4680 = vrot.lane.b32.xlu0 %v4540, 64
    %v4681 = vpop.permute.xlu0 %4680
    %4682 = vrot.lane.b32.xlu0 %v4541, 64
    %v4683 = vpop.permute.xlu0 %4682
    %4684 = vrot.lane.b32.xlu0 %v4542, 64
    %v4685 = vpop.permute.xlu0 %4684
    %4686 = vrot.lane.b32.xlu0 %v4543, 64
    %v4687 = vpop.permute.xlu0 %4686
    %v4704 = vmul.f32 %v4560, %v4657
    %v4705 = vmul.f32 %v4561, %v4659
    %v4706 = vmul.f32 %v4562, %v4661
    %v4707 = vmul.f32 %v4563, %v4663
    %v4708 = vmul.f32 %v4564, %v4665
    %v4709 = vmul.f32 %v4565, %v4667
    %v4710 = vmul.f32 %v4566, %v4669
    %v4711 = vmul.f32 %v4567, %v4671
    %v4712 = vmul.f32 %v4568, %v4673
    %v4713 = vmul.f32 %v4569, %v4675
    %v4714 = vmul.f32 %v4570, %v4677
    %v4715 = vmul.f32 %v4571, %v4679
    %v4716 = vmul.f32 %v4572, %v4681
    %v4717 = vmul.f32 %v4573, %v4683
    %v4718 = vmul.f32 %v4574, %v4685
    %v4719 = vmul.f32 %v4575, %v4687
    %4736 = vrot.lane.b32.xlu0 %v4704, 32
    %v4737 = vpop.permute.xlu0 %4736
    %4738 = vrot.lane.b32.xlu0 %v4705, 32
    %v4739 = vpop.permute.xlu0 %4738
    %4740 = vrot.lane.b32.xlu0 %v4706, 32
    %v4741 = vpop.permute.xlu0 %4740
    %4742 = vrot.lane.b32.xlu0 %v4707, 32
    %v4743 = vpop.permute.xlu0 %4742
    %4744 = vrot.lane.b32.xlu0 %v4708, 32
    %v4745 = vpop.permute.xlu0 %4744
    %4746 = vrot.lane.b32.xlu0 %v4709, 32
    %v4747 = vpop.permute.xlu0 %4746
    %4748 = vrot.lane.b32.xlu0 %v4710, 32
    %v4749 = vpop.permute.xlu0 %4748
    %4750 = vrot.lane.b32.xlu0 %v4711, 32
    %v4751 = vpop.permute.xlu0 %4750
    %4752 = vrot.lane.b32.xlu0 %v4712, 32
    %v4753 = vpop.permute.xlu0 %4752
    %4754 = vrot.lane.b32.xlu0 %v4713, 32
    %v4755 = vpop.permute.xlu0 %4754
    %4756 = vrot.lane.b32.xlu0 %v4714, 32
    %v4757 = vpop.permute.xlu0 %4756
    %4758 = vrot.lane.b32.xlu0 %v4715, 32
    %v4759 = vpop.permute.xlu0 %4758
    %4760 = vrot.lane.b32.xlu0 %v4716, 32
    %v4761 = vpop.permute.xlu0 %4760
    %4762 = vrot.lane.b32.xlu0 %v4717, 32
    %v4763 = vpop.permute.xlu0 %4762
    %4764 = vrot.lane.b32.xlu0 %v4718, 32
    %v4765 = vpop.permute.xlu0 %4764
    %4766 = vrot.lane.b32.xlu0 %v4719, 32
    %v4767 = vpop.permute.xlu0 %4766
    %v4784 = vadd.f32 %v4624, %v4737
    %v4785 = vadd.f32 %v4625, %v4739
    %v4786 = vadd.f32 %v4626, %v4741
    %v4787 = vadd.f32 %v4627, %v4743
    %v4788 = vadd.f32 %v4628, %v4745
    %v4789 = vadd.f32 %v4629, %v4747
    %v4790 = vadd.f32 %v4630, %v4749
    %v4791 = vadd.f32 %v4631, %v4751
    %v4792 = vadd.f32 %v4632, %v4753
    %v4793 = vadd.f32 %v4633, %v4755
    %v4794 = vadd.f32 %v4634, %v4757
    %v4795 = vadd.f32 %v4635, %v4759
    %v4796 = vadd.f32 %v4636, %v4761
    %v4797 = vadd.f32 %v4637, %v4763
    %v4798 = vadd.f32 %v4638, %v4765
    %v4799 = vadd.f32 %v4639, %v4767
    %v4800 = vtanh.pop %v4784
    %v4801 = vtanh.pop %v4785
    %v4802 = vtanh.pop %v4786
    %v4803 = vtanh.pop %v4787
    %v4804 = vtanh.pop %v4788
    %v4805 = vtanh.pop %v4789
    %v4806 = vtanh.pop %v4790
    %v4807 = vtanh.pop %v4791
    %v4808 = vtanh.pop %v4792
    %v4809 = vtanh.pop %v4793
    %v4810 = vtanh.pop %v4794
    %v4811 = vtanh.pop %v4795
    %v4812 = vtanh.pop %v4796
    %v4813 = vtanh.pop %v4797
    %v4814 = vtanh.pop %v4798
    %v4815 = vtanh.pop %v4799
    %4832 = vrot.lane.b32.xlu0 %v4800, 64
    %v4833 = vpop.permute.xlu0 %4832
    %4834 = vrot.lane.b32.xlu0 %v4801, 64
    %v4835 = vpop.permute.xlu0 %4834
    %4836 = vrot.lane.b32.xlu0 %v4802, 64
    %v4837 = vpop.permute.xlu0 %4836
    %4838 = vrot.lane.b32.xlu0 %v4803, 64
    %v4839 = vpop.permute.xlu0 %4838
    %4840 = vrot.lane.b32.xlu0 %v4804, 64
    %v4841 = vpop.permute.xlu0 %4840
    %4842 = vrot.lane.b32.xlu0 %v4805, 64
    %v4843 = vpop.permute.xlu0 %4842
    %4844 = vrot.lane.b32.xlu0 %v4806, 64
    %v4845 = vpop.permute.xlu0 %4844
    %4846 = vrot.lane.b32.xlu0 %v4807, 64
    %v4847 = vpop.permute.xlu0 %4846
    %4848 = vrot.lane.b32.xlu0 %v4808, 64
    %v4849 = vpop.permute.xlu0 %4848
    %4850 = vrot.lane.b32.xlu0 %v4809, 64
    %v4851 = vpop.permute.xlu0 %4850
    %4852 = vrot.lane.b32.xlu0 %v4810, 64
    %v4853 = vpop.permute.xlu0 %4852
    %4854 = vrot.lane.b32.xlu0 %v4811, 64
    %v4855 = vpop.permute.xlu0 %4854
    %4856 = vrot.lane.b32.xlu0 %v4812, 64
    %v4857 = vpop.permute.xlu0 %4856
    %4858 = vrot.lane.b32.xlu0 %v4813, 64
    %v4859 = vpop.permute.xlu0 %4858
    %4860 = vrot.lane.b32.xlu0 %v4814, 64
    %v4861 = vpop.permute.xlu0 %4860
    %4862 = vrot.lane.b32.xlu0 %v4815, 64
    %v4863 = vpop.permute.xlu0 %4862
    %v4880 = vmul.f32 %v4560, %v4833
    %v4881 = vmul.f32 %v4561, %v4835
    %v4882 = vmul.f32 %v4562, %v4837
    %v4883 = vmul.f32 %v4563, %v4839
    %v4884 = vmul.f32 %v4564, %v4841
    %v4885 = vmul.f32 %v4565, %v4843
    %v4886 = vmul.f32 %v4566, %v4845
    %v4887 = vmul.f32 %v4567, %v4847
    %v4888 = vmul.f32 %v4568, %v4849
    %v4889 = vmul.f32 %v4569, %v4851
    %v4890 = vmul.f32 %v4570, %v4853
    %v4891 = vmul.f32 %v4571, %v4855
    %v4892 = vmul.f32 %v4572, %v4857
    %v4893 = vmul.f32 %v4573, %v4859
    %v4894 = vmul.f32 %v4574, %v4861
    %v4895 = vmul.f32 %v4575, %v4863
    %v4912 = vrot.slane %v4880, 7
    %v4913 = vrot.slane %v4881, 6
    %v4914 = vsel %vm1030, %v4913, %v4912
    %v4915 = vrot.slane %v4882, 5
    %v4916 = vsel %vm1033, %v4915, %v4914
    %v4917 = vrot.slane %v4883, 4
    %v4918 = vsel %vm1036, %v4917, %v4916
    %v4919 = vrot.slane %v4884, 3
    %v4920 = vsel %vm1039, %v4919, %v4918
    %v4921 = vrot.slane %v4885, 2
    %v4922 = vsel %vm1042, %v4921, %v4920
    %v4923 = vrot.slane %v4886, 1
    %v4924 = vsel %vm1045, %v4923, %v4922
    %v4925 = vsel %vm1048, %v4887, %v4924
    %v4926 = vrot.slane %v4888, 7
    %v4927 = vrot.slane %v4889, 6
    %v4928 = vsel %vm1030, %v4927, %v4926
    %v4929 = vrot.slane %v4890, 5
    %v4930 = vsel %vm1033, %v4929, %v4928
    %v4931 = vrot.slane %v4891, 4
    %v4932 = vsel %vm1036, %v4931, %v4930
    %v4933 = vrot.slane %v4892, 3
    %v4934 = vsel %vm1039, %v4933, %v4932
    %v4935 = vrot.slane %v4893, 2
    %v4936 = vsel %vm1042, %v4935, %v4934
    %v4937 = vrot.slane %v4894, 1
    %v4938 = vsel %vm1045, %v4937, %v4936
    %v4939 = vsel %vm1048, %v4895, %v4938
    %4942 = vst.msk [vmem:[#allocation2 + $0x8] sm:$0xff] %vm2729, %v4925
    %4943 = vst.msk [vmem:[#allocation2 + $0x28] sm:$0xff] %vm2729, %v4939
    %v4944 = vld [vmem:[%s4] sm:$0xff]
    %v4945 = vld [vmem:[%s4 + $0x8] sm:$0xff]
    %v4946 = vld [vmem:[%s4 + $0x10] sm:$0xff]
    %v4947 = vld [vmem:[%s4 + $0x18] sm:$0xff]
    %4948 = vrot.lane.b32.xlu0 %v4925, 32
    %v4949 = vpop.permute.xlu0 %4948
    %4950 = vrot.lane.b32.xlu0 %v4939, 32
    %v4951 = vpop.permute.xlu0 %4950
    %v4952 = vsel %vm416, %v4949, 0
    %v4954 = vsel %vm416, %v4951, 0
    %4956 = vmatprep.subr.mxu0 0.0
    %4957 = vmatpush1.msra.mxu0 0.0
    %4958 = vmatprep.subr.mxu0 0.0
    %4959 = vmatpush1.msra.mxu0 0.0
    %4960 = vmatprep.subr.mxu0 0.0
    %4961 = vmatpush1.msra.mxu0 0.0
    %4962 = vmatprep.subr.mxu0 0.0
    %4963 = vmatpush1.msra.mxu0 0.0
    %4964 = vmatprep.subr.mxu0 0.0
    %4965 = vmatpush1.msra.mxu0 0.0
    %4966 = vmatprep.subr.mxu0 0.0
    %4967 = vmatpush1.msra.mxu0 0.0
    %4968 = vmatprep.subr.mxu0 0.0
    %4969 = vmatpush1.msra.mxu0 0.0
    %4970 = vmatprep.subr.mxu0 0.0
    %4971 = vmatpush1.msra.mxu0 0.0
    %4972 = vmatprep.subr.mxu0 0.0
    %4973 = vmatpush1.msra.mxu0 0.0
    %4974 = vmatprep.subr.mxu0 0.0
    %4975 = vmatpush1.msra.mxu0 0.0
    %4976 = vmatprep.subr.mxu0 0.0
    %4977 = vmatpush1.msra.mxu0 0.0
    %4978 = vmatprep.subr.mxu0 0.0
    %4979 = vmatpush1.msra.mxu0 0.0
    %4980 = vmatprep.subr.mxu0 0.0
    %4981 = vmatpush1.msra.mxu0 %v4947
    %4982 = vmatprep.subr.mxu0 0.0
    %4983 = vmatpush1.msra.mxu0 %v4946
    %4984 = vmatprep.subr.mxu0 0.0
    %4985 = vmatpush1.msra.mxu0 %v4945
    %4986 = vmatprep.subr.mxu0 0.0
    %4987 = vmatpush1.msra.mxu0 %v4944
    %4988 = vmatprep.subr.mxu0 0.0
    %4989 = vmatpush2.msra.mxu0 0.0
    %4990 = vmatprep.subr.mxu0 0.0
    %4991 = vmatpush2.msra.mxu0 0.0
    %4992 = vmatprep.subr.mxu0 0.0
    %4993 = vmatpush2.msra.mxu0 0.0
    %4994 = vmatprep.subr.mxu0 0.0
    %4995 = vmatpush2.msra.mxu0 0.0
    %4996 = vmatprep.subr.mxu0 0.0
    %4997 = vmatpush2.msra.mxu0 0.0
    %4998 = vmatprep.subr.mxu0 0.0
    %4999 = vmatpush2.msra.mxu0 0.0
    %5000 = vmatprep.subr.mxu0 0.0
    %5001 = vmatpush2.msra.mxu0 0.0
    %5002 = vmatprep.subr.mxu0 0.0
    %5003 = vmatpush2.msra.mxu0 0.0
    %5004 = vmatprep.subr.mxu0 0.0
    %5005 = vmatpush2.msra.mxu0 0.0
    %5006 = vmatprep.subr.mxu0 0.0
    %5007 = vmatpush2.msra.mxu0 0.0
    %5008 = vmatprep.subr.mxu0 0.0
    %5009 = vmatpush2.msra.mxu0 0.0
    %5010 = vmatprep.subr.mxu0 0.0
    %5011 = vmatpush2.msra.mxu0 0.0
    %5012 = vmatprep.subr.mxu0 0.0
    %5013 = vmatpush2.msra.mxu0 0.0
    %5014 = vmatprep.subr.mxu0 0.0
    %5015 = vmatpush2.msra.mxu0 0.0
    %5016 = vmatprep.subr.mxu0 0.0
    %5017 = vmatpush2.msra.mxu0 0.0
    %5018 = vmatprep.subr.mxu0 0.0
    %5019 = vmatpush2.msra.mxu0 0.0
    %5020 = vmatprep.mubr.f32.mxu0 0.0
    %5021 = vmatmul.mubr.f32.gmra.mxu0 %v4952
    %v5022 = vpop.f32.mrf.mxu0
    %v5023 = vadd.f32 0.0, %v5022
    %v5024 = vpop.f32.mrf.mxu0
    %5025 = vmatprep.mubr.f32.mxu0 0.0
    %5026 = vmatmul.mubr.f32.gmra.mxu0 %v4954
    %v5027 = vpop.f32.mrf.mxu0
    %v5028 = vadd.f32 0.0, %v5027
    %v5029 = vpop.f32.mrf.mxu0
    %5030 = vdwg.mxu0
    %v5033 = vrot.slane %v5023, 1
    %v5034 = vrot.slane %v5023, 2
    %v5035 = vrot.slane %v5023, 3
    %v5036 = vrot.slane %v5023, 4
    %v5037 = vrot.slane %v5023, 5
    %v5038 = vrot.slane %v5023, 6
    %v5039 = vrot.slane %v5023, 7
    %v5040 = vrot.slane %v5028, 1
    %v5041 = vrot.slane %v5028, 2
    %v5042 = vrot.slane %v5028, 3
    %v5043 = vrot.slane %v5028, 4
    %v5044 = vrot.slane %v5028, 5
    %v5045 = vrot.slane %v5028, 6
    %v5046 = vrot.slane %v5028, 7
    %v5063 = vadd.f32 %v253, %v5023
    %v5064 = vadd.f32 %v263, %v5033
    %v5065 = vadd.f32 %v273, %v5034
    %v5066 = vadd.f32 %v283, %v5035
    %v5067 = vadd.f32 %v293, %v5036
    %v5068 = vadd.f32 %v303, %v5037
    %v5069 = vadd.f32 %v313, %v5038
    %v5070 = vadd.f32 %v323, %v5039
    %v5071 = vadd.f32 %v333, %v5028
    %v5072 = vadd.f32 %v343, %v5040
    %v5073 = vadd.f32 %v353, %v5041
    %v5074 = vadd.f32 %v363, %v5042
    %v5075 = vadd.f32 %v373, %v5043
    %v5076 = vadd.f32 %v383, %v5044
    %v5077 = vadd.f32 %v393, %v5045
    %v5078 = vadd.f32 %v403, %v5046
    %v5079 = vtanh.pop %v5063
    %v5080 = vtanh.pop %v5064
    %v5081 = vtanh.pop %v5065
    %v5082 = vtanh.pop %v5066
    %v5083 = vtanh.pop %v5067
    %v5084 = vtanh.pop %v5068
    %v5085 = vtanh.pop %v5069
    %v5086 = vtanh.pop %v5070
    %v5087 = vtanh.pop %v5071
    %v5088 = vtanh.pop %v5072
    %v5089 = vtanh.pop %v5073
    %v5090 = vtanh.pop %v5074
    %v5091 = vtanh.pop %v5075
    %v5092 = vtanh.pop %v5076
    %v5093 = vtanh.pop %v5077
    %v5094 = vtanh.pop %v5078
    %v5095 = vmul.f32 %v5079, 0.5
    %v5096 = vmul.f32 %v5080, 0.5
    %v5097 = vmul.f32 %v5081, 0.5
    %v5098 = vmul.f32 %v5082, 0.5
    %v5099 = vmul.f32 %v5083, 0.5
    %v5100 = vmul.f32 %v5084, 0.5
    %v5101 = vmul.f32 %v5085, 0.5
    %v5102 = vmul.f32 %v5086, 0.5
    %v5103 = vmul.f32 %v5087, 0.5
    %v5104 = vmul.f32 %v5088, 0.5
    %v5105 = vmul.f32 %v5089, 0.5
    %v5106 = vmul.f32 %v5090, 0.5
    %v5107 = vmul.f32 %v5091, 0.5
    %v5108 = vmul.f32 %v5092, 0.5
    %v5109 = vmul.f32 %v5093, 0.5
    %v5110 = vmul.f32 %v5094, 0.5
    %v5111 = vadd.f32 %v5095, 0.5
    %v5112 = vadd.f32 %v5096, 0.5
    %v5113 = vadd.f32 %v5097, 0.5
    %v5114 = vadd.f32 %v5098, 0.5
    %v5115 = vadd.f32 %v5099, 0.5
    %v5116 = vadd.f32 %v5100, 0.5
    %v5117 = vadd.f32 %v5101, 0.5
    %v5118 = vadd.f32 %v5102, 0.5
    %v5119 = vadd.f32 %v5103, 0.5
    %v5120 = vadd.f32 %v5104, 0.5
    %v5121 = vadd.f32 %v5105, 0.5
    %v5122 = vadd.f32 %v5106, 0.5
    %v5123 = vadd.f32 %v5107, 0.5
    %v5124 = vadd.f32 %v5108, 0.5
    %v5125 = vadd.f32 %v5109, 0.5
    %v5126 = vadd.f32 %v5110, 0.5
    %v5143 = vrot.slane %v4784, 7
    %v5144 = vrot.slane %v4785, 7
    %v5145 = vrot.slane %v4786, 7
    %v5146 = vrot.slane %v4787, 7
    %v5147 = vrot.slane %v4788, 7
    %v5148 = vrot.slane %v4789, 7
    %v5149 = vrot.slane %v4790, 7
    %v5150 = vrot.slane %v4791, 7
    %v5151 = vrot.slane %v4792, 7
    %v5152 = vrot.slane %v4793, 7
    %v5153 = vrot.slane %v4794, 7
    %v5154 = vrot.slane %v4795, 7
    %v5155 = vrot.slane %v4796, 7
    %v5156 = vrot.slane %v4797, 7
    %v5157 = vrot.slane %v4798, 7
    %v5158 = vrot.slane %v4799, 7
    %v5175 = vmul.f32 %v5111, %v5143
    %v5176 = vmul.f32 %v5112, %v5144
    %v5177 = vmul.f32 %v5113, %v5145
    %v5178 = vmul.f32 %v5114, %v5146
    %v5179 = vmul.f32 %v5115, %v5147
    %v5180 = vmul.f32 %v5116, %v5148
    %v5181 = vmul.f32 %v5117, %v5149
    %v5182 = vmul.f32 %v5118, %v5150
    %v5183 = vmul.f32 %v5119, %v5151
    %v5184 = vmul.f32 %v5120, %v5152
    %v5185 = vmul.f32 %v5121, %v5153
    %v5186 = vmul.f32 %v5122, %v5154
    %v5187 = vmul.f32 %v5123, %v5155
    %v5188 = vmul.f32 %v5124, %v5156
    %v5189 = vmul.f32 %v5125, %v5157
    %v5190 = vmul.f32 %v5126, %v5158
    %5207 = vrot.lane.b32.xlu0 %v5079, 64
    %v5208 = vpop.permute.xlu0 %5207
    %5209 = vrot.lane.b32.xlu0 %v5080, 64
    %v5210 = vpop.permute.xlu0 %5209
    %5211 = vrot.lane.b32.xlu0 %v5081, 64
    %v5212 = vpop.permute.xlu0 %5211
    %5213 = vrot.lane.b32.xlu0 %v5082, 64
    %v5214 = vpop.permute.xlu0 %5213
    %5215 = vrot.lane.b32.xlu0 %v5083, 64
    %v5216 = vpop.permute.xlu0 %5215
    %5217 = vrot.lane.b32.xlu0 %v5084, 64
    %v5218 = vpop.permute.xlu0 %5217
    %5219 = vrot.lane.b32.xlu0 %v5085, 64
    %v5220 = vpop.permute.xlu0 %5219
    %5221 = vrot.lane.b32.xlu0 %v5086, 64
    %v5222 = vpop.permute.xlu0 %5221
    %5223 = vrot.lane.b32.xlu0 %v5087, 64
    %v5224 = vpop.permute.xlu0 %5223
    %5225 = vrot.lane.b32.xlu0 %v5088, 64
    %v5226 = vpop.permute.xlu0 %5225
    %5227 = vrot.lane.b32.xlu0 %v5089, 64
    %v5228 = vpop.permute.xlu0 %5227
    %5229 = vrot.lane.b32.xlu0 %v5090, 64
    %v5230 = vpop.permute.xlu0 %5229
    %5231 = vrot.lane.b32.xlu0 %v5091, 64
    %v5232 = vpop.permute.xlu0 %5231
    %5233 = vrot.lane.b32.xlu0 %v5092, 64
    %v5234 = vpop.permute.xlu0 %5233
    %5235 = vrot.lane.b32.xlu0 %v5093, 64
    %v5236 = vpop.permute.xlu0 %5235
    %5237 = vrot.lane.b32.xlu0 %v5094, 64
    %v5238 = vpop.permute.xlu0 %5237
    %v5255 = vmul.f32 %v5111, %v5208
    %v5256 = vmul.f32 %v5112, %v5210
    %v5257 = vmul.f32 %v5113, %v5212
    %v5258 = vmul.f32 %v5114, %v5214
    %v5259 = vmul.f32 %v5115, %v5216
    %v5260 = vmul.f32 %v5116, %v5218
    %v5261 = vmul.f32 %v5117, %v5220
    %v5262 = vmul.f32 %v5118, %v5222
    %v5263 = vmul.f32 %v5119, %v5224
    %v5264 = vmul.f32 %v5120, %v5226
    %v5265 = vmul.f32 %v5121, %v5228
    %v5266 = vmul.f32 %v5122, %v5230
    %v5267 = vmul.f32 %v5123, %v5232
    %v5268 = vmul.f32 %v5124, %v5234
    %v5269 = vmul.f32 %v5125, %v5236
    %v5270 = vmul.f32 %v5126, %v5238
    %5287 = vrot.lane.b32.xlu0 %v5255, 32
    %v5288 = vpop.permute.xlu0 %5287
    %5289 = vrot.lane.b32.xlu0 %v5256, 32
    %v5290 = vpop.permute.xlu0 %5289
    %5291 = vrot.lane.b32.xlu0 %v5257, 32
    %v5292 = vpop.permute.xlu0 %5291
    %5293 = vrot.lane.b32.xlu0 %v5258, 32
    %v5294 = vpop.permute.xlu0 %5293
    %5295 = vrot.lane.b32.xlu0 %v5259, 32
    %v5296 = vpop.permute.xlu0 %5295
    %5297 = vrot.lane.b32.xlu0 %v5260, 32
    %v5298 = vpop.permute.xlu0 %5297
    %5299 = vrot.lane.b32.xlu0 %v5261, 32
    %v5300 = vpop.permute.xlu0 %5299
    %5301 = vrot.lane.b32.xlu0 %v5262, 32
    %v5302 = vpop.permute.xlu0 %5301
    %5303 = vrot.lane.b32.xlu0 %v5263, 32
    %v5304 = vpop.permute.xlu0 %5303
    %5305 = vrot.lane.b32.xlu0 %v5264, 32
    %v5306 = vpop.permute.xlu0 %5305
    %5307 = vrot.lane.b32.xlu0 %v5265, 32
    %v5308 = vpop.permute.xlu0 %5307
    %5309 = vrot.lane.b32.xlu0 %v5266, 32
    %v5310 = vpop.permute.xlu0 %5309
    %5311 = vrot.lane.b32.xlu0 %v5267, 32
    %v5312 = vpop.permute.xlu0 %5311
    %5313 = vrot.lane.b32.xlu0 %v5268, 32
    %v5314 = vpop.permute.xlu0 %5313
    %5315 = vrot.lane.b32.xlu0 %v5269, 32
    %v5316 = vpop.permute.xlu0 %5315
    %5317 = vrot.lane.b32.xlu0 %v5270, 32
    %v5318 = vpop.permute.xlu0 %5317
    %v5335 = vadd.f32 %v5175, %v5288
    %v5336 = vadd.f32 %v5176, %v5290
    %v5337 = vadd.f32 %v5177, %v5292
    %v5338 = vadd.f32 %v5178, %v5294
    %v5339 = vadd.f32 %v5179, %v5296
    %v5340 = vadd.f32 %v5180, %v5298
    %v5341 = vadd.f32 %v5181, %v5300
    %v5342 = vadd.f32 %v5182, %v5302
    %v5343 = vadd.f32 %v5183, %v5304
    %v5344 = vadd.f32 %v5184, %v5306
    %v5345 = vadd.f32 %v5185, %v5308
    %v5346 = vadd.f32 %v5186, %v5310
    %v5347 = vadd.f32 %v5187, %v5312
    %v5348 = vadd.f32 %v5188, %v5314
    %v5349 = vadd.f32 %v5189, %v5316
    %v5350 = vadd.f32 %v5190, %v5318
    %v5351 = vtanh.pop %v5335
    %v5352 = vtanh.pop %v5336
    %v5353 = vtanh.pop %v5337
    %v5354 = vtanh.pop %v5338
    %v5355 = vtanh.pop %v5339
    %v5356 = vtanh.pop %v5340
    %v5357 = vtanh.pop %v5341
    %v5358 = vtanh.pop %v5342
    %v5359 = vtanh.pop %v5343
    %v5360 = vtanh.pop %v5344
    %v5361 = vtanh.pop %v5345
    %v5362 = vtanh.pop %v5346
    %v5363 = vtanh.pop %v5347
    %v5364 = vtanh.pop %v5348
    %v5365 = vtanh.pop %v5349
    %v5366 = vtanh.pop %v5350
    %5383 = vrot.lane.b32.xlu0 %v5351, 64
    %v5384 = vpop.permute.xlu0 %5383
    %5385 = vrot.lane.b32.xlu0 %v5352, 64
    %v5386 = vpop.permute.xlu0 %5385
    %5387 = vrot.lane.b32.xlu0 %v5353, 64
    %v5388 = vpop.permute.xlu0 %5387
    %5389 = vrot.lane.b32.xlu0 %v5354, 64
    %v5390 = vpop.permute.xlu0 %5389
    %5391 = vrot.lane.b32.xlu0 %v5355, 64
    %v5392 = vpop.permute.xlu0 %5391
    %5393 = vrot.lane.b32.xlu0 %v5356, 64
    %v5394 = vpop.permute.xlu0 %5393
    %5395 = vrot.lane.b32.xlu0 %v5357, 64
    %v5396 = vpop.permute.xlu0 %5395
    %5397 = vrot.lane.b32.xlu0 %v5358, 64
    %v5398 = vpop.permute.xlu0 %5397
    %5399 = vrot.lane.b32.xlu0 %v5359, 64
    %v5400 = vpop.permute.xlu0 %5399
    %5401 = vrot.lane.b32.xlu0 %v5360, 64
    %v5402 = vpop.permute.xlu0 %5401
    %5403 = vrot.lane.b32.xlu0 %v5361, 64
    %v5404 = vpop.permute.xlu0 %5403
    %5405 = vrot.lane.b32.xlu0 %v5362, 64
    %v5406 = vpop.permute.xlu0 %5405
    %5407 = vrot.lane.b32.xlu0 %v5363, 64
    %v5408 = vpop.permute.xlu0 %5407
    %5409 = vrot.lane.b32.xlu0 %v5364, 64
    %v5410 = vpop.permute.xlu0 %5409
    %5411 = vrot.lane.b32.xlu0 %v5365, 64
    %v5412 = vpop.permute.xlu0 %5411
    %5413 = vrot.lane.b32.xlu0 %v5366, 64
    %v5414 = vpop.permute.xlu0 %5413
    %v5431 = vmul.f32 %v5111, %v5384
    %v5432 = vmul.f32 %v5112, %v5386
    %v5433 = vmul.f32 %v5113, %v5388
    %v5434 = vmul.f32 %v5114, %v5390
    %v5435 = vmul.f32 %v5115, %v5392
    %v5436 = vmul.f32 %v5116, %v5394
    %v5437 = vmul.f32 %v5117, %v5396
    %v5438 = vmul.f32 %v5118, %v5398
    %v5439 = vmul.f32 %v5119, %v5400
    %v5440 = vmul.f32 %v5120, %v5402
    %v5441 = vmul.f32 %v5121, %v5404
    %v5442 = vmul.f32 %v5122, %v5406
    %v5443 = vmul.f32 %v5123, %v5408
    %v5444 = vmul.f32 %v5124, %v5410
    %v5445 = vmul.f32 %v5125, %v5412
    %v5446 = vmul.f32 %v5126, %v5414
    %v5463 = vrot.slane %v5432, 7
    %v5464 = vsel %vm1030, %v5463, %v5431
    %v5465 = vrot.slane %v5433, 6
    %v5466 = vsel %vm1033, %v5465, %v5464
    %v5467 = vrot.slane %v5434, 5
    %v5468 = vsel %vm1036, %v5467, %v5466
    %v5469 = vrot.slane %v5435, 4
    %v5470 = vsel %vm1039, %v5469, %v5468
    %v5471 = vrot.slane %v5436, 3
    %v5472 = vsel %vm1042, %v5471, %v5470
    %v5473 = vrot.slane %v5437, 2
    %v5474 = vsel %vm1045, %v5473, %v5472
    %v5475 = vrot.slane %v5438, 1
    %v5476 = vsel %vm1048, %v5475, %v5474
    %v5477 = vrot.slane %v5440, 7
    %v5478 = vsel %vm1030, %v5477, %v5439
    %v5479 = vrot.slane %v5441, 6
    %v5480 = vsel %vm1033, %v5479, %v5478
    %v5481 = vrot.slane %v5442, 5
    %v5482 = vsel %vm1036, %v5481, %v5480
    %v5483 = vrot.slane %v5443, 4
    %v5484 = vsel %vm1039, %v5483, %v5482
    %v5485 = vrot.slane %v5444, 3
    %v5486 = vsel %vm1042, %v5485, %v5484
    %v5487 = vrot.slane %v5445, 2
    %v5488 = vsel %vm1045, %v5487, %v5486
    %v5489 = vrot.slane %v5446, 1
    %v5490 = vsel %vm1048, %v5489, %v5488
    %5491 = vrot.lane.b32.xlu0 %v5476, 32
    %v5492 = vpop.permute.xlu0 %5491
    %5493 = vrot.lane.b32.xlu0 %v5490, 32
    %v5494 = vpop.permute.xlu0 %5493
    %5497 = vst.msk [vmem:[#allocation2 + $0x10] sm:$0xff] %vm416, %v5492
    %5498 = vst.msk [vmem:[#allocation2 + $0x30] sm:$0xff] %vm416, %v5494
    %v5499 = vld [vmem:[%s4] sm:$0xff]
    %v5500 = vld [vmem:[%s4 + $0x8] sm:$0xff]
    %v5501 = vld [vmem:[%s4 + $0x10] sm:$0xff]
    %v5502 = vld [vmem:[%s4 + $0x18] sm:$0xff]
    %v5503 = vsel %vm416, %v5492, 0
    %v5505 = vsel %vm416, %v5494, 0
    %5507 = vmatprep.subr.mxu0 0.0
    %5508 = vmatpush1.msra.mxu0 0.0
    %5509 = vmatprep.subr.mxu0 0.0
    %5510 = vmatpush1.msra.mxu0 0.0
    %5511 = vmatprep.subr.mxu0 0.0
    %5512 = vmatpush1.msra.mxu0 0.0
    %5513 = vmatprep.subr.mxu0 0.0
    %5514 = vmatpush1.msra.mxu0 0.0
    %5515 = vmatprep.subr.mxu0 0.0
    %5516 = vmatpush1.msra.mxu0 0.0
    %5517 = vmatprep.subr.mxu0 0.0
    %5518 = vmatpush1.msra.mxu0 0.0
    %5519 = vmatprep.subr.mxu0 0.0
    %5520 = vmatpush1.msra.mxu0 0.0
    %5521 = vmatprep.subr.mxu0 0.0
    %5522 = vmatpush1.msra.mxu0 0.0
    %5523 = vmatprep.subr.mxu0 0.0
    %5524 = vmatpush1.msra.mxu0 0.0
    %5525 = vmatprep.subr.mxu0 0.0
    %5526 = vmatpush1.msra.mxu0 0.0
    %5527 = vmatprep.subr.mxu0 0.0
    %5528 = vmatpush1.msra.mxu0 0.0
    %5529 = vmatprep.subr.mxu0 0.0
    %5530 = vmatpush1.msra.mxu0 0.0
    %5531 = vmatprep.subr.mxu0 0.0
    %5532 = vmatpush1.msra.mxu0 %v5502
    %5533 = vmatprep.subr.mxu0 0.0
    %5534 = vmatpush1.msra.mxu0 %v5501
    %5535 = vmatprep.subr.mxu0 0.0
    %5536 = vmatpush1.msra.mxu0 %v5500
    %5537 = vmatprep.subr.mxu0 0.0
    %5538 = vmatpush1.msra.mxu0 %v5499
    %5539 = vmatprep.subr.mxu0 0.0
    %5540 = vmatpush2.msra.mxu0 0.0
    %5541 = vmatprep.subr.mxu0 0.0
    %5542 = vmatpush2.msra.mxu0 0.0
    %5543 = vmatprep.subr.mxu0 0.0
    %5544 = vmatpush2.msra.mxu0 0.0
    %5545 = vmatprep.subr.mxu0 0.0
    %5546 = vmatpush2.msra.mxu0 0.0
    %5547 = vmatprep.subr.mxu0 0.0
    %5548 = vmatpush2.msra.mxu0 0.0
    %5549 = vmatprep.subr.mxu0 0.0
    %5550 = vmatpush2.msra.mxu0 0.0
    %5551 = vmatprep.subr.mxu0 0.0
    %5552 = vmatpush2.msra.mxu0 0.0
    %5553 = vmatprep.subr.mxu0 0.0
    %5554 = vmatpush2.msra.mxu0 0.0
    %5555 = vmatprep.subr.mxu0 0.0
    %5556 = vmatpush2.msra.mxu0 0.0
    %5557 = vmatprep.subr.mxu0 0.0
    %5558 = vmatpush2.msra.mxu0 0.0
    %5559 = vmatprep.subr.mxu0 0.0
    %5560 = vmatpush2.msra.mxu0 0.0
    %5561 = vmatprep.subr.mxu0 0.0
    %5562 = vmatpush2.msra.mxu0 0.0
    %5563 = vmatprep.subr.mxu0 0.0
    %5564 = vmatpush2.msra.mxu0 0.0
    %5565 = vmatprep.subr.mxu0 0.0
    %5566 = vmatpush2.msra.mxu0 0.0
    %5567 = vmatprep.subr.mxu0 0.0
    %5568 = vmatpush2.msra.mxu0 0.0
    %5569 = vmatprep.subr.mxu0 0.0
    %5570 = vmatpush2.msra.mxu0 0.0
    %5571 = vmatprep.mubr.f32.mxu0 0.0
    %5572 = vmatmul.mubr.f32.gmra.mxu0 %v5503
    %v5573 = vpop.f32.mrf.mxu0
    %v5574 = vadd.f32 0.0, %v5573
    %v5575 = vpop.f32.mrf.mxu0
    %5576 = vmatprep.mubr.f32.mxu0 0.0
    %5577 = vmatmul.mubr.f32.gmra.mxu0 %v5505
    %v5578 = vpop.f32.mrf.mxu0
    %v5579 = vadd.f32 0.0, %v5578
    %v5580 = vpop.f32.mrf.mxu0
    %5581 = vdwg.mxu0
    %v5584 = vrot.slane %v5574, 7
    %v5585 = vrot.slane %v5574, 1
    %v5586 = vrot.slane %v5574, 2
    %v5587 = vrot.slane %v5574, 3
    %v5588 = vrot.slane %v5574, 4
    %v5589 = vrot.slane %v5574, 5
    %v5590 = vrot.slane %v5574, 6
    %v5591 = vrot.slane %v5579, 7
    %v5592 = vrot.slane %v5579, 1
    %v5593 = vrot.slane %v5579, 2
    %v5594 = vrot.slane %v5579, 3
    %v5595 = vrot.slane %v5579, 4
    %v5596 = vrot.slane %v5579, 5
    %v5597 = vrot.slane %v5579, 6
    %v5614 = vadd.f32 %v253, %v5584
    %v5615 = vadd.f32 %v263, %v5574
    %v5616 = vadd.f32 %v273, %v5585
    %v5617 = vadd.f32 %v283, %v5586
    %v5618 = vadd.f32 %v293, %v5587
    %v5619 = vadd.f32 %v303, %v5588
    %v5620 = vadd.f32 %v313, %v5589
    %v5621 = vadd.f32 %v323, %v5590
    %v5622 = vadd.f32 %v333, %v5591
    %v5623 = vadd.f32 %v343, %v5579
    %v5624 = vadd.f32 %v353, %v5592
    %v5625 = vadd.f32 %v363, %v5593
    %v5626 = vadd.f32 %v373, %v5594
    %v5627 = vadd.f32 %v383, %v5595
    %v5628 = vadd.f32 %v393, %v5596
    %v5629 = vadd.f32 %v403, %v5597
    %v5630 = vtanh.pop %v5614
    %v5631 = vtanh.pop %v5615
    %v5632 = vtanh.pop %v5616
    %v5633 = vtanh.pop %v5617
    %v5634 = vtanh.pop %v5618
    %v5635 = vtanh.pop %v5619
    %v5636 = vtanh.pop %v5620
    %v5637 = vtanh.pop %v5621
    %v5638 = vtanh.pop %v5622
    %v5639 = vtanh.pop %v5623
    %v5640 = vtanh.pop %v5624
    %v5641 = vtanh.pop %v5625
    %v5642 = vtanh.pop %v5626
    %v5643 = vtanh.pop %v5627
    %v5644 = vtanh.pop %v5628
    %v5645 = vtanh.pop %v5629
    %v5646 = vmul.f32 %v5630, 0.5
    %v5647 = vmul.f32 %v5631, 0.5
    %v5648 = vmul.f32 %v5632, 0.5
    %v5649 = vmul.f32 %v5633, 0.5
    %v5650 = vmul.f32 %v5634, 0.5
    %v5651 = vmul.f32 %v5635, 0.5
    %v5652 = vmul.f32 %v5636, 0.5
    %v5653 = vmul.f32 %v5637, 0.5
    %v5654 = vmul.f32 %v5638, 0.5
    %v5655 = vmul.f32 %v5639, 0.5
    %v5656 = vmul.f32 %v5640, 0.5
    %v5657 = vmul.f32 %v5641, 0.5
    %v5658 = vmul.f32 %v5642, 0.5
    %v5659 = vmul.f32 %v5643, 0.5
    %v5660 = vmul.f32 %v5644, 0.5
    %v5661 = vmul.f32 %v5645, 0.5
    %v5662 = vadd.f32 %v5646, 0.5
    %v5663 = vadd.f32 %v5647, 0.5
    %v5664 = vadd.f32 %v5648, 0.5
    %v5665 = vadd.f32 %v5649, 0.5
    %v5666 = vadd.f32 %v5650, 0.5
    %v5667 = vadd.f32 %v5651, 0.5
    %v5668 = vadd.f32 %v5652, 0.5
    %v5669 = vadd.f32 %v5653, 0.5
    %v5670 = vadd.f32 %v5654, 0.5
    %v5671 = vadd.f32 %v5655, 0.5
    %v5672 = vadd.f32 %v5656, 0.5
    %v5673 = vadd.f32 %v5657, 0.5
    %v5674 = vadd.f32 %v5658, 0.5
    %v5675 = vadd.f32 %v5659, 0.5
    %v5676 = vadd.f32 %v5660, 0.5
    %v5677 = vadd.f32 %v5661, 0.5
    %v5694 = vrot.slane %v5335, 7
    %v5695 = vrot.slane %v5336, 7
    %v5696 = vrot.slane %v5337, 7
    %v5697 = vrot.slane %v5338, 7
    %v5698 = vrot.slane %v5339, 7
    %v5699 = vrot.slane %v5340, 7
    %v5700 = vrot.slane %v5341, 7
    %v5701 = vrot.slane %v5342, 7
    %v5702 = vrot.slane %v5343, 7
    %v5703 = vrot.slane %v5344, 7
    %v5704 = vrot.slane %v5345, 7
    %v5705 = vrot.slane %v5346, 7
    %v5706 = vrot.slane %v5347, 7
    %v5707 = vrot.slane %v5348, 7
    %v5708 = vrot.slane %v5349, 7
    %v5709 = vrot.slane %v5350, 7
    %v5726 = vmul.f32 %v5662, %v5694
    %v5727 = vmul.f32 %v5663, %v5695
    %v5728 = vmul.f32 %v5664, %v5696
    %v5729 = vmul.f32 %v5665, %v5697
    %v5730 = vmul.f32 %v5666, %v5698
    %v5731 = vmul.f32 %v5667, %v5699
    %v5732 = vmul.f32 %v5668, %v5700
    %v5733 = vmul.f32 %v5669, %v5701
    %v5734 = vmul.f32 %v5670, %v5702
    %v5735 = vmul.f32 %v5671, %v5703
    %v5736 = vmul.f32 %v5672, %v5704
    %v5737 = vmul.f32 %v5673, %v5705
    %v5738 = vmul.f32 %v5674, %v5706
    %v5739 = vmul.f32 %v5675, %v5707
    %v5740 = vmul.f32 %v5676, %v5708
    %v5741 = vmul.f32 %v5677, %v5709
    %5758 = vrot.lane.b32.xlu0 %v5630, 64
    %v5759 = vpop.permute.xlu0 %5758
    %5760 = vrot.lane.b32.xlu0 %v5631, 64
    %v5761 = vpop.permute.xlu0 %5760
    %5762 = vrot.lane.b32.xlu0 %v5632, 64
    %v5763 = vpop.permute.xlu0 %5762
    %5764 = vrot.lane.b32.xlu0 %v5633, 64
    %v5765 = vpop.permute.xlu0 %5764
    %5766 = vrot.lane.b32.xlu0 %v5634, 64
    %v5767 = vpop.permute.xlu0 %5766
    %5768 = vrot.lane.b32.xlu0 %v5635, 64
    %v5769 = vpop.permute.xlu0 %5768
    %5770 = vrot.lane.b32.xlu0 %v5636, 64
    %v5771 = vpop.permute.xlu0 %5770
    %5772 = vrot.lane.b32.xlu0 %v5637, 64
    %v5773 = vpop.permute.xlu0 %5772
    %5774 = vrot.lane.b32.xlu0 %v5638, 64
    %v5775 = vpop.permute.xlu0 %5774
    %5776 = vrot.lane.b32.xlu0 %v5639, 64
    %v5777 = vpop.permute.xlu0 %5776
    %5778 = vrot.lane.b32.xlu0 %v5640, 64
    %v5779 = vpop.permute.xlu0 %5778
    %5780 = vrot.lane.b32.xlu0 %v5641, 64
    %v5781 = vpop.permute.xlu0 %5780
    %5782 = vrot.lane.b32.xlu0 %v5642, 64
    %v5783 = vpop.permute.xlu0 %5782
    %5784 = vrot.lane.b32.xlu0 %v5643, 64
    %v5785 = vpop.permute.xlu0 %5784
    %5786 = vrot.lane.b32.xlu0 %v5644, 64
    %v5787 = vpop.permute.xlu0 %5786
    %5788 = vrot.lane.b32.xlu0 %v5645, 64
    %v5789 = vpop.permute.xlu0 %5788
    %v5806 = vmul.f32 %v5662, %v5759
    %v5807 = vmul.f32 %v5663, %v5761
    %v5808 = vmul.f32 %v5664, %v5763
    %v5809 = vmul.f32 %v5665, %v5765
    %v5810 = vmul.f32 %v5666, %v5767
    %v5811 = vmul.f32 %v5667, %v5769
    %v5812 = vmul.f32 %v5668, %v5771
    %v5813 = vmul.f32 %v5669, %v5773
    %v5814 = vmul.f32 %v5670, %v5775
    %v5815 = vmul.f32 %v5671, %v5777
    %v5816 = vmul.f32 %v5672, %v5779
    %v5817 = vmul.f32 %v5673, %v5781
    %v5818 = vmul.f32 %v5674, %v5783
    %v5819 = vmul.f32 %v5675, %v5785
    %v5820 = vmul.f32 %v5676, %v5787
    %v5821 = vmul.f32 %v5677, %v5789
    %5838 = vrot.lane.b32.xlu0 %v5806, 32
    %v5839 = vpop.permute.xlu0 %5838
    %5840 = vrot.lane.b32.xlu0 %v5807, 32
    %v5841 = vpop.permute.xlu0 %5840
    %5842 = vrot.lane.b32.xlu0 %v5808, 32
    %v5843 = vpop.permute.xlu0 %5842
    %5844 = vrot.lane.b32.xlu0 %v5809, 32
    %v5845 = vpop.permute.xlu0 %5844
    %5846 = vrot.lane.b32.xlu0 %v5810, 32
    %v5847 = vpop.permute.xlu0 %5846
    %5848 = vrot.lane.b32.xlu0 %v5811, 32
    %v5849 = vpop.permute.xlu0 %5848
    %5850 = vrot.lane.b32.xlu0 %v5812, 32
    %v5851 = vpop.permute.xlu0 %5850
    %5852 = vrot.lane.b32.xlu0 %v5813, 32
    %v5853 = vpop.permute.xlu0 %5852
    %5854 = vrot.lane.b32.xlu0 %v5814, 32
    %v5855 = vpop.permute.xlu0 %5854
    %5856 = vrot.lane.b32.xlu0 %v5815, 32
    %v5857 = vpop.permute.xlu0 %5856
    %5858 = vrot.lane.b32.xlu0 %v5816, 32
    %v5859 = vpop.permute.xlu0 %5858
    %5860 = vrot.lane.b32.xlu0 %v5817, 32
    %v5861 = vpop.permute.xlu0 %5860
    %5862 = vrot.lane.b32.xlu0 %v5818, 32
    %v5863 = vpop.permute.xlu0 %5862
    %5864 = vrot.lane.b32.xlu0 %v5819, 32
    %v5865 = vpop.permute.xlu0 %5864
    %5866 = vrot.lane.b32.xlu0 %v5820, 32
    %v5867 = vpop.permute.xlu0 %5866
    %5868 = vrot.lane.b32.xlu0 %v5821, 32
    %v5869 = vpop.permute.xlu0 %5868
    %v5886 = vadd.f32 %v5726, %v5839
    %v5887 = vadd.f32 %v5727, %v5841
    %v5888 = vadd.f32 %v5728, %v5843
    %v5889 = vadd.f32 %v5729, %v5845
    %v5890 = vadd.f32 %v5730, %v5847
    %v5891 = vadd.f32 %v5731, %v5849
    %v5892 = vadd.f32 %v5732, %v5851
    %v5893 = vadd.f32 %v5733, %v5853
    %v5894 = vadd.f32 %v5734, %v5855
    %v5895 = vadd.f32 %v5735, %v5857
    %v5896 = vadd.f32 %v5736, %v5859
    %v5897 = vadd.f32 %v5737, %v5861
    %v5898 = vadd.f32 %v5738, %v5863
    %v5899 = vadd.f32 %v5739, %v5865
    %v5900 = vadd.f32 %v5740, %v5867
    %v5901 = vadd.f32 %v5741, %v5869
    %v5902 = vtanh.pop %v5886
    %v5903 = vtanh.pop %v5887
    %v5904 = vtanh.pop %v5888
    %v5905 = vtanh.pop %v5889
    %v5906 = vtanh.pop %v5890
    %v5907 = vtanh.pop %v5891
    %v5908 = vtanh.pop %v5892
    %v5909 = vtanh.pop %v5893
    %v5910 = vtanh.pop %v5894
    %v5911 = vtanh.pop %v5895
    %v5912 = vtanh.pop %v5896
    %v5913 = vtanh.pop %v5897
    %v5914 = vtanh.pop %v5898
    %v5915 = vtanh.pop %v5899
    %v5916 = vtanh.pop %v5900
    %v5917 = vtanh.pop %v5901
    %5934 = vrot.lane.b32.xlu0 %v5902, 64
    %v5935 = vpop.permute.xlu0 %5934
    %5936 = vrot.lane.b32.xlu0 %v5903, 64
    %v5937 = vpop.permute.xlu0 %5936
    %5938 = vrot.lane.b32.xlu0 %v5904, 64
    %v5939 = vpop.permute.xlu0 %5938
    %5940 = vrot.lane.b32.xlu0 %v5905, 64
    %v5941 = vpop.permute.xlu0 %5940
    %5942 = vrot.lane.b32.xlu0 %v5906, 64
    %v5943 = vpop.permute.xlu0 %5942
    %5944 = vrot.lane.b32.xlu0 %v5907, 64
    %v5945 = vpop.permute.xlu0 %5944
    %5946 = vrot.lane.b32.xlu0 %v5908, 64
    %v5947 = vpop.permute.xlu0 %5946
    %5948 = vrot.lane.b32.xlu0 %v5909, 64
    %v5949 = vpop.permute.xlu0 %5948
    %5950 = vrot.lane.b32.xlu0 %v5910, 64
    %v5951 = vpop.permute.xlu0 %5950
    %5952 = vrot.lane.b32.xlu0 %v5911, 64
    %v5953 = vpop.permute.xlu0 %5952
    %5954 = vrot.lane.b32.xlu0 %v5912, 64
    %v5955 = vpop.permute.xlu0 %5954
    %5956 = vrot.lane.b32.xlu0 %v5913, 64
    %v5957 = vpop.permute.xlu0 %5956
    %5958 = vrot.lane.b32.xlu0 %v5914, 64
    %v5959 = vpop.permute.xlu0 %5958
    %5960 = vrot.lane.b32.xlu0 %v5915, 64
    %v5961 = vpop.permute.xlu0 %5960
    %5962 = vrot.lane.b32.xlu0 %v5916, 64
    %v5963 = vpop.permute.xlu0 %5962
    %5964 = vrot.lane.b32.xlu0 %v5917, 64
    %v5965 = vpop.permute.xlu0 %5964
    %v5982 = vmul.f32 %v5662, %v5935
    %v5983 = vmul.f32 %v5663, %v5937
    %v5984 = vmul.f32 %v5664, %v5939
    %v5985 = vmul.f32 %v5665, %v5941
    %v5986 = vmul.f32 %v5666, %v5943
    %v5987 = vmul.f32 %v5667, %v5945
    %v5988 = vmul.f32 %v5668, %v5947
    %v5989 = vmul.f32 %v5669, %v5949
    %v5990 = vmul.f32 %v5670, %v5951
    %v5991 = vmul.f32 %v5671, %v5953
    %v5992 = vmul.f32 %v5672, %v5955
    %v5993 = vmul.f32 %v5673, %v5957
    %v5994 = vmul.f32 %v5674, %v5959
    %v5995 = vmul.f32 %v5675, %v5961
    %v5996 = vmul.f32 %v5676, %v5963
    %v5997 = vmul.f32 %v5677, %v5965
    %v6014 = vrot.slane %v5982, 1
    %v6015 = vsel %vm1030, %v5983, %v6014
    %v6016 = vrot.slane %v5984, 7
    %v6017 = vsel %vm1033, %v6016, %v6015
    %v6018 = vrot.slane %v5985, 6
    %v6019 = vsel %vm1036, %v6018, %v6017
    %v6020 = vrot.slane %v5986, 5
    %v6021 = vsel %vm1039, %v6020, %v6019
    %v6022 = vrot.slane %v5987, 4
    %v6023 = vsel %vm1042, %v6022, %v6021
    %v6024 = vrot.slane %v5988, 3
    %v6025 = vsel %vm1045, %v6024, %v6023
    %v6026 = vrot.slane %v5989, 2
    %v6027 = vsel %vm1048, %v6026, %v6025
    %v6028 = vrot.slane %v5990, 1
    %v6029 = vsel %vm1030, %v5991, %v6028
    %v6030 = vrot.slane %v5992, 7
    %v6031 = vsel %vm1033, %v6030, %v6029
    %v6032 = vrot.slane %v5993, 6
    %v6033 = vsel %vm1036, %v6032, %v6031
    %v6034 = vrot.slane %v5994, 5
    %v6035 = vsel %vm1039, %v6034, %v6033
    %v6036 = vrot.slane %v5995, 4
    %v6037 = vsel %vm1042, %v6036, %v6035
    %v6038 = vrot.slane %v5996, 3
    %v6039 = vsel %vm1045, %v6038, %v6037
    %v6040 = vrot.slane %v5997, 2
    %v6041 = vsel %vm1048, %v6040, %v6039
    %6042 = vrot.lane.b32.xlu0 %v6027, 64
    %v6043 = vpop.permute.xlu0 %6042
    %6044 = vrot.lane.b32.xlu0 %v6041, 64
    %v6045 = vpop.permute.xlu0 %6044
    %6048 = vst.msk [vmem:[#allocation2 + $0x10] sm:$0xff] %vm1621, %v6043
    %6049 = vst.msk [vmem:[#allocation2 + $0x30] sm:$0xff] %vm1621, %v6045
    %v6050 = vld [vmem:[%s4] sm:$0xff]
    %v6051 = vld [vmem:[%s4 + $0x8] sm:$0xff]
    %v6052 = vld [vmem:[%s4 + $0x10] sm:$0xff]
    %v6053 = vld [vmem:[%s4 + $0x18] sm:$0xff]
    %6054 = vrot.lane.b32.xlu0 %v6027, 32
    %v6055 = vpop.permute.xlu0 %6054
    %6056 = vrot.lane.b32.xlu0 %v6041, 32
    %v6057 = vpop.permute.xlu0 %6056
    %v6058 = vsel %vm416, %v6055, 0
    %v6060 = vsel %vm416, %v6057, 0
    %6062 = vmatprep.subr.mxu0 0.0
    %6063 = vmatpush1.msra.mxu0 0.0
    %6064 = vmatprep.subr.mxu0 0.0
    %6065 = vmatpush1.msra.mxu0 0.0
    %6066 = vmatprep.subr.mxu0 0.0
    %6067 = vmatpush1.msra.mxu0 0.0
    %6068 = vmatprep.subr.mxu0 0.0
    %6069 = vmatpush1.msra.mxu0 0.0
    %6070 = vmatprep.subr.mxu0 0.0
    %6071 = vmatpush1.msra.mxu0 0.0
    %6072 = vmatprep.subr.mxu0 0.0
    %6073 = vmatpush1.msra.mxu0 0.0
    %6074 = vmatprep.subr.mxu0 0.0
    %6075 = vmatpush1.msra.mxu0 0.0
    %6076 = vmatprep.subr.mxu0 0.0
    %6077 = vmatpush1.msra.mxu0 0.0
    %6078 = vmatprep.subr.mxu0 0.0
    %6079 = vmatpush1.msra.mxu0 0.0
    %6080 = vmatprep.subr.mxu0 0.0
    %6081 = vmatpush1.msra.mxu0 0.0
    %6082 = vmatprep.subr.mxu0 0.0
    %6083 = vmatpush1.msra.mxu0 0.0
    %6084 = vmatprep.subr.mxu0 0.0
    %6085 = vmatpush1.msra.mxu0 0.0
    %6086 = vmatprep.subr.mxu0 0.0
    %6087 = vmatpush1.msra.mxu0 %v6053
    %6088 = vmatprep.subr.mxu0 0.0
    %6089 = vmatpush1.msra.mxu0 %v6052
    %6090 = vmatprep.subr.mxu0 0.0
    %6091 = vmatpush1.msra.mxu0 %v6051
    %6092 = vmatprep.subr.mxu0 0.0
    %6093 = vmatpush1.msra.mxu0 %v6050
    %6094 = vmatprep.subr.mxu0 0.0
    %6095 = vmatpush2.msra.mxu0 0.0
    %6096 = vmatprep.subr.mxu0 0.0
    %6097 = vmatpush2.msra.mxu0 0.0
    %6098 = vmatprep.subr.mxu0 0.0
    %6099 = vmatpush2.msra.mxu0 0.0
    %6100 = vmatprep.subr.mxu0 0.0
    %6101 = vmatpush2.msra.mxu0 0.0
    %6102 = vmatprep.subr.mxu0 0.0
    %6103 = vmatpush2.msra.mxu0 0.0
    %6104 = vmatprep.subr.mxu0 0.0
    %6105 = vmatpush2.msra.mxu0 0.0
    %6106 = vmatprep.subr.mxu0 0.0
    %6107 = vmatpush2.msra.mxu0 0.0
    %6108 = vmatprep.subr.mxu0 0.0
    %6109 = vmatpush2.msra.mxu0 0.0
    %6110 = vmatprep.subr.mxu0 0.0
    %6111 = vmatpush2.msra.mxu0 0.0
    %6112 = vmatprep.subr.mxu0 0.0
    %6113 = vmatpush2.msra.mxu0 0.0
    %6114 = vmatprep.subr.mxu0 0.0
    %6115 = vmatpush2.msra.mxu0 0.0
    %6116 = vmatprep.subr.mxu0 0.0
    %6117 = vmatpush2.msra.mxu0 0.0
    %6118 = vmatprep.subr.mxu0 0.0
    %6119 = vmatpush2.msra.mxu0 0.0
    %6120 = vmatprep.subr.mxu0 0.0
    %6121 = vmatpush2.msra.mxu0 0.0
    %6122 = vmatprep.subr.mxu0 0.0
    %6123 = vmatpush2.msra.mxu0 0.0
    %6124 = vmatprep.subr.mxu0 0.0
    %6125 = vmatpush2.msra.mxu0 0.0
    %6126 = vmatprep.mubr.f32.mxu0 0.0
    %6127 = vmatmul.mubr.f32.gmra.mxu0 %v6058
    %v6128 = vpop.f32.mrf.mxu0
    %v6129 = vadd.f32 0.0, %v6128
    %v6130 = vpop.f32.mrf.mxu0
    %6131 = vmatprep.mubr.f32.mxu0 0.0
    %6132 = vmatmul.mubr.f32.gmra.mxu0 %v6060
    %v6133 = vpop.f32.mrf.mxu0
    %v6134 = vadd.f32 0.0, %v6133
    %v6135 = vpop.f32.mrf.mxu0
    %6136 = vdwg.mxu0
    %v6139 = vrot.slane %v6129, 6
    %v6140 = vrot.slane %v6129, 7
    %v6141 = vrot.slane %v6129, 1
    %v6142 = vrot.slane %v6129, 2
    %v6143 = vrot.slane %v6129, 3
    %v6144 = vrot.slane %v6129, 4
    %v6145 = vrot.slane %v6129, 5
    %v6146 = vrot.slane %v6134, 6
    %v6147 = vrot.slane %v6134, 7
    %v6148 = vrot.slane %v6134, 1
    %v6149 = vrot.slane %v6134, 2
    %v6150 = vrot.slane %v6134, 3
    %v6151 = vrot.slane %v6134, 4
    %v6152 = vrot.slane %v6134, 5
    %v6169 = vadd.f32 %v253, %v6139
    %v6170 = vadd.f32 %v263, %v6140
    %v6171 = vadd.f32 %v273, %v6129
    %v6172 = vadd.f32 %v283, %v6141
    %v6173 = vadd.f32 %v293, %v6142
    %v6174 = vadd.f32 %v303, %v6143
    %v6175 = vadd.f32 %v313, %v6144
    %v6176 = vadd.f32 %v323, %v6145
    %v6177 = vadd.f32 %v333, %v6146
    %v6178 = vadd.f32 %v343, %v6147
    %v6179 = vadd.f32 %v353, %v6134
    %v6180 = vadd.f32 %v363, %v6148
    %v6181 = vadd.f32 %v373, %v6149
    %v6182 = vadd.f32 %v383, %v6150
    %v6183 = vadd.f32 %v393, %v6151
    %v6184 = vadd.f32 %v403, %v6152
    %v6185 = vtanh.pop %v6169
    %v6186 = vtanh.pop %v6170
    %v6187 = vtanh.pop %v6171
    %v6188 = vtanh.pop %v6172
    %v6189 = vtanh.pop %v6173
    %v6190 = vtanh.pop %v6174
    %v6191 = vtanh.pop %v6175
    %v6192 = vtanh.pop %v6176
    %v6193 = vtanh.pop %v6177
    %v6194 = vtanh.pop %v6178
    %v6195 = vtanh.pop %v6179
    %v6196 = vtanh.pop %v6180
    %v6197 = vtanh.pop %v6181
    %v6198 = vtanh.pop %v6182
    %v6199 = vtanh.pop %v6183
    %v6200 = vtanh.pop %v6184
    %v6201 = vmul.f32 %v6185, 0.5
    %v6202 = vmul.f32 %v6186, 0.5
    %v6203 = vmul.f32 %v6187, 0.5
    %v6204 = vmul.f32 %v6188, 0.5
    %v6205 = vmul.f32 %v6189, 0.5
    %v6206 = vmul.f32 %v6190, 0.5
    %v6207 = vmul.f32 %v6191, 0.5
    %v6208 = vmul.f32 %v6192, 0.5
    %v6209 = vmul.f32 %v6193, 0.5
    %v6210 = vmul.f32 %v6194, 0.5
    %v6211 = vmul.f32 %v6195, 0.5
    %v6212 = vmul.f32 %v6196, 0.5
    %v6213 = vmul.f32 %v6197, 0.5
    %v6214 = vmul.f32 %v6198, 0.5
    %v6215 = vmul.f32 %v6199, 0.5
    %v6216 = vmul.f32 %v6200, 0.5
    %v6217 = vadd.f32 %v6201, 0.5
    %v6218 = vadd.f32 %v6202, 0.5
    %v6219 = vadd.f32 %v6203, 0.5
    %v6220 = vadd.f32 %v6204, 0.5
    %v6221 = vadd.f32 %v6205, 0.5
    %v6222 = vadd.f32 %v6206, 0.5
    %v6223 = vadd.f32 %v6207, 0.5
    %v6224 = vadd.f32 %v6208, 0.5
    %v6225 = vadd.f32 %v6209, 0.5
    %v6226 = vadd.f32 %v6210, 0.5
    %v6227 = vadd.f32 %v6211, 0.5
    %v6228 = vadd.f32 %v6212, 0.5
    %v6229 = vadd.f32 %v6213, 0.5
    %v6230 = vadd.f32 %v6214, 0.5
    %v6231 = vadd.f32 %v6215, 0.5
    %v6232 = vadd.f32 %v6216, 0.5
    %v6249 = vrot.slane %v5886, 7
    %v6250 = vrot.slane %v5887, 7
    %v6251 = vrot.slane %v5888, 7
    %v6252 = vrot.slane %v5889, 7
    %v6253 = vrot.slane %v5890, 7
    %v6254 = vrot.slane %v5891, 7
    %v6255 = vrot.slane %v5892, 7
    %v6256 = vrot.slane %v5893, 7
    %v6257 = vrot.slane %v5894, 7
    %v6258 = vrot.slane %v5895, 7
    %v6259 = vrot.slane %v5896, 7
    %v6260 = vrot.slane %v5897, 7
    %v6261 = vrot.slane %v5898, 7
    %v6262 = vrot.slane %v5899, 7
    %v6263 = vrot.slane %v5900, 7
    %v6264 = vrot.slane %v5901, 7
    %v6281 = vmul.f32 %v6217, %v6249
    %v6282 = vmul.f32 %v6218, %v6250
    %v6283 = vmul.f32 %v6219, %v6251
    %v6284 = vmul.f32 %v6220, %v6252
    %v6285 = vmul.f32 %v6221, %v6253
    %v6286 = vmul.f32 %v6222, %v6254
    %v6287 = vmul.f32 %v6223, %v6255
    %v6288 = vmul.f32 %v6224, %v6256
    %v6289 = vmul.f32 %v6225, %v6257
    %v6290 = vmul.f32 %v6226, %v6258
    %v6291 = vmul.f32 %v6227, %v6259
    %v6292 = vmul.f32 %v6228, %v6260
    %v6293 = vmul.f32 %v6229, %v6261
    %v6294 = vmul.f32 %v6230, %v6262
    %v6295 = vmul.f32 %v6231, %v6263
    %v6296 = vmul.f32 %v6232, %v6264
    %6313 = vrot.lane.b32.xlu0 %v6185, 64
    %v6314 = vpop.permute.xlu0 %6313
    %6315 = vrot.lane.b32.xlu0 %v6186, 64
    %v6316 = vpop.permute.xlu0 %6315
    %6317 = vrot.lane.b32.xlu0 %v6187, 64
    %v6318 = vpop.permute.xlu0 %6317
    %6319 = vrot.lane.b32.xlu0 %v6188, 64
    %v6320 = vpop.permute.xlu0 %6319
    %6321 = vrot.lane.b32.xlu0 %v6189, 64
    %v6322 = vpop.permute.xlu0 %6321
    %6323 = vrot.lane.b32.xlu0 %v6190, 64
    %v6324 = vpop.permute.xlu0 %6323
    %6325 = vrot.lane.b32.xlu0 %v6191, 64
    %v6326 = vpop.permute.xlu0 %6325
    %6327 = vrot.lane.b32.xlu0 %v6192, 64
    %v6328 = vpop.permute.xlu0 %6327
    %6329 = vrot.lane.b32.xlu0 %v6193, 64
    %v6330 = vpop.permute.xlu0 %6329
    %6331 = vrot.lane.b32.xlu0 %v6194, 64
    %v6332 = vpop.permute.xlu0 %6331
    %6333 = vrot.lane.b32.xlu0 %v6195, 64
    %v6334 = vpop.permute.xlu0 %6333
    %6335 = vrot.lane.b32.xlu0 %v6196, 64
    %v6336 = vpop.permute.xlu0 %6335
    %6337 = vrot.lane.b32.xlu0 %v6197, 64
    %v6338 = vpop.permute.xlu0 %6337
    %6339 = vrot.lane.b32.xlu0 %v6198, 64
    %v6340 = vpop.permute.xlu0 %6339
    %6341 = vrot.lane.b32.xlu0 %v6199, 64
    %v6342 = vpop.permute.xlu0 %6341
    %6343 = vrot.lane.b32.xlu0 %v6200, 64
    %v6344 = vpop.permute.xlu0 %6343
    %v6361 = vmul.f32 %v6217, %v6314
    %v6362 = vmul.f32 %v6218, %v6316
    %v6363 = vmul.f32 %v6219, %v6318
    %v6364 = vmul.f32 %v6220, %v6320
    %v6365 = vmul.f32 %v6221, %v6322
    %v6366 = vmul.f32 %v6222, %v6324
    %v6367 = vmul.f32 %v6223, %v6326
    %v6368 = vmul.f32 %v6224, %v6328
    %v6369 = vmul.f32 %v6225, %v6330
    %v6370 = vmul.f32 %v6226, %v6332
    %v6371 = vmul.f32 %v6227, %v6334
    %v6372 = vmul.f32 %v6228, %v6336
    %v6373 = vmul.f32 %v6229, %v6338
    %v6374 = vmul.f32 %v6230, %v6340
    %v6375 = vmul.f32 %v6231, %v6342
    %v6376 = vmul.f32 %v6232, %v6344
    %6393 = vrot.lane.b32.xlu0 %v6361, 32
    %v6394 = vpop.permute.xlu0 %6393
    %6395 = vrot.lane.b32.xlu0 %v6362, 32
    %v6396 = vpop.permute.xlu0 %6395
    %6397 = vrot.lane.b32.xlu0 %v6363, 32
    %v6398 = vpop.permute.xlu0 %6397
    %6399 = vrot.lane.b32.xlu0 %v6364, 32
    %v6400 = vpop.permute.xlu0 %6399
    %6401 = vrot.lane.b32.xlu0 %v6365, 32
    %v6402 = vpop.permute.xlu0 %6401
    %6403 = vrot.lane.b32.xlu0 %v6366, 32
    %v6404 = vpop.permute.xlu0 %6403
    %6405 = vrot.lane.b32.xlu0 %v6367, 32
    %v6406 = vpop.permute.xlu0 %6405
    %6407 = vrot.lane.b32.xlu0 %v6368, 32
    %v6408 = vpop.permute.xlu0 %6407
    %6409 = vrot.lane.b32.xlu0 %v6369, 32
    %v6410 = vpop.permute.xlu0 %6409
    %6411 = vrot.lane.b32.xlu0 %v6370, 32
    %v6412 = vpop.permute.xlu0 %6411
    %6413 = vrot.lane.b32.xlu0 %v6371, 32
    %v6414 = vpop.permute.xlu0 %6413
    %6415 = vrot.lane.b32.xlu0 %v6372, 32
    %v6416 = vpop.permute.xlu0 %6415
    %6417 = vrot.lane.b32.xlu0 %v6373, 32
    %v6418 = vpop.permute.xlu0 %6417
    %6419 = vrot.lane.b32.xlu0 %v6374, 32
    %v6420 = vpop.permute.xlu0 %6419
    %6421 = vrot.lane.b32.xlu0 %v6375, 32
    %v6422 = vpop.permute.xlu0 %6421
    %6423 = vrot.lane.b32.xlu0 %v6376, 32
    %v6424 = vpop.permute.xlu0 %6423
    %v6441 = vadd.f32 %v6281, %v6394
    %v6442 = vadd.f32 %v6282, %v6396
    %v6443 = vadd.f32 %v6283, %v6398
    %v6444 = vadd.f32 %v6284, %v6400
    %v6445 = vadd.f32 %v6285, %v6402
    %v6446 = vadd.f32 %v6286, %v6404
    %v6447 = vadd.f32 %v6287, %v6406
    %v6448 = vadd.f32 %v6288, %v6408
    %v6449 = vadd.f32 %v6289, %v6410
    %v6450 = vadd.f32 %v6290, %v6412
    %v6451 = vadd.f32 %v6291, %v6414
    %v6452 = vadd.f32 %v6292, %v6416
    %v6453 = vadd.f32 %v6293, %v6418
    %v6454 = vadd.f32 %v6294, %v6420
    %v6455 = vadd.f32 %v6295, %v6422
    %v6456 = vadd.f32 %v6296, %v6424
    %v6457 = vtanh.pop %v6441
    %v6458 = vtanh.pop %v6442
    %v6459 = vtanh.pop %v6443
    %v6460 = vtanh.pop %v6444
    %v6461 = vtanh.pop %v6445
    %v6462 = vtanh.pop %v6446
    %v6463 = vtanh.pop %v6447
    %v6464 = vtanh.pop %v6448
    %v6465 = vtanh.pop %v6449
    %v6466 = vtanh.pop %v6450
    %v6467 = vtanh.pop %v6451
    %v6468 = vtanh.pop %v6452
    %v6469 = vtanh.pop %v6453
    %v6470 = vtanh.pop %v6454
    %v6471 = vtanh.pop %v6455
    %v6472 = vtanh.pop %v6456
    %6489 = vrot.lane.b32.xlu0 %v6457, 64
    %v6490 = vpop.permute.xlu0 %6489
    %6491 = vrot.lane.b32.xlu0 %v6458, 64
    %v6492 = vpop.permute.xlu0 %6491
    %6493 = vrot.lane.b32.xlu0 %v6459, 64
    %v6494 = vpop.permute.xlu0 %6493
    %6495 = vrot.lane.b32.xlu0 %v6460, 64
    %v6496 = vpop.permute.xlu0 %6495
    %6497 = vrot.lane.b32.xlu0 %v6461, 64
    %v6498 = vpop.permute.xlu0 %6497
    %6499 = vrot.lane.b32.xlu0 %v6462, 64
    %v6500 = vpop.permute.xlu0 %6499
    %6501 = vrot.lane.b32.xlu0 %v6463, 64
    %v6502 = vpop.permute.xlu0 %6501
    %6503 = vrot.lane.b32.xlu0 %v6464, 64
    %v6504 = vpop.permute.xlu0 %6503
    %6505 = vrot.lane.b32.xlu0 %v6465, 64
    %v6506 = vpop.permute.xlu0 %6505
    %6507 = vrot.lane.b32.xlu0 %v6466, 64
    %v6508 = vpop.permute.xlu0 %6507
    %6509 = vrot.lane.b32.xlu0 %v6467, 64
    %v6510 = vpop.permute.xlu0 %6509
    %6511 = vrot.lane.b32.xlu0 %v6468, 64
    %v6512 = vpop.permute.xlu0 %6511
    %6513 = vrot.lane.b32.xlu0 %v6469, 64
    %v6514 = vpop.permute.xlu0 %6513
    %6515 = vrot.lane.b32.xlu0 %v6470, 64
    %v6516 = vpop.permute.xlu0 %6515
    %6517 = vrot.lane.b32.xlu0 %v6471, 64
    %v6518 = vpop.permute.xlu0 %6517
    %6519 = vrot.lane.b32.xlu0 %v6472, 64
    %v6520 = vpop.permute.xlu0 %6519
    %v6537 = vmul.f32 %v6217, %v6490
    %v6538 = vmul.f32 %v6218, %v6492
    %v6539 = vmul.f32 %v6219, %v6494
    %v6540 = vmul.f32 %v6220, %v6496
    %v6541 = vmul.f32 %v6221, %v6498
    %v6542 = vmul.f32 %v6222, %v6500
    %v6543 = vmul.f32 %v6223, %v6502
    %v6544 = vmul.f32 %v6224, %v6504
    %v6545 = vmul.f32 %v6225, %v6506
    %v6546 = vmul.f32 %v6226, %v6508
    %v6547 = vmul.f32 %v6227, %v6510
    %v6548 = vmul.f32 %v6228, %v6512
    %v6549 = vmul.f32 %v6229, %v6514
    %v6550 = vmul.f32 %v6230, %v6516
    %v6551 = vmul.f32 %v6231, %v6518
    %v6552 = vmul.f32 %v6232, %v6520
    %v6569 = vrot.slane %v6537, 2
    %v6570 = vrot.slane %v6538, 1
    %v6571 = vsel %vm1030, %v6570, %v6569
    %v6572 = vsel %vm1033, %v6539, %v6571
    %v6573 = vrot.slane %v6540, 7
    %v6574 = vsel %vm1036, %v6573, %v6572
    %v6575 = vrot.slane %v6541, 6
    %v6576 = vsel %vm1039, %v6575, %v6574
    %v6577 = vrot.slane %v6542, 5
    %v6578 = vsel %vm1042, %v6577, %v6576
    %v6579 = vrot.slane %v6543, 4
    %v6580 = vsel %vm1045, %v6579, %v6578
    %v6581 = vrot.slane %v6544, 3
    %v6582 = vsel %vm1048, %v6581, %v6580
    %v6583 = vrot.slane %v6545, 2
    %v6584 = vrot.slane %v6546, 1
    %v6585 = vsel %vm1030, %v6584, %v6583
    %v6586 = vsel %vm1033, %v6547, %v6585
    %v6587 = vrot.slane %v6548, 7
    %v6588 = vsel %vm1036, %v6587, %v6586
    %v6589 = vrot.slane %v6549, 6
    %v6590 = vsel %vm1039, %v6589, %v6588
    %v6591 = vrot.slane %v6550, 5
    %v6592 = vsel %vm1042, %v6591, %v6590
    %v6593 = vrot.slane %v6551, 4
    %v6594 = vsel %vm1045, %v6593, %v6592
    %v6595 = vrot.slane %v6552, 3
    %v6596 = vsel %vm1048, %v6595, %v6594
    %6597 = vrot.lane.b32.xlu0 %v6582, 96
    %v6598 = vpop.permute.xlu0 %6597
    %6599 = vrot.lane.b32.xlu0 %v6596, 96
    %v6600 = vpop.permute.xlu0 %6599
    %6603 = vst.msk [vmem:[#allocation2 + $0x10] sm:$0xff] %vm2177, %v6598
    %6604 = vst.msk [vmem:[#allocation2 + $0x30] sm:$0xff] %vm2177, %v6600
    %v6605 = vld [vmem:[%s4] sm:$0xff]
    %v6606 = vld [vmem:[%s4 + $0x8] sm:$0xff]
    %v6607 = vld [vmem:[%s4 + $0x10] sm:$0xff]
    %v6608 = vld [vmem:[%s4 + $0x18] sm:$0xff]
    %6609 = vrot.lane.b32.xlu0 %v6582, 32
    %v6610 = vpop.permute.xlu0 %6609
    %6611 = vrot.lane.b32.xlu0 %v6596, 32
    %v6612 = vpop.permute.xlu0 %6611
    %v6613 = vsel %vm416, %v6610, 0
    %v6615 = vsel %vm416, %v6612, 0
    %6617 = vmatprep.subr.mxu0 0.0
    %6618 = vmatpush1.msra.mxu0 0.0
    %6619 = vmatprep.subr.mxu0 0.0
    %6620 = vmatpush1.msra.mxu0 0.0
    %6621 = vmatprep.subr.mxu0 0.0
    %6622 = vmatpush1.msra.mxu0 0.0
    %6623 = vmatprep.subr.mxu0 0.0
    %6624 = vmatpush1.msra.mxu0 0.0
    %6625 = vmatprep.subr.mxu0 0.0
    %6626 = vmatpush1.msra.mxu0 0.0
    %6627 = vmatprep.subr.mxu0 0.0
    %6628 = vmatpush1.msra.mxu0 0.0
    %6629 = vmatprep.subr.mxu0 0.0
    %6630 = vmatpush1.msra.mxu0 0.0
    %6631 = vmatprep.subr.mxu0 0.0
    %6632 = vmatpush1.msra.mxu0 0.0
    %6633 = vmatprep.subr.mxu0 0.0
    %6634 = vmatpush1.msra.mxu0 0.0
    %6635 = vmatprep.subr.mxu0 0.0
    %6636 = vmatpush1.msra.mxu0 0.0
    %6637 = vmatprep.subr.mxu0 0.0
    %6638 = vmatpush1.msra.mxu0 0.0
    %6639 = vmatprep.subr.mxu0 0.0
    %6640 = vmatpush1.msra.mxu0 0.0
    %6641 = vmatprep.subr.mxu0 0.0
    %6642 = vmatpush1.msra.mxu0 %v6608
    %6643 = vmatprep.subr.mxu0 0.0
    %6644 = vmatpush1.msra.mxu0 %v6607
    %6645 = vmatprep.subr.mxu0 0.0
    %6646 = vmatpush1.msra.mxu0 %v6606
    %6647 = vmatprep.subr.mxu0 0.0
    %6648 = vmatpush1.msra.mxu0 %v6605
    %6649 = vmatprep.subr.mxu0 0.0
    %6650 = vmatpush2.msra.mxu0 0.0
    %6651 = vmatprep.subr.mxu0 0.0
    %6652 = vmatpush2.msra.mxu0 0.0
    %6653 = vmatprep.subr.mxu0 0.0
    %6654 = vmatpush2.msra.mxu0 0.0
    %6655 = vmatprep.subr.mxu0 0.0
    %6656 = vmatpush2.msra.mxu0 0.0
    %6657 = vmatprep.subr.mxu0 0.0
    %6658 = vmatpush2.msra.mxu0 0.0
    %6659 = vmatprep.subr.mxu0 0.0
    %6660 = vmatpush2.msra.mxu0 0.0
    %6661 = vmatprep.subr.mxu0 0.0
    %6662 = vmatpush2.msra.mxu0 0.0
    %6663 = vmatprep.subr.mxu0 0.0
    %6664 = vmatpush2.msra.mxu0 0.0
    %6665 = vmatprep.subr.mxu0 0.0
    %6666 = vmatpush2.msra.mxu0 0.0
    %6667 = vmatprep.subr.mxu0 0.0
    %6668 = vmatpush2.msra.mxu0 0.0
    %6669 = vmatprep.subr.mxu0 0.0
    %6670 = vmatpush2.msra.mxu0 0.0
    %6671 = vmatprep.subr.mxu0 0.0
    %6672 = vmatpush2.msra.mxu0 0.0
    %6673 = vmatprep.subr.mxu0 0.0
    %6674 = vmatpush2.msra.mxu0 0.0
    %6675 = vmatprep.subr.mxu0 0.0
    %6676 = vmatpush2.msra.mxu0 0.0
    %6677 = vmatprep.subr.mxu0 0.0
    %6678 = vmatpush2.msra.mxu0 0.0
    %6679 = vmatprep.subr.mxu0 0.0
    %6680 = vmatpush2.msra.mxu0 0.0
    %6681 = vmatprep.mubr.f32.mxu0 0.0
    %6682 = vmatmul.mubr.f32.gmra.mxu0 %v6613
    %v6683 = vpop.f32.mrf.mxu0
    %v6684 = vadd.f32 0.0, %v6683
    %v6685 = vpop.f32.mrf.mxu0
    %6686 = vmatprep.mubr.f32.mxu0 0.0
    %6687 = vmatmul.mubr.f32.gmra.mxu0 %v6615
    %v6688 = vpop.f32.mrf.mxu0
    %v6689 = vadd.f32 0.0, %v6688
    %v6690 = vpop.f32.mrf.mxu0
    %6691 = vdwg.mxu0
    %v6694 = vrot.slane %v6684, 5
    %v6695 = vrot.slane %v6684, 6
    %v6696 = vrot.slane %v6684, 7
    %v6697 = vrot.slane %v6684, 1
    %v6698 = vrot.slane %v6684, 2
    %v6699 = vrot.slane %v6684, 3
    %v6700 = vrot.slane %v6684, 4
    %v6701 = vrot.slane %v6689, 5
    %v6702 = vrot.slane %v6689, 6
    %v6703 = vrot.slane %v6689, 7
    %v6704 = vrot.slane %v6689, 1
    %v6705 = vrot.slane %v6689, 2
    %v6706 = vrot.slane %v6689, 3
    %v6707 = vrot.slane %v6689, 4
    %v6724 = vadd.f32 %v253, %v6694
    %v6725 = vadd.f32 %v263, %v6695
    %v6726 = vadd.f32 %v273, %v6696
    %v6727 = vadd.f32 %v283, %v6684
    %v6728 = vadd.f32 %v293, %v6697
    %v6729 = vadd.f32 %v303, %v6698
    %v6730 = vadd.f32 %v313, %v6699
    %v6731 = vadd.f32 %v323, %v6700
    %v6732 = vadd.f32 %v333, %v6701
    %v6733 = vadd.f32 %v343, %v6702
    %v6734 = vadd.f32 %v353, %v6703
    %v6735 = vadd.f32 %v363, %v6689
    %v6736 = vadd.f32 %v373, %v6704
    %v6737 = vadd.f32 %v383, %v6705
    %v6738 = vadd.f32 %v393, %v6706
    %v6739 = vadd.f32 %v403, %v6707
    %v6740 = vtanh.pop %v6724
    %v6741 = vtanh.pop %v6725
    %v6742 = vtanh.pop %v6726
    %v6743 = vtanh.pop %v6727
    %v6744 = vtanh.pop %v6728
    %v6745 = vtanh.pop %v6729
    %v6746 = vtanh.pop %v6730
    %v6747 = vtanh.pop %v6731
    %v6748 = vtanh.pop %v6732
    %v6749 = vtanh.pop %v6733
    %v6750 = vtanh.pop %v6734
    %v6751 = vtanh.pop %v6735
    %v6752 = vtanh.pop %v6736
    %v6753 = vtanh.pop %v6737
    %v6754 = vtanh.pop %v6738
    %v6755 = vtanh.pop %v6739
    %v6756 = vmul.f32 %v6740, 0.5
    %v6757 = vmul.f32 %v6741, 0.5
    %v6758 = vmul.f32 %v6742, 0.5
    %v6759 = vmul.f32 %v6743, 0.5
    %v6760 = vmul.f32 %v6744, 0.5
    %v6761 = vmul.f32 %v6745, 0.5
    %v6762 = vmul.f32 %v6746, 0.5
    %v6763 = vmul.f32 %v6747, 0.5
    %v6764 = vmul.f32 %v6748, 0.5
    %v6765 = vmul.f32 %v6749, 0.5
    %v6766 = vmul.f32 %v6750, 0.5
    %v6767 = vmul.f32 %v6751, 0.5
    %v6768 = vmul.f32 %v6752, 0.5
    %v6769 = vmul.f32 %v6753, 0.5
    %v6770 = vmul.f32 %v6754, 0.5
    %v6771 = vmul.f32 %v6755, 0.5
    %v6772 = vadd.f32 %v6756, 0.5
    %v6773 = vadd.f32 %v6757, 0.5
    %v6774 = vadd.f32 %v6758, 0.5
    %v6775 = vadd.f32 %v6759, 0.5
    %v6776 = vadd.f32 %v6760, 0.5
    %v6777 = vadd.f32 %v6761, 0.5
    %v6778 = vadd.f32 %v6762, 0.5
    %v6779 = vadd.f32 %v6763, 0.5
    %v6780 = vadd.f32 %v6764, 0.5
    %v6781 = vadd.f32 %v6765, 0.5
    %v6782 = vadd.f32 %v6766, 0.5
    %v6783 = vadd.f32 %v6767, 0.5
    %v6784 = vadd.f32 %v6768, 0.5
    %v6785 = vadd.f32 %v6769, 0.5
    %v6786 = vadd.f32 %v6770, 0.5
    %v6787 = vadd.f32 %v6771, 0.5
    %v6804 = vrot.slane %v6441, 7
    %v6805 = vrot.slane %v6442, 7
    %v6806 = vrot.slane %v6443, 7
    %v6807 = vrot.slane %v6444, 7
    %v6808 = vrot.slane %v6445, 7
    %v6809 = vrot.slane %v6446, 7
    %v6810 = vrot.slane %v6447, 7
    %v6811 = vrot.slane %v6448, 7
    %v6812 = vrot.slane %v6449, 7
    %v6813 = vrot.slane %v6450, 7
    %v6814 = vrot.slane %v6451, 7
    %v6815 = vrot.slane %v6452, 7
    %v6816 = vrot.slane %v6453, 7
    %v6817 = vrot.slane %v6454, 7
    %v6818 = vrot.slane %v6455, 7
    %v6819 = vrot.slane %v6456, 7
    %v6836 = vmul.f32 %v6772, %v6804
    %v6837 = vmul.f32 %v6773, %v6805
    %v6838 = vmul.f32 %v6774, %v6806
    %v6839 = vmul.f32 %v6775, %v6807
    %v6840 = vmul.f32 %v6776, %v6808
    %v6841 = vmul.f32 %v6777, %v6809
    %v6842 = vmul.f32 %v6778, %v6810
    %v6843 = vmul.f32 %v6779, %v6811
    %v6844 = vmul.f32 %v6780, %v6812
    %v6845 = vmul.f32 %v6781, %v6813
    %v6846 = vmul.f32 %v6782, %v6814
    %v6847 = vmul.f32 %v6783, %v6815
    %v6848 = vmul.f32 %v6784, %v6816
    %v6849 = vmul.f32 %v6785, %v6817
    %v6850 = vmul.f32 %v6786, %v6818
    %v6851 = vmul.f32 %v6787, %v6819
    %6868 = vrot.lane.b32.xlu0 %v6740, 64
    %v6869 = vpop.permute.xlu0 %6868
    %6870 = vrot.lane.b32.xlu0 %v6741, 64
    %v6871 = vpop.permute.xlu0 %6870
    %6872 = vrot.lane.b32.xlu0 %v6742, 64
    %v6873 = vpop.permute.xlu0 %6872
    %6874 = vrot.lane.b32.xlu0 %v6743, 64
    %v6875 = vpop.permute.xlu0 %6874
    %6876 = vrot.lane.b32.xlu0 %v6744, 64
    %v6877 = vpop.permute.xlu0 %6876
    %6878 = vrot.lane.b32.xlu0 %v6745, 64
    %v6879 = vpop.permute.xlu0 %6878
    %6880 = vrot.lane.b32.xlu0 %v6746, 64
    %v6881 = vpop.permute.xlu0 %6880
    %6882 = vrot.lane.b32.xlu0 %v6747, 64
    %v6883 = vpop.permute.xlu0 %6882
    %6884 = vrot.lane.b32.xlu0 %v6748, 64
    %v6885 = vpop.permute.xlu0 %6884
    %6886 = vrot.lane.b32.xlu0 %v6749, 64
    %v6887 = vpop.permute.xlu0 %6886
    %6888 = vrot.lane.b32.xlu0 %v6750, 64
    %v6889 = vpop.permute.xlu0 %6888
    %6890 = vrot.lane.b32.xlu0 %v6751, 64
    %v6891 = vpop.permute.xlu0 %6890
    %6892 = vrot.lane.b32.xlu0 %v6752, 64
    %v6893 = vpop.permute.xlu0 %6892
    %6894 = vrot.lane.b32.xlu0 %v6753, 64
    %v6895 = vpop.permute.xlu0 %6894
    %6896 = vrot.lane.b32.xlu0 %v6754, 64
    %v6897 = vpop.permute.xlu0 %6896
    %6898 = vrot.lane.b32.xlu0 %v6755, 64
    %v6899 = vpop.permute.xlu0 %6898
    %v6916 = vmul.f32 %v6772, %v6869
    %v6917 = vmul.f32 %v6773, %v6871
    %v6918 = vmul.f32 %v6774, %v6873
    %v6919 = vmul.f32 %v6775, %v6875
    %v6920 = vmul.f32 %v6776, %v6877
    %v6921 = vmul.f32 %v6777, %v6879
    %v6922 = vmul.f32 %v6778, %v6881
    %v6923 = vmul.f32 %v6779, %v6883
    %v6924 = vmul.f32 %v6780, %v6885
    %v6925 = vmul.f32 %v6781, %v6887
    %v6926 = vmul.f32 %v6782, %v6889
    %v6927 = vmul.f32 %v6783, %v6891
    %v6928 = vmul.f32 %v6784, %v6893
    %v6929 = vmul.f32 %v6785, %v6895
    %v6930 = vmul.f32 %v6786, %v6897
    %v6931 = vmul.f32 %v6787, %v6899
    %6948 = vrot.lane.b32.xlu0 %v6916, 32
    %v6949 = vpop.permute.xlu0 %6948
    %6950 = vrot.lane.b32.xlu0 %v6917, 32
    %v6951 = vpop.permute.xlu0 %6950
    %6952 = vrot.lane.b32.xlu0 %v6918, 32
    %v6953 = vpop.permute.xlu0 %6952
    %6954 = vrot.lane.b32.xlu0 %v6919, 32
    %v6955 = vpop.permute.xlu0 %6954
    %6956 = vrot.lane.b32.xlu0 %v6920, 32
    %v6957 = vpop.permute.xlu0 %6956
    %6958 = vrot.lane.b32.xlu0 %v6921, 32
    %v6959 = vpop.permute.xlu0 %6958
    %6960 = vrot.lane.b32.xlu0 %v6922, 32
    %v6961 = vpop.permute.xlu0 %6960
    %6962 = vrot.lane.b32.xlu0 %v6923, 32
    %v6963 = vpop.permute.xlu0 %6962
    %6964 = vrot.lane.b32.xlu0 %v6924, 32
    %v6965 = vpop.permute.xlu0 %6964
    %6966 = vrot.lane.b32.xlu0 %v6925, 32
    %v6967 = vpop.permute.xlu0 %6966
    %6968 = vrot.lane.b32.xlu0 %v6926, 32
    %v6969 = vpop.permute.xlu0 %6968
    %6970 = vrot.lane.b32.xlu0 %v6927, 32
    %v6971 = vpop.permute.xlu0 %6970
    %6972 = vrot.lane.b32.xlu0 %v6928, 32
    %v6973 = vpop.permute.xlu0 %6972
    %6974 = vrot.lane.b32.xlu0 %v6929, 32
    %v6975 = vpop.permute.xlu0 %6974
    %6976 = vrot.lane.b32.xlu0 %v6930, 32
    %v6977 = vpop.permute.xlu0 %6976
    %6978 = vrot.lane.b32.xlu0 %v6931, 32
    %v6979 = vpop.permute.xlu0 %6978
    %v6996 = vadd.f32 %v6836, %v6949
    %v6997 = vadd.f32 %v6837, %v6951
    %v6998 = vadd.f32 %v6838, %v6953
    %v6999 = vadd.f32 %v6839, %v6955
    %v7000 = vadd.f32 %v6840, %v6957
    %v7001 = vadd.f32 %v6841, %v6959
    %v7002 = vadd.f32 %v6842, %v6961
    %v7003 = vadd.f32 %v6843, %v6963
    %v7004 = vadd.f32 %v6844, %v6965
    %v7005 = vadd.f32 %v6845, %v6967
    %v7006 = vadd.f32 %v6846, %v6969
    %v7007 = vadd.f32 %v6847, %v6971
    %v7008 = vadd.f32 %v6848, %v6973
    %v7009 = vadd.f32 %v6849, %v6975
    %v7010 = vadd.f32 %v6850, %v6977
    %v7011 = vadd.f32 %v6851, %v6979
    %v7012 = vtanh.pop %v6996
    %v7013 = vtanh.pop %v6997
    %v7014 = vtanh.pop %v6998
    %v7015 = vtanh.pop %v6999
    %v7016 = vtanh.pop %v7000
    %v7017 = vtanh.pop %v7001
    %v7018 = vtanh.pop %v7002
    %v7019 = vtanh.pop %v7003
    %v7020 = vtanh.pop %v7004
    %v7021 = vtanh.pop %v7005
    %v7022 = vtanh.pop %v7006
    %v7023 = vtanh.pop %v7007
    %v7024 = vtanh.pop %v7008
    %v7025 = vtanh.pop %v7009
    %v7026 = vtanh.pop %v7010
    %v7027 = vtanh.pop %v7011
    %7044 = vrot.lane.b32.xlu0 %v7012, 64
    %v7045 = vpop.permute.xlu0 %7044
    %7046 = vrot.lane.b32.xlu0 %v7013, 64
    %v7047 = vpop.permute.xlu0 %7046
    %7048 = vrot.lane.b32.xlu0 %v7014, 64
    %v7049 = vpop.permute.xlu0 %7048
    %7050 = vrot.lane.b32.xlu0 %v7015, 64
    %v7051 = vpop.permute.xlu0 %7050
    %7052 = vrot.lane.b32.xlu0 %v7016, 64
    %v7053 = vpop.permute.xlu0 %7052
    %7054 = vrot.lane.b32.xlu0 %v7017, 64
    %v7055 = vpop.permute.xlu0 %7054
    %7056 = vrot.lane.b32.xlu0 %v7018, 64
    %v7057 = vpop.permute.xlu0 %7056
    %7058 = vrot.lane.b32.xlu0 %v7019, 64
    %v7059 = vpop.permute.xlu0 %7058
    %7060 = vrot.lane.b32.xlu0 %v7020, 64
    %v7061 = vpop.permute.xlu0 %7060
    %7062 = vrot.lane.b32.xlu0 %v7021, 64
    %v7063 = vpop.permute.xlu0 %7062
    %7064 = vrot.lane.b32.xlu0 %v7022, 64
    %v7065 = vpop.permute.xlu0 %7064
    %7066 = vrot.lane.b32.xlu0 %v7023, 64
    %v7067 = vpop.permute.xlu0 %7066
    %7068 = vrot.lane.b32.xlu0 %v7024, 64
    %v7069 = vpop.permute.xlu0 %7068
    %7070 = vrot.lane.b32.xlu0 %v7025, 64
    %v7071 = vpop.permute.xlu0 %7070
    %7072 = vrot.lane.b32.xlu0 %v7026, 64
    %v7073 = vpop.permute.xlu0 %7072
    %7074 = vrot.lane.b32.xlu0 %v7027, 64
    %v7075 = vpop.permute.xlu0 %7074
    %v7092 = vmul.f32 %v6772, %v7045
    %v7093 = vmul.f32 %v6773, %v7047
    %v7094 = vmul.f32 %v6774, %v7049
    %v7095 = vmul.f32 %v6775, %v7051
    %v7096 = vmul.f32 %v6776, %v7053
    %v7097 = vmul.f32 %v6777, %v7055
    %v7098 = vmul.f32 %v6778, %v7057
    %v7099 = vmul.f32 %v6779, %v7059
    %v7100 = vmul.f32 %v6780, %v7061
    %v7101 = vmul.f32 %v6781, %v7063
    %v7102 = vmul.f32 %v6782, %v7065
    %v7103 = vmul.f32 %v6783, %v7067
    %v7104 = vmul.f32 %v6784, %v7069
    %v7105 = vmul.f32 %v6785, %v7071
    %v7106 = vmul.f32 %v6786, %v7073
    %v7107 = vmul.f32 %v6787, %v7075
    %v7124 = vrot.slane %v7092, 3
    %v7125 = vrot.slane %v7093, 2
    %v7126 = vsel %vm1030, %v7125, %v7124
    %v7127 = vrot.slane %v7094, 1
    %v7128 = vsel %vm1033, %v7127, %v7126
    %v7129 = vsel %vm1036, %v7095, %v7128
    %v7130 = vrot.slane %v7096, 7
    %v7131 = vsel %vm1039, %v7130, %v7129
    %v7132 = vrot.slane %v7097, 6
    %v7133 = vsel %vm1042, %v7132, %v7131
    %v7134 = vrot.slane %v7098, 5
    %v7135 = vsel %vm1045, %v7134, %v7133
    %v7136 = vrot.slane %v7099, 4
    %v7137 = vsel %vm1048, %v7136, %v7135
    %v7138 = vrot.slane %v7100, 3
    %v7139 = vrot.slane %v7101, 2
    %v7140 = vsel %vm1030, %v7139, %v7138
    %v7141 = vrot.slane %v7102, 1
    %v7142 = vsel %vm1033, %v7141, %v7140
    %v7143 = vsel %vm1036, %v7103, %v7142
    %v7144 = vrot.slane %v7104, 7
    %v7145 = vsel %vm1039, %v7144, %v7143
    %v7146 = vrot.slane %v7105, 6
    %v7147 = vsel %vm1042, %v7146, %v7145
    %v7148 = vrot.slane %v7106, 5
    %v7149 = vsel %vm1045, %v7148, %v7147
    %v7150 = vrot.slane %v7107, 4
    %v7151 = vsel %vm1048, %v7150, %v7149
    %7154 = vst.msk [vmem:[#allocation2 + $0x10] sm:$0xff] %vm2729, %v7137
    %7155 = vst.msk [vmem:[#allocation2 + $0x30] sm:$0xff] %vm2729, %v7151
    %v7156 = vld [vmem:[%s4] sm:$0xff]
    %v7157 = vld [vmem:[%s4 + $0x8] sm:$0xff]
    %v7158 = vld [vmem:[%s4 + $0x10] sm:$0xff]
    %v7159 = vld [vmem:[%s4 + $0x18] sm:$0xff]
    %7160 = vrot.lane.b32.xlu0 %v7137, 32
    %v7161 = vpop.permute.xlu0 %7160
    %7162 = vrot.lane.b32.xlu0 %v7151, 32
    %v7163 = vpop.permute.xlu0 %7162
    %v7164 = vsel %vm416, %v7161, 0
    %v7166 = vsel %vm416, %v7163, 0
    %7168 = vmatprep.subr.mxu0 0.0
    %7169 = vmatpush1.msra.mxu0 0.0
    %7170 = vmatprep.subr.mxu0 0.0
    %7171 = vmatpush1.msra.mxu0 0.0
    %7172 = vmatprep.subr.mxu0 0.0
    %7173 = vmatpush1.msra.mxu0 0.0
    %7174 = vmatprep.subr.mxu0 0.0
    %7175 = vmatpush1.msra.mxu0 0.0
    %7176 = vmatprep.subr.mxu0 0.0
    %7177 = vmatpush1.msra.mxu0 0.0
    %7178 = vmatprep.subr.mxu0 0.0
    %7179 = vmatpush1.msra.mxu0 0.0
    %7180 = vmatprep.subr.mxu0 0.0
    %7181 = vmatpush1.msra.mxu0 0.0
    %7182 = vmatprep.subr.mxu0 0.0
    %7183 = vmatpush1.msra.mxu0 0.0
    %7184 = vmatprep.subr.mxu0 0.0
    %7185 = vmatpush1.msra.mxu0 0.0
    %7186 = vmatprep.subr.mxu0 0.0
    %7187 = vmatpush1.msra.mxu0 0.0
    %7188 = vmatprep.subr.mxu0 0.0
    %7189 = vmatpush1.msra.mxu0 0.0
    %7190 = vmatprep.subr.mxu0 0.0
    %7191 = vmatpush1.msra.mxu0 0.0
    %7192 = vmatprep.subr.mxu0 0.0
    %7193 = vmatpush1.msra.mxu0 %v7159
    %7194 = vmatprep.subr.mxu0 0.0
    %7195 = vmatpush1.msra.mxu0 %v7158
    %7196 = vmatprep.subr.mxu0 0.0
    %7197 = vmatpush1.msra.mxu0 %v7157
    %7198 = vmatprep.subr.mxu0 0.0
    %7199 = vmatpush1.msra.mxu0 %v7156
    %7200 = vmatprep.subr.mxu0 0.0
    %7201 = vmatpush2.msra.mxu0 0.0
    %7202 = vmatprep.subr.mxu0 0.0
    %7203 = vmatpush2.msra.mxu0 0.0
    %7204 = vmatprep.subr.mxu0 0.0
    %7205 = vmatpush2.msra.mxu0 0.0
    %7206 = vmatprep.subr.mxu0 0.0
    %7207 = vmatpush2.msra.mxu0 0.0
    %7208 = vmatprep.subr.mxu0 0.0
    %7209 = vmatpush2.msra.mxu0 0.0
    %7210 = vmatprep.subr.mxu0 0.0
    %7211 = vmatpush2.msra.mxu0 0.0
    %7212 = vmatprep.subr.mxu0 0.0
    %7213 = vmatpush2.msra.mxu0 0.0
    %7214 = vmatprep.subr.mxu0 0.0
    %7215 = vmatpush2.msra.mxu0 0.0
    %7216 = vmatprep.subr.mxu0 0.0
    %7217 = vmatpush2.msra.mxu0 0.0
    %7218 = vmatprep.subr.mxu0 0.0
    %7219 = vmatpush2.msra.mxu0 0.0
    %7220 = vmatprep.subr.mxu0 0.0
    %7221 = vmatpush2.msra.mxu0 0.0
    %7222 = vmatprep.subr.mxu0 0.0
    %7223 = vmatpush2.msra.mxu0 0.0
    %7224 = vmatprep.subr.mxu0 0.0
    %7225 = vmatpush2.msra.mxu0 0.0
    %7226 = vmatprep.subr.mxu0 0.0
    %7227 = vmatpush2.msra.mxu0 0.0
    %7228 = vmatprep.subr.mxu0 0.0
    %7229 = vmatpush2.msra.mxu0 0.0
    %7230 = vmatprep.subr.mxu0 0.0
    %7231 = vmatpush2.msra.mxu0 0.0
    %7232 = vmatprep.mubr.f32.mxu0 0.0
    %7233 = vmatmul.mubr.f32.gmra.mxu0 %v7164
    %v7234 = vpop.f32.mrf.mxu0
    %v7235 = vadd.f32 0.0, %v7234
    %v7236 = vpop.f32.mrf.mxu0
    %7237 = vmatprep.mubr.f32.mxu0 0.0
    %7238 = vmatmul.mubr.f32.gmra.mxu0 %v7166
    %v7239 = vpop.f32.mrf.mxu0
    %v7240 = vadd.f32 0.0, %v7239
    %v7241 = vpop.f32.mrf.mxu0
    %7242 = vdwg.mxu0
    %v7245 = vrot.slane %v7235, 4
    %v7246 = vrot.slane %v7235, 5
    %v7247 = vrot.slane %v7235, 6
    %v7248 = vrot.slane %v7235, 7
    %v7249 = vrot.slane %v7235, 1
    %v7250 = vrot.slane %v7235, 2
    %v7251 = vrot.slane %v7235, 3
    %v7252 = vrot.slane %v7240, 4
    %v7253 = vrot.slane %v7240, 5
    %v7254 = vrot.slane %v7240, 6
    %v7255 = vrot.slane %v7240, 7
    %v7256 = vrot.slane %v7240, 1
    %v7257 = vrot.slane %v7240, 2
    %v7258 = vrot.slane %v7240, 3
    %v7275 = vadd.f32 %v253, %v7245
    %v7276 = vadd.f32 %v263, %v7246
    %v7277 = vadd.f32 %v273, %v7247
    %v7278 = vadd.f32 %v283, %v7248
    %v7279 = vadd.f32 %v293, %v7235
    %v7280 = vadd.f32 %v303, %v7249
    %v7281 = vadd.f32 %v313, %v7250
    %v7282 = vadd.f32 %v323, %v7251
    %v7283 = vadd.f32 %v333, %v7252
    %v7284 = vadd.f32 %v343, %v7253
    %v7285 = vadd.f32 %v353, %v7254
    %v7286 = vadd.f32 %v363, %v7255
    %v7287 = vadd.f32 %v373, %v7240
    %v7288 = vadd.f32 %v383, %v7256
    %v7289 = vadd.f32 %v393, %v7257
    %v7290 = vadd.f32 %v403, %v7258
    %v7291 = vtanh.pop %v7275
    %v7292 = vtanh.pop %v7276
    %v7293 = vtanh.pop %v7277
    %v7294 = vtanh.pop %v7278
    %v7295 = vtanh.pop %v7279
    %v7296 = vtanh.pop %v7280
    %v7297 = vtanh.pop %v7281
    %v7298 = vtanh.pop %v7282
    %v7299 = vtanh.pop %v7283
    %v7300 = vtanh.pop %v7284
    %v7301 = vtanh.pop %v7285
    %v7302 = vtanh.pop %v7286
    %v7303 = vtanh.pop %v7287
    %v7304 = vtanh.pop %v7288
    %v7305 = vtanh.pop %v7289
    %v7306 = vtanh.pop %v7290
    %v7307 = vmul.f32 %v7291, 0.5
    %v7308 = vmul.f32 %v7292, 0.5
    %v7309 = vmul.f32 %v7293, 0.5
    %v7310 = vmul.f32 %v7294, 0.5
    %v7311 = vmul.f32 %v7295, 0.5
    %v7312 = vmul.f32 %v7296, 0.5
    %v7313 = vmul.f32 %v7297, 0.5
    %v7314 = vmul.f32 %v7298, 0.5
    %v7315 = vmul.f32 %v7299, 0.5
    %v7316 = vmul.f32 %v7300, 0.5
    %v7317 = vmul.f32 %v7301, 0.5
    %v7318 = vmul.f32 %v7302, 0.5
    %v7319 = vmul.f32 %v7303, 0.5
    %v7320 = vmul.f32 %v7304, 0.5
    %v7321 = vmul.f32 %v7305, 0.5
    %v7322 = vmul.f32 %v7306, 0.5
    %v7323 = vadd.f32 %v7307, 0.5
    %v7324 = vadd.f32 %v7308, 0.5
    %v7325 = vadd.f32 %v7309, 0.5
    %v7326 = vadd.f32 %v7310, 0.5
    %v7327 = vadd.f32 %v7311, 0.5
    %v7328 = vadd.f32 %v7312, 0.5
    %v7329 = vadd.f32 %v7313, 0.5
    %v7330 = vadd.f32 %v7314, 0.5
    %v7331 = vadd.f32 %v7315, 0.5
    %v7332 = vadd.f32 %v7316, 0.5
    %v7333 = vadd.f32 %v7317, 0.5
    %v7334 = vadd.f32 %v7318, 0.5
    %v7335 = vadd.f32 %v7319, 0.5
    %v7336 = vadd.f32 %v7320, 0.5
    %v7337 = vadd.f32 %v7321, 0.5
    %v7338 = vadd.f32 %v7322, 0.5
    %v7355 = vrot.slane %v6996, 7
    %v7356 = vrot.slane %v6997, 7
    %v7357 = vrot.slane %v6998, 7
    %v7358 = vrot.slane %v6999, 7
    %v7359 = vrot.slane %v7000, 7
    %v7360 = vrot.slane %v7001, 7
    %v7361 = vrot.slane %v7002, 7
    %v7362 = vrot.slane %v7003, 7
    %v7363 = vrot.slane %v7004, 7
    %v7364 = vrot.slane %v7005, 7
    %v7365 = vrot.slane %v7006, 7
    %v7366 = vrot.slane %v7007, 7
    %v7367 = vrot.slane %v7008, 7
    %v7368 = vrot.slane %v7009, 7
    %v7369 = vrot.slane %v7010, 7
    %v7370 = vrot.slane %v7011, 7
    %v7387 = vmul.f32 %v7323, %v7355
    %v7388 = vmul.f32 %v7324, %v7356
    %v7389 = vmul.f32 %v7325, %v7357
    %v7390 = vmul.f32 %v7326, %v7358
    %v7391 = vmul.f32 %v7327, %v7359
    %v7392 = vmul.f32 %v7328, %v7360
    %v7393 = vmul.f32 %v7329, %v7361
    %v7394 = vmul.f32 %v7330, %v7362
    %v7395 = vmul.f32 %v7331, %v7363
    %v7396 = vmul.f32 %v7332, %v7364
    %v7397 = vmul.f32 %v7333, %v7365
    %v7398 = vmul.f32 %v7334, %v7366
    %v7399 = vmul.f32 %v7335, %v7367
    %v7400 = vmul.f32 %v7336, %v7368
    %v7401 = vmul.f32 %v7337, %v7369
    %v7402 = vmul.f32 %v7338, %v7370
    %7419 = vrot.lane.b32.xlu0 %v7291, 64
    %v7420 = vpop.permute.xlu0 %7419
    %7421 = vrot.lane.b32.xlu0 %v7292, 64
    %v7422 = vpop.permute.xlu0 %7421
    %7423 = vrot.lane.b32.xlu0 %v7293, 64
    %v7424 = vpop.permute.xlu0 %7423
    %7425 = vrot.lane.b32.xlu0 %v7294, 64
    %v7426 = vpop.permute.xlu0 %7425
    %7427 = vrot.lane.b32.xlu0 %v7295, 64
    %v7428 = vpop.permute.xlu0 %7427
    %7429 = vrot.lane.b32.xlu0 %v7296, 64
    %v7430 = vpop.permute.xlu0 %7429
    %7431 = vrot.lane.b32.xlu0 %v7297, 64
    %v7432 = vpop.permute.xlu0 %7431
    %7433 = vrot.lane.b32.xlu0 %v7298, 64
    %v7434 = vpop.permute.xlu0 %7433
    %7435 = vrot.lane.b32.xlu0 %v7299, 64
    %v7436 = vpop.permute.xlu0 %7435
    %7437 = vrot.lane.b32.xlu0 %v7300, 64
    %v7438 = vpop.permute.xlu0 %7437
    %7439 = vrot.lane.b32.xlu0 %v7301, 64
    %v7440 = vpop.permute.xlu0 %7439
    %7441 = vrot.lane.b32.xlu0 %v7302, 64
    %v7442 = vpop.permute.xlu0 %7441
    %7443 = vrot.lane.b32.xlu0 %v7303, 64
    %v7444 = vpop.permute.xlu0 %7443
    %7445 = vrot.lane.b32.xlu0 %v7304, 64
    %v7446 = vpop.permute.xlu0 %7445
    %7447 = vrot.lane.b32.xlu0 %v7305, 64
    %v7448 = vpop.permute.xlu0 %7447
    %7449 = vrot.lane.b32.xlu0 %v7306, 64
    %v7450 = vpop.permute.xlu0 %7449
    %v7467 = vmul.f32 %v7323, %v7420
    %v7468 = vmul.f32 %v7324, %v7422
    %v7469 = vmul.f32 %v7325, %v7424
    %v7470 = vmul.f32 %v7326, %v7426
    %v7471 = vmul.f32 %v7327, %v7428
    %v7472 = vmul.f32 %v7328, %v7430
    %v7473 = vmul.f32 %v7329, %v7432
    %v7474 = vmul.f32 %v7330, %v7434
    %v7475 = vmul.f32 %v7331, %v7436
    %v7476 = vmul.f32 %v7332, %v7438
    %v7477 = vmul.f32 %v7333, %v7440
    %v7478 = vmul.f32 %v7334, %v7442
    %v7479 = vmul.f32 %v7335, %v7444
    %v7480 = vmul.f32 %v7336, %v7446
    %v7481 = vmul.f32 %v7337, %v7448
    %v7482 = vmul.f32 %v7338, %v7450
    %7499 = vrot.lane.b32.xlu0 %v7467, 32
    %v7500 = vpop.permute.xlu0 %7499
    %7501 = vrot.lane.b32.xlu0 %v7468, 32
    %v7502 = vpop.permute.xlu0 %7501
    %7503 = vrot.lane.b32.xlu0 %v7469, 32
    %v7504 = vpop.permute.xlu0 %7503
    %7505 = vrot.lane.b32.xlu0 %v7470, 32
    %v7506 = vpop.permute.xlu0 %7505
    %7507 = vrot.lane.b32.xlu0 %v7471, 32
    %v7508 = vpop.permute.xlu0 %7507
    %7509 = vrot.lane.b32.xlu0 %v7472, 32
    %v7510 = vpop.permute.xlu0 %7509
    %7511 = vrot.lane.b32.xlu0 %v7473, 32
    %v7512 = vpop.permute.xlu0 %7511
    %7513 = vrot.lane.b32.xlu0 %v7474, 32
    %v7514 = vpop.permute.xlu0 %7513
    %7515 = vrot.lane.b32.xlu0 %v7475, 32
    %v7516 = vpop.permute.xlu0 %7515
    %7517 = vrot.lane.b32.xlu0 %v7476, 32
    %v7518 = vpop.permute.xlu0 %7517
    %7519 = vrot.lane.b32.xlu0 %v7477, 32
    %v7520 = vpop.permute.xlu0 %7519
    %7521 = vrot.lane.b32.xlu0 %v7478, 32
    %v7522 = vpop.permute.xlu0 %7521
    %7523 = vrot.lane.b32.xlu0 %v7479, 32
    %v7524 = vpop.permute.xlu0 %7523
    %7525 = vrot.lane.b32.xlu0 %v7480, 32
    %v7526 = vpop.permute.xlu0 %7525
    %7527 = vrot.lane.b32.xlu0 %v7481, 32
    %v7528 = vpop.permute.xlu0 %7527
    %7529 = vrot.lane.b32.xlu0 %v7482, 32
    %v7530 = vpop.permute.xlu0 %7529
    %v7547 = vadd.f32 %v7387, %v7500
    %v7548 = vadd.f32 %v7388, %v7502
    %v7549 = vadd.f32 %v7389, %v7504
    %v7550 = vadd.f32 %v7390, %v7506
    %v7551 = vadd.f32 %v7391, %v7508
    %v7552 = vadd.f32 %v7392, %v7510
    %v7553 = vadd.f32 %v7393, %v7512
    %v7554 = vadd.f32 %v7394, %v7514
    %v7555 = vadd.f32 %v7395, %v7516
    %v7556 = vadd.f32 %v7396, %v7518
    %v7557 = vadd.f32 %v7397, %v7520
    %v7558 = vadd.f32 %v7398, %v7522
    %v7559 = vadd.f32 %v7399, %v7524
    %v7560 = vadd.f32 %v7400, %v7526
    %v7561 = vadd.f32 %v7401, %v7528
    %v7562 = vadd.f32 %v7402, %v7530
    %v7563 = vtanh.pop %v7547
    %v7564 = vtanh.pop %v7548
    %v7565 = vtanh.pop %v7549
    %v7566 = vtanh.pop %v7550
    %v7567 = vtanh.pop %v7551
    %v7568 = vtanh.pop %v7552
    %v7569 = vtanh.pop %v7553
    %v7570 = vtanh.pop %v7554
    %v7571 = vtanh.pop %v7555
    %v7572 = vtanh.pop %v7556
    %v7573 = vtanh.pop %v7557
    %v7574 = vtanh.pop %v7558
    %v7575 = vtanh.pop %v7559
    %v7576 = vtanh.pop %v7560
    %v7577 = vtanh.pop %v7561
    %v7578 = vtanh.pop %v7562
    %7595 = vrot.lane.b32.xlu0 %v7563, 64
    %v7596 = vpop.permute.xlu0 %7595
    %7597 = vrot.lane.b32.xlu0 %v7564, 64
    %v7598 = vpop.permute.xlu0 %7597
    %7599 = vrot.lane.b32.xlu0 %v7565, 64
    %v7600 = vpop.permute.xlu0 %7599
    %7601 = vrot.lane.b32.xlu0 %v7566, 64
    %v7602 = vpop.permute.xlu0 %7601
    %7603 = vrot.lane.b32.xlu0 %v7567, 64
    %v7604 = vpop.permute.xlu0 %7603
    %7605 = vrot.lane.b32.xlu0 %v7568, 64
    %v7606 = vpop.permute.xlu0 %7605
    %7607 = vrot.lane.b32.xlu0 %v7569, 64
    %v7608 = vpop.permute.xlu0 %7607
    %7609 = vrot.lane.b32.xlu0 %v7570, 64
    %v7610 = vpop.permute.xlu0 %7609
    %7611 = vrot.lane.b32.xlu0 %v7571, 64
    %v7612 = vpop.permute.xlu0 %7611
    %7613 = vrot.lane.b32.xlu0 %v7572, 64
    %v7614 = vpop.permute.xlu0 %7613
    %7615 = vrot.lane.b32.xlu0 %v7573, 64
    %v7616 = vpop.permute.xlu0 %7615
    %7617 = vrot.lane.b32.xlu0 %v7574, 64
    %v7618 = vpop.permute.xlu0 %7617
    %7619 = vrot.lane.b32.xlu0 %v7575, 64
    %v7620 = vpop.permute.xlu0 %7619
    %7621 = vrot.lane.b32.xlu0 %v7576, 64
    %v7622 = vpop.permute.xlu0 %7621
    %7623 = vrot.lane.b32.xlu0 %v7577, 64
    %v7624 = vpop.permute.xlu0 %7623
    %7625 = vrot.lane.b32.xlu0 %v7578, 64
    %v7626 = vpop.permute.xlu0 %7625
    %v7643 = vmul.f32 %v7323, %v7596
    %v7644 = vmul.f32 %v7324, %v7598
    %v7645 = vmul.f32 %v7325, %v7600
    %v7646 = vmul.f32 %v7326, %v7602
    %v7647 = vmul.f32 %v7327, %v7604
    %v7648 = vmul.f32 %v7328, %v7606
    %v7649 = vmul.f32 %v7329, %v7608
    %v7650 = vmul.f32 %v7330, %v7610
    %v7651 = vmul.f32 %v7331, %v7612
    %v7652 = vmul.f32 %v7332, %v7614
    %v7653 = vmul.f32 %v7333, %v7616
    %v7654 = vmul.f32 %v7334, %v7618
    %v7655 = vmul.f32 %v7335, %v7620
    %v7656 = vmul.f32 %v7336, %v7622
    %v7657 = vmul.f32 %v7337, %v7624
    %v7658 = vmul.f32 %v7338, %v7626
    %v7675 = vrot.slane %v7643, 4
    %v7676 = vrot.slane %v7644, 3
    %v7677 = vsel %vm1030, %v7676, %v7675
    %v7678 = vrot.slane %v7645, 2
    %v7679 = vsel %vm1033, %v7678, %v7677
    %v7680 = vrot.slane %v7646, 1
    %v7681 = vsel %vm1036, %v7680, %v7679
    %v7682 = vsel %vm1039, %v7647, %v7681
    %v7683 = vrot.slane %v7648, 7
    %v7684 = vsel %vm1042, %v7683, %v7682
    %v7685 = vrot.slane %v7649, 6
    %v7686 = vsel %vm1045, %v7685, %v7684
    %v7687 = vrot.slane %v7650, 5
    %v7688 = vsel %vm1048, %v7687, %v7686
    %v7689 = vrot.slane %v7651, 4
    %v7690 = vrot.slane %v7652, 3
    %v7691 = vsel %vm1030, %v7690, %v7689
    %v7692 = vrot.slane %v7653, 2
    %v7693 = vsel %vm1033, %v7692, %v7691
    %v7694 = vrot.slane %v7654, 1
    %v7695 = vsel %vm1036, %v7694, %v7693
    %v7696 = vsel %vm1039, %v7655, %v7695
    %v7697 = vrot.slane %v7656, 7
    %v7698 = vsel %vm1042, %v7697, %v7696
    %v7699 = vrot.slane %v7657, 6
    %v7700 = vsel %vm1045, %v7699, %v7698
    %v7701 = vrot.slane %v7658, 5
    %v7702 = vsel %vm1048, %v7701, %v7700
    %7703 = vrot.lane.b32.xlu0 %v7688, 32
    %v7704 = vpop.permute.xlu0 %7703
    %7705 = vrot.lane.b32.xlu0 %v7702, 32
    %v7706 = vpop.permute.xlu0 %7705
    %7709 = vst.msk [vmem:[#allocation2 + $0x18] sm:$0xff] %vm416, %v7704
    %7710 = vst.msk [vmem:[#allocation2 + $0x38] sm:$0xff] %vm416, %v7706
    %v7711 = vld [vmem:[%s4] sm:$0xff]
    %v7712 = vld [vmem:[%s4 + $0x8] sm:$0xff]
    %v7713 = vld [vmem:[%s4 + $0x10] sm:$0xff]
    %v7714 = vld [vmem:[%s4 + $0x18] sm:$0xff]
    %v7715 = vsel %vm416, %v7704, 0
    %v7717 = vsel %vm416, %v7706, 0
    %7719 = vmatprep.subr.mxu0 0.0
    %7720 = vmatpush1.msra.mxu0 0.0
    %7721 = vmatprep.subr.mxu0 0.0
    %7722 = vmatpush1.msra.mxu0 0.0
    %7723 = vmatprep.subr.mxu0 0.0
    %7724 = vmatpush1.msra.mxu0 0.0
    %7725 = vmatprep.subr.mxu0 0.0
    %7726 = vmatpush1.msra.mxu0 0.0
    %7727 = vmatprep.subr.mxu0 0.0
    %7728 = vmatpush1.msra.mxu0 0.0
    %7729 = vmatprep.subr.mxu0 0.0
    %7730 = vmatpush1.msra.mxu0 0.0
    %7731 = vmatprep.subr.mxu0 0.0
    %7732 = vmatpush1.msra.mxu0 0.0
    %7733 = vmatprep.subr.mxu0 0.0
    %7734 = vmatpush1.msra.mxu0 0.0
    %7735 = vmatprep.subr.mxu0 0.0
    %7736 = vmatpush1.msra.mxu0 0.0
    %7737 = vmatprep.subr.mxu0 0.0
    %7738 = vmatpush1.msra.mxu0 0.0
    %7739 = vmatprep.subr.mxu0 0.0
    %7740 = vmatpush1.msra.mxu0 0.0
    %7741 = vmatprep.subr.mxu0 0.0
    %7742 = vmatpush1.msra.mxu0 0.0
    %7743 = vmatprep.subr.mxu0 0.0
    %7744 = vmatpush1.msra.mxu0 %v7714
    %7745 = vmatprep.subr.mxu0 0.0
    %7746 = vmatpush1.msra.mxu0 %v7713
    %7747 = vmatprep.subr.mxu0 0.0
    %7748 = vmatpush1.msra.mxu0 %v7712
    %7749 = vmatprep.subr.mxu0 0.0
    %7750 = vmatpush1.msra.mxu0 %v7711
    %7751 = vmatprep.subr.mxu0 0.0
    %7752 = vmatpush2.msra.mxu0 0.0
    %7753 = vmatprep.subr.mxu0 0.0
    %7754 = vmatpush2.msra.mxu0 0.0
    %7755 = vmatprep.subr.mxu0 0.0
    %7756 = vmatpush2.msra.mxu0 0.0
    %7757 = vmatprep.subr.mxu0 0.0
    %7758 = vmatpush2.msra.mxu0 0.0
    %7759 = vmatprep.subr.mxu0 0.0
    %7760 = vmatpush2.msra.mxu0 0.0
    %7761 = vmatprep.subr.mxu0 0.0
    %7762 = vmatpush2.msra.mxu0 0.0
    %7763 = vmatprep.subr.mxu0 0.0
    %7764 = vmatpush2.msra.mxu0 0.0
    %7765 = vmatprep.subr.mxu0 0.0
    %7766 = vmatpush2.msra.mxu0 0.0
    %7767 = vmatprep.subr.mxu0 0.0
    %7768 = vmatpush2.msra.mxu0 0.0
    %7769 = vmatprep.subr.mxu0 0.0
    %7770 = vmatpush2.msra.mxu0 0.0
    %7771 = vmatprep.subr.mxu0 0.0
    %7772 = vmatpush2.msra.mxu0 0.0
    %7773 = vmatprep.subr.mxu0 0.0
    %7774 = vmatpush2.msra.mxu0 0.0
    %7775 = vmatprep.subr.mxu0 0.0
    %7776 = vmatpush2.msra.mxu0 0.0
    %7777 = vmatprep.subr.mxu0 0.0
    %7778 = vmatpush2.msra.mxu0 0.0
    %7779 = vmatprep.subr.mxu0 0.0
    %7780 = vmatpush2.msra.mxu0 0.0
    %7781 = vmatprep.subr.mxu0 0.0
    %7782 = vmatpush2.msra.mxu0 0.0
    %7783 = vmatprep.mubr.f32.mxu0 0.0
    %7784 = vmatmul.mubr.f32.gmra.mxu0 %v7715
    %v7785 = vpop.f32.mrf.mxu0
    %v7786 = vadd.f32 0.0, %v7785
    %v7787 = vpop.f32.mrf.mxu0
    %7788 = vmatprep.mubr.f32.mxu0 0.0
    %7789 = vmatmul.mubr.f32.gmra.mxu0 %v7717
    %v7790 = vpop.f32.mrf.mxu0
    %v7791 = vadd.f32 0.0, %v7790
    %v7792 = vpop.f32.mrf.mxu0
    %7793 = vdwg.mxu0
    %v7796 = vrot.slane %v7786, 3
    %v7797 = vrot.slane %v7786, 4
    %v7798 = vrot.slane %v7786, 5
    %v7799 = vrot.slane %v7786, 6
    %v7800 = vrot.slane %v7786, 7
    %v7801 = vrot.slane %v7786, 1
    %v7802 = vrot.slane %v7786, 2
    %v7803 = vrot.slane %v7791, 3
    %v7804 = vrot.slane %v7791, 4
    %v7805 = vrot.slane %v7791, 5
    %v7806 = vrot.slane %v7791, 6
    %v7807 = vrot.slane %v7791, 7
    %v7808 = vrot.slane %v7791, 1
    %v7809 = vrot.slane %v7791, 2
    %v7826 = vadd.f32 %v253, %v7796
    %v7827 = vadd.f32 %v263, %v7797
    %v7828 = vadd.f32 %v273, %v7798
    %v7829 = vadd.f32 %v283, %v7799
    %v7830 = vadd.f32 %v293, %v7800
    %v7831 = vadd.f32 %v303, %v7786
    %v7832 = vadd.f32 %v313, %v7801
    %v7833 = vadd.f32 %v323, %v7802
    %v7834 = vadd.f32 %v333, %v7803
    %v7835 = vadd.f32 %v343, %v7804
    %v7836 = vadd.f32 %v353, %v7805
    %v7837 = vadd.f32 %v363, %v7806
    %v7838 = vadd.f32 %v373, %v7807
    %v7839 = vadd.f32 %v383, %v7791
    %v7840 = vadd.f32 %v393, %v7808
    %v7841 = vadd.f32 %v403, %v7809
    %v7842 = vtanh.pop %v7826
    %v7843 = vtanh.pop %v7827
    %v7844 = vtanh.pop %v7828
    %v7845 = vtanh.pop %v7829
    %v7846 = vtanh.pop %v7830
    %v7847 = vtanh.pop %v7831
    %v7848 = vtanh.pop %v7832
    %v7849 = vtanh.pop %v7833
    %v7850 = vtanh.pop %v7834
    %v7851 = vtanh.pop %v7835
    %v7852 = vtanh.pop %v7836
    %v7853 = vtanh.pop %v7837
    %v7854 = vtanh.pop %v7838
    %v7855 = vtanh.pop %v7839
    %v7856 = vtanh.pop %v7840
    %v7857 = vtanh.pop %v7841
    %v7858 = vmul.f32 %v7842, 0.5
    %v7859 = vmul.f32 %v7843, 0.5
    %v7860 = vmul.f32 %v7844, 0.5
    %v7861 = vmul.f32 %v7845, 0.5
    %v7862 = vmul.f32 %v7846, 0.5
    %v7863 = vmul.f32 %v7847, 0.5
    %v7864 = vmul.f32 %v7848, 0.5
    %v7865 = vmul.f32 %v7849, 0.5
    %v7866 = vmul.f32 %v7850, 0.5
    %v7867 = vmul.f32 %v7851, 0.5
    %v7868 = vmul.f32 %v7852, 0.5
    %v7869 = vmul.f32 %v7853, 0.5
    %v7870 = vmul.f32 %v7854, 0.5
    %v7871 = vmul.f32 %v7855, 0.5
    %v7872 = vmul.f32 %v7856, 0.5
    %v7873 = vmul.f32 %v7857, 0.5
    %v7874 = vadd.f32 %v7858, 0.5
    %v7875 = vadd.f32 %v7859, 0.5
    %v7876 = vadd.f32 %v7860, 0.5
    %v7877 = vadd.f32 %v7861, 0.5
    %v7878 = vadd.f32 %v7862, 0.5
    %v7879 = vadd.f32 %v7863, 0.5
    %v7880 = vadd.f32 %v7864, 0.5
    %v7881 = vadd.f32 %v7865, 0.5
    %v7882 = vadd.f32 %v7866, 0.5
    %v7883 = vadd.f32 %v7867, 0.5
    %v7884 = vadd.f32 %v7868, 0.5
    %v7885 = vadd.f32 %v7869, 0.5
    %v7886 = vadd.f32 %v7870, 0.5
    %v7887 = vadd.f32 %v7871, 0.5
    %v7888 = vadd.f32 %v7872, 0.5
    %v7889 = vadd.f32 %v7873, 0.5
    %v7906 = vrot.slane %v7547, 7
    %v7907 = vrot.slane %v7548, 7
    %v7908 = vrot.slane %v7549, 7
    %v7909 = vrot.slane %v7550, 7
    %v7910 = vrot.slane %v7551, 7
    %v7911 = vrot.slane %v7552, 7
    %v7912 = vrot.slane %v7553, 7
    %v7913 = vrot.slane %v7554, 7
    %v7914 = vrot.slane %v7555, 7
    %v7915 = vrot.slane %v7556, 7
    %v7916 = vrot.slane %v7557, 7
    %v7917 = vrot.slane %v7558, 7
    %v7918 = vrot.slane %v7559, 7
    %v7919 = vrot.slane %v7560, 7
    %v7920 = vrot.slane %v7561, 7
    %v7921 = vrot.slane %v7562, 7
    %v7938 = vmul.f32 %v7874, %v7906
    %v7939 = vmul.f32 %v7875, %v7907
    %v7940 = vmul.f32 %v7876, %v7908
    %v7941 = vmul.f32 %v7877, %v7909
    %v7942 = vmul.f32 %v7878, %v7910
    %v7943 = vmul.f32 %v7879, %v7911
    %v7944 = vmul.f32 %v7880, %v7912
    %v7945 = vmul.f32 %v7881, %v7913
    %v7946 = vmul.f32 %v7882, %v7914
    %v7947 = vmul.f32 %v7883, %v7915
    %v7948 = vmul.f32 %v7884, %v7916
    %v7949 = vmul.f32 %v7885, %v7917
    %v7950 = vmul.f32 %v7886, %v7918
    %v7951 = vmul.f32 %v7887, %v7919
    %v7952 = vmul.f32 %v7888, %v7920
    %v7953 = vmul.f32 %v7889, %v7921
    %7970 = vrot.lane.b32.xlu0 %v7842, 64
    %v7971 = vpop.permute.xlu0 %7970
    %7972 = vrot.lane.b32.xlu0 %v7843, 64
    %v7973 = vpop.permute.xlu0 %7972
    %7974 = vrot.lane.b32.xlu0 %v7844, 64
    %v7975 = vpop.permute.xlu0 %7974
    %7976 = vrot.lane.b32.xlu0 %v7845, 64
    %v7977 = vpop.permute.xlu0 %7976
    %7978 = vrot.lane.b32.xlu0 %v7846, 64
    %v7979 = vpop.permute.xlu0 %7978
    %7980 = vrot.lane.b32.xlu0 %v7847, 64
    %v7981 = vpop.permute.xlu0 %7980
    %7982 = vrot.lane.b32.xlu0 %v7848, 64
    %v7983 = vpop.permute.xlu0 %7982
    %7984 = vrot.lane.b32.xlu0 %v7849, 64
    %v7985 = vpop.permute.xlu0 %7984
    %7986 = vrot.lane.b32.xlu0 %v7850, 64
    %v7987 = vpop.permute.xlu0 %7986
    %7988 = vrot.lane.b32.xlu0 %v7851, 64
    %v7989 = vpop.permute.xlu0 %7988
    %7990 = vrot.lane.b32.xlu0 %v7852, 64
    %v7991 = vpop.permute.xlu0 %7990
    %7992 = vrot.lane.b32.xlu0 %v7853, 64
    %v7993 = vpop.permute.xlu0 %7992
    %7994 = vrot.lane.b32.xlu0 %v7854, 64
    %v7995 = vpop.permute.xlu0 %7994
    %7996 = vrot.lane.b32.xlu0 %v7855, 64
    %v7997 = vpop.permute.xlu0 %7996
    %7998 = vrot.lane.b32.xlu0 %v7856, 64
    %v7999 = vpop.permute.xlu0 %7998
    %8000 = vrot.lane.b32.xlu0 %v7857, 64
    %v8001 = vpop.permute.xlu0 %8000
    %v8018 = vmul.f32 %v7874, %v7971
    %v8019 = vmul.f32 %v7875, %v7973
    %v8020 = vmul.f32 %v7876, %v7975
    %v8021 = vmul.f32 %v7877, %v7977
    %v8022 = vmul.f32 %v7878, %v7979
    %v8023 = vmul.f32 %v7879, %v7981
    %v8024 = vmul.f32 %v7880, %v7983
    %v8025 = vmul.f32 %v7881, %v7985
    %v8026 = vmul.f32 %v7882, %v7987
    %v8027 = vmul.f32 %v7883, %v7989
    %v8028 = vmul.f32 %v7884, %v7991
    %v8029 = vmul.f32 %v7885, %v7993
    %v8030 = vmul.f32 %v7886, %v7995
    %v8031 = vmul.f32 %v7887, %v7997
    %v8032 = vmul.f32 %v7888, %v7999
    %v8033 = vmul.f32 %v7889, %v8001
    %8050 = vrot.lane.b32.xlu0 %v8018, 32
    %v8051 = vpop.permute.xlu0 %8050
    %8052 = vrot.lane.b32.xlu0 %v8019, 32
    %v8053 = vpop.permute.xlu0 %8052
    %8054 = vrot.lane.b32.xlu0 %v8020, 32
    %v8055 = vpop.permute.xlu0 %8054
    %8056 = vrot.lane.b32.xlu0 %v8021, 32
    %v8057 = vpop.permute.xlu0 %8056
    %8058 = vrot.lane.b32.xlu0 %v8022, 32
    %v8059 = vpop.permute.xlu0 %8058
    %8060 = vrot.lane.b32.xlu0 %v8023, 32
    %v8061 = vpop.permute.xlu0 %8060
    %8062 = vrot.lane.b32.xlu0 %v8024, 32
    %v8063 = vpop.permute.xlu0 %8062
    %8064 = vrot.lane.b32.xlu0 %v8025, 32
    %v8065 = vpop.permute.xlu0 %8064
    %8066 = vrot.lane.b32.xlu0 %v8026, 32
    %v8067 = vpop.permute.xlu0 %8066
    %8068 = vrot.lane.b32.xlu0 %v8027, 32
    %v8069 = vpop.permute.xlu0 %8068
    %8070 = vrot.lane.b32.xlu0 %v8028, 32
    %v8071 = vpop.permute.xlu0 %8070
    %8072 = vrot.lane.b32.xlu0 %v8029, 32
    %v8073 = vpop.permute.xlu0 %8072
    %8074 = vrot.lane.b32.xlu0 %v8030, 32
    %v8075 = vpop.permute.xlu0 %8074
    %8076 = vrot.lane.b32.xlu0 %v8031, 32
    %v8077 = vpop.permute.xlu0 %8076
    %8078 = vrot.lane.b32.xlu0 %v8032, 32
    %v8079 = vpop.permute.xlu0 %8078
    %8080 = vrot.lane.b32.xlu0 %v8033, 32
    %v8081 = vpop.permute.xlu0 %8080
    %v8098 = vadd.f32 %v7938, %v8051
    %v8099 = vadd.f32 %v7939, %v8053
    %v8100 = vadd.f32 %v7940, %v8055
    %v8101 = vadd.f32 %v7941, %v8057
    %v8102 = vadd.f32 %v7942, %v8059
    %v8103 = vadd.f32 %v7943, %v8061
    %v8104 = vadd.f32 %v7944, %v8063
    %v8105 = vadd.f32 %v7945, %v8065
    %v8106 = vadd.f32 %v7946, %v8067
    %v8107 = vadd.f32 %v7947, %v8069
    %v8108 = vadd.f32 %v7948, %v8071
    %v8109 = vadd.f32 %v7949, %v8073
    %v8110 = vadd.f32 %v7950, %v8075
    %v8111 = vadd.f32 %v7951, %v8077
    %v8112 = vadd.f32 %v7952, %v8079
    %v8113 = vadd.f32 %v7953, %v8081
    %v8114 = vtanh.pop %v8098
    %v8115 = vtanh.pop %v8099
    %v8116 = vtanh.pop %v8100
    %v8117 = vtanh.pop %v8101
    %v8118 = vtanh.pop %v8102
    %v8119 = vtanh.pop %v8103
    %v8120 = vtanh.pop %v8104
    %v8121 = vtanh.pop %v8105
    %v8122 = vtanh.pop %v8106
    %v8123 = vtanh.pop %v8107
    %v8124 = vtanh.pop %v8108
    %v8125 = vtanh.pop %v8109
    %v8126 = vtanh.pop %v8110
    %v8127 = vtanh.pop %v8111
    %v8128 = vtanh.pop %v8112
    %v8129 = vtanh.pop %v8113
    %8146 = vrot.lane.b32.xlu0 %v8114, 64
    %v8147 = vpop.permute.xlu0 %8146
    %8148 = vrot.lane.b32.xlu0 %v8115, 64
    %v8149 = vpop.permute.xlu0 %8148
    %8150 = vrot.lane.b32.xlu0 %v8116, 64
    %v8151 = vpop.permute.xlu0 %8150
    %8152 = vrot.lane.b32.xlu0 %v8117, 64
    %v8153 = vpop.permute.xlu0 %8152
    %8154 = vrot.lane.b32.xlu0 %v8118, 64
    %v8155 = vpop.permute.xlu0 %8154
    %8156 = vrot.lane.b32.xlu0 %v8119, 64
    %v8157 = vpop.permute.xlu0 %8156
    %8158 = vrot.lane.b32.xlu0 %v8120, 64
    %v8159 = vpop.permute.xlu0 %8158
    %8160 = vrot.lane.b32.xlu0 %v8121, 64
    %v8161 = vpop.permute.xlu0 %8160
    %8162 = vrot.lane.b32.xlu0 %v8122, 64
    %v8163 = vpop.permute.xlu0 %8162
    %8164 = vrot.lane.b32.xlu0 %v8123, 64
    %v8165 = vpop.permute.xlu0 %8164
    %8166 = vrot.lane.b32.xlu0 %v8124, 64
    %v8167 = vpop.permute.xlu0 %8166
    %8168 = vrot.lane.b32.xlu0 %v8125, 64
    %v8169 = vpop.permute.xlu0 %8168
    %8170 = vrot.lane.b32.xlu0 %v8126, 64
    %v8171 = vpop.permute.xlu0 %8170
    %8172 = vrot.lane.b32.xlu0 %v8127, 64
    %v8173 = vpop.permute.xlu0 %8172
    %8174 = vrot.lane.b32.xlu0 %v8128, 64
    %v8175 = vpop.permute.xlu0 %8174
    %8176 = vrot.lane.b32.xlu0 %v8129, 64
    %v8177 = vpop.permute.xlu0 %8176
    %v8194 = vmul.f32 %v7874, %v8147
    %v8195 = vmul.f32 %v7875, %v8149
    %v8196 = vmul.f32 %v7876, %v8151
    %v8197 = vmul.f32 %v7877, %v8153
    %v8198 = vmul.f32 %v7878, %v8155
    %v8199 = vmul.f32 %v7879, %v8157
    %v8200 = vmul.f32 %v7880, %v8159
    %v8201 = vmul.f32 %v7881, %v8161
    %v8202 = vmul.f32 %v7882, %v8163
    %v8203 = vmul.f32 %v7883, %v8165
    %v8204 = vmul.f32 %v7884, %v8167
    %v8205 = vmul.f32 %v7885, %v8169
    %v8206 = vmul.f32 %v7886, %v8171
    %v8207 = vmul.f32 %v7887, %v8173
    %v8208 = vmul.f32 %v7888, %v8175
    %v8209 = vmul.f32 %v7889, %v8177
    %v8226 = vrot.slane %v8194, 5
    %v8227 = vrot.slane %v8195, 4
    %v8228 = vsel %vm1030, %v8227, %v8226
    %v8229 = vrot.slane %v8196, 3
    %v8230 = vsel %vm1033, %v8229, %v8228
    %v8231 = vrot.slane %v8197, 2
    %v8232 = vsel %vm1036, %v8231, %v8230
    %v8233 = vrot.slane %v8198, 1
    %v8234 = vsel %vm1039, %v8233, %v8232
    %v8235 = vsel %vm1042, %v8199, %v8234
    %v8236 = vrot.slane %v8200, 7
    %v8237 = vsel %vm1045, %v8236, %v8235
    %v8238 = vrot.slane %v8201, 6
    %v8239 = vsel %vm1048, %v8238, %v8237
    %v8240 = vrot.slane %v8202, 5
    %v8241 = vrot.slane %v8203, 4
    %v8242 = vsel %vm1030, %v8241, %v8240
    %v8243 = vrot.slane %v8204, 3
    %v8244 = vsel %vm1033, %v8243, %v8242
    %v8245 = vrot.slane %v8205, 2
    %v8246 = vsel %vm1036, %v8245, %v8244
    %v8247 = vrot.slane %v8206, 1
    %v8248 = vsel %vm1039, %v8247, %v8246
    %v8249 = vsel %vm1042, %v8207, %v8248
    %v8250 = vrot.slane %v8208, 7
    %v8251 = vsel %vm1045, %v8250, %v8249
    %v8252 = vrot.slane %v8209, 6
    %v8253 = vsel %vm1048, %v8252, %v8251
    %8254 = vrot.lane.b32.xlu0 %v8239, 64
    %v8255 = vpop.permute.xlu0 %8254
    %8256 = vrot.lane.b32.xlu0 %v8253, 64
    %v8257 = vpop.permute.xlu0 %8256
    %8260 = vst.msk [vmem:[#allocation2 + $0x18] sm:$0xff] %vm1621, %v8255
    %8261 = vst.msk [vmem:[#allocation2 + $0x38] sm:$0xff] %vm1621, %v8257
    %v8262 = vld [vmem:[%s4] sm:$0xff]
    %v8263 = vld [vmem:[%s4 + $0x8] sm:$0xff]
    %v8264 = vld [vmem:[%s4 + $0x10] sm:$0xff]
    %v8265 = vld [vmem:[%s4 + $0x18] sm:$0xff]
    %8266 = vrot.lane.b32.xlu0 %v8239, 32
    %v8267 = vpop.permute.xlu0 %8266
    %8268 = vrot.lane.b32.xlu0 %v8253, 32
    %v8269 = vpop.permute.xlu0 %8268
    %v8270 = vsel %vm416, %v8267, 0
    %v8272 = vsel %vm416, %v8269, 0
    %8274 = vmatprep.subr.mxu0 0.0
    %8275 = vmatpush1.msra.mxu0 0.0
    %8276 = vmatprep.subr.mxu0 0.0
    %8277 = vmatpush1.msra.mxu0 0.0
    %8278 = vmatprep.subr.mxu0 0.0
    %8279 = vmatpush1.msra.mxu0 0.0
    %8280 = vmatprep.subr.mxu0 0.0
    %8281 = vmatpush1.msra.mxu0 0.0
    %8282 = vmatprep.subr.mxu0 0.0
    %8283 = vmatpush1.msra.mxu0 0.0
    %8284 = vmatprep.subr.mxu0 0.0
    %8285 = vmatpush1.msra.mxu0 0.0
    %8286 = vmatprep.subr.mxu0 0.0
    %8287 = vmatpush1.msra.mxu0 0.0
    %8288 = vmatprep.subr.mxu0 0.0
    %8289 = vmatpush1.msra.mxu0 0.0
    %8290 = vmatprep.subr.mxu0 0.0
    %8291 = vmatpush1.msra.mxu0 0.0
    %8292 = vmatprep.subr.mxu0 0.0
    %8293 = vmatpush1.msra.mxu0 0.0
    %8294 = vmatprep.subr.mxu0 0.0
    %8295 = vmatpush1.msra.mxu0 0.0
    %8296 = vmatprep.subr.mxu0 0.0
    %8297 = vmatpush1.msra.mxu0 0.0
    %8298 = vmatprep.subr.mxu0 0.0
    %8299 = vmatpush1.msra.mxu0 %v8265
    %8300 = vmatprep.subr.mxu0 0.0
    %8301 = vmatpush1.msra.mxu0 %v8264
    %8302 = vmatprep.subr.mxu0 0.0
    %8303 = vmatpush1.msra.mxu0 %v8263
    %8304 = vmatprep.subr.mxu0 0.0
    %8305 = vmatpush1.msra.mxu0 %v8262
    %8306 = vmatprep.subr.mxu0 0.0
    %8307 = vmatpush2.msra.mxu0 0.0
    %8308 = vmatprep.subr.mxu0 0.0
    %8309 = vmatpush2.msra.mxu0 0.0
    %8310 = vmatprep.subr.mxu0 0.0
    %8311 = vmatpush2.msra.mxu0 0.0
    %8312 = vmatprep.subr.mxu0 0.0
    %8313 = vmatpush2.msra.mxu0 0.0
    %8314 = vmatprep.subr.mxu0 0.0
    %8315 = vmatpush2.msra.mxu0 0.0
    %8316 = vmatprep.subr.mxu0 0.0
    %8317 = vmatpush2.msra.mxu0 0.0
    %8318 = vmatprep.subr.mxu0 0.0
    %8319 = vmatpush2.msra.mxu0 0.0
    %8320 = vmatprep.subr.mxu0 0.0
    %8321 = vmatpush2.msra.mxu0 0.0
    %8322 = vmatprep.subr.mxu0 0.0
    %8323 = vmatpush2.msra.mxu0 0.0
    %8324 = vmatprep.subr.mxu0 0.0
    %8325 = vmatpush2.msra.mxu0 0.0
    %8326 = vmatprep.subr.mxu0 0.0
    %8327 = vmatpush2.msra.mxu0 0.0
    %8328 = vmatprep.subr.mxu0 0.0
    %8329 = vmatpush2.msra.mxu0 0.0
    %8330 = vmatprep.subr.mxu0 0.0
    %8331 = vmatpush2.msra.mxu0 0.0
    %8332 = vmatprep.subr.mxu0 0.0
    %8333 = vmatpush2.msra.mxu0 0.0
    %8334 = vmatprep.subr.mxu0 0.0
    %8335 = vmatpush2.msra.mxu0 0.0
    %8336 = vmatprep.subr.mxu0 0.0
    %8337 = vmatpush2.msra.mxu0 0.0
    %8338 = vmatprep.mubr.f32.mxu0 0.0
    %8339 = vmatmul.mubr.f32.gmra.mxu0 %v8270
    %v8340 = vpop.f32.mrf.mxu0
    %v8341 = vadd.f32 0.0, %v8340
    %v8342 = vpop.f32.mrf.mxu0
    %8343 = vmatprep.mubr.f32.mxu0 0.0
    %8344 = vmatmul.mubr.f32.gmra.mxu0 %v8272
    %v8345 = vpop.f32.mrf.mxu0
    %v8346 = vadd.f32 0.0, %v8345
    %v8347 = vpop.f32.mrf.mxu0
    %8348 = vdwg.mxu0
    %v8351 = vrot.slane %v8341, 2
    %v8352 = vrot.slane %v8341, 3
    %v8353 = vrot.slane %v8341, 4
    %v8354 = vrot.slane %v8341, 5
    %v8355 = vrot.slane %v8341, 6
    %v8356 = vrot.slane %v8341, 7
    %v8357 = vrot.slane %v8341, 1
    %v8358 = vrot.slane %v8346, 2
    %v8359 = vrot.slane %v8346, 3
    %v8360 = vrot.slane %v8346, 4
    %v8361 = vrot.slane %v8346, 5
    %v8362 = vrot.slane %v8346, 6
    %v8363 = vrot.slane %v8346, 7
    %v8364 = vrot.slane %v8346, 1
    %v8381 = vadd.f32 %v253, %v8351
    %v8382 = vadd.f32 %v263, %v8352
    %v8383 = vadd.f32 %v273, %v8353
    %v8384 = vadd.f32 %v283, %v8354
    %v8385 = vadd.f32 %v293, %v8355
    %v8386 = vadd.f32 %v303, %v8356
    %v8387 = vadd.f32 %v313, %v8341
    %v8388 = vadd.f32 %v323, %v8357
    %v8389 = vadd.f32 %v333, %v8358
    %v8390 = vadd.f32 %v343, %v8359
    %v8391 = vadd.f32 %v353, %v8360
    %v8392 = vadd.f32 %v363, %v8361
    %v8393 = vadd.f32 %v373, %v8362
    %v8394 = vadd.f32 %v383, %v8363
    %v8395 = vadd.f32 %v393, %v8346
    %v8396 = vadd.f32 %v403, %v8364
    %v8397 = vtanh.pop %v8381
    %v8398 = vtanh.pop %v8382
    %v8399 = vtanh.pop %v8383
    %v8400 = vtanh.pop %v8384
    %v8401 = vtanh.pop %v8385
    %v8402 = vtanh.pop %v8386
    %v8403 = vtanh.pop %v8387
    %v8404 = vtanh.pop %v8388
    %v8405 = vtanh.pop %v8389
    %v8406 = vtanh.pop %v8390
    %v8407 = vtanh.pop %v8391
    %v8408 = vtanh.pop %v8392
    %v8409 = vtanh.pop %v8393
    %v8410 = vtanh.pop %v8394
    %v8411 = vtanh.pop %v8395
    %v8412 = vtanh.pop %v8396
    %v8413 = vmul.f32 %v8397, 0.5
    %v8414 = vmul.f32 %v8398, 0.5
    %v8415 = vmul.f32 %v8399, 0.5
    %v8416 = vmul.f32 %v8400, 0.5
    %v8417 = vmul.f32 %v8401, 0.5
    %v8418 = vmul.f32 %v8402, 0.5
    %v8419 = vmul.f32 %v8403, 0.5
    %v8420 = vmul.f32 %v8404, 0.5
    %v8421 = vmul.f32 %v8405, 0.5
    %v8422 = vmul.f32 %v8406, 0.5
    %v8423 = vmul.f32 %v8407, 0.5
    %v8424 = vmul.f32 %v8408, 0.5
    %v8425 = vmul.f32 %v8409, 0.5
    %v8426 = vmul.f32 %v8410, 0.5
    %v8427 = vmul.f32 %v8411, 0.5
    %v8428 = vmul.f32 %v8412, 0.5
    %v8429 = vadd.f32 %v8413, 0.5
    %v8430 = vadd.f32 %v8414, 0.5
    %v8431 = vadd.f32 %v8415, 0.5
    %v8432 = vadd.f32 %v8416, 0.5
    %v8433 = vadd.f32 %v8417, 0.5
    %v8434 = vadd.f32 %v8418, 0.5
    %v8435 = vadd.f32 %v8419, 0.5
    %v8436 = vadd.f32 %v8420, 0.5
    %v8437 = vadd.f32 %v8421, 0.5
    %v8438 = vadd.f32 %v8422, 0.5
    %v8439 = vadd.f32 %v8423, 0.5
    %v8440 = vadd.f32 %v8424, 0.5
    %v8441 = vadd.f32 %v8425, 0.5
    %v8442 = vadd.f32 %v8426, 0.5
    %v8443 = vadd.f32 %v8427, 0.5
    %v8444 = vadd.f32 %v8428, 0.5
    %v8461 = vrot.slane %v8098, 7
    %v8462 = vrot.slane %v8099, 7
    %v8463 = vrot.slane %v8100, 7
    %v8464 = vrot.slane %v8101, 7
    %v8465 = vrot.slane %v8102, 7
    %v8466 = vrot.slane %v8103, 7
    %v8467 = vrot.slane %v8104, 7
    %v8468 = vrot.slane %v8105, 7
    %v8469 = vrot.slane %v8106, 7
    %v8470 = vrot.slane %v8107, 7
    %v8471 = vrot.slane %v8108, 7
    %v8472 = vrot.slane %v8109, 7
    %v8473 = vrot.slane %v8110, 7
    %v8474 = vrot.slane %v8111, 7
    %v8475 = vrot.slane %v8112, 7
    %v8476 = vrot.slane %v8113, 7
    %v8493 = vmul.f32 %v8429, %v8461
    %v8494 = vmul.f32 %v8430, %v8462
    %v8495 = vmul.f32 %v8431, %v8463
    %v8496 = vmul.f32 %v8432, %v8464
    %v8497 = vmul.f32 %v8433, %v8465
    %v8498 = vmul.f32 %v8434, %v8466
    %v8499 = vmul.f32 %v8435, %v8467
    %v8500 = vmul.f32 %v8436, %v8468
    %v8501 = vmul.f32 %v8437, %v8469
    %v8502 = vmul.f32 %v8438, %v8470
    %v8503 = vmul.f32 %v8439, %v8471
    %v8504 = vmul.f32 %v8440, %v8472
    %v8505 = vmul.f32 %v8441, %v8473
    %v8506 = vmul.f32 %v8442, %v8474
    %v8507 = vmul.f32 %v8443, %v8475
    %v8508 = vmul.f32 %v8444, %v8476
    %8525 = vrot.lane.b32.xlu0 %v8397, 64
    %v8526 = vpop.permute.xlu0 %8525
    %8527 = vrot.lane.b32.xlu0 %v8398, 64
    %v8528 = vpop.permute.xlu0 %8527
    %8529 = vrot.lane.b32.xlu0 %v8399, 64
    %v8530 = vpop.permute.xlu0 %8529
    %8531 = vrot.lane.b32.xlu0 %v8400, 64
    %v8532 = vpop.permute.xlu0 %8531
    %8533 = vrot.lane.b32.xlu0 %v8401, 64
    %v8534 = vpop.permute.xlu0 %8533
    %8535 = vrot.lane.b32.xlu0 %v8402, 64
    %v8536 = vpop.permute.xlu0 %8535
    %8537 = vrot.lane.b32.xlu0 %v8403, 64
    %v8538 = vpop.permute.xlu0 %8537
    %8539 = vrot.lane.b32.xlu0 %v8404, 64
    %v8540 = vpop.permute.xlu0 %8539
    %8541 = vrot.lane.b32.xlu0 %v8405, 64
    %v8542 = vpop.permute.xlu0 %8541
    %8543 = vrot.lane.b32.xlu0 %v8406, 64
    %v8544 = vpop.permute.xlu0 %8543
    %8545 = vrot.lane.b32.xlu0 %v8407, 64
    %v8546 = vpop.permute.xlu0 %8545
    %8547 = vrot.lane.b32.xlu0 %v8408, 64
    %v8548 = vpop.permute.xlu0 %8547
    %8549 = vrot.lane.b32.xlu0 %v8409, 64
    %v8550 = vpop.permute.xlu0 %8549
    %8551 = vrot.lane.b32.xlu0 %v8410, 64
    %v8552 = vpop.permute.xlu0 %8551
    %8553 = vrot.lane.b32.xlu0 %v8411, 64
    %v8554 = vpop.permute.xlu0 %8553
    %8555 = vrot.lane.b32.xlu0 %v8412, 64
    %v8556 = vpop.permute.xlu0 %8555
    %v8573 = vmul.f32 %v8429, %v8526
    %v8574 = vmul.f32 %v8430, %v8528
    %v8575 = vmul.f32 %v8431, %v8530
    %v8576 = vmul.f32 %v8432, %v8532
    %v8577 = vmul.f32 %v8433, %v8534
    %v8578 = vmul.f32 %v8434, %v8536
    %v8579 = vmul.f32 %v8435, %v8538
    %v8580 = vmul.f32 %v8436, %v8540
    %v8581 = vmul.f32 %v8437, %v8542
    %v8582 = vmul.f32 %v8438, %v8544
    %v8583 = vmul.f32 %v8439, %v8546
    %v8584 = vmul.f32 %v8440, %v8548
    %v8585 = vmul.f32 %v8441, %v8550
    %v8586 = vmul.f32 %v8442, %v8552
    %v8587 = vmul.f32 %v8443, %v8554
    %v8588 = vmul.f32 %v8444, %v8556
    %8605 = vrot.lane.b32.xlu0 %v8573, 32
    %v8606 = vpop.permute.xlu0 %8605
    %8607 = vrot.lane.b32.xlu0 %v8574, 32
    %v8608 = vpop.permute.xlu0 %8607
    %8609 = vrot.lane.b32.xlu0 %v8575, 32
    %v8610 = vpop.permute.xlu0 %8609
    %8611 = vrot.lane.b32.xlu0 %v8576, 32
    %v8612 = vpop.permute.xlu0 %8611
    %8613 = vrot.lane.b32.xlu0 %v8577, 32
    %v8614 = vpop.permute.xlu0 %8613
    %8615 = vrot.lane.b32.xlu0 %v8578, 32
    %v8616 = vpop.permute.xlu0 %8615
    %8617 = vrot.lane.b32.xlu0 %v8579, 32
    %v8618 = vpop.permute.xlu0 %8617
    %8619 = vrot.lane.b32.xlu0 %v8580, 32
    %v8620 = vpop.permute.xlu0 %8619
    %8621 = vrot.lane.b32.xlu0 %v8581, 32
    %v8622 = vpop.permute.xlu0 %8621
    %8623 = vrot.lane.b32.xlu0 %v8582, 32
    %v8624 = vpop.permute.xlu0 %8623
    %8625 = vrot.lane.b32.xlu0 %v8583, 32
    %v8626 = vpop.permute.xlu0 %8625
    %8627 = vrot.lane.b32.xlu0 %v8584, 32
    %v8628 = vpop.permute.xlu0 %8627
    %8629 = vrot.lane.b32.xlu0 %v8585, 32
    %v8630 = vpop.permute.xlu0 %8629
    %8631 = vrot.lane.b32.xlu0 %v8586, 32
    %v8632 = vpop.permute.xlu0 %8631
    %8633 = vrot.lane.b32.xlu0 %v8587, 32
    %v8634 = vpop.permute.xlu0 %8633
    %8635 = vrot.lane.b32.xlu0 %v8588, 32
    %v8636 = vpop.permute.xlu0 %8635
    %v8653 = vadd.f32 %v8493, %v8606
    %v8654 = vadd.f32 %v8494, %v8608
    %v8655 = vadd.f32 %v8495, %v8610
    %v8656 = vadd.f32 %v8496, %v8612
    %v8657 = vadd.f32 %v8497, %v8614
    %v8658 = vadd.f32 %v8498, %v8616
    %v8659 = vadd.f32 %v8499, %v8618
    %v8660 = vadd.f32 %v8500, %v8620
    %v8661 = vadd.f32 %v8501, %v8622
    %v8662 = vadd.f32 %v8502, %v8624
    %v8663 = vadd.f32 %v8503, %v8626
    %v8664 = vadd.f32 %v8504, %v8628
    %v8665 = vadd.f32 %v8505, %v8630
    %v8666 = vadd.f32 %v8506, %v8632
    %v8667 = vadd.f32 %v8507, %v8634
    %v8668 = vadd.f32 %v8508, %v8636
    %v8669 = vtanh.pop %v8653
    %v8670 = vtanh.pop %v8654
    %v8671 = vtanh.pop %v8655
    %v8672 = vtanh.pop %v8656
    %v8673 = vtanh.pop %v8657
    %v8674 = vtanh.pop %v8658
    %v8675 = vtanh.pop %v8659
    %v8676 = vtanh.pop %v8660
    %v8677 = vtanh.pop %v8661
    %v8678 = vtanh.pop %v8662
    %v8679 = vtanh.pop %v8663
    %v8680 = vtanh.pop %v8664
    %v8681 = vtanh.pop %v8665
    %v8682 = vtanh.pop %v8666
    %v8683 = vtanh.pop %v8667
    %v8684 = vtanh.pop %v8668
    %8701 = vrot.lane.b32.xlu0 %v8669, 64
    %v8702 = vpop.permute.xlu0 %8701
    %8703 = vrot.lane.b32.xlu0 %v8670, 64
    %v8704 = vpop.permute.xlu0 %8703
    %8705 = vrot.lane.b32.xlu0 %v8671, 64
    %v8706 = vpop.permute.xlu0 %8705
    %8707 = vrot.lane.b32.xlu0 %v8672, 64
    %v8708 = vpop.permute.xlu0 %8707
    %8709 = vrot.lane.b32.xlu0 %v8673, 64
    %v8710 = vpop.permute.xlu0 %8709
    %8711 = vrot.lane.b32.xlu0 %v8674, 64
    %v8712 = vpop.permute.xlu0 %8711
    %8713 = vrot.lane.b32.xlu0 %v8675, 64
    %v8714 = vpop.permute.xlu0 %8713
    %8715 = vrot.lane.b32.xlu0 %v8676, 64
    %v8716 = vpop.permute.xlu0 %8715
    %8717 = vrot.lane.b32.xlu0 %v8677, 64
    %v8718 = vpop.permute.xlu0 %8717
    %8719 = vrot.lane.b32.xlu0 %v8678, 64
    %v8720 = vpop.permute.xlu0 %8719
    %8721 = vrot.lane.b32.xlu0 %v8679, 64
    %v8722 = vpop.permute.xlu0 %8721
    %8723 = vrot.lane.b32.xlu0 %v8680, 64
    %v8724 = vpop.permute.xlu0 %8723
    %8725 = vrot.lane.b32.xlu0 %v8681, 64
    %v8726 = vpop.permute.xlu0 %8725
    %8727 = vrot.lane.b32.xlu0 %v8682, 64
    %v8728 = vpop.permute.xlu0 %8727
    %8729 = vrot.lane.b32.xlu0 %v8683, 64
    %v8730 = vpop.permute.xlu0 %8729
    %8731 = vrot.lane.b32.xlu0 %v8684, 64
    %v8732 = vpop.permute.xlu0 %8731
    %v8749 = vmul.f32 %v8429, %v8702
    %v8750 = vmul.f32 %v8430, %v8704
    %v8751 = vmul.f32 %v8431, %v8706
    %v8752 = vmul.f32 %v8432, %v8708
    %v8753 = vmul.f32 %v8433, %v8710
    %v8754 = vmul.f32 %v8434, %v8712
    %v8755 = vmul.f32 %v8435, %v8714
    %v8756 = vmul.f32 %v8436, %v8716
    %v8757 = vmul.f32 %v8437, %v8718
    %v8758 = vmul.f32 %v8438, %v8720
    %v8759 = vmul.f32 %v8439, %v8722
    %v8760 = vmul.f32 %v8440, %v8724
    %v8761 = vmul.f32 %v8441, %v8726
    %v8762 = vmul.f32 %v8442, %v8728
    %v8763 = vmul.f32 %v8443, %v8730
    %v8764 = vmul.f32 %v8444, %v8732
    %v8781 = vrot.slane %v8749, 6
    %v8782 = vrot.slane %v8750, 5
    %v8783 = vsel %vm1030, %v8782, %v8781
    %v8784 = vrot.slane %v8751, 4
    %v8785 = vsel %vm1033, %v8784, %v8783
    %v8786 = vrot.slane %v8752, 3
    %v8787 = vsel %vm1036, %v8786, %v8785
    %v8788 = vrot.slane %v8753, 2
    %v8789 = vsel %vm1039, %v8788, %v8787
    %v8790 = vrot.slane %v8754, 1
    %v8791 = vsel %vm1042, %v8790, %v8789
    %v8792 = vsel %vm1045, %v8755, %v8791
    %v8793 = vrot.slane %v8756, 7
    %v8794 = vsel %vm1048, %v8793, %v8792
    %v8795 = vrot.slane %v8757, 6
    %v8796 = vrot.slane %v8758, 5
    %v8797 = vsel %vm1030, %v8796, %v8795
    %v8798 = vrot.slane %v8759, 4
    %v8799 = vsel %vm1033, %v8798, %v8797
    %v8800 = vrot.slane %v8760, 3
    %v8801 = vsel %vm1036, %v8800, %v8799
    %v8802 = vrot.slane %v8761, 2
    %v8803 = vsel %vm1039, %v8802, %v8801
    %v8804 = vrot.slane %v8762, 1
    %v8805 = vsel %vm1042, %v8804, %v8803
    %v8806 = vsel %vm1045, %v8763, %v8805
    %v8807 = vrot.slane %v8764, 7
    %v8808 = vsel %vm1048, %v8807, %v8806
    %8809 = vrot.lane.b32.xlu0 %v8794, 96
    %v8810 = vpop.permute.xlu0 %8809
    %8811 = vrot.lane.b32.xlu0 %v8808, 96
    %v8812 = vpop.permute.xlu0 %8811
    %8815 = vst.msk [vmem:[#allocation2 + $0x18] sm:$0xff] %vm2177, %v8810
    %8816 = vst.msk [vmem:[#allocation2 + $0x38] sm:$0xff] %vm2177, %v8812
    %v8817 = vld [vmem:[%s4] sm:$0xff]
    %v8818 = vld [vmem:[%s4 + $0x8] sm:$0xff]
    %v8819 = vld [vmem:[%s4 + $0x10] sm:$0xff]
    %v8820 = vld [vmem:[%s4 + $0x18] sm:$0xff]
    %8821 = vrot.lane.b32.xlu0 %v8794, 32
    %v8822 = vpop.permute.xlu0 %8821
    %8823 = vrot.lane.b32.xlu0 %v8808, 32
    %v8824 = vpop.permute.xlu0 %8823
    %v8825 = vsel %vm416, %v8822, 0
    %v8827 = vsel %vm416, %v8824, 0
    %8829 = vmatprep.subr.mxu0 0.0
    %8830 = vmatpush1.msra.mxu0 0.0
    %8831 = vmatprep.subr.mxu0 0.0
    %8832 = vmatpush1.msra.mxu0 0.0
    %8833 = vmatprep.subr.mxu0 0.0
    %8834 = vmatpush1.msra.mxu0 0.0
    %8835 = vmatprep.subr.mxu0 0.0
    %8836 = vmatpush1.msra.mxu0 0.0
    %8837 = vmatprep.subr.mxu0 0.0
    %8838 = vmatpush1.msra.mxu0 0.0
    %8839 = vmatprep.subr.mxu0 0.0
    %8840 = vmatpush1.msra.mxu0 0.0
    %8841 = vmatprep.subr.mxu0 0.0
    %8842 = vmatpush1.msra.mxu0 0.0
    %8843 = vmatprep.subr.mxu0 0.0
    %8844 = vmatpush1.msra.mxu0 0.0
    %8845 = vmatprep.subr.mxu0 0.0
    %8846 = vmatpush1.msra.mxu0 0.0
    %8847 = vmatprep.subr.mxu0 0.0
    %8848 = vmatpush1.msra.mxu0 0.0
    %8849 = vmatprep.subr.mxu0 0.0
    %8850 = vmatpush1.msra.mxu0 0.0
    %8851 = vmatprep.subr.mxu0 0.0
    %8852 = vmatpush1.msra.mxu0 0.0
    %8853 = vmatprep.subr.mxu0 0.0
    %8854 = vmatpush1.msra.mxu0 %v8820
    %8855 = vmatprep.subr.mxu0 0.0
    %8856 = vmatpush1.msra.mxu0 %v8819
    %8857 = vmatprep.subr.mxu0 0.0
    %8858 = vmatpush1.msra.mxu0 %v8818
    %8859 = vmatprep.subr.mxu0 0.0
    %8860 = vmatpush1.msra.mxu0 %v8817
    %8861 = vmatprep.subr.mxu0 0.0
    %8862 = vmatpush2.msra.mxu0 0.0
    %8863 = vmatprep.subr.mxu0 0.0
    %8864 = vmatpush2.msra.mxu0 0.0
    %8865 = vmatprep.subr.mxu0 0.0
    %8866 = vmatpush2.msra.mxu0 0.0
    %8867 = vmatprep.subr.mxu0 0.0
    %8868 = vmatpush2.msra.mxu0 0.0
    %8869 = vmatprep.subr.mxu0 0.0
    %8870 = vmatpush2.msra.mxu0 0.0
    %8871 = vmatprep.subr.mxu0 0.0
    %8872 = vmatpush2.msra.mxu0 0.0
    %8873 = vmatprep.subr.mxu0 0.0
    %8874 = vmatpush2.msra.mxu0 0.0
    %8875 = vmatprep.subr.mxu0 0.0
    %8876 = vmatpush2.msra.mxu0 0.0
    %8877 = vmatprep.subr.mxu0 0.0
    %8878 = vmatpush2.msra.mxu0 0.0
    %8879 = vmatprep.subr.mxu0 0.0
    %8880 = vmatpush2.msra.mxu0 0.0
    %8881 = vmatprep.subr.mxu0 0.0
    %8882 = vmatpush2.msra.mxu0 0.0
    %8883 = vmatprep.subr.mxu0 0.0
    %8884 = vmatpush2.msra.mxu0 0.0
    %8885 = vmatprep.subr.mxu0 0.0
    %8886 = vmatpush2.msra.mxu0 0.0
    %8887 = vmatprep.subr.mxu0 0.0
    %8888 = vmatpush2.msra.mxu0 0.0
    %8889 = vmatprep.subr.mxu0 0.0
    %8890 = vmatpush2.msra.mxu0 0.0
    %8891 = vmatprep.subr.mxu0 0.0
    %8892 = vmatpush2.msra.mxu0 0.0
    %8893 = vmatprep.mubr.f32.mxu0 0.0
    %8894 = vmatmul.mubr.f32.gmra.mxu0 %v8825
    %v8895 = vpop.f32.mrf.mxu0
    %v8896 = vadd.f32 0.0, %v8895
    %v8897 = vpop.f32.mrf.mxu0
    %8898 = vmatprep.mubr.f32.mxu0 0.0
    %8899 = vmatmul.mubr.f32.gmra.mxu0 %v8827
    %v8900 = vpop.f32.mrf.mxu0
    %v8901 = vadd.f32 0.0, %v8900
    %v8902 = vpop.f32.mrf.mxu0
    %8903 = vdwg.mxu0
    %v8906 = vrot.slane %v8896, 1
    %v8907 = vrot.slane %v8896, 2
    %v8908 = vrot.slane %v8896, 3
    %v8909 = vrot.slane %v8896, 4
    %v8910 = vrot.slane %v8896, 5
    %v8911 = vrot.slane %v8896, 6
    %v8912 = vrot.slane %v8896, 7
    %v8913 = vrot.slane %v8901, 1
    %v8914 = vrot.slane %v8901, 2
    %v8915 = vrot.slane %v8901, 3
    %v8916 = vrot.slane %v8901, 4
    %v8917 = vrot.slane %v8901, 5
    %v8918 = vrot.slane %v8901, 6
    %v8919 = vrot.slane %v8901, 7
    %v8936 = vadd.f32 %v253, %v8906
    %v8937 = vadd.f32 %v263, %v8907
    %v8938 = vadd.f32 %v273, %v8908
    %v8939 = vadd.f32 %v283, %v8909
    %v8940 = vadd.f32 %v293, %v8910
    %v8941 = vadd.f32 %v303, %v8911
    %v8942 = vadd.f32 %v313, %v8912
    %v8943 = vadd.f32 %v323, %v8896
    %v8944 = vadd.f32 %v333, %v8913
    %v8945 = vadd.f32 %v343, %v8914
    %v8946 = vadd.f32 %v353, %v8915
    %v8947 = vadd.f32 %v363, %v8916
    %v8948 = vadd.f32 %v373, %v8917
    %v8949 = vadd.f32 %v383, %v8918
    %v8950 = vadd.f32 %v393, %v8919
    %v8951 = vadd.f32 %v403, %v8901
    %v8952 = vtanh.pop %v8936
    %v8953 = vtanh.pop %v8937
    %v8954 = vtanh.pop %v8938
    %v8955 = vtanh.pop %v8939
    %v8956 = vtanh.pop %v8940
    %v8957 = vtanh.pop %v8941
    %v8958 = vtanh.pop %v8942
    %v8959 = vtanh.pop %v8943
    %v8960 = vtanh.pop %v8944
    %v8961 = vtanh.pop %v8945
    %v8962 = vtanh.pop %v8946
    %v8963 = vtanh.pop %v8947
    %v8964 = vtanh.pop %v8948
    %v8965 = vtanh.pop %v8949
    %v8966 = vtanh.pop %v8950
    %v8967 = vtanh.pop %v8951
    %v8968 = vmul.f32 %v8952, 0.5
    %v8969 = vmul.f32 %v8953, 0.5
    %v8970 = vmul.f32 %v8954, 0.5
    %v8971 = vmul.f32 %v8955, 0.5
    %v8972 = vmul.f32 %v8956, 0.5
    %v8973 = vmul.f32 %v8957, 0.5
    %v8974 = vmul.f32 %v8958, 0.5
    %v8975 = vmul.f32 %v8959, 0.5
    %v8976 = vmul.f32 %v8960, 0.5
    %v8977 = vmul.f32 %v8961, 0.5
    %v8978 = vmul.f32 %v8962, 0.5
    %v8979 = vmul.f32 %v8963, 0.5
    %v8980 = vmul.f32 %v8964, 0.5
    %v8981 = vmul.f32 %v8965, 0.5
    %v8982 = vmul.f32 %v8966, 0.5
    %v8983 = vmul.f32 %v8967, 0.5
    %v8984 = vadd.f32 %v8968, 0.5
    %v8985 = vadd.f32 %v8969, 0.5
    %v8986 = vadd.f32 %v8970, 0.5
    %v8987 = vadd.f32 %v8971, 0.5
    %v8988 = vadd.f32 %v8972, 0.5
    %v8989 = vadd.f32 %v8973, 0.5
    %v8990 = vadd.f32 %v8974, 0.5
    %v8991 = vadd.f32 %v8975, 0.5
    %v8992 = vadd.f32 %v8976, 0.5
    %v8993 = vadd.f32 %v8977, 0.5
    %v8994 = vadd.f32 %v8978, 0.5
    %v8995 = vadd.f32 %v8979, 0.5
    %v8996 = vadd.f32 %v8980, 0.5
    %v8997 = vadd.f32 %v8981, 0.5
    %v8998 = vadd.f32 %v8982, 0.5
    %v8999 = vadd.f32 %v8983, 0.5
    %v9016 = vrot.slane %v8653, 7
    %v9017 = vrot.slane %v8654, 7
    %v9018 = vrot.slane %v8655, 7
    %v9019 = vrot.slane %v8656, 7
    %v9020 = vrot.slane %v8657, 7
    %v9021 = vrot.slane %v8658, 7
    %v9022 = vrot.slane %v8659, 7
    %v9023 = vrot.slane %v8660, 7
    %v9024 = vrot.slane %v8661, 7
    %v9025 = vrot.slane %v8662, 7
    %v9026 = vrot.slane %v8663, 7
    %v9027 = vrot.slane %v8664, 7
    %v9028 = vrot.slane %v8665, 7
    %v9029 = vrot.slane %v8666, 7
    %v9030 = vrot.slane %v8667, 7
    %v9031 = vrot.slane %v8668, 7
    %v9048 = vmul.f32 %v8984, %v9016
    %v9049 = vmul.f32 %v8985, %v9017
    %v9050 = vmul.f32 %v8986, %v9018
    %v9051 = vmul.f32 %v8987, %v9019
    %v9052 = vmul.f32 %v8988, %v9020
    %v9053 = vmul.f32 %v8989, %v9021
    %v9054 = vmul.f32 %v8990, %v9022
    %v9055 = vmul.f32 %v8991, %v9023
    %v9056 = vmul.f32 %v8992, %v9024
    %v9057 = vmul.f32 %v8993, %v9025
    %v9058 = vmul.f32 %v8994, %v9026
    %v9059 = vmul.f32 %v8995, %v9027
    %v9060 = vmul.f32 %v8996, %v9028
    %v9061 = vmul.f32 %v8997, %v9029
    %v9062 = vmul.f32 %v8998, %v9030
    %v9063 = vmul.f32 %v8999, %v9031
    %9080 = vrot.lane.b32.xlu0 %v8952, 64
    %v9081 = vpop.permute.xlu0 %9080
    %9082 = vrot.lane.b32.xlu0 %v8953, 64
    %v9083 = vpop.permute.xlu0 %9082
    %9084 = vrot.lane.b32.xlu0 %v8954, 64
    %v9085 = vpop.permute.xlu0 %9084
    %9086 = vrot.lane.b32.xlu0 %v8955, 64
    %v9087 = vpop.permute.xlu0 %9086
    %9088 = vrot.lane.b32.xlu0 %v8956, 64
    %v9089 = vpop.permute.xlu0 %9088
    %9090 = vrot.lane.b32.xlu0 %v8957, 64
    %v9091 = vpop.permute.xlu0 %9090
    %9092 = vrot.lane.b32.xlu0 %v8958, 64
    %v9093 = vpop.permute.xlu0 %9092
    %9094 = vrot.lane.b32.xlu0 %v8959, 64
    %v9095 = vpop.permute.xlu0 %9094
    %9096 = vrot.lane.b32.xlu0 %v8960, 64
    %v9097 = vpop.permute.xlu0 %9096
    %9098 = vrot.lane.b32.xlu0 %v8961, 64
    %v9099 = vpop.permute.xlu0 %9098
    %9100 = vrot.lane.b32.xlu0 %v8962, 64
    %v9101 = vpop.permute.xlu0 %9100
    %9102 = vrot.lane.b32.xlu0 %v8963, 64
    %v9103 = vpop.permute.xlu0 %9102
    %9104 = vrot.lane.b32.xlu0 %v8964, 64
    %v9105 = vpop.permute.xlu0 %9104
    %9106 = vrot.lane.b32.xlu0 %v8965, 64
    %v9107 = vpop.permute.xlu0 %9106
    %9108 = vrot.lane.b32.xlu0 %v8966, 64
    %v9109 = vpop.permute.xlu0 %9108
    %9110 = vrot.lane.b32.xlu0 %v8967, 64
    %v9111 = vpop.permute.xlu0 %9110
    %v9128 = vmul.f32 %v8984, %v9081
    %v9129 = vmul.f32 %v8985, %v9083
    %v9130 = vmul.f32 %v8986, %v9085
    %v9131 = vmul.f32 %v8987, %v9087
    %v9132 = vmul.f32 %v8988, %v9089
    %v9133 = vmul.f32 %v8989, %v9091
    %v9134 = vmul.f32 %v8990, %v9093
    %v9135 = vmul.f32 %v8991, %v9095
    %v9136 = vmul.f32 %v8992, %v9097
    %v9137 = vmul.f32 %v8993, %v9099
    %v9138 = vmul.f32 %v8994, %v9101
    %v9139 = vmul.f32 %v8995, %v9103
    %v9140 = vmul.f32 %v8996, %v9105
    %v9141 = vmul.f32 %v8997, %v9107
    %v9142 = vmul.f32 %v8998, %v9109
    %v9143 = vmul.f32 %v8999, %v9111
    %9160 = vrot.lane.b32.xlu0 %v9128, 32
    %v9161 = vpop.permute.xlu0 %9160
    %9162 = vrot.lane.b32.xlu0 %v9129, 32
    %v9163 = vpop.permute.xlu0 %9162
    %9164 = vrot.lane.b32.xlu0 %v9130, 32
    %v9165 = vpop.permute.xlu0 %9164
    %9166 = vrot.lane.b32.xlu0 %v9131, 32
    %v9167 = vpop.permute.xlu0 %9166
    %9168 = vrot.lane.b32.xlu0 %v9132, 32
    %v9169 = vpop.permute.xlu0 %9168
    %9170 = vrot.lane.b32.xlu0 %v9133, 32
    %v9171 = vpop.permute.xlu0 %9170
    %9172 = vrot.lane.b32.xlu0 %v9134, 32
    %v9173 = vpop.permute.xlu0 %9172
    %9174 = vrot.lane.b32.xlu0 %v9135, 32
    %v9175 = vpop.permute.xlu0 %9174
    %9176 = vrot.lane.b32.xlu0 %v9136, 32
    %v9177 = vpop.permute.xlu0 %9176
    %9178 = vrot.lane.b32.xlu0 %v9137, 32
    %v9179 = vpop.permute.xlu0 %9178
    %9180 = vrot.lane.b32.xlu0 %v9138, 32
    %v9181 = vpop.permute.xlu0 %9180
    %9182 = vrot.lane.b32.xlu0 %v9139, 32
    %v9183 = vpop.permute.xlu0 %9182
    %9184 = vrot.lane.b32.xlu0 %v9140, 32
    %v9185 = vpop.permute.xlu0 %9184
    %9186 = vrot.lane.b32.xlu0 %v9141, 32
    %v9187 = vpop.permute.xlu0 %9186
    %9188 = vrot.lane.b32.xlu0 %v9142, 32
    %v9189 = vpop.permute.xlu0 %9188
    %9190 = vrot.lane.b32.xlu0 %v9143, 32
    %v9191 = vpop.permute.xlu0 %9190
    %v9208 = vadd.f32 %v9048, %v9161
    %v9209 = vadd.f32 %v9049, %v9163
    %v9210 = vadd.f32 %v9050, %v9165
    %v9211 = vadd.f32 %v9051, %v9167
    %v9212 = vadd.f32 %v9052, %v9169
    %v9213 = vadd.f32 %v9053, %v9171
    %v9214 = vadd.f32 %v9054, %v9173
    %v9215 = vadd.f32 %v9055, %v9175
    %v9216 = vadd.f32 %v9056, %v9177
    %v9217 = vadd.f32 %v9057, %v9179
    %v9218 = vadd.f32 %v9058, %v9181
    %v9219 = vadd.f32 %v9059, %v9183
    %v9220 = vadd.f32 %v9060, %v9185
    %v9221 = vadd.f32 %v9061, %v9187
    %v9222 = vadd.f32 %v9062, %v9189
    %v9223 = vadd.f32 %v9063, %v9191
    %v9224 = vtanh.pop %v9208
    %v9225 = vtanh.pop %v9209
    %v9226 = vtanh.pop %v9210
    %v9227 = vtanh.pop %v9211
    %v9228 = vtanh.pop %v9212
    %v9229 = vtanh.pop %v9213
    %v9230 = vtanh.pop %v9214
    %v9231 = vtanh.pop %v9215
    %v9232 = vtanh.pop %v9216
    %v9233 = vtanh.pop %v9217
    %v9234 = vtanh.pop %v9218
    %v9235 = vtanh.pop %v9219
    %v9236 = vtanh.pop %v9220
    %v9237 = vtanh.pop %v9221
    %v9238 = vtanh.pop %v9222
    %v9239 = vtanh.pop %v9223
    %9256 = vrot.lane.b32.xlu0 %v9224, 64
    %v9257 = vpop.permute.xlu0 %9256
    %9258 = vrot.lane.b32.xlu0 %v9225, 64
    %v9259 = vpop.permute.xlu0 %9258
    %9260 = vrot.lane.b32.xlu0 %v9226, 64
    %v9261 = vpop.permute.xlu0 %9260
    %9262 = vrot.lane.b32.xlu0 %v9227, 64
    %v9263 = vpop.permute.xlu0 %9262
    %9264 = vrot.lane.b32.xlu0 %v9228, 64
    %v9265 = vpop.permute.xlu0 %9264
    %9266 = vrot.lane.b32.xlu0 %v9229, 64
    %v9267 = vpop.permute.xlu0 %9266
    %9268 = vrot.lane.b32.xlu0 %v9230, 64
    %v9269 = vpop.permute.xlu0 %9268
    %9270 = vrot.lane.b32.xlu0 %v9231, 64
    %v9271 = vpop.permute.xlu0 %9270
    %9272 = vrot.lane.b32.xlu0 %v9232, 64
    %v9273 = vpop.permute.xlu0 %9272
    %9274 = vrot.lane.b32.xlu0 %v9233, 64
    %v9275 = vpop.permute.xlu0 %9274
    %9276 = vrot.lane.b32.xlu0 %v9234, 64
    %v9277 = vpop.permute.xlu0 %9276
    %9278 = vrot.lane.b32.xlu0 %v9235, 64
    %v9279 = vpop.permute.xlu0 %9278
    %9280 = vrot.lane.b32.xlu0 %v9236, 64
    %v9281 = vpop.permute.xlu0 %9280
    %9282 = vrot.lane.b32.xlu0 %v9237, 64
    %v9283 = vpop.permute.xlu0 %9282
    %9284 = vrot.lane.b32.xlu0 %v9238, 64
    %v9285 = vpop.permute.xlu0 %9284
    %9286 = vrot.lane.b32.xlu0 %v9239, 64
    %v9287 = vpop.permute.xlu0 %9286
    %v9304 = vmul.f32 %v8984, %v9257
    %v9305 = vmul.f32 %v8985, %v9259
    %v9306 = vmul.f32 %v8986, %v9261
    %v9307 = vmul.f32 %v8987, %v9263
    %v9308 = vmul.f32 %v8988, %v9265
    %v9309 = vmul.f32 %v8989, %v9267
    %v9310 = vmul.f32 %v8990, %v9269
    %v9311 = vmul.f32 %v8991, %v9271
    %v9312 = vmul.f32 %v8992, %v9273
    %v9313 = vmul.f32 %v8993, %v9275
    %v9314 = vmul.f32 %v8994, %v9277
    %v9315 = vmul.f32 %v8995, %v9279
    %v9316 = vmul.f32 %v8996, %v9281
    %v9317 = vmul.f32 %v8997, %v9283
    %v9318 = vmul.f32 %v8998, %v9285
    %v9319 = vmul.f32 %v8999, %v9287
    %v9336 = vrot.slane %v9304, 7
    %v9337 = vrot.slane %v9305, 6
    %v9338 = vsel %vm1030, %v9337, %v9336
    %v9339 = vrot.slane %v9306, 5
    %v9340 = vsel %vm1033, %v9339, %v9338
    %v9341 = vrot.slane %v9307, 4
    %v9342 = vsel %vm1036, %v9341, %v9340
    %v9343 = vrot.slane %v9308, 3
    %v9344 = vsel %vm1039, %v9343, %v9342
    %v9345 = vrot.slane %v9309, 2
    %v9346 = vsel %vm1042, %v9345, %v9344
    %v9347 = vrot.slane %v9310, 1
    %v9348 = vsel %vm1045, %v9347, %v9346
    %v9349 = vsel %vm1048, %v9311, %v9348
    %v9350 = vrot.slane %v9312, 7
    %v9351 = vrot.slane %v9313, 6
    %v9352 = vsel %vm1030, %v9351, %v9350
    %v9353 = vrot.slane %v9314, 5
    %v9354 = vsel %vm1033, %v9353, %v9352
    %v9355 = vrot.slane %v9315, 4
    %v9356 = vsel %vm1036, %v9355, %v9354
    %v9357 = vrot.slane %v9316, 3
    %v9358 = vsel %vm1039, %v9357, %v9356
    %v9359 = vrot.slane %v9317, 2
    %v9360 = vsel %vm1042, %v9359, %v9358
    %v9361 = vrot.slane %v9318, 1
    %v9362 = vsel %vm1045, %v9361, %v9360
    %v9363 = vsel %vm1048, %v9319, %v9362
    %9366 = vst.msk [vmem:[#allocation2 + $0x18] sm:$0xff] %vm2729, %v9349
    %9367 = vst.msk [vmem:[#allocation2 + $0x38] sm:$0xff] %vm2729, %v9363
    %v9368 = vrot.slane %v9305, 7
    %v9369 = vrot.slane %v9306, 6
    %v9370 = vsel %vm1030, %v9369, %v9368
    %v9371 = vrot.slane %v9307, 5
    %v9372 = vsel %vm1033, %v9371, %v9370
    %v9373 = vrot.slane %v9308, 4
    %v9374 = vsel %vm1036, %v9373, %v9372
    %v9375 = vrot.slane %v9309, 3
    %v9376 = vsel %vm1039, %v9375, %v9374
    %v9377 = vrot.slane %v9310, 2
    %v9378 = vsel %vm1042, %v9377, %v9376
    %v9379 = vrot.slane %v9311, 1
    %v9380 = vsel %vm1045, %v9379, %v9378
    %v9381 = vsel %vm1048, %v9312, %v9380
    %v9382 = vrot.slane %v9313, 7
    %v9383 = vrot.slane %v9314, 6
    %v9384 = vsel %vm1030, %v9383, %v9382
    %v9385 = vrot.slane %v9315, 5
    %v9386 = vsel %vm1033, %v9385, %v9384
    %v9387 = vrot.slane %v9316, 4
    %v9388 = vsel %vm1036, %v9387, %v9386
    %v9389 = vrot.slane %v9317, 3
    %v9390 = vsel %vm1039, %v9389, %v9388
    %v9391 = vrot.slane %v9318, 2
    %v9392 = vsel %vm1042, %v9391, %v9390
    %v9393 = vrot.slane %v9319, 1
    %v9394 = vsel %vm1045, %v9393, %v9392
    %9395 = vrot.lane.b32.xlu0 %v9304, 32
    %v9396 = vpop.permute.xlu0 %9395
    %9397 = vrot.lane.b32.xlu0 %v9381, 32
    %v9398 = vpop.permute.xlu0 %9397
    %9399 = vrot.lane.b32.xlu0 %v9394, 32
    %v9400 = vpop.permute.xlu0 %9399
    %vm9404 = vcmask 261127
    %9405 = vst.msk [vmem:[#allocation4 - $0x7] sm:$0x80] %vm9404, %v9396
    %9406 = vst.msk [vmem:[#allocation4 + $0x1] sm:$0xff] %vm416, %v9398
    %vm9407 = vcmask 260096
    %9408 = vst.msk [vmem:[#allocation4 + $0x9] sm:$0x7f] %vm9407, %v9400
    %v9425 = vrot.slane %v9209, 7
    %v9426 = vrot.slane %v9210, 6
    %v9427 = vsel %vm1030, %v9426, %v9425
    %v9428 = vrot.slane %v9211, 5
    %v9429 = vsel %vm1033, %v9428, %v9427
    %v9430 = vrot.slane %v9212, 4
    %v9431 = vsel %vm1036, %v9430, %v9429
    %v9432 = vrot.slane %v9213, 3
    %v9433 = vsel %vm1039, %v9432, %v9431
    %v9434 = vrot.slane %v9214, 2
    %v9435 = vsel %vm1042, %v9434, %v9433
    %v9436 = vrot.slane %v9215, 1
    %v9437 = vsel %vm1045, %v9436, %v9435
    %v9438 = vsel %vm1048, %v9216, %v9437
    %v9439 = vrot.slane %v9217, 7
    %v9440 = vrot.slane %v9218, 6
    %v9441 = vsel %vm1030, %v9440, %v9439
    %v9442 = vrot.slane %v9219, 5
    %v9443 = vsel %vm1033, %v9442, %v9441
    %v9444 = vrot.slane %v9220, 4
    %v9445 = vsel %vm1036, %v9444, %v9443
    %v9446 = vrot.slane %v9221, 3
    %v9447 = vsel %vm1039, %v9446, %v9445
    %v9448 = vrot.slane %v9222, 2
    %v9449 = vsel %vm1042, %v9448, %v9447
    %v9450 = vrot.slane %v9223, 1
    %v9451 = vsel %vm1045, %v9450, %v9449
    %9452 = vrot.lane.b32.xlu0 %v9208, 96
    %v9453 = vpop.permute.xlu0 %9452
    %9454 = vrot.lane.b32.xlu0 %v9438, 96
    %v9455 = vpop.permute.xlu0 %9454
    %9456 = vrot.lane.b32.xlu0 %v9451, 96
    %v9457 = vpop.permute.xlu0 %9456
    %9461 = vst.msk [vmem:[#allocation6 - $0x7] sm:$0x80] %vm9404, %v9453
    %9462 = vst.msk [vmem:[#allocation6 + $0x1] sm:$0xff] %vm416, %v9455
    %9463 = vst.msk [vmem:[#allocation6 + $0x9] sm:$0x7f] %vm9407, %v9457
    // Predicated region
    $region34: #{tpu_custom_call.1} parent=1 // pred_check
      _
    $region35: #{tpu_custom_call.1} parent=1 // pred_check_branch
      %9465 = sbr.rel (0) target = $region37
    $region36: #{tpu_custom_call.1} parent=1 // pred_region
      %s9467 = ssub.s32 1024, 1024
      %9468 = vsyncadd [#allocation3], %s9467
      %s9469 = sshll.u32 [#allocation2], 4
      %s9470 = int_to_ptr.vmem [resolvable:$true] %s9469
      %9475 = dma.vmem_to_hbm [thread:$0]  %s9470, 1024, %s7, [#allocation3], 512, 512, 32
    $region37: #{tpu_custom_call.1} parent=1 // pred_fallthru
      _
    // Predicated region
    $region38: #{tpu_custom_call.1} parent=1 // pred_check
      _
    $region39: #{tpu_custom_call.1} parent=1 // pred_check_branch
      %9477 = sbr.rel (0) target = $region41
    $region40: #{tpu_custom_call.1} parent=1 // pred_region
      %s9479 = ssub.s32 256, 256
      %9480 = vsyncadd [#allocation5], %s9479
      %s9481 = sshll.u32 [#allocation4], 4
      %s9482 = int_to_ptr.vmem [resolvable:$true] %s9481
      %9487 = dma.vmem_to_hbm [thread:$0]  %s9482, 256, %s8, [#allocation5], 128, 128, 8
    $region41: #{tpu_custom_call.1} parent=1 // pred_fallthru
      _
    // Predicated region
    $region42: #{tpu_custom_call.1} parent=1 // pred_check
      _
    $region43: #{tpu_custom_call.1} parent=1 // pred_check_branch
      %9489 = sbr.rel (0) target = $region45
    $region44: #{tpu_custom_call.1} parent=1 // pred_region
      %s9491 = ssub.s32 256, 256
      %9492 = vsyncadd [#allocation5], %s9491
      %s9493 = sshll.u32 [#allocation6], 4
      %s9494 = int_to_ptr.vmem [resolvable:$true] %s9493
      %9499 = dma.vmem_to_hbm [thread:$0]  %s9494, 256, %s9, [#allocation5], 128, 128, 8
    $region45: #{tpu_custom_call.1} parent=1 // pred_fallthru
      _
    // Predicated region
    $region46: #{tpu_custom_call.1} parent=1 // pred_check
      _
    $region47: #{tpu_custom_call.1} parent=1 // pred_check_branch
      %9501 = sbr.rel (0) target = $region49
    $region48: #{tpu_custom_call.1} parent=1 // pred_region
      %9502 = dma.done [#allocation3], 1024
    $region49: #{tpu_custom_call.1} parent=1 // pred_fallthru
      _
    // Predicated region
    $region50: #{tpu_custom_call.1} parent=1 // pred_check
      _
    $region51: #{tpu_custom_call.1} parent=1 // pred_check_branch
      %9504 = sbr.rel (0) target = $region53
    $region52: #{tpu_custom_call.1} parent=1 // pred_region
      %9505 = dma.done [#allocation5], 256
    $region53: #{tpu_custom_call.1} parent=1 // pred_fallthru
      _
    // Predicated region
    $region54: #{tpu_custom_call.1} parent=1 // pred_check
      _
    $region55: #{tpu_custom_call.1} parent=1 // pred_check_branch
      %9507 = sbr.rel (0) target = $region57
    $region56: #{tpu_custom_call.1} parent=1 // pred_region
      %9508 = dma.done [#allocation5], 256
    $region57: #{tpu_custom_call.1} parent=1 // pred_fallthru
      _
    %9509 = vsyncpa [#allocation3], 1
    %9510 = vsyncpa [#allocation5], 1

</llo_original>
